<compile_context>
chip_gen: v7x
topology: tpu7x:2x2x1
jax: 0.10.0
libtpu: 0.0.40
codegen_flags: <defaults>
</compile_context>

<pallas_src>
import math
import numpy as np

import jax
import jax.numpy as jnp
from jax import lax
from jax.experimental import pallas as pl
from jax.experimental.pallas import tpu as pltpu

# ----------------------------------------------------------------------------
# Config (small synthetic sizes)
# ----------------------------------------------------------------------------
REPR_SIZE = 128
NUM_VERBS = 8
HIDDEN = 256
HUMAN_IDX = 0
N_HEADS = 8
HEAD_DIM = HIDDEN // N_HEADS
SP_PAD = 128                 # 36-d spatial feature zero-padded to a full lane width
MMF_HID_PAD = 256            # int(128*1.5)=192 zero-padded to a full lane width
VMEM_LIMIT = 32 * 1024 * 1024


def _next_pow2(n):
    return 1 if n <= 1 else 1 << (int(n) - 1).bit_length()


# ----------------------------------------------------------------------------
# Shared kernel helpers
# ----------------------------------------------------------------------------
def _layer_norm(z, g, b, eps=1e-5):
    m = jnp.mean(z, axis=-1, keepdims=True)
    v = jnp.mean((z - m) ** 2, axis=-1, keepdims=True)
    return (z - m) * jax.lax.rsqrt(v + eps) * g + b


# ----------------------------------------------------------------------------
# Kernel 1: fused ref-anchor head + 2-layer transformer encoder.
# Grid = (num_images,); weights have constant block index -> VMEM-resident.
# ----------------------------------------------------------------------------
def _token_kernel(x_ref, pos_ref, kbias_ref,
                  ref_w1, ref_b1, ref_w2, ref_b2,
                  wp, bp, wq, bq, wk, bk, wv, bv, wo, bo,
                  ln1_g, ln1_b, wf1, bf1, wf2, bf2, ln2_g, ln2_b,
                  enc_out_ref, ref_out_ref):
    bf16 = jnp.bfloat16
    f32 = jnp.float32
    x = x_ref[...]                      # (n_pad, 256) f32 residual stream
    pos = pos_ref[...]                  # (n_pad, 512) bf16
    kbias = kbias_ref[...]              # (1, n_pad) f32, -1e9 on padded keys

    # --- ref_anchor head (output padded to 128 lanes; caller slices [..., :2]) ---
    h = jnp.dot(x.astype(bf16), ref_w1[...], preferred_element_type=f32) + ref_b1[...]
    h = jnp.maximum(h, 0.0)
    r = jnp.dot(h.astype(bf16), ref_w2[...], preferred_element_type=f32) + ref_b2[...]
    ref_out_ref[...] = jax.nn.sigmoid(r)

    # --- 2 encoder layers; x never leaves VMEM between layers ---
    # TODO(synk): exact PViC TransformerEncoder definition was not provided; this
    # is a standard post-norm MHA+FFN layer with q/k conditioned on the 512-d
    # box positional embedding (projected to 256).
    scale = 1.0 / math.sqrt(HEAD_DIM)
    for l in range(2):
        p_l = jnp.dot(pos, wp[l], preferred_element_type=f32) + bp[l]
        qk_in = (x + p_l).astype(bf16)
        q = jnp.dot(qk_in, wq[l], preferred_element_type=f32) + bq[l]
        k = jnp.dot(qk_in, wk[l], preferred_element_type=f32) + bk[l]
        v = jnp.dot(x.astype(bf16), wv[l], preferred_element_type=f32) + bv[l]
        wo_l = wo[l]                                     # (256, 256) bf16

        # Per-head attention on static 32-lane slices: no transposes / reshapes,
        # output projection split-summed per head (no lane concat).
        attn = jnp.zeros_like(x)
        for hd in range(N_HEADS):
            lo = hd * HEAD_DIM
            qh = q[:, lo:lo + HEAD_DIM].astype(bf16)
            kh = k[:, lo:lo + HEAD_DIM].astype(bf16)
            vh = v[:, lo:lo + HEAD_DIM].astype(bf16)
            s = lax.dot_general(qh, kh, (((1,), (1,)), ((), ())),
                                preferred_element_type=f32) * scale
            a = jax.nn.softmax(s + kbias, axis=-1)       # f32
            ctx = jnp.dot(a.astype(bf16), vh, preferred_element_type=f32)
            attn = attn + jnp.dot(ctx.astype(bf16), wo_l[lo:lo + HEAD_DIM, :],
                                  preferred_element_type=f32)
        attn = attn + bo[l]

        x = _layer_norm(x + attn, ln1_g[l], ln1_b[l])
        f = jnp.maximum(jnp.dot(x.astype(bf16), wf1[l], preferred_element_type=f32) + bf1[l], 0.0)
        f = jnp.dot(f.astype(bf16), wf2[l], preferred_element_type=f32) + bf2[l]
        x = _layer_norm(x + f, ln2_g[l], ln2_b[l])

    enc_out_ref[...] = x


def _token_pallas(params, x, pos_bf16, kbias):
    """x (B,n_pad,256) f32, pos (B,n_pad,512) bf16, kbias (B,1,n_pad) f32."""
    B, n_pad, _ = x.shape
    e = params['enc']
    weights = [params['ref_w1'], params['ref_b1'], params['ref_w2p'], params['ref_b2p'],
               e['wp'], e['bp'], e['wq'], e['bq'], e['wk'], e['bk'],
               e['wv'], e['bv'], e['wo'], e['bo'],
               e['ln1_g'], e['ln1_b'], e['wf1'], e['bf1'], e['wf2'], e['bf2'],
               e['ln2_g'], e['ln2_b']]
    in_specs = ([pl.BlockSpec((None, n_pad, HIDDEN), lambda b: (b, 0, 0)),
                 pl.BlockSpec((None, n_pad, 2 * HIDDEN), lambda b: (b, 0, 0)),
                 pl.BlockSpec((None, 1, n_pad), lambda b: (b, 0, 0))]
                + [pl.BlockSpec(w.shape, lambda b, nd=w.ndim: (0,) * nd) for w in weights])
    out_specs = (pl.BlockSpec((None, n_pad, HIDDEN), lambda b: (b, 0, 0)),
                 pl.BlockSpec((None, n_pad, 128), lambda b: (b, 0, 0)))
    out_shape = (jax.ShapeDtypeStruct((B, n_pad, HIDDEN), jnp.float32),
                 jax.ShapeDtypeStruct((B, n_pad, 128), jnp.float32))
    return pl.pallas_call(
        _token_kernel,
        out_shape=out_shape,
        grid=(B,),
        in_specs=in_specs,
        out_specs=out_specs,
        compiler_params=pltpu.CompilerParams(
            dimension_semantics=("parallel",),           # images shard across v7x's 2 TCs
            vmem_limit_bytes=VMEM_LIMIT),
    )(x, pos_bf16, kbias, *weights)


# ----------------------------------------------------------------------------
# Kernel 2: fused spatial head + MultiModalFusion over all kept pairs (tiled)
# ----------------------------------------------------------------------------
def _pairs_kernel(sp_ref, ex_ref, ey_ref,
                  sp_w1, sp_b1, sp_w2, sp_b2, sp_w3, sp_b3,
                  fc1_wx, fc1_wy, fc1_b, fc2_w, fc2_b,
                  ln1_g, ln1_b, ln2_g, ln2_b,
                  m1_wx, m1_wy, m1_b, m2_w, m2_b,
                  o_ref):
    bf16 = jnp.bfloat16
    f32 = jnp.float32
    sp = sp_ref[...]                    # (T, 128) bf16 (36 real lanes, rest zero)
    ex = ex_ref[...]                    # (T, 256) bf16
    ey = ey_ref[...]                    # (T, 256) bf16

    # spatial head: 36(->128 pad) -> 128 -> 256 -> repr, ReLU after each
    s = jnp.maximum(jnp.dot(sp, sp_w1[...], preferred_element_type=f32) + sp_b1[...], 0.0)
    s = jnp.maximum(jnp.dot(s.astype(bf16), sp_w2[...], preferred_element_type=f32) + sp_b2[...], 0.0)
    s = jnp.maximum(jnp.dot(s.astype(bf16), sp_w3[...], preferred_element_type=f32) + sp_b3[...], 0.0)

    # MMF: fc1(cat(ex,ey)) done as split matmuls (no lane concat); fc2 on spatial
    x = (jnp.dot(ex, fc1_wx[...], preferred_element_type=f32)
         + jnp.dot(ey, fc1_wy[...], preferred_element_type=f32) + fc1_b[...])
    x = _layer_norm(x, ln1_g[...], ln1_b[...])
    y = jnp.dot(s.astype(bf16), fc2_w[...], preferred_element_type=f32) + fc2_b[...]
    y = _layer_norm(y, ln2_g[...], ln2_b[...])

    xr = jnp.maximum(x, 0.0).astype(bf16)
    yr = jnp.maximum(y, 0.0).astype(bf16)
    # hidden padded 192 -> 256 (padded lanes are exact zeros, see init_params)
    z = jnp.maximum(jnp.dot(xr, m1_wx[...], preferred_element_type=f32)
                    + jnp.dot(yr, m1_wy[...], preferred_element_type=f32) + m1_b[...], 0.0)
    z = jnp.maximum(jnp.dot(z.astype(bf16), m2_w[...], preferred_element_type=f32) + m2_b[...], 0.0)
    o_ref[...] = z


def _pair_tile(p_pad):
    # >=2 grid steps once p_pad > 128 (so v7x can shard tiles across both TCs),
    # tile capped at 1024 (large MXU M on v5e/v6e, per-tile live set < 1 MB).
    if p_pad <= 128:
        return p_pad
    return min(max(128, p_pad // 2), 1024)


def _pairs_pallas(params, sp, ex, ey):
    """sp (p_pad,128) bf16, ex/ey (p_pad,256) bf16 -> (p_pad, repr) f32."""
    p_pad = sp.shape[0]
    tile = _pair_tile(p_pad)
    weights = [params[k] for k in (
        'sp_w1', 'sp_b1', 'sp_w2', 'sp_b2', 'sp_w3', 'sp_b3',
        'fc1_wx', 'fc1_wy', 'fc1_b', 'fc2_w', 'fc2_b',
        'mmf_ln1_g', 'mmf_ln1_b', 'mmf_ln2_g', 'mmf_ln2_b',
        'm1_wx', 'm1_wy', 'm1_b', 'm2_w', 'm2_b')]
    in_specs = ([pl.BlockSpec((tile, SP_PAD), lambda i: (i, 0)),
                 pl.BlockSpec((tile, HIDDEN), lambda i: (i, 0)),
                 pl.BlockSpec((tile, HIDDEN), lambda i: (i, 0))]
                + [pl.BlockSpec(w.shape, lambda i, nd=w.ndim: (0,) * nd) for w in weights])
    return pl.pallas_call(
        _pairs_kernel,
        out_shape=jax.ShapeDtypeStruct((p_pad, REPR_SIZE), jnp.float32),
        grid=(p_pad // tile,),
        in_specs=in_specs,
        out_specs=pl.BlockSpec((tile, REPR_SIZE), lambda i: (i, 0)),
        compiler_params=pltpu.CompilerParams(
            dimension_semantics=("parallel",),
            vmem_limit_bytes=VMEM_LIMIT),
    )(sp, ex, ey, *weights)


# ----------------------------------------------------------------------------
# Plain-JAX glue (runs inside the two jitted stages below)
# ----------------------------------------------------------------------------
def compute_sinusoidal_pe(pos, temperature=20.0):
    # pos: (..., 2) -> (..., 256)   (y-embedding then x-embedding, PViC convention)
    scale = 2.0 * math.pi
    dim_t = jnp.arange(128, dtype=jnp.float32)
    dim_t = temperature ** (2.0 * jnp.floor(dim_t / 2.0) / 128.0)
    x_embed = pos[..., 0] * scale
    y_embed = pos[..., 1] * scale
    pos_x = x_embed[..., None] / dim_t
    pos_y = y_embed[..., None] / dim_t
    lead = pos.shape[:-1]
    pos_x = jnp.stack((jnp.sin(pos_x[..., 0::2]), jnp.cos(pos_x[..., 1::2])), axis=-1).reshape(lead + (-1,))
    pos_y = jnp.stack((jnp.sin(pos_y[..., 0::2]), jnp.cos(pos_y[..., 1::2])), axis=-1).reshape(lead + (-1,))
    return jnp.concatenate((pos_y, pos_x), axis=-1)


def _elementwise_iou(b1, b2):
    lt = jnp.maximum(b1[:, :2], b2[:, :2])
    rb = jnp.minimum(b1[:, 2:], b2[:, 2:])
    wh = jnp.clip(rb - lt, 0.0)
    inter = wh[:, 0] * wh[:, 1]
    a1 = (b1[:, 2] - b1[:, 0]) * (b1[:, 3] - b1[:, 1])
    a2 = (b2[:, 2] - b2[:, 0]) * (b2[:, 3] - b2[:, 1])
    return inter / (a1 + a2 - inter)


def compute_spatial_encodings(b1, b2, hw, eps=1e-10):
    # 36-d pairwise spatial features (UPT convention); hw is per-pair (h, w)
    h = hw[:, 0]; w = hw[:, 1]
    c1_x = (b1[:, 0] + b1[:, 2]) / 2; c1_y = (b1[:, 1] + b1[:, 3]) / 2
    c2_x = (b2[:, 0] + b2[:, 2]) / 2; c2_y = (b2[:, 1] + b2[:, 3]) / 2
    b1_w = b1[:, 2] - b1[:, 0]; b1_h = b1[:, 3] - b1[:, 1]
    b2_w = b2[:, 2] - b2[:, 0]; b2_h = b2[:, 3] - b2[:, 1]
    d_x = jnp.abs(c2_x - c1_x) / (b1_w + eps)
    d_y = jnp.abs(c2_y - c1_y) / (b1_h + eps)
    iou = _elementwise_iou(b1, b2)
    f = jnp.stack([
        c1_x / w, c1_y / h, c2_x / w, c2_y / h,
        b1_w / w, b1_h / h, b2_w / w, b2_h / h,
        b1_w * b1_h / (h * w), b2_w * b2_h / (h * w),
        b2_w * b2_h / (b1_w * b1_h + eps),
        b1_w / (b1_h + eps), b2_w / (b2_h + eps),
        iou,
        (c2_x > c1_x).astype(jnp.float32) * d_x,
        (c2_x < c1_x).astype(jnp.float32) * d_x,
        (c2_y > c1_y).astype(jnp.float32) * d_y,
        (c2_y < c1_y).astype(jnp.float32) * d_y,
    ], axis=1)
    return jnp.concatenate([f, jnp.log(f + eps)], axis=1)


# ----------------------------------------------------------------------------
# Jitted device stages (exactly two device dispatches per batch)
# ----------------------------------------------------------------------------
def _token_stage_impl(params, boxes_pad, embeds_pad, sizes, kbias):
    """boxes (B,n_pad,4), embeds (B,n_pad,256), sizes (B,2)=[h,w], kbias (B,1,n_pad)."""
    whwh = jnp.stack([sizes[:, 1], sizes[:, 0], sizes[:, 1], sizes[:, 0]], axis=-1)
    bx_norm = boxes_pad / whwh[:, None, :]
    bx_c = (bx_norm[..., :2] + bx_norm[..., 2:]) / 2.0
    b_wh = bx_norm[..., 2:] - bx_norm[..., :2]
    c_pe = compute_sinusoidal_pe(bx_c, 20.0)                 # (B, n_pad, 256)
    wh_pe = compute_sinusoidal_pe(b_wh, 20.0)
    box_pe = jnp.concatenate([c_pe, wh_pe], axis=-1)         # (B, n_pad, 512)

    enc, ref_pad = _token_pallas(params, embeds_pad, box_pe.astype(jnp.bfloat16), kbias)
    ref_hw = ref_pad[..., :2]
    # TODO(synk): matches reference exactly — divides by b_wh with no epsilon.
    c_pe = c_pe.at[..., :128].multiply((ref_hw[..., 1] / b_wh[..., 1])[..., None])
    c_pe = c_pe.at[..., 128:].multiply((ref_hw[..., 0] / b_wh[..., 0])[..., None])
    return enc, box_pe, c_pe


_token_stage = jax.jit(_token_stage_impl)


def _pairs_stage_impl(params, enc, box_pe, c_pe, b1, b2, hw_pair, hx, hy):
    """enc (B,n_pad,256), b1/b2 (p_pad,4), hw_pair (p_pad,2), hx/hy flat token ids."""
    B, n_pad, _ = enc.shape
    enc_flat = enc.reshape(B * n_pad, HIDDEN)
    ex = jnp.take(enc_flat, hx, axis=0).astype(jnp.bfloat16)
    ey = jnp.take(enc_flat, hy, axis=0).astype(jnp.bfloat16)

    sp36 = compute_spatial_encodings(b1, b2, hw_pair)        # (p_pad, 36) f32
    sp = jnp.zeros((sp36.shape[0], SP_PAD), jnp.bfloat16).at[:, :36].set(sp36.astype(jnp.bfloat16))

    ho_q = _pairs_pallas(params, sp, ex, ey)

    c_flat = c_pe.reshape(B * n_pad, HIDDEN)
    bpe_flat = box_pe.reshape(B * n_pad, 2 * HIDDEN)
    pe_centre = jnp.concatenate([jnp.take(c_flat, hx, axis=0),
                                 jnp.take(c_flat, hy, axis=0)], axis=-1)
    pe_box = jnp.concatenate([jnp.take(bpe_flat, hx, axis=0),
                              jnp.take(bpe_flat, hy, axis=0)], axis=-1)
    return ho_q, pe_centre, pe_box


_pairs_stage = jax.jit(_pairs_stage_impl)


# ----------------------------------------------------------------------------
# Host-side (numpy) ports of the pose / prior utilities.
# MultiModalFusion.forward ignores the pose features; reproduced for fidelity.
# ----------------------------------------------------------------------------
def box_iou_np(b1, b2):
    a1 = (b1[:, 2] - b1[:, 0]) * (b1[:, 3] - b1[:, 1])
    a2 = (b2[:, 2] - b2[:, 0]) * (b2[:, 3] - b2[:, 1])
    lt = np.maximum(b1[:, None, :2], b2[None, :, :2])
    rb = np.minimum(b1[:, None, 2:], b2[None, :, 2:])
    wh = np.clip(rb - lt, 0, None)
    inter = wh[..., 0] * wh[..., 1]
    return inter / (a1[:, None] + a2[None, :] - inter)


def human_box_pose_matcher_np(human_boxes, human_poses):
    candidate = np.asarray(human_poses['candidate'], dtype=np.float32)
    subset = np.asarray(human_poses['subset'], dtype=np.float32)
    candidate_dict = {int(item[3]): item[:3] for item in candidate}
    pose_points, pose_xyxy = [], []
    match_ind = np.zeros(human_boxes.shape[0], dtype=np.int64)
    match_iou = np.zeros(human_boxes.shape[0], dtype=np.float32)
    if subset.shape[0] != 0:
        subset = subset[subset[:, -1] != 0]
    if subset.shape[0] == 0:
        return match_iou, match_ind, np.zeros([1, 18, 3], dtype=np.float32)
    for h in subset:
        pose = []
        for part in h[:18]:
            part = int(part)
            if part != -1:
                pose.append(np.asarray(candidate_dict[part], dtype=np.float32))
            else:
                pose.append(np.zeros(3, dtype=np.float32))
        pose = np.stack(pose)
        xy = pose[pose[:, 2] > 0][:, :2]
        pose_xyxy.append(np.array([xy[:, 0].min(), xy[:, 1].min(),
                                   xy[:, 0].max(), xy[:, 1].max()], dtype=np.float32))
        pose_points.append(pose)
    pose_xyxy = np.stack(pose_xyxy)
    iou = box_iou_np(np.asarray(human_boxes, dtype=np.float32), pose_xyxy)
    match_ind = iou.argmax(axis=1).astype(np.int64)
    match_iou = iou.max(axis=1).astype(np.float32)
    return match_iou, match_ind, np.stack(pose_points)


def pose_feature_np(pose_point, image_size):
    relations = [[0, 1], [1, 2], [1, 5], [2, 3], [3, 4], [5, 6], [6, 7],
                 [1, 8], [1, 11], [8, 9], [9, 10], [11, 12], [12, 13]]
    num_pose = pose_point.shape[0]
    h, w = float(image_size[0]), float(image_size[1])
    relative_xy = np.zeros((num_pose, 13), dtype=np.float32)
    angle = np.zeros((num_pose, 13), dtype=np.float32)
    for i, pose in enumerate(pose_point):
        for j, rel in enumerate(relations):
            rx = pose[rel[1]][0] - pose[rel[0]][0]
            ry = pose[rel[1]][1] - pose[rel[0]][1]
            ang = (math.atan2(ry, rx) + math.pi) / (2 * math.pi)
            relative_xy[i, j] = math.sqrt(abs(rx / w) ** 2 + abs(ry / h) ** 2)
            angle[i, j] = ang
    return np.concatenate([relative_xy[..., None], angle[..., None]], axis=-1)


def global_pose_feature_np(pose_point, image_size):
    num_pose = pose_point.shape[0]
    h, w = float(image_size[0]), float(image_size[1])
    re = np.zeros((num_pose, 18, 2), dtype=np.float32)
    re[:, :, 0] = pose_point[:, :, 0] / w
    re[:, :, 1] = pose_point[:, :, 1] / h
    return re


def compute_prior_scores_np(x, y, scores, labels, num_classes, is_training, obj_to_verb):
    n_pairs = len(x)
    prior_h = np.zeros((n_pairs, num_classes), dtype=np.float32)
    prior_o = np.zeros_like(prior_h)
    p = 1.0 if is_training else 2.8
    s_h = scores[x] ** p
    s_o = scores[y] ** p
    for i, obj in enumerate(labels[y]):
        for verb in obj_to_verb[int(obj)]:
            prior_h[i, verb] = s_h[i]
            prior_o[i, verb] = s_o[i]
    return np.stack([prior_h, prior_o], axis=1)   # (n_pairs, 2, num_verbs)


def check_human_instances(labels, human_idx):
    is_human = labels == human_idx
    n_h = int(is_human.sum())
    if not np.all(labels[:n_h] == human_idx):
        raise AssertionError('Human instances are not permuted to the top!')
    return n_h


# ----------------------------------------------------------------------------
# Parameter init (deterministic, synthetic).  Matmul weights stored bf16
# (accumulation stays f32); biases / LayerNorm params stay f32.
# ----------------------------------------------------------------------------
def _init_linear(key, d_in, d_out):
    w = jax.random.normal(key, (d_in, d_out), jnp.float32) * (1.0 / math.sqrt(d_in))
    b = jnp.zeros((1, d_out), jnp.float32)
    return w, b


def init_params(key, repr_size=REPR_SIZE):
    keys = jax.random.split(key, 32)
    it = iter(keys)
    f32, bf16 = jnp.float32, jnp.bfloat16
    p = {}

    # ref anchor head (256 -> 256 -> 2); last layer padded to 128 lanes
    w, b = _init_linear(next(it), 256, 256)
    p['ref_w1'], p['ref_b1'] = w.astype(bf16), b
    w, b = _init_linear(next(it), 256, 2)
    p['ref_w2p'] = jnp.zeros((256, 128), f32).at[:, :2].set(w).astype(bf16)
    p['ref_b2p'] = jnp.zeros((1, 128), f32).at[:, :2].set(b)

    # spatial head (36 -> 128 -> 256 -> repr); first layer zero-padded to 128 input lanes
    w, b = _init_linear(next(it), 36, 128)
    p['sp_w1'] = jnp.zeros((SP_PAD, 128), f32).at[:36].set(w).astype(bf16)
    p['sp_b1'] = b
    w, b = _init_linear(next(it), 128, 256); p['sp_w2'], p['sp_b2'] = w.astype(bf16), b
    w, b = _init_linear(next(it), 256, repr_size); p['sp_w3'], p['sp_b3'] = w.astype(bf16), b

    # TODO(synk): pos_head (Linear(512,256)+ReLU) is defined in __init__ but never
    # used in the reference forward pass; it is omitted here.

    # encoder: 2 layers stacked on a leading axis (single fused kernel)
    names = [('wp', 512, 256), ('wq', 256, 256), ('wk', 256, 256),
             ('wv', 256, 256), ('wo', 256, 256), ('wf1', 256, 512), ('wf2', 512, 256)]
    layers = {k: [] for k in ['wp', 'bp', 'wq', 'bq', 'wk', 'bk', 'wv', 'bv', 'wo', 'bo',
                              'ln1_g', 'ln1_b', 'wf1', 'bf1', 'wf2', 'bf2', 'ln2_g', 'ln2_b']}
    for _ in range(2):
        for name, din, dout in names:
            w, b = _init_linear(next(it), din, dout)
            layers[name].append(w.astype(bf16))
            layers['b' + name[1:]].append(b)
        layers['ln1_g'].append(jnp.ones((1, 256), f32)); layers['ln1_b'].append(jnp.zeros((1, 256), f32))
        layers['ln2_g'].append(jnp.ones((1, 256), f32)); layers['ln2_b'].append(jnp.zeros((1, 256), f32))
    p['enc'] = {k: jnp.stack(v, axis=0) for k, v in layers.items()}

    # MultiModalFusion; fc1 / mlp-1 split into x/y halves (no lane concat in-kernel),
    # hidden dim 192 zero-padded to 256 so the two hottest pair matmuls are lane-dense.
    hid = int(repr_size * 1.5)                      # 192
    w, b = _init_linear(next(it), 512, repr_size)
    p['fc1_wx'] = w[:256].astype(bf16); p['fc1_wy'] = w[256:].astype(bf16); p['fc1_b'] = b
    w, b = _init_linear(next(it), repr_size, repr_size)
    p['fc2_w'], p['fc2_b'] = w.astype(bf16), b
    p['mmf_ln1_g'] = jnp.ones((1, repr_size), f32); p['mmf_ln1_b'] = jnp.zeros((1, repr_size), f32)
    p['mmf_ln2_g'] = jnp.ones((1, repr_size), f32); p['mmf_ln2_b'] = jnp.zeros((1, repr_size), f32)
    w, b = _init_linear(next(it), 2 * repr_size, hid)
    p['m1_wx'] = jnp.zeros((repr_size, MMF_HID_PAD), f32).at[:, :hid].set(w[:repr_size]).astype(bf16)
    p['m1_wy'] = jnp.zeros((repr_size, MMF_HID_PAD), f32).at[:, :hid].set(w[repr_size:]).astype(bf16)
    p['m1_b'] = jnp.zeros((1, MMF_HID_PAD), f32).at[:, :hid].set(b)
    w, b = _init_linear(next(it), hid, repr_size)
    p['m2_w'] = jnp.zeros((MMF_HID_PAD, repr_size), f32).at[:hid].set(w).astype(bf16)
    p['m2_b'] = b
    return p


# ----------------------------------------------------------------------------
# Forward pass: 2 jitted device dispatches per batch + host numpy glue
# ----------------------------------------------------------------------------
def human_object_matcher_forward(params, region_props, poses, image_sizes,
                                 obj_to_verb, repr_size=REPR_SIZE,
                                 num_verbs=NUM_VERBS, human_idx=HUMAN_IDX,
                                 is_training=False):
    B = len(region_props)
    if B == 0:
        return [], [], [], [], []

    # --- host: per-image pair enumeration / human check ---
    ns, nhs, keeps = [], [], []
    for rp in region_props:
        labels = np.asarray(rp['labels'])
        nh = check_human_instances(labels, human_idx)
        n = int(np.asarray(rp['boxes']).shape[0])
        xg, yg = np.meshgrid(np.arange(n), np.arange(n), indexing='ij')
        keep = np.logical_and(np.logical_and(xg != yg, xg < nh), yg > nh - 1)
        xk, yk = np.nonzero(keep)
        ns.append(n); nhs.append(nh); keeps.append((xk, yk))

    n_max = max(ns) if ns else 1
    n_pad = max(16, int(math.ceil(max(n_max, 1) / 16.0)) * 16)   # bf16-tile friendly bucket

    # --- host: stack + pad token-stage inputs (one batched launch) ---
    boxes_pad = np.zeros((B, n_pad, 4), np.float32)
    embeds_pad = np.zeros((B, n_pad, HIDDEN), np.float32)
    kbias = np.full((B, 1, n_pad), -1e9, np.float32)
    sizes = np.zeros((B, 2), np.float32)
    for i, rp in enumerate(region_props):
        n = ns[i]
        if n > 0:
            boxes_pad[i, :n] = np.asarray(rp['boxes'], np.float32)
            embeds_pad[i, :n] = np.asarray(rp['hidden_states'], np.float32)
            kbias[i, 0, :n] = 0.0
        sizes[i] = np.asarray(image_sizes[i], np.float32)

    enc, box_pe, c_pe = _token_stage(params, jnp.asarray(boxes_pad), jnp.asarray(embeds_pad),
                                     jnp.asarray(sizes), jnp.asarray(kbias))

    # --- host: flatten all kept pairs across the batch for one pairs launch ---
    pair_counts = [len(k[0]) for k in keeps]
    total = int(sum(pair_counts))
    ho_q_all = pe_c_all = pe_b_all = None
    if total > 0:
        p_pad = max(128, _next_pow2(total))
        b1 = np.tile(np.array([0.0, 0.0, 1.0, 1.0], np.float32), (p_pad, 1))
        b2 = b1.copy()
        hw_pair = np.ones((p_pad, 2), np.float32)
        hx = np.zeros((p_pad,), np.int32)
        hy = np.zeros((p_pad,), np.int32)
        off = 0
        for i, rp in enumerate(region_props):
            xk, yk = keeps[i]
            m = len(xk)
            if m == 0:
                continue
            bx = np.asarray(rp['boxes'], np.float32)
            b1[off:off + m] = bx[xk]
            b2[off:off + m] = bx[yk]
            hw_pair[off:off + m] = np.asarray(image_sizes[i], np.float32)
            hx[off:off + m] = i * n_pad + xk
            hy[off:off + m] = i * n_pad + yk
            off += m
        ho_q_all, pe_c_all, pe_b_all = _pairs_stage(
            params, enc, box_pe, c_pe,
            jnp.asarray(b1), jnp.asarray(b2), jnp.asarray(hw_pair),
            jnp.asarray(hx), jnp.asarray(hy))

    # --- host: per-image assembly + pose / prior utilities ---
    ho_queries, paired_indices, prior_scores, object_types, positional_embeds = [], [], [], [], []
    off = 0
    for i, rp in enumerate(region_props):
        xk, yk = keeps[i]
        m = len(xk)
        if m == 0:
            ho_queries.append(jnp.zeros((0, repr_size), jnp.float32))
            paired_indices.append(jnp.zeros((0, 2), jnp.int32))
            prior_scores.append(jnp.zeros((0, 2, num_verbs), jnp.float32))
            object_types.append(jnp.zeros((0,), jnp.int32))
            positional_embeds.append({})
            continue

        scores = np.asarray(rp['scores'], np.float32)
        labels = np.asarray(rp['labels'], np.int64)

        # pose matching / features (host; unused by MultiModalFusion.forward)
        match_ious, match_inds, pose_points = human_box_pose_matcher_np(
            np.asarray(rp['boxes'], np.float32)[:nhs[i]], poses[i])
        human_to_pose_index = match_inds[xk]
        human_to_pose_iou = match_ious[xk]
        _human_to_pose_valid = (human_to_pose_iou != 0).astype(np.float32)
        hp_features = pose_feature_np(pose_points, np.asarray(image_sizes[i]))
        _local_pose = hp_features[human_to_pose_index]
        _global_pose = global_pose_feature_np(pose_points, np.asarray(image_sizes[i]))[human_to_pose_index]

        ho_queries.append(ho_q_all[off:off + m])
        paired_indices.append(jnp.stack([jnp.asarray(xk, jnp.int32),
                                         jnp.asarray(yk, jnp.int32)], axis=1))
        prior_scores.append(jnp.asarray(compute_prior_scores_np(
            xk, yk, scores, labels, num_verbs, is_training, obj_to_verb)))
        object_types.append(jnp.asarray(labels[yk].astype(np.int32)))
        positional_embeds.append({
            'centre': pe_c_all[off:off + m][:, None],
            'box': pe_b_all[off:off + m][:, None],
        })
        off += m
    return ho_queries, paired_indices, prior_scores, object_types, positional_embeds


# ----------------------------------------------------------------------------
# Demo
# ----------------------------------------------------------------------------
if __name__ == "__main__":
    key = jax.random.PRNGKey(0)
    pkey, dkey = jax.random.split(key)
    params = init_params(pkey, REPR_SIZE)

    obj_to_verb = [[0, 1], [2], [3, 4], [5], [6, 7]]   # 5 object classes -> verbs

    B, n, nh = 2, 6, 2
    H, W = 64.0, 80.0
    region_props, poses, image_sizes = [], [], []
    dkeys = jax.random.split(dkey, B)
    for b in range(B):
        kb = jax.random.split(dkeys[b], 4)
        xy1 = jax.random.uniform(kb[0], (n, 2), jnp.float32) * jnp.array([W * 0.5, H * 0.5])
        wh = jax.random.uniform(kb[1], (n, 2), jnp.float32) * jnp.array([W * 0.4, H * 0.4]) + 4.0
        boxes = jnp.concatenate([xy1, xy1 + wh], axis=1)
        scores = jax.random.uniform(kb[2], (n,), jnp.float32, minval=0.1, maxval=1.0)
        labels = np.array([0, 0, 1, 2, 3, 4], dtype=np.int64)   # 2 humans on top
        embeds = jax.random.normal(kb[3], (n, HIDDEN), jnp.float32)
        region_props.append({'boxes': np.asarray(boxes), 'scores': np.asarray(scores),
                             'labels': labels, 'hidden_states': np.asarray(embeds)})

        # synthetic OpenPose-style output: 18 keypoints inside the first human box
        bx = np.asarray(boxes[0])
        rng = np.random.RandomState(b)
        pts_x = rng.uniform(bx[0], bx[2], size=18)
        pts_y = rng.uniform(bx[1], bx[3], size=18)
        candidate = np.stack([pts_x, pts_y, np.full(18, 0.9), np.arange(18)], axis=1).astype(np.float32)
        subset = np.concatenate([np.arange(18, dtype=np.float32),
                                 np.array([18 * 0.9, 18.0], dtype=np.float32)])[None]
        poses.append({'candidate': candidate, 'subset': subset})
        image_sizes.append(np.array([H, W], dtype=np.float32))

    outs = human_object_matcher_forward(params, region_props, poses, image_sizes, obj_to_verb)
    ho_queries, paired_indices, prior_scores, object_types, positional_embeds = outs
    for q in ho_queries:
        jax.block_until_ready(q)
    for pe in positional_embeds:
        if pe:
            jax.block_until_ready(pe['centre'])
            jax.block_until_ready(pe['box'])
    print("KERNEL_OK")
</pallas_src>

<mosaic_0001>
module attributes {stable_mosaic.version = 11 : i64} {
  func.func @_token_kernel(%arg0: i32, %arg1: memref<1x16x256xf32, #tpu.memory_space<vmem>>, %arg2: memref<1x16x512xbf16, #tpu.memory_space<vmem>>, %arg3: memref<1x1x16xf32, #tpu.memory_space<vmem>>, %arg4: memref<256x256xbf16, #tpu.memory_space<vmem>>, %arg5: memref<1x256xf32, #tpu.memory_space<vmem>>, %arg6: memref<256x128xbf16, #tpu.memory_space<vmem>>, %arg7: memref<1x128xf32, #tpu.memory_space<vmem>>, %arg8: memref<2x512x256xbf16, #tpu.memory_space<vmem>>, %arg9: memref<2x1x256xf32, #tpu.memory_space<vmem>>, %arg10: memref<2x256x256xbf16, #tpu.memory_space<vmem>>, %arg11: memref<2x1x256xf32, #tpu.memory_space<vmem>>, %arg12: memref<2x256x256xbf16, #tpu.memory_space<vmem>>, %arg13: memref<2x1x256xf32, #tpu.memory_space<vmem>>, %arg14: memref<2x256x256xbf16, #tpu.memory_space<vmem>>, %arg15: memref<2x1x256xf32, #tpu.memory_space<vmem>>, %arg16: memref<2x256x256xbf16, #tpu.memory_space<vmem>>, %arg17: memref<2x1x256xf32, #tpu.memory_space<vmem>>, %arg18: memref<2x1x256xf32, #tpu.memory_space<vmem>>, %arg19: memref<2x1x256xf32, #tpu.memory_space<vmem>>, %arg20: memref<2x256x512xbf16, #tpu.memory_space<vmem>>, %arg21: memref<2x1x512xf32, #tpu.memory_space<vmem>>, %arg22: memref<2x512x256xbf16, #tpu.memory_space<vmem>>, %arg23: memref<2x1x256xf32, #tpu.memory_space<vmem>>, %arg24: memref<2x1x256xf32, #tpu.memory_space<vmem>>, %arg25: memref<2x1x256xf32, #tpu.memory_space<vmem>>, %arg26: memref<1x16x256xf32, #tpu.memory_space<vmem>>, %arg27: memref<1x16x128xf32, #tpu.memory_space<vmem>>) attributes {dimension_semantics = [#tpu.dimension_semantics<parallel>], iteration_bounds = array<i64: 2>, scalar_prefetch = 0 : i64, scratch_operands = 0 : i64, tpu.core_type = #tpu.core_type<tc>, window_params = [{transform_indices = @transform_0, window_bounds = array<i64: 1, 16, 256>}, {transform_indices = @transform_1, window_bounds = array<i64: 1, 16, 512>}, {transform_indices = @transform_2, window_bounds = array<i64: 1, 1, 16>}, {pipeline_mode = #tpu.pipeline_mode<synchronous>, transform_indices = @transform_3, window_bounds = array<i64: 256, 256>}, {pipeline_mode = #tpu.pipeline_mode<synchronous>, transform_indices = @transform_4, window_bounds = array<i64: 1, 256>}, {pipeline_mode = #tpu.pipeline_mode<synchronous>, transform_indices = @transform_5, window_bounds = array<i64: 256, 128>}, {pipeline_mode = #tpu.pipeline_mode<synchronous>, transform_indices = @transform_6, window_bounds = array<i64: 1, 128>}, {pipeline_mode = #tpu.pipeline_mode<synchronous>, transform_indices = @transform_7, window_bounds = array<i64: 2, 512, 256>}, {pipeline_mode = #tpu.pipeline_mode<synchronous>, transform_indices = @transform_8, window_bounds = array<i64: 2, 1, 256>}, {pipeline_mode = #tpu.pipeline_mode<synchronous>, transform_indices = @transform_9, window_bounds = array<i64: 2, 256, 256>}, {pipeline_mode = #tpu.pipeline_mode<synchronous>, transform_indices = @transform_10, window_bounds = array<i64: 2, 1, 256>}, {pipeline_mode = #tpu.pipeline_mode<synchronous>, transform_indices = @transform_11, window_bounds = array<i64: 2, 256, 256>}, {pipeline_mode = #tpu.pipeline_mode<synchronous>, transform_indices = @transform_12, window_bounds = array<i64: 2, 1, 256>}, {pipeline_mode = #tpu.pipeline_mode<synchronous>, transform_indices = @transform_13, window_bounds = array<i64: 2, 256, 256>}, {pipeline_mode = #tpu.pipeline_mode<synchronous>, transform_indices = @transform_14, window_bounds = array<i64: 2, 1, 256>}, {pipeline_mode = #tpu.pipeline_mode<synchronous>, transform_indices = @transform_15, window_bounds = array<i64: 2, 256, 256>}, {pipeline_mode = #tpu.pipeline_mode<synchronous>, transform_indices = @transform_16, window_bounds = array<i64: 2, 1, 256>}, {pipeline_mode = #tpu.pipeline_mode<synchronous>, transform_indices = @transform_17, window_bounds = array<i64: 2, 1, 256>}, {pipeline_mode = #tpu.pipeline_mode<synchronous>, transform_indices = @transform_18, window_bounds = array<i64: 2, 1, 256>}, {pipeline_mode = #tpu.pipeline_mode<synchronous>, transform_indices = @transform_19, window_bounds = array<i64: 2, 256, 512>}, {pipeline_mode = #tpu.pipeline_mode<synchronous>, transform_indices = @transform_20, window_bounds = array<i64: 2, 1, 512>}, {pipeline_mode = #tpu.pipeline_mode<synchronous>, transform_indices = @transform_21, window_bounds = array<i64: 2, 512, 256>}, {pipeline_mode = #tpu.pipeline_mode<synchronous>, transform_indices = @transform_22, window_bounds = array<i64: 2, 1, 256>}, {pipeline_mode = #tpu.pipeline_mode<synchronous>, transform_indices = @transform_23, window_bounds = array<i64: 2, 1, 256>}, {pipeline_mode = #tpu.pipeline_mode<synchronous>, transform_indices = @transform_24, window_bounds = array<i64: 2, 1, 256>}, {transform_indices = @transform_25, window_bounds = array<i64: 1, 16, 256>}, {transform_indices = @transform_26, window_bounds = array<i64: 1, 16, 128>}]} {
    %c0 = arith.constant 0 : index
    %c0_0 = arith.constant 0 : index
    %c0_1 = arith.constant 0 : index
    %0 = vector.load %arg1[%c0, %c0_0, %c0_1] : memref<1x16x256xf32, #tpu.memory_space<vmem>>, vector<1x16x256xf32>
    %1 = vector.shape_cast %0 : vector<1x16x256xf32> to vector<16x256xf32>
    %c0_2 = arith.constant 0 : index
    %c0_3 = arith.constant 0 : index
    %c0_4 = arith.constant 0 : index
    %2 = vector.load %arg2[%c0_2, %c0_3, %c0_4] : memref<1x16x512xbf16, #tpu.memory_space<vmem>>, vector<1x16x512xbf16>
    %3 = vector.shape_cast %2 : vector<1x16x512xbf16> to vector<16x512xbf16>
    %c0_5 = arith.constant 0 : index
    %c0_6 = arith.constant 0 : index
    %c0_7 = arith.constant 0 : index
    %4 = vector.load %arg3[%c0_5, %c0_6, %c0_7] : memref<1x1x16xf32, #tpu.memory_space<vmem>>, vector<1x1x16xf32>
    %5 = vector.shape_cast %4 : vector<1x1x16xf32> to vector<1x16xf32>
    %6 = arith.truncf %1 : vector<16x256xf32> to vector<16x256xbf16>
    %c0_8 = arith.constant 0 : index
    %c0_9 = arith.constant 0 : index
    %7 = vector.load %arg4[%c0_8, %c0_9] : memref<256x256xbf16, #tpu.memory_space<vmem>>, vector<256x256xbf16>
    %cst = arith.constant dense<0.000000e+00> : vector<16x256xf32>
    %8 = tpu.matmul %6, %7, %cst {dimension_numbers = #tpu.dot_dimension_numbers<[1], [0], [0], [1], [0, 0, 1, 1], [], []>} : vector<16x256xbf16>, vector<256x256xbf16>, vector<16x256xf32> -> vector<16x256xf32>
    %c0_10 = arith.constant 0 : index
    %c0_11 = arith.constant 0 : index
    %9 = vector.load %arg5[%c0_10, %c0_11] : memref<1x256xf32, #tpu.memory_space<vmem>>, vector<1x256xf32>
    %10 = vector.broadcast %9 : vector<1x256xf32> to vector<16x256xf32>
    %11 = arith.addf %8, %10 : vector<16x256xf32>
    %cst_12 = arith.constant 0.000000e+00 : f32
    %12 = vector.broadcast %cst_12 : f32 to vector<16x256xf32>
    %13 = arith.maximumf %11, %12 : vector<16x256xf32>
    %14 = arith.truncf %13 : vector<16x256xf32> to vector<16x256xbf16>
    %c0_13 = arith.constant 0 : index
    %c0_14 = arith.constant 0 : index
    %15 = vector.load %arg6[%c0_13, %c0_14] : memref<256x128xbf16, #tpu.memory_space<vmem>>, vector<256x128xbf16>
    %cst_15 = arith.constant dense<0.000000e+00> : vector<16x128xf32>
    %16 = tpu.matmul %14, %15, %cst_15 {dimension_numbers = #tpu.dot_dimension_numbers<[1], [0], [0], [1], [0, 0, 1, 1], [], []>} : vector<16x256xbf16>, vector<256x128xbf16>, vector<16x128xf32> -> vector<16x128xf32>
    %c0_16 = arith.constant 0 : index
    %c0_17 = arith.constant 0 : index
    %17 = vector.load %arg7[%c0_16, %c0_17] : memref<1x128xf32, #tpu.memory_space<vmem>>, vector<1x128xf32>
    %18 = vector.broadcast %17 : vector<1x128xf32> to vector<16x128xf32>
    %19 = arith.addf %16, %18 : vector<16x128xf32>
    %20 = arith.negf %19 : vector<16x128xf32>
    %21 = math.exp %20 : vector<16x128xf32>
    %cst_18 = arith.constant 1.000000e+00 : f32
    %22 = vector.broadcast %cst_18 : f32 to vector<16x128xf32>
    %23 = arith.addf %22, %21 : vector<16x128xf32>
    %24 = arith.divf %22, %23 : vector<16x128xf32>
    %c0_19 = arith.constant 0 : index
    %c0_20 = arith.constant 0 : index
    %c0_21 = arith.constant 0 : index
    %25 = vector.load %arg27[%c0_19, %c0_20, %c0_21] : memref<1x16x128xf32, #tpu.memory_space<vmem>>, vector<1x16x128xf32>
    %26 = vector.shape_cast %25 : vector<1x16x128xf32> to vector<16x128xf32>
    %27 = vector.shape_cast %24 : vector<16x128xf32> to vector<1x16x128xf32>
    tpu.vector_store %arg27[%c0_19, %c0_20, %c0_21], %27 {strides = array<i32>} : memref<1x16x128xf32, #tpu.memory_space<vmem>>, vector<1x16x128xf32>,
    %c0_22 = arith.constant 0 : index
    %c0_23 = arith.constant 0 : index
    %c0_24 = arith.constant 0 : index
    %28 = vector.load %arg8[%c0_22, %c0_23, %c0_24] : memref<2x512x256xbf16, #tpu.memory_space<vmem>>, vector<1x512x256xbf16>
    %29 = vector.shape_cast %28 : vector<1x512x256xbf16> to vector<512x256xbf16>
    %cst_25 = arith.constant dense<0.000000e+00> : vector<16x256xf32>
    %30 = tpu.matmul %3, %29, %cst_25 {dimension_numbers = #tpu.dot_dimension_numbers<[1], [0], [0], [1], [0, 0, 1, 1], [], []>} : vector<16x512xbf16>, vector<512x256xbf16>, vector<16x256xf32> -> vector<16x256xf32>
    %c0_26 = arith.constant 0 : index
    %c0_27 = arith.constant 0 : index
    %c0_28 = arith.constant 0 : index
    %31 = vector.load %arg9[%c0_26, %c0_27, %c0_28] : memref<2x1x256xf32, #tpu.memory_space<vmem>>, vector<1x1x256xf32>
    %32 = vector.shape_cast %31 : vector<1x1x256xf32> to vector<1x256xf32>
    %33 = vector.broadcast %32 : vector<1x256xf32> to vector<16x256xf32>
    %34 = arith.addf %30, %33 : vector<16x256xf32>
    %35 = arith.addf %1, %34 : vector<16x256xf32>
    %36 = arith.truncf %35 : vector<16x256xf32> to vector<16x256xbf16>
    %c0_29 = arith.constant 0 : index
    %c0_30 = arith.constant 0 : index
    %c0_31 = arith.constant 0 : index
    %37 = vector.load %arg10[%c0_29, %c0_30, %c0_31] : memref<2x256x256xbf16, #tpu.memory_space<vmem>>, vector<1x256x256xbf16>
    %38 = vector.shape_cast %37 : vector<1x256x256xbf16> to vector<256x256xbf16>
    %cst_32 = arith.constant dense<0.000000e+00> : vector<16x256xf32>
    %39 = tpu.matmul %36, %38, %cst_32 {dimension_numbers = #tpu.dot_dimension_numbers<[1], [0], [0], [1], [0, 0, 1, 1], [], []>} : vector<16x256xbf16>, vector<256x256xbf16>, vector<16x256xf32> -> vector<16x256xf32>
    %c0_33 = arith.constant 0 : index
    %c0_34 = arith.constant 0 : index
    %c0_35 = arith.constant 0 : index
    %40 = vector.load %arg11[%c0_33, %c0_34, %c0_35] : memref<2x1x256xf32, #tpu.memory_space<vmem>>, vector<1x1x256xf32>
    %41 = vector.shape_cast %40 : vector<1x1x256xf32> to vector<1x256xf32>
    %42 = vector.broadcast %41 : vector<1x256xf32> to vector<16x256xf32>
    %43 = arith.addf %39, %42 : vector<16x256xf32>
    %c0_36 = arith.constant 0 : index
    %c0_37 = arith.constant 0 : index
    %c0_38 = arith.constant 0 : index
    %44 = vector.load %arg12[%c0_36, %c0_37, %c0_38] : memref<2x256x256xbf16, #tpu.memory_space<vmem>>, vector<1x256x256xbf16>
    %45 = vector.shape_cast %44 : vector<1x256x256xbf16> to vector<256x256xbf16>
    %cst_39 = arith.constant dense<0.000000e+00> : vector<16x256xf32>
    %46 = tpu.matmul %36, %45, %cst_39 {dimension_numbers = #tpu.dot_dimension_numbers<[1], [0], [0], [1], [0, 0, 1, 1], [], []>} : vector<16x256xbf16>, vector<256x256xbf16>, vector<16x256xf32> -> vector<16x256xf32>
    %c0_40 = arith.constant 0 : index
    %c0_41 = arith.constant 0 : index
    %c0_42 = arith.constant 0 : index
    %47 = vector.load %arg13[%c0_40, %c0_41, %c0_42] : memref<2x1x256xf32, #tpu.memory_space<vmem>>, vector<1x1x256xf32>
    %48 = vector.shape_cast %47 : vector<1x1x256xf32> to vector<1x256xf32>
    %49 = vector.broadcast %48 : vector<1x256xf32> to vector<16x256xf32>
    %50 = arith.addf %46, %49 : vector<16x256xf32>
    %51 = arith.truncf %1 : vector<16x256xf32> to vector<16x256xbf16>
    %c0_43 = arith.constant 0 : index
    %c0_44 = arith.constant 0 : index
    %c0_45 = arith.constant 0 : index
    %52 = vector.load %arg14[%c0_43, %c0_44, %c0_45] : memref<2x256x256xbf16, #tpu.memory_space<vmem>>, vector<1x256x256xbf16>
    %53 = vector.shape_cast %52 : vector<1x256x256xbf16> to vector<256x256xbf16>
    %cst_46 = arith.constant dense<0.000000e+00> : vector<16x256xf32>
    %54 = tpu.matmul %51, %53, %cst_46 {dimension_numbers = #tpu.dot_dimension_numbers<[1], [0], [0], [1], [0, 0, 1, 1], [], []>} : vector<16x256xbf16>, vector<256x256xbf16>, vector<16x256xf32> -> vector<16x256xf32>
    %c0_47 = arith.constant 0 : index
    %c0_48 = arith.constant 0 : index
    %c0_49 = arith.constant 0 : index
    %55 = vector.load %arg15[%c0_47, %c0_48, %c0_49] : memref<2x1x256xf32, #tpu.memory_space<vmem>>, vector<1x1x256xf32>
    %56 = vector.shape_cast %55 : vector<1x1x256xf32> to vector<1x256xf32>
    %57 = vector.broadcast %56 : vector<1x256xf32> to vector<16x256xf32>
    %58 = arith.addf %54, %57 : vector<16x256xf32>
    %c0_50 = arith.constant 0 : index
    %c0_51 = arith.constant 0 : index
    %c0_52 = arith.constant 0 : index
    %59 = vector.load %arg16[%c0_50, %c0_51, %c0_52] : memref<2x256x256xbf16, #tpu.memory_space<vmem>>, vector<1x256x256xbf16>
    %60 = vector.shape_cast %59 : vector<1x256x256xbf16> to vector<256x256xbf16>
    %cst_53 = arith.constant 0.000000e+00 : f32
    %61 = vector.broadcast %cst_53 : f32 to vector<16x256xf32>
    %62 = vector.extract_strided_slice %43 {offsets = [0, 0], sizes = [16, 32], strides = [1, 1]} : vector<16x256xf32> to vector<16x32xf32>
    %63 = arith.truncf %62 : vector<16x32xf32> to vector<16x32xbf16>
    %64 = vector.extract_strided_slice %50 {offsets = [0, 0], sizes = [16, 32], strides = [1, 1]} : vector<16x256xf32> to vector<16x32xf32>
    %65 = arith.truncf %64 : vector<16x32xf32> to vector<16x32xbf16>
    %66 = vector.extract_strided_slice %58 {offsets = [0, 0], sizes = [16, 32], strides = [1, 1]} : vector<16x256xf32> to vector<16x32xf32>
    %67 = arith.truncf %66 : vector<16x32xf32> to vector<16x32xbf16>
    %cst_54 = arith.constant dense<0.000000e+00> : vector<16x16xf32>
    %68 = tpu.matmul %63, %65, %cst_54 {dimension_numbers = #tpu.dot_dimension_numbers<[1], [1], [0], [0], [0, 0, 1, 0], [], []>} : vector<16x32xbf16>, vector<16x32xbf16>, vector<16x16xf32> -> vector<16x16xf32>
    %cst_55 = arith.constant 0.176776692 : f32
    %69 = vector.broadcast %cst_55 : f32 to vector<16x16xf32>
    %70 = arith.mulf %68, %69 : vector<16x16xf32>
    %71 = vector.broadcast %5 : vector<1x16xf32> to vector<16x16xf32>
    %72 = arith.addf %70, %71 : vector<16x16xf32>
    %cst_56 = arith.constant dense<0xFF800000> : vector<16xf32>
    %73 = vector.multi_reduction <maximumf>, %72, %cst_56 [1] : vector<16x16xf32> to vector<16xf32>
    %cst_57 = arith.constant 0xFF800000 : f32
    %74 = vector.broadcast %cst_57 : f32 to vector<16xf32>
    %75 = arith.maximumf %74, %73 : vector<16xf32>
    %76 = vector.shape_cast %75 : vector<16xf32> to vector<16x1xf32>
    %77 = vector.broadcast %76 : vector<16x1xf32> to vector<16x16xf32>
    %78 = arith.subf %72, %77 : vector<16x16xf32>
    %79 = math.exp %78 : vector<16x16xf32>
    %cst_58 = arith.constant dense<0.000000e+00> : vector<16xf32>
    %80 = vector.multi_reduction <add>, %79, %cst_58 [1] : vector<16x16xf32> to vector<16xf32>
    %81 = vector.shape_cast %80 : vector<16xf32> to vector<16x1xf32>
    %82 = vector.broadcast %81 : vector<16x1xf32> to vector<16x16xf32>
    %83 = arith.divf %79, %82 : vector<16x16xf32>
    %84 = arith.truncf %83 : vector<16x16xf32> to vector<16x16xbf16>
    %cst_59 = arith.constant dense<0.000000e+00> : vector<16x32xf32>
    %85 = tpu.matmul %84, %67, %cst_59 {dimension_numbers = #tpu.dot_dimension_numbers<[1], [0], [0], [1], [0, 0, 1, 1], [], []>} : vector<16x16xbf16>, vector<16x32xbf16>, vector<16x32xf32> -> vector<16x32xf32>
    %86 = arith.truncf %85 : vector<16x32xf32> to vector<16x32xbf16>
    %87 = vector.extract_strided_slice %60 {offsets = [0, 0], sizes = [32, 256], strides = [1, 1]} : vector<256x256xbf16> to vector<32x256xbf16>
    %cst_60 = arith.constant dense<0.000000e+00> : vector<16x256xf32>
    %88 = tpu.matmul %86, %87, %cst_60 {dimension_numbers = #tpu.dot_dimension_numbers<[1], [0], [0], [1], [0, 0, 1, 1], [], []>} : vector<16x32xbf16>, vector<32x256xbf16>, vector<16x256xf32> -> vector<16x256xf32>
    %89 = arith.addf %61, %88 : vector<16x256xf32>
    %90 = vector.extract_strided_slice %43 {offsets = [0, 32], sizes = [16, 32], strides = [1, 1]} : vector<16x256xf32> to vector<16x32xf32>
    %91 = arith.truncf %90 : vector<16x32xf32> to vector<16x32xbf16>
    %92 = vector.extract_strided_slice %50 {offsets = [0, 32], sizes = [16, 32], strides = [1, 1]} : vector<16x256xf32> to vector<16x32xf32>
    %93 = arith.truncf %92 : vector<16x32xf32> to vector<16x32xbf16>
    %94 = vector.extract_strided_slice %58 {offsets = [0, 32], sizes = [16, 32], strides = [1, 1]} : vector<16x256xf32> to vector<16x32xf32>
    %95 = arith.truncf %94 : vector<16x32xf32> to vector<16x32xbf16>
    %cst_61 = arith.constant dense<0.000000e+00> : vector<16x16xf32>
    %96 = tpu.matmul %91, %93, %cst_61 {dimension_numbers = #tpu.dot_dimension_numbers<[1], [1], [0], [0], [0, 0, 1, 0], [], []>} : vector<16x32xbf16>, vector<16x32xbf16>, vector<16x16xf32> -> vector<16x16xf32>
    %cst_62 = arith.constant 0.176776692 : f32
    %97 = vector.broadcast %cst_62 : f32 to vector<16x16xf32>
    %98 = arith.mulf %96, %97 : vector<16x16xf32>
    %99 = vector.broadcast %5 : vector<1x16xf32> to vector<16x16xf32>
    %100 = arith.addf %98, %99 : vector<16x16xf32>
    %cst_63 = arith.constant dense<0xFF800000> : vector<16xf32>
    %101 = vector.multi_reduction <maximumf>, %100, %cst_63 [1] : vector<16x16xf32> to vector<16xf32>
    %cst_64 = arith.constant 0xFF800000 : f32
    %102 = vector.broadcast %cst_64 : f32 to vector<16xf32>
    %103 = arith.maximumf %102, %101 : vector<16xf32>
    %104 = vector.shape_cast %103 : vector<16xf32> to vector<16x1xf32>
    %105 = vector.broadcast %104 : vector<16x1xf32> to vector<16x16xf32>
    %106 = arith.subf %100, %105 : vector<16x16xf32>
    %107 = math.exp %106 : vector<16x16xf32>
    %cst_65 = arith.constant dense<0.000000e+00> : vector<16xf32>
    %108 = vector.multi_reduction <add>, %107, %cst_65 [1] : vector<16x16xf32> to vector<16xf32>
    %109 = vector.shape_cast %108 : vector<16xf32> to vector<16x1xf32>
    %110 = vector.broadcast %109 : vector<16x1xf32> to vector<16x16xf32>
    %111 = arith.divf %107, %110 : vector<16x16xf32>
    %112 = arith.truncf %111 : vector<16x16xf32> to vector<16x16xbf16>
    %cst_66 = arith.constant dense<0.000000e+00> : vector<16x32xf32>
    %113 = tpu.matmul %112, %95, %cst_66 {dimension_numbers = #tpu.dot_dimension_numbers<[1], [0], [0], [1], [0, 0, 1, 1], [], []>} : vector<16x16xbf16>, vector<16x32xbf16>, vector<16x32xf32> -> vector<16x32xf32>
    %114 = arith.truncf %113 : vector<16x32xf32> to vector<16x32xbf16>
    %115 = vector.extract_strided_slice %60 {offsets = [32, 0], sizes = [32, 256], strides = [1, 1]} : vector<256x256xbf16> to vector<32x256xbf16>
    %cst_67 = arith.constant dense<0.000000e+00> : vector<16x256xf32>
    %116 = tpu.matmul %114, %115, %cst_67 {dimension_numbers = #tpu.dot_dimension_numbers<[1], [0], [0], [1], [0, 0, 1, 1], [], []>} : vector<16x32xbf16>, vector<32x256xbf16>, vector<16x256xf32> -> vector<16x256xf32>
    %117 = arith.addf %89, %116 : vector<16x256xf32>
    %118 = vector.extract_strided_slice %43 {offsets = [0, 64], sizes = [16, 32], strides = [1, 1]} : vector<16x256xf32> to vector<16x32xf32>
    %119 = arith.truncf %118 : vector<16x32xf32> to vector<16x32xbf16>
    %120 = vector.extract_strided_slice %50 {offsets = [0, 64], sizes = [16, 32], strides = [1, 1]} : vector<16x256xf32> to vector<16x32xf32>
    %121 = arith.truncf %120 : vector<16x32xf32> to vector<16x32xbf16>
    %122 = vector.extract_strided_slice %58 {offsets = [0, 64], sizes = [16, 32], strides = [1, 1]} : vector<16x256xf32> to vector<16x32xf32>
    %123 = arith.truncf %122 : vector<16x32xf32> to vector<16x32xbf16>
    %cst_68 = arith.constant dense<0.000000e+00> : vector<16x16xf32>
    %124 = tpu.matmul %119, %121, %cst_68 {dimension_numbers = #tpu.dot_dimension_numbers<[1], [1], [0], [0], [0, 0, 1, 0], [], []>} : vector<16x32xbf16>, vector<16x32xbf16>, vector<16x16xf32> -> vector<16x16xf32>
    %cst_69 = arith.constant 0.176776692 : f32
    %125 = vector.broadcast %cst_69 : f32 to vector<16x16xf32>
    %126 = arith.mulf %124, %125 : vector<16x16xf32>
    %127 = vector.broadcast %5 : vector<1x16xf32> to vector<16x16xf32>
    %128 = arith.addf %126, %127 : vector<16x16xf32>
    %cst_70 = arith.constant dense<0xFF800000> : vector<16xf32>
    %129 = vector.multi_reduction <maximumf>, %128, %cst_70 [1] : vector<16x16xf32> to vector<16xf32>
    %cst_71 = arith.constant 0xFF800000 : f32
    %130 = vector.broadcast %cst_71 : f32 to vector<16xf32>
    %131 = arith.maximumf %130, %129 : vector<16xf32>
    %132 = vector.shape_cast %131 : vector<16xf32> to vector<16x1xf32>
    %133 = vector.broadcast %132 : vector<16x1xf32> to vector<16x16xf32>
    %134 = arith.subf %128, %133 : vector<16x16xf32>
    %135 = math.exp %134 : vector<16x16xf32>
    %cst_72 = arith.constant dense<0.000000e+00> : vector<16xf32>
    %136 = vector.multi_reduction <add>, %135, %cst_72 [1] : vector<16x16xf32> to vector<16xf32>
    %137 = vector.shape_cast %136 : vector<16xf32> to vector<16x1xf32>
    %138 = vector.broadcast %137 : vector<16x1xf32> to vector<16x16xf32>
    %139 = arith.divf %135, %138 : vector<16x16xf32>
    %140 = arith.truncf %139 : vector<16x16xf32> to vector<16x16xbf16>
    %cst_73 = arith.constant dense<0.000000e+00> : vector<16x32xf32>
    %141 = tpu.matmul %140, %123, %cst_73 {dimension_numbers = #tpu.dot_dimension_numbers<[1], [0], [0], [1], [0, 0, 1, 1], [], []>} : vector<16x16xbf16>, vector<16x32xbf16>, vector<16x32xf32> -> vector<16x32xf32>
    %142 = arith.truncf %141 : vector<16x32xf32> to vector<16x32xbf16>
    %143 = vector.extract_strided_slice %60 {offsets = [64, 0], sizes = [32, 256], strides = [1, 1]} : vector<256x256xbf16> to vector<32x256xbf16>
    %cst_74 = arith.constant dense<0.000000e+00> : vector<16x256xf32>
    %144 = tpu.matmul %142, %143, %cst_74 {dimension_numbers = #tpu.dot_dimension_numbers<[1], [0], [0], [1], [0, 0, 1, 1], [], []>} : vector<16x32xbf16>, vector<32x256xbf16>, vector<16x256xf32> -> vector<16x256xf32>
    %145 = arith.addf %117, %144 : vector<16x256xf32>
    %146 = vector.extract_strided_slice %43 {offsets = [0, 96], sizes = [16, 32], strides = [1, 1]} : vector<16x256xf32> to vector<16x32xf32>
    %147 = arith.truncf %146 : vector<16x32xf32> to vector<16x32xbf16>
    %148 = vector.extract_strided_slice %50 {offsets = [0, 96], sizes = [16, 32], strides = [1, 1]} : vector<16x256xf32> to vector<16x32xf32>
    %149 = arith.truncf %148 : vector<16x32xf32> to vector<16x32xbf16>
    %150 = vector.extract_strided_slice %58 {offsets = [0, 96], sizes = [16, 32], strides = [1, 1]} : vector<16x256xf32> to vector<16x32xf32>
    %151 = arith.truncf %150 : vector<16x32xf32> to vector<16x32xbf16>
    %cst_75 = arith.constant dense<0.000000e+00> : vector<16x16xf32>
    %152 = tpu.matmul %147, %149, %cst_75 {dimension_numbers = #tpu.dot_dimension_numbers<[1], [1], [0], [0], [0, 0, 1, 0], [], []>} : vector<16x32xbf16>, vector<16x32xbf16>, vector<16x16xf32> -> vector<16x16xf32>
    %cst_76 = arith.constant 0.176776692 : f32
    %153 = vector.broadcast %cst_76 : f32 to vector<16x16xf32>
    %154 = arith.mulf %152, %153 : vector<16x16xf32>
    %155 = vector.broadcast %5 : vector<1x16xf32> to vector<16x16xf32>
    %156 = arith.addf %154, %155 : vector<16x16xf32>
    %cst_77 = arith.constant dense<0xFF800000> : vector<16xf32>
    %157 = vector.multi_reduction <maximumf>, %156, %cst_77 [1] : vector<16x16xf32> to vector<16xf32>
    %cst_78 = arith.constant 0xFF800000 : f32
    %158 = vector.broadcast %cst_78 : f32 to vector<16xf32>
    %159 = arith.maximumf %158, %157 : vector<16xf32>
    %160 = vector.shape_cast %159 : vector<16xf32> to vector<16x1xf32>
    %161 = vector.broadcast %160 : vector<16x1xf32> to vector<16x16xf32>
    %162 = arith.subf %156, %161 : vector<16x16xf32>
    %163 = math.exp %162 : vector<16x16xf32>
    %cst_79 = arith.constant dense<0.000000e+00> : vector<16xf32>
    %164 = vector.multi_reduction <add>, %163, %cst_79 [1] : vector<16x16xf32> to vector<16xf32>
    %165 = vector.shape_cast %164 : vector<16xf32> to vector<16x1xf32>
    %166 = vector.broadcast %165 : vector<16x1xf32> to vector<16x16xf32>
    %167 = arith.divf %163, %166 : vector<16x16xf32>
    %168 = arith.truncf %167 : vector<16x16xf32> to vector<16x16xbf16>
    %cst_80 = arith.constant dense<0.000000e+00> : vector<16x32xf32>
    %169 = tpu.matmul %168, %151, %cst_80 {dimension_numbers = #tpu.dot_dimension_numbers<[1], [0], [0], [1], [0, 0, 1, 1], [], []>} : vector<16x16xbf16>, vector<16x32xbf16>, vector<16x32xf32> -> vector<16x32xf32>
    %170 = arith.truncf %169 : vector<16x32xf32> to vector<16x32xbf16>
    %171 = vector.extract_strided_slice %60 {offsets = [96, 0], sizes = [32, 256], strides = [1, 1]} : vector<256x256xbf16> to vector<32x256xbf16>
    %cst_81 = arith.constant dense<0.000000e+00> : vector<16x256xf32>
    %172 = tpu.matmul %170, %171, %cst_81 {dimension_numbers = #tpu.dot_dimension_numbers<[1], [0], [0], [1], [0, 0, 1, 1], [], []>} : vector<16x32xbf16>, vector<32x256xbf16>, vector<16x256xf32> -> vector<16x256xf32>
    %173 = arith.addf %145, %172 : vector<16x256xf32>
    %174 = vector.extract_strided_slice %43 {offsets = [0, 128], sizes = [16, 32], strides = [1, 1]} : vector<16x256xf32> to vector<16x32xf32>
    %175 = arith.truncf %174 : vector<16x32xf32> to vector<16x32xbf16>
    %176 = vector.extract_strided_slice %50 {offsets = [0, 128], sizes = [16, 32], strides = [1, 1]} : vector<16x256xf32> to vector<16x32xf32>
    %177 = arith.truncf %176 : vector<16x32xf32> to vector<16x32xbf16>
    %178 = vector.extract_strided_slice %58 {offsets = [0, 128], sizes = [16, 32], strides = [1, 1]} : vector<16x256xf32> to vector<16x32xf32>
    %179 = arith.truncf %178 : vector<16x32xf32> to vector<16x32xbf16>
    %cst_82 = arith.constant dense<0.000000e+00> : vector<16x16xf32>
    %180 = tpu.matmul %175, %177, %cst_82 {dimension_numbers = #tpu.dot_dimension_numbers<[1], [1], [0], [0], [0, 0, 1, 0], [], []>} : vector<16x32xbf16>, vector<16x32xbf16>, vector<16x16xf32> -> vector<16x16xf32>
    %cst_83 = arith.constant 0.176776692 : f32
    %181 = vector.broadcast %cst_83 : f32 to vector<16x16xf32>
    %182 = arith.mulf %180, %181 : vector<16x16xf32>
    %183 = vector.broadcast %5 : vector<1x16xf32> to vector<16x16xf32>
    %184 = arith.addf %182, %183 : vector<16x16xf32>
    %cst_84 = arith.constant dense<0xFF800000> : vector<16xf32>
    %185 = vector.multi_reduction <maximumf>, %184, %cst_84 [1] : vector<16x16xf32> to vector<16xf32>
    %cst_85 = arith.constant 0xFF800000 : f32
    %186 = vector.broadcast %cst_85 : f32 to vector<16xf32>
    %187 = arith.maximumf %186, %185 : vector<16xf32>
    %188 = vector.shape_cast %187 : vector<16xf32> to vector<16x1xf32>
    %189 = vector.broadcast %188 : vector<16x1xf32> to vector<16x16xf32>
    %190 = arith.subf %184, %189 : vector<16x16xf32>
    %191 = math.exp %190 : vector<16x16xf32>
    %cst_86 = arith.constant dense<0.000000e+00> : vector<16xf32>
    %192 = vector.multi_reduction <add>, %191, %cst_86 [1] : vector<16x16xf32> to vector<16xf32>
    %193 = vector.shape_cast %192 : vector<16xf32> to vector<16x1xf32>
    %194 = vector.broadcast %193 : vector<16x1xf32> to vector<16x16xf32>
    %195 = arith.divf %191, %194 : vector<16x16xf32>
    %196 = arith.truncf %195 : vector<16x16xf32> to vector<16x16xbf16>
    %cst_87 = arith.constant dense<0.000000e+00> : vector<16x32xf32>
    %197 = tpu.matmul %196, %179, %cst_87 {dimension_numbers = #tpu.dot_dimension_numbers<[1], [0], [0], [1], [0, 0, 1, 1], [], []>} : vector<16x16xbf16>, vector<16x32xbf16>, vector<16x32xf32> -> vector<16x32xf32>
    %198 = arith.truncf %197 : vector<16x32xf32> to vector<16x32xbf16>
    %199 = vector.extract_strided_slice %60 {offsets = [128, 0], sizes = [32, 256], strides = [1, 1]} : vector<256x256xbf16> to vector<32x256xbf16>
    %cst_88 = arith.constant dense<0.000000e+00> : vector<16x256xf32>
    %200 = tpu.matmul %198, %199, %cst_88 {dimension_numbers = #tpu.dot_dimension_numbers<[1], [0], [0], [1], [0, 0, 1, 1], [], []>} : vector<16x32xbf16>, vector<32x256xbf16>, vector<16x256xf32> -> vector<16x256xf32>
    %201 = arith.addf %173, %200 : vector<16x256xf32>
    %202 = vector.extract_strided_slice %43 {offsets = [0, 160], sizes = [16, 32], strides = [1, 1]} : vector<16x256xf32> to vector<16x32xf32>
    %203 = arith.truncf %202 : vector<16x32xf32> to vector<16x32xbf16>
    %204 = vector.extract_strided_slice %50 {offsets = [0, 160], sizes = [16, 32], strides = [1, 1]} : vector<16x256xf32> to vector<16x32xf32>
    %205 = arith.truncf %204 : vector<16x32xf32> to vector<16x32xbf16>
    %206 = vector.extract_strided_slice %58 {offsets = [0, 160], sizes = [16, 32], strides = [1, 1]} : vector<16x256xf32> to vector<16x32xf32>
    %207 = arith.truncf %206 : vector<16x32xf32> to vector<16x32xbf16>
    %cst_89 = arith.constant dense<0.000000e+00> : vector<16x16xf32>
    %208 = tpu.matmul %203, %205, %cst_89 {dimension_numbers = #tpu.dot_dimension_numbers<[1], [1], [0], [0], [0, 0, 1, 0], [], []>} : vector<16x32xbf16>, vector<16x32xbf16>, vector<16x16xf32> -> vector<16x16xf32>
    %cst_90 = arith.constant 0.176776692 : f32
    %209 = vector.broadcast %cst_90 : f32 to vector<16x16xf32>
    %210 = arith.mulf %208, %209 : vector<16x16xf32>
    %211 = vector.broadcast %5 : vector<1x16xf32> to vector<16x16xf32>
    %212 = arith.addf %210, %211 : vector<16x16xf32>
    %cst_91 = arith.constant dense<0xFF800000> : vector<16xf32>
    %213 = vector.multi_reduction <maximumf>, %212, %cst_91 [1] : vector<16x16xf32> to vector<16xf32>
    %cst_92 = arith.constant 0xFF800000 : f32
    %214 = vector.broadcast %cst_92 : f32 to vector<16xf32>
    %215 = arith.maximumf %214, %213 : vector<16xf32>
    %216 = vector.shape_cast %215 : vector<16xf32> to vector<16x1xf32>
    %217 = vector.broadcast %216 : vector<16x1xf32> to vector<16x16xf32>
    %218 = arith.subf %212, %217 : vector<16x16xf32>
    %219 = math.exp %218 : vector<16x16xf32>
    %cst_93 = arith.constant dense<0.000000e+00> : vector<16xf32>
    %220 = vector.multi_reduction <add>, %219, %cst_93 [1] : vector<16x16xf32> to vector<16xf32>
    %221 = vector.shape_cast %220 : vector<16xf32> to vector<16x1xf32>
    %222 = vector.broadcast %221 : vector<16x1xf32> to vector<16x16xf32>
    %223 = arith.divf %219, %222 : vector<16x16xf32>
    %224 = arith.truncf %223 : vector<16x16xf32> to vector<16x16xbf16>
    %cst_94 = arith.constant dense<0.000000e+00> : vector<16x32xf32>
    %225 = tpu.matmul %224, %207, %cst_94 {dimension_numbers = #tpu.dot_dimension_numbers<[1], [0], [0], [1], [0, 0, 1, 1], [], []>} : vector<16x16xbf16>, vector<16x32xbf16>, vector<16x32xf32> -> vector<16x32xf32>
    %226 = arith.truncf %225 : vector<16x32xf32> to vector<16x32xbf16>
    %227 = vector.extract_strided_slice %60 {offsets = [160, 0], sizes = [32, 256], strides = [1, 1]} : vector<256x256xbf16> to vector<32x256xbf16>
    %cst_95 = arith.constant dense<0.000000e+00> : vector<16x256xf32>
    %228 = tpu.matmul %226, %227, %cst_95 {dimension_numbers = #tpu.dot_dimension_numbers<[1], [0], [0], [1], [0, 0, 1, 1], [], []>} : vector<16x32xbf16>, vector<32x256xbf16>, vector<16x256xf32> -> vector<16x256xf32>
    %229 = arith.addf %201, %228 : vector<16x256xf32>
    %230 = vector.extract_strided_slice %43 {offsets = [0, 192], sizes = [16, 32], strides = [1, 1]} : vector<16x256xf32> to vector<16x32xf32>
    %231 = arith.truncf %230 : vector<16x32xf32> to vector<16x32xbf16>
    %232 = vector.extract_strided_slice %50 {offsets = [0, 192], sizes = [16, 32], strides = [1, 1]} : vector<16x256xf32> to vector<16x32xf32>
    %233 = arith.truncf %232 : vector<16x32xf32> to vector<16x32xbf16>
    %234 = vector.extract_strided_slice %58 {offsets = [0, 192], sizes = [16, 32], strides = [1, 1]} : vector<16x256xf32> to vector<16x32xf32>
    %235 = arith.truncf %234 : vector<16x32xf32> to vector<16x32xbf16>
    %cst_96 = arith.constant dense<0.000000e+00> : vector<16x16xf32>
    %236 = tpu.matmul %231, %233, %cst_96 {dimension_numbers = #tpu.dot_dimension_numbers<[1], [1], [0], [0], [0, 0, 1, 0], [], []>} : vector<16x32xbf16>, vector<16x32xbf16>, vector<16x16xf32> -> vector<16x16xf32>
    %cst_97 = arith.constant 0.176776692 : f32
    %237 = vector.broadcast %cst_97 : f32 to vector<16x16xf32>
    %238 = arith.mulf %236, %237 : vector<16x16xf32>
    %239 = vector.broadcast %5 : vector<1x16xf32> to vector<16x16xf32>
    %240 = arith.addf %238, %239 : vector<16x16xf32>
    %cst_98 = arith.constant dense<0xFF800000> : vector<16xf32>
    %241 = vector.multi_reduction <maximumf>, %240, %cst_98 [1] : vector<16x16xf32> to vector<16xf32>
    %cst_99 = arith.constant 0xFF800000 : f32
    %242 = vector.broadcast %cst_99 : f32 to vector<16xf32>
    %243 = arith.maximumf %242, %241 : vector<16xf32>
    %244 = vector.shape_cast %243 : vector<16xf32> to vector<16x1xf32>
    %245 = vector.broadcast %244 : vector<16x1xf32> to vector<16x16xf32>
    %246 = arith.subf %240, %245 : vector<16x16xf32>
    %247 = math.exp %246 : vector<16x16xf32>
    %cst_100 = arith.constant dense<0.000000e+00> : vector<16xf32>
    %248 = vector.multi_reduction <add>, %247, %cst_100 [1] : vector<16x16xf32> to vector<16xf32>
    %249 = vector.shape_cast %248 : vector<16xf32> to vector<16x1xf32>
    %250 = vector.broadcast %249 : vector<16x1xf32> to vector<16x16xf32>
    %251 = arith.divf %247, %250 : vector<16x16xf32>
    %252 = arith.truncf %251 : vector<16x16xf32> to vector<16x16xbf16>
    %cst_101 = arith.constant dense<0.000000e+00> : vector<16x32xf32>
    %253 = tpu.matmul %252, %235, %cst_101 {dimension_numbers = #tpu.dot_dimension_numbers<[1], [0], [0], [1], [0, 0, 1, 1], [], []>} : vector<16x16xbf16>, vector<16x32xbf16>, vector<16x32xf32> -> vector<16x32xf32>
    %254 = arith.truncf %253 : vector<16x32xf32> to vector<16x32xbf16>
    %255 = vector.extract_strided_slice %60 {offsets = [192, 0], sizes = [32, 256], strides = [1, 1]} : vector<256x256xbf16> to vector<32x256xbf16>
    %cst_102 = arith.constant dense<0.000000e+00> : vector<16x256xf32>
    %256 = tpu.matmul %254, %255, %cst_102 {dimension_numbers = #tpu.dot_dimension_numbers<[1], [0], [0], [1], [0, 0, 1, 1], [], []>} : vector<16x32xbf16>, vector<32x256xbf16>, vector<16x256xf32> -> vector<16x256xf32>
    %257 = arith.addf %229, %256 : vector<16x256xf32>
    %258 = vector.extract_strided_slice %43 {offsets = [0, 224], sizes = [16, 32], strides = [1, 1]} : vector<16x256xf32> to vector<16x32xf32>
    %259 = arith.truncf %258 : vector<16x32xf32> to vector<16x32xbf16>
    %260 = vector.extract_strided_slice %50 {offsets = [0, 224], sizes = [16, 32], strides = [1, 1]} : vector<16x256xf32> to vector<16x32xf32>
    %261 = arith.truncf %260 : vector<16x32xf32> to vector<16x32xbf16>
    %262 = vector.extract_strided_slice %58 {offsets = [0, 224], sizes = [16, 32], strides = [1, 1]} : vector<16x256xf32> to vector<16x32xf32>
    %263 = arith.truncf %262 : vector<16x32xf32> to vector<16x32xbf16>
    %cst_103 = arith.constant dense<0.000000e+00> : vector<16x16xf32>
    %264 = tpu.matmul %259, %261, %cst_103 {dimension_numbers = #tpu.dot_dimension_numbers<[1], [1], [0], [0], [0, 0, 1, 0], [], []>} : vector<16x32xbf16>, vector<16x32xbf16>, vector<16x16xf32> -> vector<16x16xf32>
    %cst_104 = arith.constant 0.176776692 : f32
    %265 = vector.broadcast %cst_104 : f32 to vector<16x16xf32>
    %266 = arith.mulf %264, %265 : vector<16x16xf32>
    %267 = vector.broadcast %5 : vector<1x16xf32> to vector<16x16xf32>
    %268 = arith.addf %266, %267 : vector<16x16xf32>
    %cst_105 = arith.constant dense<0xFF800000> : vector<16xf32>
    %269 = vector.multi_reduction <maximumf>, %268, %cst_105 [1] : vector<16x16xf32> to vector<16xf32>
    %cst_106 = arith.constant 0xFF800000 : f32
    %270 = vector.broadcast %cst_106 : f32 to vector<16xf32>
    %271 = arith.maximumf %270, %269 : vector<16xf32>
    %272 = vector.shape_cast %271 : vector<16xf32> to vector<16x1xf32>
    %273 = vector.broadcast %272 : vector<16x1xf32> to vector<16x16xf32>
    %274 = arith.subf %268, %273 : vector<16x16xf32>
    %275 = math.exp %274 : vector<16x16xf32>
    %cst_107 = arith.constant dense<0.000000e+00> : vector<16xf32>
    %276 = vector.multi_reduction <add>, %275, %cst_107 [1] : vector<16x16xf32> to vector<16xf32>
    %277 = vector.shape_cast %276 : vector<16xf32> to vector<16x1xf32>
    %278 = vector.broadcast %277 : vector<16x1xf32> to vector<16x16xf32>
    %279 = arith.divf %275, %278 : vector<16x16xf32>
    %280 = arith.truncf %279 : vector<16x16xf32> to vector<16x16xbf16>
    %cst_108 = arith.constant dense<0.000000e+00> : vector<16x32xf32>
    %281 = tpu.matmul %280, %263, %cst_108 {dimension_numbers = #tpu.dot_dimension_numbers<[1], [0], [0], [1], [0, 0, 1, 1], [], []>} : vector<16x16xbf16>, vector<16x32xbf16>, vector<16x32xf32> -> vector<16x32xf32>
    %282 = arith.truncf %281 : vector<16x32xf32> to vector<16x32xbf16>
    %283 = vector.extract_strided_slice %60 {offsets = [224, 0], sizes = [32, 256], strides = [1, 1]} : vector<256x256xbf16> to vector<32x256xbf16>
    %cst_109 = arith.constant dense<0.000000e+00> : vector<16x256xf32>
    %284 = tpu.matmul %282, %283, %cst_109 {dimension_numbers = #tpu.dot_dimension_numbers<[1], [0], [0], [1], [0, 0, 1, 1], [], []>} : vector<16x32xbf16>, vector<32x256xbf16>, vector<16x256xf32> -> vector<16x256xf32>
    %285 = arith.addf %257, %284 : vector<16x256xf32>
    %c0_110 = arith.constant 0 : index
    %c0_111 = arith.constant 0 : index
    %c0_112 = arith.constant 0 : index
    %286 = vector.load %arg17[%c0_110, %c0_111, %c0_112] : memref<2x1x256xf32, #tpu.memory_space<vmem>>, vector<1x1x256xf32>
    %287 = vector.shape_cast %286 : vector<1x1x256xf32> to vector<1x256xf32>
    %288 = vector.broadcast %287 : vector<1x256xf32> to vector<16x256xf32>
    %289 = arith.addf %285, %288 : vector<16x256xf32>
    %290 = arith.addf %1, %289 : vector<16x256xf32>
    %c0_113 = arith.constant 0 : index
    %c0_114 = arith.constant 0 : index
    %c0_115 = arith.constant 0 : index
    %291 = vector.load %arg18[%c0_113, %c0_114, %c0_115] : memref<2x1x256xf32, #tpu.memory_space<vmem>>, vector<1x1x256xf32>
    %292 = vector.shape_cast %291 : vector<1x1x256xf32> to vector<1x256xf32>
    %c0_116 = arith.constant 0 : index
    %c0_117 = arith.constant 0 : index
    %c0_118 = arith.constant 0 : index
    %293 = vector.load %arg19[%c0_116, %c0_117, %c0_118] : memref<2x1x256xf32, #tpu.memory_space<vmem>>, vector<1x1x256xf32>
    %294 = vector.shape_cast %293 : vector<1x1x256xf32> to vector<1x256xf32>
    %cst_119 = arith.constant dense<0.000000e+00> : vector<16xf32>
    %295 = vector.multi_reduction <add>, %290, %cst_119 [1] : vector<16x256xf32> to vector<16xf32>
    %296 = vector.shape_cast %295 : vector<16xf32> to vector<16x1xf32>
    %cst_120 = arith.constant 2.560000e+02 : f32
    %297 = vector.broadcast %cst_120 : f32 to vector<16x1xf32>
    %298 = arith.divf %296, %297 : vector<16x1xf32>
    %299 = vector.broadcast %298 : vector<16x1xf32> to vector<16x256xf32>
    %300 = arith.subf %290, %299 : vector<16x256xf32>
    %301 = arith.mulf %300, %300 : vector<16x256xf32>
    %cst_121 = arith.constant dense<0.000000e+00> : vector<16xf32>
    %302 = vector.multi_reduction <add>, %301, %cst_121 [1] : vector<16x256xf32> to vector<16xf32>
    %303 = vector.shape_cast %302 : vector<16xf32> to vector<16x1xf32>
    %cst_122 = arith.constant 2.560000e+02 : f32
    %304 = vector.broadcast %cst_122 : f32 to vector<16x1xf32>
    %305 = arith.divf %303, %304 : vector<16x1xf32>
    %306 = vector.broadcast %298 : vector<16x1xf32> to vector<16x256xf32>
    %307 = arith.subf %290, %306 : vector<16x256xf32>
    %cst_123 = arith.constant 9.99999974E-6 : f32
    %308 = vector.broadcast %cst_123 : f32 to vector<16x1xf32>
    %309 = arith.addf %305, %308 : vector<16x1xf32>
    %310 = math.rsqrt %309 : vector<16x1xf32>
    %311 = vector.broadcast %310 : vector<16x1xf32> to vector<16x256xf32>
    %312 = arith.mulf %307, %311 : vector<16x256xf32>
    %313 = vector.broadcast %292 : vector<1x256xf32> to vector<16x256xf32>
    %314 = arith.mulf %312, %313 : vector<16x256xf32>
    %315 = vector.broadcast %294 : vector<1x256xf32> to vector<16x256xf32>
    %316 = arith.addf %314, %315 : vector<16x256xf32>
    %317 = arith.truncf %316 : vector<16x256xf32> to vector<16x256xbf16>
    %c0_124 = arith.constant 0 : index
    %c0_125 = arith.constant 0 : index
    %c0_126 = arith.constant 0 : index
    %318 = vector.load %arg20[%c0_124, %c0_125, %c0_126] : memref<2x256x512xbf16, #tpu.memory_space<vmem>>, vector<1x256x512xbf16>
    %319 = vector.shape_cast %318 : vector<1x256x512xbf16> to vector<256x512xbf16>
    %cst_127 = arith.constant dense<0.000000e+00> : vector<16x512xf32>
    %320 = tpu.matmul %317, %319, %cst_127 {dimension_numbers = #tpu.dot_dimension_numbers<[1], [0], [0], [1], [0, 0, 1, 1], [], []>} : vector<16x256xbf16>, vector<256x512xbf16>, vector<16x512xf32> -> vector<16x512xf32>
    %c0_128 = arith.constant 0 : index
    %c0_129 = arith.constant 0 : index
    %c0_130 = arith.constant 0 : index
    %321 = vector.load %arg21[%c0_128, %c0_129, %c0_130] : memref<2x1x512xf32, #tpu.memory_space<vmem>>, vector<1x1x512xf32>
    %322 = vector.shape_cast %321 : vector<1x1x512xf32> to vector<1x512xf32>
    %323 = vector.broadcast %322 : vector<1x512xf32> to vector<16x512xf32>
    %324 = arith.addf %320, %323 : vector<16x512xf32>
    %cst_131 = arith.constant 0.000000e+00 : f32
    %325 = vector.broadcast %cst_131 : f32 to vector<16x512xf32>
    %326 = arith.maximumf %324, %325 : vector<16x512xf32>
    %327 = arith.truncf %326 : vector<16x512xf32> to vector<16x512xbf16>
    %c0_132 = arith.constant 0 : index
    %c0_133 = arith.constant 0 : index
    %c0_134 = arith.constant 0 : index
    %328 = vector.load %arg22[%c0_132, %c0_133, %c0_134] : memref<2x512x256xbf16, #tpu.memory_space<vmem>>, vector<1x512x256xbf16>
    %329 = vector.shape_cast %328 : vector<1x512x256xbf16> to vector<512x256xbf16>
    %cst_135 = arith.constant dense<0.000000e+00> : vector<16x256xf32>
    %330 = tpu.matmul %327, %329, %cst_135 {dimension_numbers = #tpu.dot_dimension_numbers<[1], [0], [0], [1], [0, 0, 1, 1], [], []>} : vector<16x512xbf16>, vector<512x256xbf16>, vector<16x256xf32> -> vector<16x256xf32>
    %c0_136 = arith.constant 0 : index
    %c0_137 = arith.constant 0 : index
    %c0_138 = arith.constant 0 : index
    %331 = vector.load %arg23[%c0_136, %c0_137, %c0_138] : memref<2x1x256xf32, #tpu.memory_space<vmem>>, vector<1x1x256xf32>
    %332 = vector.shape_cast %331 : vector<1x1x256xf32> to vector<1x256xf32>
    %333 = vector.broadcast %332 : vector<1x256xf32> to vector<16x256xf32>
    %334 = arith.addf %330, %333 : vector<16x256xf32>
    %335 = arith.addf %316, %334 : vector<16x256xf32>
    %c0_139 = arith.constant 0 : index
    %c0_140 = arith.constant 0 : index
    %c0_141 = arith.constant 0 : index
    %336 = vector.load %arg24[%c0_139, %c0_140, %c0_141] : memref<2x1x256xf32, #tpu.memory_space<vmem>>, vector<1x1x256xf32>
    %337 = vector.shape_cast %336 : vector<1x1x256xf32> to vector<1x256xf32>
    %c0_142 = arith.constant 0 : index
    %c0_143 = arith.constant 0 : index
    %c0_144 = arith.constant 0 : index
    %338 = vector.load %arg25[%c0_142, %c0_143, %c0_144] : memref<2x1x256xf32, #tpu.memory_space<vmem>>, vector<1x1x256xf32>
    %339 = vector.shape_cast %338 : vector<1x1x256xf32> to vector<1x256xf32>
    %cst_145 = arith.constant dense<0.000000e+00> : vector<16xf32>
    %340 = vector.multi_reduction <add>, %335, %cst_145 [1] : vector<16x256xf32> to vector<16xf32>
    %341 = vector.shape_cast %340 : vector<16xf32> to vector<16x1xf32>
    %cst_146 = arith.constant 2.560000e+02 : f32
    %342 = vector.broadcast %cst_146 : f32 to vector<16x1xf32>
    %343 = arith.divf %341, %342 : vector<16x1xf32>
    %344 = vector.broadcast %343 : vector<16x1xf32> to vector<16x256xf32>
    %345 = arith.subf %335, %344 : vector<16x256xf32>
    %346 = arith.mulf %345, %345 : vector<16x256xf32>
    %cst_147 = arith.constant dense<0.000000e+00> : vector<16xf32>
    %347 = vector.multi_reduction <add>, %346, %cst_147 [1] : vector<16x256xf32> to vector<16xf32>
    %348 = vector.shape_cast %347 : vector<16xf32> to vector<16x1xf32>
    %cst_148 = arith.constant 2.560000e+02 : f32
    %349 = vector.broadcast %cst_148 : f32 to vector<16x1xf32>
    %350 = arith.divf %348, %349 : vector<16x1xf32>
    %351 = vector.broadcast %343 : vector<16x1xf32> to vector<16x256xf32>
    %352 = arith.subf %335, %351 : vector<16x256xf32>
    %cst_149 = arith.constant 9.99999974E-6 : f32
    %353 = vector.broadcast %cst_149 : f32 to vector<16x1xf32>
    %354 = arith.addf %350, %353 : vector<16x1xf32>
    %355 = math.rsqrt %354 : vector<16x1xf32>
    %356 = vector.broadcast %355 : vector<16x1xf32> to vector<16x256xf32>
    %357 = arith.mulf %352, %356 : vector<16x256xf32>
    %358 = vector.broadcast %337 : vector<1x256xf32> to vector<16x256xf32>
    %359 = arith.mulf %357, %358 : vector<16x256xf32>
    %360 = vector.broadcast %339 : vector<1x256xf32> to vector<16x256xf32>
    %361 = arith.addf %359, %360 : vector<16x256xf32>
    %c1 = arith.constant 1 : index
    %c0_150 = arith.constant 0 : index
    %c0_151 = arith.constant 0 : index
    %362 = vector.load %arg8[%c1, %c0_150, %c0_151] : memref<2x512x256xbf16, #tpu.memory_space<vmem>>, vector<1x512x256xbf16>
    %363 = vector.shape_cast %362 : vector<1x512x256xbf16> to vector<512x256xbf16>
    %cst_152 = arith.constant dense<0.000000e+00> : vector<16x256xf32>
    %364 = tpu.matmul %3, %363, %cst_152 {dimension_numbers = #tpu.dot_dimension_numbers<[1], [0], [0], [1], [0, 0, 1, 1], [], []>} : vector<16x512xbf16>, vector<512x256xbf16>, vector<16x256xf32> -> vector<16x256xf32>
    %c1_153 = arith.constant 1 : index
    %c0_154 = arith.constant 0 : index
    %c0_155 = arith.constant 0 : index
    %365 = vector.load %arg9[%c1_153, %c0_154, %c0_155] : memref<2x1x256xf32, #tpu.memory_space<vmem>>, vector<1x1x256xf32>
    %366 = vector.shape_cast %365 : vector<1x1x256xf32> to vector<1x256xf32>
    %367 = vector.broadcast %366 : vector<1x256xf32> to vector<16x256xf32>
    %368 = arith.addf %364, %367 : vector<16x256xf32>
    %369 = arith.addf %361, %368 : vector<16x256xf32>
    %370 = arith.truncf %369 : vector<16x256xf32> to vector<16x256xbf16>
    %c1_156 = arith.constant 1 : index
    %c0_157 = arith.constant 0 : index
    %c0_158 = arith.constant 0 : index
    %371 = vector.load %arg10[%c1_156, %c0_157, %c0_158] : memref<2x256x256xbf16, #tpu.memory_space<vmem>>, vector<1x256x256xbf16>
    %372 = vector.shape_cast %371 : vector<1x256x256xbf16> to vector<256x256xbf16>
    %cst_159 = arith.constant dense<0.000000e+00> : vector<16x256xf32>
    %373 = tpu.matmul %370, %372, %cst_159 {dimension_numbers = #tpu.dot_dimension_numbers<[1], [0], [0], [1], [0, 0, 1, 1], [], []>} : vector<16x256xbf16>, vector<256x256xbf16>, vector<16x256xf32> -> vector<16x256xf32>
    %c1_160 = arith.constant 1 : index
    %c0_161 = arith.constant 0 : index
    %c0_162 = arith.constant 0 : index
    %374 = vector.load %arg11[%c1_160, %c0_161, %c0_162] : memref<2x1x256xf32, #tpu.memory_space<vmem>>, vector<1x1x256xf32>
    %375 = vector.shape_cast %374 : vector<1x1x256xf32> to vector<1x256xf32>
    %376 = vector.broadcast %375 : vector<1x256xf32> to vector<16x256xf32>
    %377 = arith.addf %373, %376 : vector<16x256xf32>
    %c1_163 = arith.constant 1 : index
    %c0_164 = arith.constant 0 : index
    %c0_165 = arith.constant 0 : index
    %378 = vector.load %arg12[%c1_163, %c0_164, %c0_165] : memref<2x256x256xbf16, #tpu.memory_space<vmem>>, vector<1x256x256xbf16>
    %379 = vector.shape_cast %378 : vector<1x256x256xbf16> to vector<256x256xbf16>
    %cst_166 = arith.constant dense<0.000000e+00> : vector<16x256xf32>
    %380 = tpu.matmul %370, %379, %cst_166 {dimension_numbers = #tpu.dot_dimension_numbers<[1], [0], [0], [1], [0, 0, 1, 1], [], []>} : vector<16x256xbf16>, vector<256x256xbf16>, vector<16x256xf32> -> vector<16x256xf32>
    %c1_167 = arith.constant 1 : index
    %c0_168 = arith.constant 0 : index
    %c0_169 = arith.constant 0 : index
    %381 = vector.load %arg13[%c1_167, %c0_168, %c0_169] : memref<2x1x256xf32, #tpu.memory_space<vmem>>, vector<1x1x256xf32>
    %382 = vector.shape_cast %381 : vector<1x1x256xf32> to vector<1x256xf32>
    %383 = vector.broadcast %382 : vector<1x256xf32> to vector<16x256xf32>
    %384 = arith.addf %380, %383 : vector<16x256xf32>
    %385 = arith.truncf %361 : vector<16x256xf32> to vector<16x256xbf16>
    %c1_170 = arith.constant 1 : index
    %c0_171 = arith.constant 0 : index
    %c0_172 = arith.constant 0 : index
    %386 = vector.load %arg14[%c1_170, %c0_171, %c0_172] : memref<2x256x256xbf16, #tpu.memory_space<vmem>>, vector<1x256x256xbf16>
    %387 = vector.shape_cast %386 : vector<1x256x256xbf16> to vector<256x256xbf16>
    %cst_173 = arith.constant dense<0.000000e+00> : vector<16x256xf32>
    %388 = tpu.matmul %385, %387, %cst_173 {dimension_numbers = #tpu.dot_dimension_numbers<[1], [0], [0], [1], [0, 0, 1, 1], [], []>} : vector<16x256xbf16>, vector<256x256xbf16>, vector<16x256xf32> -> vector<16x256xf32>
    %c1_174 = arith.constant 1 : index
    %c0_175 = arith.constant 0 : index
    %c0_176 = arith.constant 0 : index
    %389 = vector.load %arg15[%c1_174, %c0_175, %c0_176] : memref<2x1x256xf32, #tpu.memory_space<vmem>>, vector<1x1x256xf32>
    %390 = vector.shape_cast %389 : vector<1x1x256xf32> to vector<1x256xf32>
    %391 = vector.broadcast %390 : vector<1x256xf32> to vector<16x256xf32>
    %392 = arith.addf %388, %391 : vector<16x256xf32>
    %c1_177 = arith.constant 1 : index
    %c0_178 = arith.constant 0 : index
    %c0_179 = arith.constant 0 : index
    %393 = vector.load %arg16[%c1_177, %c0_178, %c0_179] : memref<2x256x256xbf16, #tpu.memory_space<vmem>>, vector<1x256x256xbf16>
    %394 = vector.shape_cast %393 : vector<1x256x256xbf16> to vector<256x256xbf16>
    %cst_180 = arith.constant 0.000000e+00 : f32
    %395 = vector.broadcast %cst_180 : f32 to vector<16x256xf32>
    %396 = vector.extract_strided_slice %377 {offsets = [0, 0], sizes = [16, 32], strides = [1, 1]} : vector<16x256xf32> to vector<16x32xf32>
    %397 = arith.truncf %396 : vector<16x32xf32> to vector<16x32xbf16>
    %398 = vector.extract_strided_slice %384 {offsets = [0, 0], sizes = [16, 32], strides = [1, 1]} : vector<16x256xf32> to vector<16x32xf32>
    %399 = arith.truncf %398 : vector<16x32xf32> to vector<16x32xbf16>
    %400 = vector.extract_strided_slice %392 {offsets = [0, 0], sizes = [16, 32], strides = [1, 1]} : vector<16x256xf32> to vector<16x32xf32>
    %401 = arith.truncf %400 : vector<16x32xf32> to vector<16x32xbf16>
    %cst_181 = arith.constant dense<0.000000e+00> : vector<16x16xf32>
    %402 = tpu.matmul %397, %399, %cst_181 {dimension_numbers = #tpu.dot_dimension_numbers<[1], [1], [0], [0], [0, 0, 1, 0], [], []>} : vector<16x32xbf16>, vector<16x32xbf16>, vector<16x16xf32> -> vector<16x16xf32>
    %cst_182 = arith.constant 0.176776692 : f32
    %403 = vector.broadcast %cst_182 : f32 to vector<16x16xf32>
    %404 = arith.mulf %402, %403 : vector<16x16xf32>
    %405 = vector.broadcast %5 : vector<1x16xf32> to vector<16x16xf32>
    %406 = arith.addf %404, %405 : vector<16x16xf32>
    %cst_183 = arith.constant dense<0xFF800000> : vector<16xf32>
    %407 = vector.multi_reduction <maximumf>, %406, %cst_183 [1] : vector<16x16xf32> to vector<16xf32>
    %cst_184 = arith.constant 0xFF800000 : f32
    %408 = vector.broadcast %cst_184 : f32 to vector<16xf32>
    %409 = arith.maximumf %408, %407 : vector<16xf32>
    %410 = vector.shape_cast %409 : vector<16xf32> to vector<16x1xf32>
    %411 = vector.broadcast %410 : vector<16x1xf32> to vector<16x16xf32>
    %412 = arith.subf %406, %411 : vector<16x16xf32>
    %413 = math.exp %412 : vector<16x16xf32>
    %cst_185 = arith.constant dense<0.000000e+00> : vector<16xf32>
    %414 = vector.multi_reduction <add>, %413, %cst_185 [1] : vector<16x16xf32> to vector<16xf32>
    %415 = vector.shape_cast %414 : vector<16xf32> to vector<16x1xf32>
    %416 = vector.broadcast %415 : vector<16x1xf32> to vector<16x16xf32>
    %417 = arith.divf %413, %416 : vector<16x16xf32>
    %418 = arith.truncf %417 : vector<16x16xf32> to vector<16x16xbf16>
    %cst_186 = arith.constant dense<0.000000e+00> : vector<16x32xf32>
    %419 = tpu.matmul %418, %401, %cst_186 {dimension_numbers = #tpu.dot_dimension_numbers<[1], [0], [0], [1], [0, 0, 1, 1], [], []>} : vector<16x16xbf16>, vector<16x32xbf16>, vector<16x32xf32> -> vector<16x32xf32>
    %420 = arith.truncf %419 : vector<16x32xf32> to vector<16x32xbf16>
    %421 = vector.extract_strided_slice %394 {offsets = [0, 0], sizes = [32, 256], strides = [1, 1]} : vector<256x256xbf16> to vector<32x256xbf16>
    %cst_187 = arith.constant dense<0.000000e+00> : vector<16x256xf32>
    %422 = tpu.matmul %420, %421, %cst_187 {dimension_numbers = #tpu.dot_dimension_numbers<[1], [0], [0], [1], [0, 0, 1, 1], [], []>} : vector<16x32xbf16>, vector<32x256xbf16>, vector<16x256xf32> -> vector<16x256xf32>
    %423 = arith.addf %395, %422 : vector<16x256xf32>
    %424 = vector.extract_strided_slice %377 {offsets = [0, 32], sizes = [16, 32], strides = [1, 1]} : vector<16x256xf32> to vector<16x32xf32>
    %425 = arith.truncf %424 : vector<16x32xf32> to vector<16x32xbf16>
    %426 = vector.extract_strided_slice %384 {offsets = [0, 32], sizes = [16, 32], strides = [1, 1]} : vector<16x256xf32> to vector<16x32xf32>
    %427 = arith.truncf %426 : vector<16x32xf32> to vector<16x32xbf16>
    %428 = vector.extract_strided_slice %392 {offsets = [0, 32], sizes = [16, 32], strides = [1, 1]} : vector<16x256xf32> to vector<16x32xf32>
    %429 = arith.truncf %428 : vector<16x32xf32> to vector<16x32xbf16>
    %cst_188 = arith.constant dense<0.000000e+00> : vector<16x16xf32>
    %430 = tpu.matmul %425, %427, %cst_188 {dimension_numbers = #tpu.dot_dimension_numbers<[1], [1], [0], [0], [0, 0, 1, 0], [], []>} : vector<16x32xbf16>, vector<16x32xbf16>, vector<16x16xf32> -> vector<16x16xf32>
    %cst_189 = arith.constant 0.176776692 : f32
    %431 = vector.broadcast %cst_189 : f32 to vector<16x16xf32>
    %432 = arith.mulf %430, %431 : vector<16x16xf32>
    %433 = vector.broadcast %5 : vector<1x16xf32> to vector<16x16xf32>
    %434 = arith.addf %432, %433 : vector<16x16xf32>
    %cst_190 = arith.constant dense<0xFF800000> : vector<16xf32>
    %435 = vector.multi_reduction <maximumf>, %434, %cst_190 [1] : vector<16x16xf32> to vector<16xf32>
    %cst_191 = arith.constant 0xFF800000 : f32
    %436 = vector.broadcast %cst_191 : f32 to vector<16xf32>
    %437 = arith.maximumf %436, %435 : vector<16xf32>
    %438 = vector.shape_cast %437 : vector<16xf32> to vector<16x1xf32>
    %439 = vector.broadcast %438 : vector<16x1xf32> to vector<16x16xf32>
    %440 = arith.subf %434, %439 : vector<16x16xf32>
    %441 = math.exp %440 : vector<16x16xf32>
    %cst_192 = arith.constant dense<0.000000e+00> : vector<16xf32>
    %442 = vector.multi_reduction <add>, %441, %cst_192 [1] : vector<16x16xf32> to vector<16xf32>
    %443 = vector.shape_cast %442 : vector<16xf32> to vector<16x1xf32>
    %444 = vector.broadcast %443 : vector<16x1xf32> to vector<16x16xf32>
    %445 = arith.divf %441, %444 : vector<16x16xf32>
    %446 = arith.truncf %445 : vector<16x16xf32> to vector<16x16xbf16>
    %cst_193 = arith.constant dense<0.000000e+00> : vector<16x32xf32>
    %447 = tpu.matmul %446, %429, %cst_193 {dimension_numbers = #tpu.dot_dimension_numbers<[1], [0], [0], [1], [0, 0, 1, 1], [], []>} : vector<16x16xbf16>, vector<16x32xbf16>, vector<16x32xf32> -> vector<16x32xf32>
    %448 = arith.truncf %447 : vector<16x32xf32> to vector<16x32xbf16>
    %449 = vector.extract_strided_slice %394 {offsets = [32, 0], sizes = [32, 256], strides = [1, 1]} : vector<256x256xbf16> to vector<32x256xbf16>
    %cst_194 = arith.constant dense<0.000000e+00> : vector<16x256xf32>
    %450 = tpu.matmul %448, %449, %cst_194 {dimension_numbers = #tpu.dot_dimension_numbers<[1], [0], [0], [1], [0, 0, 1, 1], [], []>} : vector<16x32xbf16>, vector<32x256xbf16>, vector<16x256xf32> -> vector<16x256xf32>
    %451 = arith.addf %423, %450 : vector<16x256xf32>
    %452 = vector.extract_strided_slice %377 {offsets = [0, 64], sizes = [16, 32], strides = [1, 1]} : vector<16x256xf32> to vector<16x32xf32>
    %453 = arith.truncf %452 : vector<16x32xf32> to vector<16x32xbf16>
    %454 = vector.extract_strided_slice %384 {offsets = [0, 64], sizes = [16, 32], strides = [1, 1]} : vector<16x256xf32> to vector<16x32xf32>
    %455 = arith.truncf %454 : vector<16x32xf32> to vector<16x32xbf16>
    %456 = vector.extract_strided_slice %392 {offsets = [0, 64], sizes = [16, 32], strides = [1, 1]} : vector<16x256xf32> to vector<16x32xf32>
    %457 = arith.truncf %456 : vector<16x32xf32> to vector<16x32xbf16>
    %cst_195 = arith.constant dense<0.000000e+00> : vector<16x16xf32>
    %458 = tpu.matmul %453, %455, %cst_195 {dimension_numbers = #tpu.dot_dimension_numbers<[1], [1], [0], [0], [0, 0, 1, 0], [], []>} : vector<16x32xbf16>, vector<16x32xbf16>, vector<16x16xf32> -> vector<16x16xf32>
    %cst_196 = arith.constant 0.176776692 : f32
    %459 = vector.broadcast %cst_196 : f32 to vector<16x16xf32>
    %460 = arith.mulf %458, %459 : vector<16x16xf32>
    %461 = vector.broadcast %5 : vector<1x16xf32> to vector<16x16xf32>
    %462 = arith.addf %460, %461 : vector<16x16xf32>
    %cst_197 = arith.constant dense<0xFF800000> : vector<16xf32>
    %463 = vector.multi_reduction <maximumf>, %462, %cst_197 [1] : vector<16x16xf32> to vector<16xf32>
    %cst_198 = arith.constant 0xFF800000 : f32
    %464 = vector.broadcast %cst_198 : f32 to vector<16xf32>
    %465 = arith.maximumf %464, %463 : vector<16xf32>
    %466 = vector.shape_cast %465 : vector<16xf32> to vector<16x1xf32>
    %467 = vector.broadcast %466 : vector<16x1xf32> to vector<16x16xf32>
    %468 = arith.subf %462, %467 : vector<16x16xf32>
    %469 = math.exp %468 : vector<16x16xf32>
    %cst_199 = arith.constant dense<0.000000e+00> : vector<16xf32>
    %470 = vector.multi_reduction <add>, %469, %cst_199 [1] : vector<16x16xf32> to vector<16xf32>
    %471 = vector.shape_cast %470 : vector<16xf32> to vector<16x1xf32>
    %472 = vector.broadcast %471 : vector<16x1xf32> to vector<16x16xf32>
    %473 = arith.divf %469, %472 : vector<16x16xf32>
    %474 = arith.truncf %473 : vector<16x16xf32> to vector<16x16xbf16>
    %cst_200 = arith.constant dense<0.000000e+00> : vector<16x32xf32>
    %475 = tpu.matmul %474, %457, %cst_200 {dimension_numbers = #tpu.dot_dimension_numbers<[1], [0], [0], [1], [0, 0, 1, 1], [], []>} : vector<16x16xbf16>, vector<16x32xbf16>, vector<16x32xf32> -> vector<16x32xf32>
    %476 = arith.truncf %475 : vector<16x32xf32> to vector<16x32xbf16>
    %477 = vector.extract_strided_slice %394 {offsets = [64, 0], sizes = [32, 256], strides = [1, 1]} : vector<256x256xbf16> to vector<32x256xbf16>
    %cst_201 = arith.constant dense<0.000000e+00> : vector<16x256xf32>
    %478 = tpu.matmul %476, %477, %cst_201 {dimension_numbers = #tpu.dot_dimension_numbers<[1], [0], [0], [1], [0, 0, 1, 1], [], []>} : vector<16x32xbf16>, vector<32x256xbf16>, vector<16x256xf32> -> vector<16x256xf32>
    %479 = arith.addf %451, %478 : vector<16x256xf32>
    %480 = vector.extract_strided_slice %377 {offsets = [0, 96], sizes = [16, 32], strides = [1, 1]} : vector<16x256xf32> to vector<16x32xf32>
    %481 = arith.truncf %480 : vector<16x32xf32> to vector<16x32xbf16>
    %482 = vector.extract_strided_slice %384 {offsets = [0, 96], sizes = [16, 32], strides = [1, 1]} : vector<16x256xf32> to vector<16x32xf32>
    %483 = arith.truncf %482 : vector<16x32xf32> to vector<16x32xbf16>
    %484 = vector.extract_strided_slice %392 {offsets = [0, 96], sizes = [16, 32], strides = [1, 1]} : vector<16x256xf32> to vector<16x32xf32>
    %485 = arith.truncf %484 : vector<16x32xf32> to vector<16x32xbf16>
    %cst_202 = arith.constant dense<0.000000e+00> : vector<16x16xf32>
    %486 = tpu.matmul %481, %483, %cst_202 {dimension_numbers = #tpu.dot_dimension_numbers<[1], [1], [0], [0], [0, 0, 1, 0], [], []>} : vector<16x32xbf16>, vector<16x32xbf16>, vector<16x16xf32> -> vector<16x16xf32>
    %cst_203 = arith.constant 0.176776692 : f32
    %487 = vector.broadcast %cst_203 : f32 to vector<16x16xf32>
    %488 = arith.mulf %486, %487 : vector<16x16xf32>
    %489 = vector.broadcast %5 : vector<1x16xf32> to vector<16x16xf32>
    %490 = arith.addf %488, %489 : vector<16x16xf32>
    %cst_204 = arith.constant dense<0xFF800000> : vector<16xf32>
    %491 = vector.multi_reduction <maximumf>, %490, %cst_204 [1] : vector<16x16xf32> to vector<16xf32>
    %cst_205 = arith.constant 0xFF800000 : f32
    %492 = vector.broadcast %cst_205 : f32 to vector<16xf32>
    %493 = arith.maximumf %492, %491 : vector<16xf32>
    %494 = vector.shape_cast %493 : vector<16xf32> to vector<16x1xf32>
    %495 = vector.broadcast %494 : vector<16x1xf32> to vector<16x16xf32>
    %496 = arith.subf %490, %495 : vector<16x16xf32>
    %497 = math.exp %496 : vector<16x16xf32>
    %cst_206 = arith.constant dense<0.000000e+00> : vector<16xf32>
    %498 = vector.multi_reduction <add>, %497, %cst_206 [1] : vector<16x16xf32> to vector<16xf32>
    %499 = vector.shape_cast %498 : vector<16xf32> to vector<16x1xf32>
    %500 = vector.broadcast %499 : vector<16x1xf32> to vector<16x16xf32>
    %501 = arith.divf %497, %500 : vector<16x16xf32>
    %502 = arith.truncf %501 : vector<16x16xf32> to vector<16x16xbf16>
    %cst_207 = arith.constant dense<0.000000e+00> : vector<16x32xf32>
    %503 = tpu.matmul %502, %485, %cst_207 {dimension_numbers = #tpu.dot_dimension_numbers<[1], [0], [0], [1], [0, 0, 1, 1], [], []>} : vector<16x16xbf16>, vector<16x32xbf16>, vector<16x32xf32> -> vector<16x32xf32>
    %504 = arith.truncf %503 : vector<16x32xf32> to vector<16x32xbf16>
    %505 = vector.extract_strided_slice %394 {offsets = [96, 0], sizes = [32, 256], strides = [1, 1]} : vector<256x256xbf16> to vector<32x256xbf16>
    %cst_208 = arith.constant dense<0.000000e+00> : vector<16x256xf32>
    %506 = tpu.matmul %504, %505, %cst_208 {dimension_numbers = #tpu.dot_dimension_numbers<[1], [0], [0], [1], [0, 0, 1, 1], [], []>} : vector<16x32xbf16>, vector<32x256xbf16>, vector<16x256xf32> -> vector<16x256xf32>
    %507 = arith.addf %479, %506 : vector<16x256xf32>
    %508 = vector.extract_strided_slice %377 {offsets = [0, 128], sizes = [16, 32], strides = [1, 1]} : vector<16x256xf32> to vector<16x32xf32>
    %509 = arith.truncf %508 : vector<16x32xf32> to vector<16x32xbf16>
    %510 = vector.extract_strided_slice %384 {offsets = [0, 128], sizes = [16, 32], strides = [1, 1]} : vector<16x256xf32> to vector<16x32xf32>
    %511 = arith.truncf %510 : vector<16x32xf32> to vector<16x32xbf16>
    %512 = vector.extract_strided_slice %392 {offsets = [0, 128], sizes = [16, 32], strides = [1, 1]} : vector<16x256xf32> to vector<16x32xf32>
    %513 = arith.truncf %512 : vector<16x32xf32> to vector<16x32xbf16>
    %cst_209 = arith.constant dense<0.000000e+00> : vector<16x16xf32>
    %514 = tpu.matmul %509, %511, %cst_209 {dimension_numbers = #tpu.dot_dimension_numbers<[1], [1], [0], [0], [0, 0, 1, 0], [], []>} : vector<16x32xbf16>, vector<16x32xbf16>, vector<16x16xf32> -> vector<16x16xf32>
    %cst_210 = arith.constant 0.176776692 : f32
    %515 = vector.broadcast %cst_210 : f32 to vector<16x16xf32>
    %516 = arith.mulf %514, %515 : vector<16x16xf32>
    %517 = vector.broadcast %5 : vector<1x16xf32> to vector<16x16xf32>
    %518 = arith.addf %516, %517 : vector<16x16xf32>
    %cst_211 = arith.constant dense<0xFF800000> : vector<16xf32>
    %519 = vector.multi_reduction <maximumf>, %518, %cst_211 [1] : vector<16x16xf32> to vector<16xf32>
    %cst_212 = arith.constant 0xFF800000 : f32
    %520 = vector.broadcast %cst_212 : f32 to vector<16xf32>
    %521 = arith.maximumf %520, %519 : vector<16xf32>
    %522 = vector.shape_cast %521 : vector<16xf32> to vector<16x1xf32>
    %523 = vector.broadcast %522 : vector<16x1xf32> to vector<16x16xf32>
    %524 = arith.subf %518, %523 : vector<16x16xf32>
    %525 = math.exp %524 : vector<16x16xf32>
    %cst_213 = arith.constant dense<0.000000e+00> : vector<16xf32>
    %526 = vector.multi_reduction <add>, %525, %cst_213 [1] : vector<16x16xf32> to vector<16xf32>
    %527 = vector.shape_cast %526 : vector<16xf32> to vector<16x1xf32>
    %528 = vector.broadcast %527 : vector<16x1xf32> to vector<16x16xf32>
    %529 = arith.divf %525, %528 : vector<16x16xf32>
    %530 = arith.truncf %529 : vector<16x16xf32> to vector<16x16xbf16>
    %cst_214 = arith.constant dense<0.000000e+00> : vector<16x32xf32>
    %531 = tpu.matmul %530, %513, %cst_214 {dimension_numbers = #tpu.dot_dimension_numbers<[1], [0], [0], [1], [0, 0, 1, 1], [], []>} : vector<16x16xbf16>, vector<16x32xbf16>, vector<16x32xf32> -> vector<16x32xf32>
    %532 = arith.truncf %531 : vector<16x32xf32> to vector<16x32xbf16>
    %533 = vector.extract_strided_slice %394 {offsets = [128, 0], sizes = [32, 256], strides = [1, 1]} : vector<256x256xbf16> to vector<32x256xbf16>
    %cst_215 = arith.constant dense<0.000000e+00> : vector<16x256xf32>
    %534 = tpu.matmul %532, %533, %cst_215 {dimension_numbers = #tpu.dot_dimension_numbers<[1], [0], [0], [1], [0, 0, 1, 1], [], []>} : vector<16x32xbf16>, vector<32x256xbf16>, vector<16x256xf32> -> vector<16x256xf32>
    %535 = arith.addf %507, %534 : vector<16x256xf32>
    %536 = vector.extract_strided_slice %377 {offsets = [0, 160], sizes = [16, 32], strides = [1, 1]} : vector<16x256xf32> to vector<16x32xf32>
    %537 = arith.truncf %536 : vector<16x32xf32> to vector<16x32xbf16>
    %538 = vector.extract_strided_slice %384 {offsets = [0, 160], sizes = [16, 32], strides = [1, 1]} : vector<16x256xf32> to vector<16x32xf32>
    %539 = arith.truncf %538 : vector<16x32xf32> to vector<16x32xbf16>
    %540 = vector.extract_strided_slice %392 {offsets = [0, 160], sizes = [16, 32], strides = [1, 1]} : vector<16x256xf32> to vector<16x32xf32>
    %541 = arith.truncf %540 : vector<16x32xf32> to vector<16x32xbf16>
    %cst_216 = arith.constant dense<0.000000e+00> : vector<16x16xf32>
    %542 = tpu.matmul %537, %539, %cst_216 {dimension_numbers = #tpu.dot_dimension_numbers<[1], [1], [0], [0], [0, 0, 1, 0], [], []>} : vector<16x32xbf16>, vector<16x32xbf16>, vector<16x16xf32> -> vector<16x16xf32>
    %cst_217 = arith.constant 0.176776692 : f32
    %543 = vector.broadcast %cst_217 : f32 to vector<16x16xf32>
    %544 = arith.mulf %542, %543 : vector<16x16xf32>
    %545 = vector.broadcast %5 : vector<1x16xf32> to vector<16x16xf32>
    %546 = arith.addf %544, %545 : vector<16x16xf32>
    %cst_218 = arith.constant dense<0xFF800000> : vector<16xf32>
    %547 = vector.multi_reduction <maximumf>, %546, %cst_218 [1] : vector<16x16xf32> to vector<16xf32>
    %cst_219 = arith.constant 0xFF800000 : f32
    %548 = vector.broadcast %cst_219 : f32 to vector<16xf32>
    %549 = arith.maximumf %548, %547 : vector<16xf32>
    %550 = vector.shape_cast %549 : vector<16xf32> to vector<16x1xf32>
    %551 = vector.broadcast %550 : vector<16x1xf32> to vector<16x16xf32>
    %552 = arith.subf %546, %551 : vector<16x16xf32>
    %553 = math.exp %552 : vector<16x16xf32>
    %cst_220 = arith.constant dense<0.000000e+00> : vector<16xf32>
    %554 = vector.multi_reduction <add>, %553, %cst_220 [1] : vector<16x16xf32> to vector<16xf32>
    %555 = vector.shape_cast %554 : vector<16xf32> to vector<16x1xf32>
    %556 = vector.broadcast %555 : vector<16x1xf32> to vector<16x16xf32>
    %557 = arith.divf %553, %556 : vector<16x16xf32>
    %558 = arith.truncf %557 : vector<16x16xf32> to vector<16x16xbf16>
    %cst_221 = arith.constant dense<0.000000e+00> : vector<16x32xf32>
    %559 = tpu.matmul %558, %541, %cst_221 {dimension_numbers = #tpu.dot_dimension_numbers<[1], [0], [0], [1], [0, 0, 1, 1], [], []>} : vector<16x16xbf16>, vector<16x32xbf16>, vector<16x32xf32> -> vector<16x32xf32>
    %560 = arith.truncf %559 : vector<16x32xf32> to vector<16x32xbf16>
    %561 = vector.extract_strided_slice %394 {offsets = [160, 0], sizes = [32, 256], strides = [1, 1]} : vector<256x256xbf16> to vector<32x256xbf16>
    %cst_222 = arith.constant dense<0.000000e+00> : vector<16x256xf32>
    %562 = tpu.matmul %560, %561, %cst_222 {dimension_numbers = #tpu.dot_dimension_numbers<[1], [0], [0], [1], [0, 0, 1, 1], [], []>} : vector<16x32xbf16>, vector<32x256xbf16>, vector<16x256xf32> -> vector<16x256xf32>
    %563 = arith.addf %535, %562 : vector<16x256xf32>
    %564 = vector.extract_strided_slice %377 {offsets = [0, 192], sizes = [16, 32], strides = [1, 1]} : vector<16x256xf32> to vector<16x32xf32>
    %565 = arith.truncf %564 : vector<16x32xf32> to vector<16x32xbf16>
    %566 = vector.extract_strided_slice %384 {offsets = [0, 192], sizes = [16, 32], strides = [1, 1]} : vector<16x256xf32> to vector<16x32xf32>
    %567 = arith.truncf %566 : vector<16x32xf32> to vector<16x32xbf16>
    %568 = vector.extract_strided_slice %392 {offsets = [0, 192], sizes = [16, 32], strides = [1, 1]} : vector<16x256xf32> to vector<16x32xf32>
    %569 = arith.truncf %568 : vector<16x32xf32> to vector<16x32xbf16>
    %cst_223 = arith.constant dense<0.000000e+00> : vector<16x16xf32>
    %570 = tpu.matmul %565, %567, %cst_223 {dimension_numbers = #tpu.dot_dimension_numbers<[1], [1], [0], [0], [0, 0, 1, 0], [], []>} : vector<16x32xbf16>, vector<16x32xbf16>, vector<16x16xf32> -> vector<16x16xf32>
    %cst_224 = arith.constant 0.176776692 : f32
    %571 = vector.broadcast %cst_224 : f32 to vector<16x16xf32>
    %572 = arith.mulf %570, %571 : vector<16x16xf32>
    %573 = vector.broadcast %5 : vector<1x16xf32> to vector<16x16xf32>
    %574 = arith.addf %572, %573 : vector<16x16xf32>
    %cst_225 = arith.constant dense<0xFF800000> : vector<16xf32>
    %575 = vector.multi_reduction <maximumf>, %574, %cst_225 [1] : vector<16x16xf32> to vector<16xf32>
    %cst_226 = arith.constant 0xFF800000 : f32
    %576 = vector.broadcast %cst_226 : f32 to vector<16xf32>
    %577 = arith.maximumf %576, %575 : vector<16xf32>
    %578 = vector.shape_cast %577 : vector<16xf32> to vector<16x1xf32>
    %579 = vector.broadcast %578 : vector<16x1xf32> to vector<16x16xf32>
    %580 = arith.subf %574, %579 : vector<16x16xf32>
    %581 = math.exp %580 : vector<16x16xf32>
    %cst_227 = arith.constant dense<0.000000e+00> : vector<16xf32>
    %582 = vector.multi_reduction <add>, %581, %cst_227 [1] : vector<16x16xf32> to vector<16xf32>
    %583 = vector.shape_cast %582 : vector<16xf32> to vector<16x1xf32>
    %584 = vector.broadcast %583 : vector<16x1xf32> to vector<16x16xf32>
    %585 = arith.divf %581, %584 : vector<16x16xf32>
    %586 = arith.truncf %585 : vector<16x16xf32> to vector<16x16xbf16>
    %cst_228 = arith.constant dense<0.000000e+00> : vector<16x32xf32>
    %587 = tpu.matmul %586, %569, %cst_228 {dimension_numbers = #tpu.dot_dimension_numbers<[1], [0], [0], [1], [0, 0, 1, 1], [], []>} : vector<16x16xbf16>, vector<16x32xbf16>, vector<16x32xf32> -> vector<16x32xf32>
    %588 = arith.truncf %587 : vector<16x32xf32> to vector<16x32xbf16>
    %589 = vector.extract_strided_slice %394 {offsets = [192, 0], sizes = [32, 256], strides = [1, 1]} : vector<256x256xbf16> to vector<32x256xbf16>
    %cst_229 = arith.constant dense<0.000000e+00> : vector<16x256xf32>
    %590 = tpu.matmul %588, %589, %cst_229 {dimension_numbers = #tpu.dot_dimension_numbers<[1], [0], [0], [1], [0, 0, 1, 1], [], []>} : vector<16x32xbf16>, vector<32x256xbf16>, vector<16x256xf32> -> vector<16x256xf32>
    %591 = arith.addf %563, %590 : vector<16x256xf32>
    %592 = vector.extract_strided_slice %377 {offsets = [0, 224], sizes = [16, 32], strides = [1, 1]} : vector<16x256xf32> to vector<16x32xf32>
    %593 = arith.truncf %592 : vector<16x32xf32> to vector<16x32xbf16>
    %594 = vector.extract_strided_slice %384 {offsets = [0, 224], sizes = [16, 32], strides = [1, 1]} : vector<16x256xf32> to vector<16x32xf32>
    %595 = arith.truncf %594 : vector<16x32xf32> to vector<16x32xbf16>
    %596 = vector.extract_strided_slice %392 {offsets = [0, 224], sizes = [16, 32], strides = [1, 1]} : vector<16x256xf32> to vector<16x32xf32>
    %597 = arith.truncf %596 : vector<16x32xf32> to vector<16x32xbf16>
    %cst_230 = arith.constant dense<0.000000e+00> : vector<16x16xf32>
    %598 = tpu.matmul %593, %595, %cst_230 {dimension_numbers = #tpu.dot_dimension_numbers<[1], [1], [0], [0], [0, 0, 1, 0], [], []>} : vector<16x32xbf16>, vector<16x32xbf16>, vector<16x16xf32> -> vector<16x16xf32>
    %cst_231 = arith.constant 0.176776692 : f32
    %599 = vector.broadcast %cst_231 : f32 to vector<16x16xf32>
    %600 = arith.mulf %598, %599 : vector<16x16xf32>
    %601 = vector.broadcast %5 : vector<1x16xf32> to vector<16x16xf32>
    %602 = arith.addf %600, %601 : vector<16x16xf32>
    %cst_232 = arith.constant dense<0xFF800000> : vector<16xf32>
    %603 = vector.multi_reduction <maximumf>, %602, %cst_232 [1] : vector<16x16xf32> to vector<16xf32>
    %cst_233 = arith.constant 0xFF800000 : f32
    %604 = vector.broadcast %cst_233 : f32 to vector<16xf32>
    %605 = arith.maximumf %604, %603 : vector<16xf32>
    %606 = vector.shape_cast %605 : vector<16xf32> to vector<16x1xf32>
    %607 = vector.broadcast %606 : vector<16x1xf32> to vector<16x16xf32>
    %608 = arith.subf %602, %607 : vector<16x16xf32>
    %609 = math.exp %608 : vector<16x16xf32>
    %cst_234 = arith.constant dense<0.000000e+00> : vector<16xf32>
    %610 = vector.multi_reduction <add>, %609, %cst_234 [1] : vector<16x16xf32> to vector<16xf32>
    %611 = vector.shape_cast %610 : vector<16xf32> to vector<16x1xf32>
    %612 = vector.broadcast %611 : vector<16x1xf32> to vector<16x16xf32>
    %613 = arith.divf %609, %612 : vector<16x16xf32>
    %614 = arith.truncf %613 : vector<16x16xf32> to vector<16x16xbf16>
    %cst_235 = arith.constant dense<0.000000e+00> : vector<16x32xf32>
    %615 = tpu.matmul %614, %597, %cst_235 {dimension_numbers = #tpu.dot_dimension_numbers<[1], [0], [0], [1], [0, 0, 1, 1], [], []>} : vector<16x16xbf16>, vector<16x32xbf16>, vector<16x32xf32> -> vector<16x32xf32>
    %616 = arith.truncf %615 : vector<16x32xf32> to vector<16x32xbf16>
    %617 = vector.extract_strided_slice %394 {offsets = [224, 0], sizes = [32, 256], strides = [1, 1]} : vector<256x256xbf16> to vector<32x256xbf16>
    %cst_236 = arith.constant dense<0.000000e+00> : vector<16x256xf32>
    %618 = tpu.matmul %616, %617, %cst_236 {dimension_numbers = #tpu.dot_dimension_numbers<[1], [0], [0], [1], [0, 0, 1, 1], [], []>} : vector<16x32xbf16>, vector<32x256xbf16>, vector<16x256xf32> -> vector<16x256xf32>
    %619 = arith.addf %591, %618 : vector<16x256xf32>
    %c1_237 = arith.constant 1 : index
    %c0_238 = arith.constant 0 : index
    %c0_239 = arith.constant 0 : index
    %620 = vector.load %arg17[%c1_237, %c0_238, %c0_239] : memref<2x1x256xf32, #tpu.memory_space<vmem>>, vector<1x1x256xf32>
    %621 = vector.shape_cast %620 : vector<1x1x256xf32> to vector<1x256xf32>
    %622 = vector.broadcast %621 : vector<1x256xf32> to vector<16x256xf32>
    %623 = arith.addf %619, %622 : vector<16x256xf32>
    %624 = arith.addf %361, %623 : vector<16x256xf32>
    %c1_240 = arith.constant 1 : index
    %c0_241 = arith.constant 0 : index
    %c0_242 = arith.constant 0 : index
    %625 = vector.load %arg18[%c1_240, %c0_241, %c0_242] : memref<2x1x256xf32, #tpu.memory_space<vmem>>, vector<1x1x256xf32>
    %626 = vector.shape_cast %625 : vector<1x1x256xf32> to vector<1x256xf32>
    %c1_243 = arith.constant 1 : index
    %c0_244 = arith.constant 0 : index
    %c0_245 = arith.constant 0 : index
    %627 = vector.load %arg19[%c1_243, %c0_244, %c0_245] : memref<2x1x256xf32, #tpu.memory_space<vmem>>, vector<1x1x256xf32>
    %628 = vector.shape_cast %627 : vector<1x1x256xf32> to vector<1x256xf32>
    %cst_246 = arith.constant dense<0.000000e+00> : vector<16xf32>
    %629 = vector.multi_reduction <add>, %624, %cst_246 [1] : vector<16x256xf32> to vector<16xf32>
    %630 = vector.shape_cast %629 : vector<16xf32> to vector<16x1xf32>
    %cst_247 = arith.constant 2.560000e+02 : f32
    %631 = vector.broadcast %cst_247 : f32 to vector<16x1xf32>
    %632 = arith.divf %630, %631 : vector<16x1xf32>
    %633 = vector.broadcast %632 : vector<16x1xf32> to vector<16x256xf32>
    %634 = arith.subf %624, %633 : vector<16x256xf32>
    %635 = arith.mulf %634, %634 : vector<16x256xf32>
    %cst_248 = arith.constant dense<0.000000e+00> : vector<16xf32>
    %636 = vector.multi_reduction <add>, %635, %cst_248 [1] : vector<16x256xf32> to vector<16xf32>
    %637 = vector.shape_cast %636 : vector<16xf32> to vector<16x1xf32>
    %cst_249 = arith.constant 2.560000e+02 : f32
    %638 = vector.broadcast %cst_249 : f32 to vector<16x1xf32>
    %639 = arith.divf %637, %638 : vector<16x1xf32>
    %640 = vector.broadcast %632 : vector<16x1xf32> to vector<16x256xf32>
    %641 = arith.subf %624, %640 : vector<16x256xf32>
    %cst_250 = arith.constant 9.99999974E-6 : f32
    %642 = vector.broadcast %cst_250 : f32 to vector<16x1xf32>
    %643 = arith.addf %639, %642 : vector<16x1xf32>
    %644 = math.rsqrt %643 : vector<16x1xf32>
    %645 = vector.broadcast %644 : vector<16x1xf32> to vector<16x256xf32>
    %646 = arith.mulf %641, %645 : vector<16x256xf32>
    %647 = vector.broadcast %626 : vector<1x256xf32> to vector<16x256xf32>
    %648 = arith.mulf %646, %647 : vector<16x256xf32>
    %649 = vector.broadcast %628 : vector<1x256xf32> to vector<16x256xf32>
    %650 = arith.addf %648, %649 : vector<16x256xf32>
    %651 = arith.truncf %650 : vector<16x256xf32> to vector<16x256xbf16>
    %c1_251 = arith.constant 1 : index
    %c0_252 = arith.constant 0 : index
    %c0_253 = arith.constant 0 : index
    %652 = vector.load %arg20[%c1_251, %c0_252, %c0_253] : memref<2x256x512xbf16, #tpu.memory_space<vmem>>, vector<1x256x512xbf16>
    %653 = vector.shape_cast %652 : vector<1x256x512xbf16> to vector<256x512xbf16>
    %cst_254 = arith.constant dense<0.000000e+00> : vector<16x512xf32>
    %654 = tpu.matmul %651, %653, %cst_254 {dimension_numbers = #tpu.dot_dimension_numbers<[1], [0], [0], [1], [0, 0, 1, 1], [], []>} : vector<16x256xbf16>, vector<256x512xbf16>, vector<16x512xf32> -> vector<16x512xf32>
    %c1_255 = arith.constant 1 : index
    %c0_256 = arith.constant 0 : index
    %c0_257 = arith.constant 0 : index
    %655 = vector.load %arg21[%c1_255, %c0_256, %c0_257] : memref<2x1x512xf32, #tpu.memory_space<vmem>>, vector<1x1x512xf32>
    %656 = vector.shape_cast %655 : vector<1x1x512xf32> to vector<1x512xf32>
    %657 = vector.broadcast %656 : vector<1x512xf32> to vector<16x512xf32>
    %658 = arith.addf %654, %657 : vector<16x512xf32>
    %cst_258 = arith.constant 0.000000e+00 : f32
    %659 = vector.broadcast %cst_258 : f32 to vector<16x512xf32>
    %660 = arith.maximumf %658, %659 : vector<16x512xf32>
    %661 = arith.truncf %660 : vector<16x512xf32> to vector<16x512xbf16>
    %c1_259 = arith.constant 1 : index
    %c0_260 = arith.constant 0 : index
    %c0_261 = arith.constant 0 : index
    %662 = vector.load %arg22[%c1_259, %c0_260, %c0_261] : memref<2x512x256xbf16, #tpu.memory_space<vmem>>, vector<1x512x256xbf16>
    %663 = vector.shape_cast %662 : vector<1x512x256xbf16> to vector<512x256xbf16>
    %cst_262 = arith.constant dense<0.000000e+00> : vector<16x256xf32>
    %664 = tpu.matmul %661, %663, %cst_262 {dimension_numbers = #tpu.dot_dimension_numbers<[1], [0], [0], [1], [0, 0, 1, 1], [], []>} : vector<16x512xbf16>, vector<512x256xbf16>, vector<16x256xf32> -> vector<16x256xf32>
    %c1_263 = arith.constant 1 : index
    %c0_264 = arith.constant 0 : index
    %c0_265 = arith.constant 0 : index
    %665 = vector.load %arg23[%c1_263, %c0_264, %c0_265] : memref<2x1x256xf32, #tpu.memory_space<vmem>>, vector<1x1x256xf32>
    %666 = vector.shape_cast %665 : vector<1x1x256xf32> to vector<1x256xf32>
    %667 = vector.broadcast %666 : vector<1x256xf32> to vector<16x256xf32>
    %668 = arith.addf %664, %667 : vector<16x256xf32>
    %669 = arith.addf %650, %668 : vector<16x256xf32>
    %c1_266 = arith.constant 1 : index
    %c0_267 = arith.constant 0 : index
    %c0_268 = arith.constant 0 : index
    %670 = vector.load %arg24[%c1_266, %c0_267, %c0_268] : memref<2x1x256xf32, #tpu.memory_space<vmem>>, vector<1x1x256xf32>
    %671 = vector.shape_cast %670 : vector<1x1x256xf32> to vector<1x256xf32>
    %c1_269 = arith.constant 1 : index
    %c0_270 = arith.constant 0 : index
    %c0_271 = arith.constant 0 : index
    %672 = vector.load %arg25[%c1_269, %c0_270, %c0_271] : memref<2x1x256xf32, #tpu.memory_space<vmem>>, vector<1x1x256xf32>
    %673 = vector.shape_cast %672 : vector<1x1x256xf32> to vector<1x256xf32>
    %cst_272 = arith.constant dense<0.000000e+00> : vector<16xf32>
    %674 = vector.multi_reduction <add>, %669, %cst_272 [1] : vector<16x256xf32> to vector<16xf32>
    %675 = vector.shape_cast %674 : vector<16xf32> to vector<16x1xf32>
    %cst_273 = arith.constant 2.560000e+02 : f32
    %676 = vector.broadcast %cst_273 : f32 to vector<16x1xf32>
    %677 = arith.divf %675, %676 : vector<16x1xf32>
    %678 = vector.broadcast %677 : vector<16x1xf32> to vector<16x256xf32>
    %679 = arith.subf %669, %678 : vector<16x256xf32>
    %680 = arith.mulf %679, %679 : vector<16x256xf32>
    %cst_274 = arith.constant dense<0.000000e+00> : vector<16xf32>
    %681 = vector.multi_reduction <add>, %680, %cst_274 [1] : vector<16x256xf32> to vector<16xf32>
    %682 = vector.shape_cast %681 : vector<16xf32> to vector<16x1xf32>
    %cst_275 = arith.constant 2.560000e+02 : f32
    %683 = vector.broadcast %cst_275 : f32 to vector<16x1xf32>
    %684 = arith.divf %682, %683 : vector<16x1xf32>
    %685 = vector.broadcast %677 : vector<16x1xf32> to vector<16x256xf32>
    %686 = arith.subf %669, %685 : vector<16x256xf32>
    %cst_276 = arith.constant 9.99999974E-6 : f32
    %687 = vector.broadcast %cst_276 : f32 to vector<16x1xf32>
    %688 = arith.addf %684, %687 : vector<16x1xf32>
    %689 = math.rsqrt %688 : vector<16x1xf32>
    %690 = vector.broadcast %689 : vector<16x1xf32> to vector<16x256xf32>
    %691 = arith.mulf %686, %690 : vector<16x256xf32>
    %692 = vector.broadcast %671 : vector<1x256xf32> to vector<16x256xf32>
    %693 = arith.mulf %691, %692 : vector<16x256xf32>
    %694 = vector.broadcast %673 : vector<1x256xf32> to vector<16x256xf32>
    %695 = arith.addf %693, %694 : vector<16x256xf32>
    %c0_277 = arith.constant 0 : index
    %c0_278 = arith.constant 0 : index
    %c0_279 = arith.constant 0 : index
    %696 = vector.load %arg26[%c0_277, %c0_278, %c0_279] : memref<1x16x256xf32, #tpu.memory_space<vmem>>, vector<1x16x256xf32>
    %697 = vector.shape_cast %696 : vector<1x16x256xf32> to vector<16x256xf32>
    %698 = vector.shape_cast %695 : vector<16x256xf32> to vector<1x16x256xf32>
    tpu.vector_store %arg26[%c0_277, %c0_278, %c0_279], %698 {strides = array<i32>} : memref<1x16x256xf32, #tpu.memory_space<vmem>>, vector<1x16x256xf32>,
    return
  }
  func.func @transform_0(%arg0: i32) -> (i32, i32, i32) {
    %c0_i32 = arith.constant 0 : i32
    %c0_i32_0 = arith.constant 0 : i32
    %c0_i32_1 = arith.constant 0 : i32
    return %arg0, %c0_i32, %c0_i32_0 : i32, i32, i32
  }
  func.func @transform_1(%arg0: i32) -> (i32, i32, i32) {
    %c0_i32 = arith.constant 0 : i32
    %c0_i32_0 = arith.constant 0 : i32
    %c0_i32_1 = arith.constant 0 : i32
    return %arg0, %c0_i32, %c0_i32_0 : i32, i32, i32
  }
  func.func @transform_2(%arg0: i32) -> (i32, i32, i32) {
    %c0_i32 = arith.constant 0 : i32
    %c0_i32_0 = arith.constant 0 : i32
    %c0_i32_1 = arith.constant 0 : i32
    return %arg0, %c0_i32, %c0_i32_0 : i32, i32, i32
  }
  func.func @transform_3(%arg0: i32) -> (i32, i32) {
    %c0_i32 = arith.constant 0 : i32
    %c0_i32_0 = arith.constant 0 : i32
    %c0_i32_1 = arith.constant 0 : i32
    return %c0_i32, %c0_i32_0 : i32, i32
  }
  func.func @transform_4(%arg0: i32) -> (i32, i32) {
    %c0_i32 = arith.constant 0 : i32
    %c0_i32_0 = arith.constant 0 : i32
    %c0_i32_1 = arith.constant 0 : i32
    return %c0_i32, %c0_i32_0 : i32, i32
  }
  func.func @transform_5(%arg0: i32) -> (i32, i32) {
    %c0_i32 = arith.constant 0 : i32
    %c0_i32_0 = arith.constant 0 : i32
    %c0_i32_1 = arith.constant 0 : i32
    return %c0_i32, %c0_i32_0 : i32, i32
  }
  func.func @transform_6(%arg0: i32) -> (i32, i32) {
    %c0_i32 = arith.constant 0 : i32
    %c0_i32_0 = arith.constant 0 : i32
    %c0_i32_1 = arith.constant 0 : i32
    return %c0_i32, %c0_i32_0 : i32, i32
  }
  func.func @transform_7(%arg0: i32) -> (i32, i32, i32) {
    %c0_i32 = arith.constant 0 : i32
    %c0_i32_0 = arith.constant 0 : i32
    %c0_i32_1 = arith.constant 0 : i32
    %c0_i32_2 = arith.constant 0 : i32
    return %c0_i32, %c0_i32_0, %c0_i32_1 : i32, i32, i32
  }
  func.func @transform_8(%arg0: i32) -> (i32, i32, i32) {
    %c0_i32 = arith.constant 0 : i32
    %c0_i32_0 = arith.constant 0 : i32
    %c0_i32_1 = arith.constant 0 : i32
    %c0_i32_2 = arith.constant 0 : i32
    return %c0_i32, %c0_i32_0, %c0_i32_1 : i32, i32, i32
  }
  func.func @transform_9(%arg0: i32) -> (i32, i32, i32) {
    %c0_i32 = arith.constant 0 : i32
    %c0_i32_0 = arith.constant 0 : i32
    %c0_i32_1 = arith.constant 0 : i32
    %c0_i32_2 = arith.constant 0 : i32
    return %c0_i32, %c0_i32_0, %c0_i32_1 : i32, i32, i32
  }
  func.func @transform_10(%arg0: i32) -> (i32, i32, i32) {
    %c0_i32 = arith.constant 0 : i32
    %c0_i32_0 = arith.constant 0 : i32
    %c0_i32_1 = arith.constant 0 : i32
    %c0_i32_2 = arith.constant 0 : i32
    return %c0_i32, %c0_i32_0, %c0_i32_1 : i32, i32, i32
  }
  func.func @transform_11(%arg0: i32) -> (i32, i32, i32) {
    %c0_i32 = arith.constant 0 : i32
    %c0_i32_0 = arith.constant 0 : i32
    %c0_i32_1 = arith.constant 0 : i32
    %c0_i32_2 = arith.constant 0 : i32
    return %c0_i32, %c0_i32_0, %c0_i32_1 : i32, i32, i32
  }
  func.func @transform_12(%arg0: i32) -> (i32, i32, i32) {
    %c0_i32 = arith.constant 0 : i32
    %c0_i32_0 = arith.constant 0 : i32
    %c0_i32_1 = arith.constant 0 : i32
    %c0_i32_2 = arith.constant 0 : i32
    return %c0_i32, %c0_i32_0, %c0_i32_1 : i32, i32, i32
  }
  func.func @transform_13(%arg0: i32) -> (i32, i32, i32) {
    %c0_i32 = arith.constant 0 : i32
    %c0_i32_0 = arith.constant 0 : i32
    %c0_i32_1 = arith.constant 0 : i32
    %c0_i32_2 = arith.constant 0 : i32
    return %c0_i32, %c0_i32_0, %c0_i32_1 : i32, i32, i32
  }
  func.func @transform_14(%arg0: i32) -> (i32, i32, i32) {
    %c0_i32 = arith.constant 0 : i32
    %c0_i32_0 = arith.constant 0 : i32
    %c0_i32_1 = arith.constant 0 : i32
    %c0_i32_2 = arith.constant 0 : i32
    return %c0_i32, %c0_i32_0, %c0_i32_1 : i32, i32, i32
  }
  func.func @transform_15(%arg0: i32) -> (i32, i32, i32) {
    %c0_i32 = arith.constant 0 : i32
    %c0_i32_0 = arith.constant 0 : i32
    %c0_i32_1 = arith.constant 0 : i32
    %c0_i32_2 = arith.constant 0 : i32
    return %c0_i32, %c0_i32_0, %c0_i32_1 : i32, i32, i32
  }
  func.func @transform_16(%arg0: i32) -> (i32, i32, i32) {
    %c0_i32 = arith.constant 0 : i32
    %c0_i32_0 = arith.constant 0 : i32
    %c0_i32_1 = arith.constant 0 : i32
    %c0_i32_2 = arith.constant 0 : i32
    return %c0_i32, %c0_i32_0, %c0_i32_1 : i32, i32, i32
  }
  func.func @transform_17(%arg0: i32) -> (i32, i32, i32) {
    %c0_i32 = arith.constant 0 : i32
    %c0_i32_0 = arith.constant 0 : i32
    %c0_i32_1 = arith.constant 0 : i32
    %c0_i32_2 = arith.constant 0 : i32
    return %c0_i32, %c0_i32_0, %c0_i32_1 : i32, i32, i32
  }
  func.func @transform_18(%arg0: i32) -> (i32, i32, i32) {
    %c0_i32 = arith.constant 0 : i32
    %c0_i32_0 = arith.constant 0 : i32
    %c0_i32_1 = arith.constant 0 : i32
    %c0_i32_2 = arith.constant 0 : i32
    return %c0_i32, %c0_i32_0, %c0_i32_1 : i32, i32, i32
  }
  func.func @transform_19(%arg0: i32) -> (i32, i32, i32) {
    %c0_i32 = arith.constant 0 : i32
    %c0_i32_0 = arith.constant 0 : i32
    %c0_i32_1 = arith.constant 0 : i32
    %c0_i32_2 = arith.constant 0 : i32
    return %c0_i32, %c0_i32_0, %c0_i32_1 : i32, i32, i32
  }
  func.func @transform_20(%arg0: i32) -> (i32, i32, i32) {
    %c0_i32 = arith.constant 0 : i32
    %c0_i32_0 = arith.constant 0 : i32
    %c0_i32_1 = arith.constant 0 : i32
    %c0_i32_2 = arith.constant 0 : i32
    return %c0_i32, %c0_i32_0, %c0_i32_1 : i32, i32, i32
  }
  func.func @transform_21(%arg0: i32) -> (i32, i32, i32) {
    %c0_i32 = arith.constant 0 : i32
    %c0_i32_0 = arith.constant 0 : i32
    %c0_i32_1 = arith.constant 0 : i32
    %c0_i32_2 = arith.constant 0 : i32
    return %c0_i32, %c0_i32_0, %c0_i32_1 : i32, i32, i32
  }
  func.func @transform_22(%arg0: i32) -> (i32, i32, i32) {
    %c0_i32 = arith.constant 0 : i32
    %c0_i32_0 = arith.constant 0 : i32
    %c0_i32_1 = arith.constant 0 : i32
    %c0_i32_2 = arith.constant 0 : i32
    return %c0_i32, %c0_i32_0, %c0_i32_1 : i32, i32, i32
  }
  func.func @transform_23(%arg0: i32) -> (i32, i32, i32) {
    %c0_i32 = arith.constant 0 : i32
    %c0_i32_0 = arith.constant 0 : i32
    %c0_i32_1 = arith.constant 0 : i32
    %c0_i32_2 = arith.constant 0 : i32
    return %c0_i32, %c0_i32_0, %c0_i32_1 : i32, i32, i32
  }
  func.func @transform_24(%arg0: i32) -> (i32, i32, i32) {
    %c0_i32 = arith.constant 0 : i32
    %c0_i32_0 = arith.constant 0 : i32
    %c0_i32_1 = arith.constant 0 : i32
    %c0_i32_2 = arith.constant 0 : i32
    return %c0_i32, %c0_i32_0, %c0_i32_1 : i32, i32, i32
  }
  func.func @transform_25(%arg0: i32) -> (i32, i32, i32) {
    %c0_i32 = arith.constant 0 : i32
    %c0_i32_0 = arith.constant 0 : i32
    %c0_i32_1 = arith.constant 0 : i32
    return %arg0, %c0_i32, %c0_i32_0 : i32, i32, i32
  }
  func.func @transform_26(%arg0: i32) -> (i32, i32, i32) {
    %c0_i32 = arith.constant 0 : i32
    %c0_i32_0 = arith.constant 0 : i32
    %c0_i32_1 = arith.constant 0 : i32
    return %arg0, %c0_i32, %c0_i32_0 : i32, i32, i32
  }
}

</mosaic_0001>

<llo_original>
// kernel: _token_stage_impl.1
$region0: #{_token_stage_impl.1}
  #allocation0 [shape = 'u32[]', space=smem, size = 0x4, offset = 0x4, fixed_abs, tag = 'smem constant byte address 0x4 - core index']
  #allocation1 [shape = 'u32[144,128]{1,0:T(1,128)}', space=vmem, size = 0x12000, scoped, tag = 'internal scratch']
  %s0 = inlined_call_operand.hbm [shape: f32[2,16,256], index: 0, kind: input, shape index: {}]
  %s1 = inlined_call_operand.vmem [shape: bf16[2,16,512], index: 1, kind: input, shape index: {}]
  %s2 = inlined_call_operand.vmem [shape: f32[2,1,16], index: 2, kind: input, shape index: {}]
  %s3 = inlined_call_operand.vmem [shape: bf16[256,256], index: 3, kind: input, shape index: {}]
  %s4 = inlined_call_operand.vmem [shape: f32[1,256], index: 4, kind: input, shape index: {}]
  %s5 = inlined_call_operand.vmem [shape: bf16[256,128], index: 5, kind: input, shape index: {}]
  %s6 = inlined_call_operand.vmem [shape: f32[1,128], index: 6, kind: input, shape index: {}]
  %s7 = inlined_call_operand.vmem [shape: bf16[2,512,256], index: 7, kind: input, shape index: {}]
  %s8 = inlined_call_operand.hbm [shape: f32[2,1,256], index: 8, kind: input, shape index: {}]
  %s9 = inlined_call_operand.vmem [shape: bf16[2,256,256], index: 9, kind: input, shape index: {}]
  %s10 = inlined_call_operand.hbm [shape: f32[2,1,256], index: 10, kind: input, shape index: {}]
  %s11 = inlined_call_operand.vmem [shape: bf16[2,256,256], index: 11, kind: input, shape index: {}]
  %s12 = inlined_call_operand.hbm [shape: f32[2,1,256], index: 12, kind: input, shape index: {}]
  %s13 = inlined_call_operand.vmem [shape: bf16[2,256,256], index: 13, kind: input, shape index: {}]
  %s14 = inlined_call_operand.hbm [shape: f32[2,1,256], index: 14, kind: input, shape index: {}]
  %s15 = inlined_call_operand.hbm [shape: bf16[2,256,256], index: 15, kind: input, shape index: {}]
  %s16 = inlined_call_operand.hbm [shape: f32[2,1,256], index: 16, kind: input, shape index: {}]
  %s17 = inlined_call_operand.hbm [shape: f32[2,1,256], index: 17, kind: input, shape index: {}]
  %s18 = inlined_call_operand.hbm [shape: f32[2,1,256], index: 18, kind: input, shape index: {}]
  %s19 = inlined_call_operand.vmem [shape: bf16[2,256,512], index: 19, kind: input, shape index: {}]
  %s20 = inlined_call_operand.hbm [shape: f32[2,1,512], index: 20, kind: input, shape index: {}]
  %s21 = inlined_call_operand.vmem [shape: bf16[2,512,256], index: 21, kind: input, shape index: {}]
  %s22 = inlined_call_operand.hbm [shape: f32[2,1,256], index: 22, kind: input, shape index: {}]
  %s23 = inlined_call_operand.vmem [shape: f32[2,1,256], index: 23, kind: input, shape index: {}]
  %s24 = inlined_call_operand.hbm [shape: f32[2,1,256], index: 24, kind: input, shape index: {}]
  %s25 = inlined_call_operand.hbm [shape: f32[2,16,256], index: 25, kind: output, shape index: {0}]
  %s26 = inlined_call_operand.vmem [shape: f32[2,16,128], index: 26, kind: output, shape index: {1}]
  %27 = xla_tuple %s25, %s26
  %s28 = sld [smem:[#allocation0]]
  $region189: #{_token_stage_impl.1} parent=0
    _
  %s30 = ssub.s32 1, %s28
  %s31 = scalar_select 0, %s30, %s28
  $region1: #{_token_stage_impl.1} parent=0
    #allocation2 [shape = 'u8[32768]{0}', space=vmem, size = 0x8000, scoped, tag = 'input window, operand 0']
    #allocation3 [shape = 's32[2]{0}', space=sflag, size = 0x8, scoped, tag = 'scoped memory for _token_stage_impl.1']
    #allocation4 [shape = 's32[2]{0}', space=sflag, size = 0x8, scoped, tag = 'scoped memory for _token_stage_impl.1']
    #allocation5 [shape = 'u8[2048]{0}', space=vmem, size = 0x800, scoped, tag = 'input window, operand 8, single buffered']
    #allocation6 [shape = 's32[1]{0}', space=sflag, size = 0x4, scoped, tag = 'scoped memory for _token_stage_impl.1']
    #allocation7 [shape = 'u8[2048]{0}', space=vmem, size = 0x800, scoped, tag = 'input window, operand 10, single buffered']
    #allocation8 [shape = 'u8[2048]{0}', space=vmem, size = 0x800, scoped, tag = 'input window, operand 12, single buffered']
    #allocation9 [shape = 's32[1]{0}', space=sflag, size = 0x4, scoped, tag = 'scoped memory for _token_stage_impl.1']
    #allocation10 [shape = 'u8[2048]{0}', space=vmem, size = 0x800, scoped, tag = 'input window, operand 14, single buffered']
    #allocation11 [shape = 'u8[262144]{0}', space=vmem, size = 0x40000, scoped, tag = 'input window, operand 15, single buffered']
    #allocation12 [shape = 's32[1]{0}', space=sflag, size = 0x4, scoped, tag = 'scoped memory for _token_stage_impl.1']
    #allocation13 [shape = 'u8[2048]{0}', space=vmem, size = 0x800, scoped, tag = 'input window, operand 16, single buffered']
    #allocation14 [shape = 'u8[2048]{0}', space=vmem, size = 0x800, scoped, tag = 'input window, operand 17, single buffered']
    #allocation15 [shape = 's32[1]{0}', space=sflag, size = 0x4, scoped, tag = 'scoped memory for _token_stage_impl.1']
    #allocation16 [shape = 'u8[2048]{0}', space=vmem, size = 0x800, scoped, tag = 'input window, operand 18, single buffered']
    #allocation17 [shape = 'u8[4096]{0}', space=vmem, size = 0x1000, scoped, tag = 'input window, operand 20, single buffered']
    #allocation18 [shape = 's32[1]{0}', space=sflag, size = 0x4, scoped, tag = 'scoped memory for _token_stage_impl.1']
    #allocation19 [shape = 'u8[2048]{0}', space=vmem, size = 0x800, scoped, tag = 'input window, operand 22, single buffered']
    #allocation20 [shape = 'u8[2048]{0}', space=vmem, size = 0x800, scoped, tag = 'input window, operand 24, single buffered']
    #allocation21 [shape = 's32[1]{0}', space=sflag, size = 0x4, scoped, tag = 'scoped memory for _token_stage_impl.1']
    #allocation22 [shape = 'u8[32768]{0}', space=vmem, size = 0x8000, scoped, tag = 'output window, operand 0']
    %32 = vsyncpa [#allocation3], 0
    %s33 = scalar_lea.sflag [#allocation3], 1
    %34 = vsyncpa %s33, 0
    %35 = vsyncpa [#allocation6], 0
    %36 = vsyncpa [#allocation9], 0
    %37 = vsyncpa [#allocation12], 0
    %38 = vsyncpa [#allocation15], 0
    %39 = vsyncpa [#allocation18], 0
    %40 = vsyncpa [#allocation21], 0
    %41 = vsyncpa [#allocation4], 0
    %s42 = scalar_lea.sflag [#allocation4], 1
    %43 = vsyncpa %s42, 0
    loop: start=0, step=1, limit=4
    $region2: #{_token_stage_impl.1} parent=1 // loop_pre_header
      _
    $region3: #{_token_stage_impl.1} parent=1 // loop_header
      %s45 = sphi 0, %s49
      %p46 = scmp.ge.s32.totalorder %s45, 4
      %s55 = sphi 0, %s57
      %s58 = sphi 0, %s55
      %s59 = sphi 0, %s58
      %s75 = sphi 0, %s59
      %s81 = sphi 0, %s83
      %s84 = sphi 0, %s81
      %s85 = sphi 0, %s84
      %s101 = sphi 0, %s85
      %s107 = sphi 0, %s109
      %s110 = sphi 0, %s107
      %s111 = sphi 0, %s110
      %s127 = sphi 0, %s111
      %s131 = sphi 0, %s131
      %s133 = sphi 0, %s131
      %s134 = sphi 0, %s133
      %s148 = sphi 0, %s134
      %s152 = sphi 0, %s152
      %s154 = sphi 0, %s152
      %s155 = sphi 0, %s154
      %s169 = sphi 0, %s155
      %s173 = sphi 0, %s173
      %s175 = sphi 0, %s173
      %s176 = sphi 0, %s175
      %s190 = sphi 0, %s176
      %s194 = sphi 0, %s194
      %s196 = sphi 0, %s194
      %s197 = sphi 0, %s196
      %s211 = sphi 0, %s197
      %s215 = sphi 0, %s215
      %s217 = sphi 0, %s215
      %s218 = sphi 0, %s217
      %s232 = sphi 0, %s218
      %s236 = sphi 0, %s236
      %s238 = sphi 0, %s236
      %s239 = sphi 0, %s238
      %s253 = sphi 0, %s239
      %s257 = sphi 0, %s257
      %s259 = sphi 0, %s257
      %s260 = sphi 0, %s259
      %s274 = sphi 0, %s260
      %s278 = sphi 0, %s278
      %s280 = sphi 0, %s278
      %s281 = sphi 0, %s280
      %s295 = sphi 0, %s281
      %s299 = sphi 0, %s299
      %s301 = sphi 0, %s299
      %s302 = sphi 0, %s301
      %s316 = sphi 0, %s302
      %s320 = sphi 0, %s320
      %s322 = sphi 0, %s320
      %s323 = sphi 0, %s322
      %s337 = sphi 0, %s323
      %s341 = sphi 0, %s341
      %s343 = sphi 0, %s341
      %s344 = sphi 0, %s343
      %s358 = sphi 0, %s344
      %s362 = sphi 0, %s362
      %s364 = sphi 0, %s362
      %s365 = sphi 0, %s364
      %s379 = sphi 0, %s365
      %s383 = sphi 0, %s383
      %s385 = sphi 0, %s383
      %s386 = sphi 0, %s385
      %s400 = sphi 0, %s386
      %s404 = sphi 0, %s404
      %s406 = sphi 0, %s404
      %s407 = sphi 0, %s406
      %s421 = sphi 0, %s407
      %s425 = sphi 0, %s425
      %s427 = sphi 0, %s425
      %s428 = sphi 0, %s427
      %s442 = sphi 0, %s428
      %s446 = sphi 0, %s446
      %s448 = sphi 0, %s446
      %s449 = sphi 0, %s448
      %s463 = sphi 0, %s449
      %s467 = sphi 0, %s467
      %s469 = sphi 0, %s467
      %s470 = sphi 0, %s469
      %s484 = sphi 0, %s470
      %s488 = sphi 0, %s488
      %s490 = sphi 0, %s488
      %s491 = sphi 0, %s490
      %s505 = sphi 0, %s491
      %s509 = sphi 0, %s509
      %s511 = sphi 0, %s509
      %s512 = sphi 0, %s511
      %s526 = sphi 0, %s512
      %s530 = sphi 0, %s530
      %s532 = sphi 0, %s530
      %s533 = sphi 0, %s532
      %s547 = sphi 0, %s533
      %s551 = sphi 0, %s551
      %s553 = sphi 0, %s551
      %s554 = sphi 0, %s553
      %s568 = sphi 0, %s554
      %s572 = sphi 0, %s572
      %s574 = sphi 0, %s572
      %s575 = sphi 0, %s574
      %s589 = sphi 0, %s575
      %s595 = sphi 0, %s597
      %s598 = sphi 0, %s595
      %s599 = sphi 0, %s598
      %s615 = sphi 0, %s599
      %s621 = sphi 0, %s623
      %s624 = sphi 0, %s621
      %s625 = sphi 0, %s624
      %s641 = sphi 0, %s625
    $region4: #{_token_stage_impl.1} parent=1 // loop_header_branch
      %48 = sbr.rel (%p46) target = $region8
    $region5: #{_token_stage_impl.1} parent=1 // loop_body
      %s50 = ssub.s32 %s45, 1
      %s51 = ssub.s32 %s45, 2
      %s52 = sadd.s32 %s45, 1
      %s53 = ssub.s32 %s45, %s52
      %p54 = scmp.eq.s32.totalorder %s53, 0
      %s56 = sadd.s32 %s55, 1
      %s57 = scalar_select %p54, %s55, %s56
      %p60 = pneg %p54
      %p61 = scmp.eq.s32.totalorder %s45, 1
      %p62 = por %p60, %p61
      %p63 = scmp.ne.s32.totalorder %s55, %s58
      %p64 = scmp.eq.s32.totalorder %s45, 0
      %p65 = por %p63, %p64
      %p66 = scmp.ne.s32.totalorder %s55, %s58
      %p67 = scmp.eq.s32.totalorder %s50, 1
      %p68 = por %p66, %p67
      %p69 = scmp.ne.s32.totalorder %s58, %s59
      %p70 = scmp.eq.s32.totalorder %s50, 0
      %p71 = por %p69, %p70
      %p72 = scmp.ne.s32.totalorder %s58, %s59
      %p73 = scmp.eq.s32.totalorder %s51, 1
      %p74 = por %p72, %p73
      %p76 = scmp.ne.s32.totalorder %s59, %s75
      %p77 = scmp.eq.s32.totalorder %s51, 0
      %p78 = por %p76, %p77
      %s79 = ssub.s32 %s45, %s52
      %p80 = scmp.eq.s32.totalorder %s79, 0
      %s82 = sadd.s32 %s81, 1
      %s83 = scalar_select %p80, %s81, %s82
      %p86 = pneg %p80
      %p87 = scmp.eq.s32.totalorder %s45, 1
      %p88 = por %p86, %p87
      %p89 = scmp.ne.s32.totalorder %s81, %s84
      %p90 = scmp.eq.s32.totalorder %s45, 0
      %p91 = por %p89, %p90
      %p92 = scmp.ne.s32.totalorder %s81, %s84
      %p93 = scmp.eq.s32.totalorder %s50, 1
      %p94 = por %p92, %p93
      %p95 = scmp.ne.s32.totalorder %s84, %s85
      %p96 = scmp.eq.s32.totalorder %s50, 0
      %p97 = por %p95, %p96
      %p98 = scmp.ne.s32.totalorder %s84, %s85
      %p99 = scmp.eq.s32.totalorder %s51, 1
      %p100 = por %p98, %p99
      %p102 = scmp.ne.s32.totalorder %s85, %s101
      %p103 = scmp.eq.s32.totalorder %s51, 0
      %p104 = por %p102, %p103
      %s105 = ssub.s32 %s45, %s52
      %p106 = scmp.eq.s32.totalorder %s105, 0
      %s108 = sadd.s32 %s107, 1
      %s109 = scalar_select %p106, %s107, %s108
      %p112 = pneg %p106
      %p113 = scmp.eq.s32.totalorder %s45, 1
      %p114 = por %p112, %p113
      %p115 = scmp.ne.s32.totalorder %s107, %s110
      %p116 = scmp.eq.s32.totalorder %s45, 0
      %p117 = por %p115, %p116
      %p118 = scmp.ne.s32.totalorder %s107, %s110
      %p119 = scmp.eq.s32.totalorder %s50, 1
      %p120 = por %p118, %p119
      %p121 = scmp.ne.s32.totalorder %s110, %s111
      %p122 = scmp.eq.s32.totalorder %s50, 0
      %p123 = por %p121, %p122
      %p124 = scmp.ne.s32.totalorder %s110, %s111
      %p125 = scmp.eq.s32.totalorder %s51, 1
      %p126 = por %p124, %p125
      %p128 = scmp.ne.s32.totalorder %s111, %s127
      %p129 = scmp.eq.s32.totalorder %s51, 0
      %p130 = por %p128, %p129
      %s132 = sadd.s32 %s131, 1
      %p135 = scmp.eq.s32.totalorder %s45, 1
      %p136 = scmp.ne.s32.totalorder %s131, %s133
      %p137 = scmp.eq.s32.totalorder %s45, 0
      %p138 = por %p136, %p137
      %p139 = scmp.ne.s32.totalorder %s131, %s133
      %p140 = scmp.eq.s32.totalorder %s50, 1
      %p141 = por %p139, %p140
      %p142 = scmp.ne.s32.totalorder %s133, %s134
      %p143 = scmp.eq.s32.totalorder %s50, 0
      %p144 = por %p142, %p143
      %p145 = scmp.ne.s32.totalorder %s133, %s134
      %p146 = scmp.eq.s32.totalorder %s51, 1
      %p147 = por %p145, %p146
      %p149 = scmp.ne.s32.totalorder %s134, %s148
      %p150 = scmp.eq.s32.totalorder %s51, 0
      %p151 = por %p149, %p150
      %s153 = sadd.s32 %s152, 1
      %p156 = scmp.eq.s32.totalorder %s45, 1
      %p157 = scmp.ne.s32.totalorder %s152, %s154
      %p158 = scmp.eq.s32.totalorder %s45, 0
      %p159 = por %p157, %p158
      %p160 = scmp.ne.s32.totalorder %s152, %s154
      %p161 = scmp.eq.s32.totalorder %s50, 1
      %p162 = por %p160, %p161
      %p163 = scmp.ne.s32.totalorder %s154, %s155
      %p164 = scmp.eq.s32.totalorder %s50, 0
      %p165 = por %p163, %p164
      %p166 = scmp.ne.s32.totalorder %s154, %s155
      %p167 = scmp.eq.s32.totalorder %s51, 1
      %p168 = por %p166, %p167
      %p170 = scmp.ne.s32.totalorder %s155, %s169
      %p171 = scmp.eq.s32.totalorder %s51, 0
      %p172 = por %p170, %p171
      %s174 = sadd.s32 %s173, 1
      %p177 = scmp.eq.s32.totalorder %s45, 1
      %p178 = scmp.ne.s32.totalorder %s173, %s175
      %p179 = scmp.eq.s32.totalorder %s45, 0
      %p180 = por %p178, %p179
      %p181 = scmp.ne.s32.totalorder %s173, %s175
      %p182 = scmp.eq.s32.totalorder %s50, 1
      %p183 = por %p181, %p182
      %p184 = scmp.ne.s32.totalorder %s175, %s176
      %p185 = scmp.eq.s32.totalorder %s50, 0
      %p186 = por %p184, %p185
      %p187 = scmp.ne.s32.totalorder %s175, %s176
      %p188 = scmp.eq.s32.totalorder %s51, 1
      %p189 = por %p187, %p188
      %p191 = scmp.ne.s32.totalorder %s176, %s190
      %p192 = scmp.eq.s32.totalorder %s51, 0
      %p193 = por %p191, %p192
      %s195 = sadd.s32 %s194, 1
      %p198 = scmp.eq.s32.totalorder %s45, 1
      %p199 = scmp.ne.s32.totalorder %s194, %s196
      %p200 = scmp.eq.s32.totalorder %s45, 0
      %p201 = por %p199, %p200
      %p202 = scmp.ne.s32.totalorder %s194, %s196
      %p203 = scmp.eq.s32.totalorder %s50, 1
      %p204 = por %p202, %p203
      %p205 = scmp.ne.s32.totalorder %s196, %s197
      %p206 = scmp.eq.s32.totalorder %s50, 0
      %p207 = por %p205, %p206
      %p208 = scmp.ne.s32.totalorder %s196, %s197
      %p209 = scmp.eq.s32.totalorder %s51, 1
      %p210 = por %p208, %p209
      %p212 = scmp.ne.s32.totalorder %s197, %s211
      %p213 = scmp.eq.s32.totalorder %s51, 0
      %p214 = por %p212, %p213
      %s216 = sadd.s32 %s215, 1
      %p219 = scmp.eq.s32.totalorder %s45, 1
      %p220 = scmp.ne.s32.totalorder %s215, %s217
      %p221 = scmp.eq.s32.totalorder %s45, 0
      %p222 = por %p220, %p221
      %p223 = scmp.ne.s32.totalorder %s215, %s217
      %p224 = scmp.eq.s32.totalorder %s50, 1
      %p225 = por %p223, %p224
      %p226 = scmp.ne.s32.totalorder %s217, %s218
      %p227 = scmp.eq.s32.totalorder %s50, 0
      %p228 = por %p226, %p227
      %p229 = scmp.ne.s32.totalorder %s217, %s218
      %p230 = scmp.eq.s32.totalorder %s51, 1
      %p231 = por %p229, %p230
      %p233 = scmp.ne.s32.totalorder %s218, %s232
      %p234 = scmp.eq.s32.totalorder %s51, 0
      %p235 = por %p233, %p234
      %s237 = sadd.s32 %s236, 1
      %p240 = scmp.eq.s32.totalorder %s45, 1
      %p241 = scmp.ne.s32.totalorder %s236, %s238
      %p242 = scmp.eq.s32.totalorder %s45, 0
      %p243 = por %p241, %p242
      %p244 = scmp.ne.s32.totalorder %s236, %s238
      %p245 = scmp.eq.s32.totalorder %s50, 1
      %p246 = por %p244, %p245
      %p247 = scmp.ne.s32.totalorder %s238, %s239
      %p248 = scmp.eq.s32.totalorder %s50, 0
      %p249 = por %p247, %p248
      %p250 = scmp.ne.s32.totalorder %s238, %s239
      %p251 = scmp.eq.s32.totalorder %s51, 1
      %p252 = por %p250, %p251
      %p254 = scmp.ne.s32.totalorder %s239, %s253
      %p255 = scmp.eq.s32.totalorder %s51, 0
      %p256 = por %p254, %p255
      %s258 = sadd.s32 %s257, 1
      %p261 = scmp.eq.s32.totalorder %s45, 1
      %p262 = scmp.ne.s32.totalorder %s257, %s259
      %p263 = scmp.eq.s32.totalorder %s45, 0
      %p264 = por %p262, %p263
      %p265 = scmp.ne.s32.totalorder %s257, %s259
      %p266 = scmp.eq.s32.totalorder %s50, 1
      %p267 = por %p265, %p266
      %p268 = scmp.ne.s32.totalorder %s259, %s260
      %p269 = scmp.eq.s32.totalorder %s50, 0
      %p270 = por %p268, %p269
      %p271 = scmp.ne.s32.totalorder %s259, %s260
      %p272 = scmp.eq.s32.totalorder %s51, 1
      %p273 = por %p271, %p272
      %p275 = scmp.ne.s32.totalorder %s260, %s274
      %p276 = scmp.eq.s32.totalorder %s51, 0
      %p277 = por %p275, %p276
      %s279 = sadd.s32 %s278, 1
      %p282 = scmp.eq.s32.totalorder %s45, 1
      %p283 = scmp.ne.s32.totalorder %s278, %s280
      %p284 = scmp.eq.s32.totalorder %s45, 0
      %p285 = por %p283, %p284
      %p286 = scmp.ne.s32.totalorder %s278, %s280
      %p287 = scmp.eq.s32.totalorder %s50, 1
      %p288 = por %p286, %p287
      %p289 = scmp.ne.s32.totalorder %s280, %s281
      %p290 = scmp.eq.s32.totalorder %s50, 0
      %p291 = por %p289, %p290
      %p292 = scmp.ne.s32.totalorder %s280, %s281
      %p293 = scmp.eq.s32.totalorder %s51, 1
      %p294 = por %p292, %p293
      %p296 = scmp.ne.s32.totalorder %s281, %s295
      %p297 = scmp.eq.s32.totalorder %s51, 0
      %p298 = por %p296, %p297
      %s300 = sadd.s32 %s299, 1
      %p303 = scmp.eq.s32.totalorder %s45, 1
      %p304 = scmp.ne.s32.totalorder %s299, %s301
      %p305 = scmp.eq.s32.totalorder %s45, 0
      %p306 = por %p304, %p305
      %p307 = scmp.ne.s32.totalorder %s299, %s301
      %p308 = scmp.eq.s32.totalorder %s50, 1
      %p309 = por %p307, %p308
      %p310 = scmp.ne.s32.totalorder %s301, %s302
      %p311 = scmp.eq.s32.totalorder %s50, 0
      %p312 = por %p310, %p311
      %p313 = scmp.ne.s32.totalorder %s301, %s302
      %p314 = scmp.eq.s32.totalorder %s51, 1
      %p315 = por %p313, %p314
      %p317 = scmp.ne.s32.totalorder %s302, %s316
      %p318 = scmp.eq.s32.totalorder %s51, 0
      %p319 = por %p317, %p318
      %s321 = sadd.s32 %s320, 1
      %p324 = scmp.eq.s32.totalorder %s45, 1
      %p325 = scmp.ne.s32.totalorder %s320, %s322
      %p326 = scmp.eq.s32.totalorder %s45, 0
      %p327 = por %p325, %p326
      %p328 = scmp.ne.s32.totalorder %s320, %s322
      %p329 = scmp.eq.s32.totalorder %s50, 1
      %p330 = por %p328, %p329
      %p331 = scmp.ne.s32.totalorder %s322, %s323
      %p332 = scmp.eq.s32.totalorder %s50, 0
      %p333 = por %p331, %p332
      %p334 = scmp.ne.s32.totalorder %s322, %s323
      %p335 = scmp.eq.s32.totalorder %s51, 1
      %p336 = por %p334, %p335
      %p338 = scmp.ne.s32.totalorder %s323, %s337
      %p339 = scmp.eq.s32.totalorder %s51, 0
      %p340 = por %p338, %p339
      %s342 = sadd.s32 %s341, 1
      %p345 = scmp.eq.s32.totalorder %s45, 1
      %p346 = scmp.ne.s32.totalorder %s341, %s343
      %p347 = scmp.eq.s32.totalorder %s45, 0
      %p348 = por %p346, %p347
      %p349 = scmp.ne.s32.totalorder %s341, %s343
      %p350 = scmp.eq.s32.totalorder %s50, 1
      %p351 = por %p349, %p350
      %p352 = scmp.ne.s32.totalorder %s343, %s344
      %p353 = scmp.eq.s32.totalorder %s50, 0
      %p354 = por %p352, %p353
      %p355 = scmp.ne.s32.totalorder %s343, %s344
      %p356 = scmp.eq.s32.totalorder %s51, 1
      %p357 = por %p355, %p356
      %p359 = scmp.ne.s32.totalorder %s344, %s358
      %p360 = scmp.eq.s32.totalorder %s51, 0
      %p361 = por %p359, %p360
      %s363 = sadd.s32 %s362, 1
      %p366 = scmp.eq.s32.totalorder %s45, 1
      %p367 = scmp.ne.s32.totalorder %s362, %s364
      %p368 = scmp.eq.s32.totalorder %s45, 0
      %p369 = por %p367, %p368
      %p370 = scmp.ne.s32.totalorder %s362, %s364
      %p371 = scmp.eq.s32.totalorder %s50, 1
      %p372 = por %p370, %p371
      %p373 = scmp.ne.s32.totalorder %s364, %s365
      %p374 = scmp.eq.s32.totalorder %s50, 0
      %p375 = por %p373, %p374
      %p376 = scmp.ne.s32.totalorder %s364, %s365
      %p377 = scmp.eq.s32.totalorder %s51, 1
      %p378 = por %p376, %p377
      %p380 = scmp.ne.s32.totalorder %s365, %s379
      %p381 = scmp.eq.s32.totalorder %s51, 0
      %p382 = por %p380, %p381
      %s384 = sadd.s32 %s383, 1
      %p387 = scmp.eq.s32.totalorder %s45, 1
      %p388 = scmp.ne.s32.totalorder %s383, %s385
      %p389 = scmp.eq.s32.totalorder %s45, 0
      %p390 = por %p388, %p389
      %p391 = scmp.ne.s32.totalorder %s383, %s385
      %p392 = scmp.eq.s32.totalorder %s50, 1
      %p393 = por %p391, %p392
      %p394 = scmp.ne.s32.totalorder %s385, %s386
      %p395 = scmp.eq.s32.totalorder %s50, 0
      %p396 = por %p394, %p395
      %p397 = scmp.ne.s32.totalorder %s385, %s386
      %p398 = scmp.eq.s32.totalorder %s51, 1
      %p399 = por %p397, %p398
      %p401 = scmp.ne.s32.totalorder %s386, %s400
      %p402 = scmp.eq.s32.totalorder %s51, 0
      %p403 = por %p401, %p402
      %s405 = sadd.s32 %s404, 1
      %p408 = scmp.eq.s32.totalorder %s45, 1
      %p409 = scmp.ne.s32.totalorder %s404, %s406
      %p410 = scmp.eq.s32.totalorder %s45, 0
      %p411 = por %p409, %p410
      %p412 = scmp.ne.s32.totalorder %s404, %s406
      %p413 = scmp.eq.s32.totalorder %s50, 1
      %p414 = por %p412, %p413
      %p415 = scmp.ne.s32.totalorder %s406, %s407
      %p416 = scmp.eq.s32.totalorder %s50, 0
      %p417 = por %p415, %p416
      %p418 = scmp.ne.s32.totalorder %s406, %s407
      %p419 = scmp.eq.s32.totalorder %s51, 1
      %p420 = por %p418, %p419
      %p422 = scmp.ne.s32.totalorder %s407, %s421
      %p423 = scmp.eq.s32.totalorder %s51, 0
      %p424 = por %p422, %p423
      %s426 = sadd.s32 %s425, 1
      %p429 = scmp.eq.s32.totalorder %s45, 1
      %p430 = scmp.ne.s32.totalorder %s425, %s427
      %p431 = scmp.eq.s32.totalorder %s45, 0
      %p432 = por %p430, %p431
      %p433 = scmp.ne.s32.totalorder %s425, %s427
      %p434 = scmp.eq.s32.totalorder %s50, 1
      %p435 = por %p433, %p434
      %p436 = scmp.ne.s32.totalorder %s427, %s428
      %p437 = scmp.eq.s32.totalorder %s50, 0
      %p438 = por %p436, %p437
      %p439 = scmp.ne.s32.totalorder %s427, %s428
      %p440 = scmp.eq.s32.totalorder %s51, 1
      %p441 = por %p439, %p440
      %p443 = scmp.ne.s32.totalorder %s428, %s442
      %p444 = scmp.eq.s32.totalorder %s51, 0
      %p445 = por %p443, %p444
      %s447 = sadd.s32 %s446, 1
      %p450 = scmp.eq.s32.totalorder %s45, 1
      %p451 = scmp.ne.s32.totalorder %s446, %s448
      %p452 = scmp.eq.s32.totalorder %s45, 0
      %p453 = por %p451, %p452
      %p454 = scmp.ne.s32.totalorder %s446, %s448
      %p455 = scmp.eq.s32.totalorder %s50, 1
      %p456 = por %p454, %p455
      %p457 = scmp.ne.s32.totalorder %s448, %s449
      %p458 = scmp.eq.s32.totalorder %s50, 0
      %p459 = por %p457, %p458
      %p460 = scmp.ne.s32.totalorder %s448, %s449
      %p461 = scmp.eq.s32.totalorder %s51, 1
      %p462 = por %p460, %p461
      %p464 = scmp.ne.s32.totalorder %s449, %s463
      %p465 = scmp.eq.s32.totalorder %s51, 0
      %p466 = por %p464, %p465
      %s468 = sadd.s32 %s467, 1
      %p471 = scmp.eq.s32.totalorder %s45, 1
      %p472 = scmp.ne.s32.totalorder %s467, %s469
      %p473 = scmp.eq.s32.totalorder %s45, 0
      %p474 = por %p472, %p473
      %p475 = scmp.ne.s32.totalorder %s467, %s469
      %p476 = scmp.eq.s32.totalorder %s50, 1
      %p477 = por %p475, %p476
      %p478 = scmp.ne.s32.totalorder %s469, %s470
      %p479 = scmp.eq.s32.totalorder %s50, 0
      %p480 = por %p478, %p479
      %p481 = scmp.ne.s32.totalorder %s469, %s470
      %p482 = scmp.eq.s32.totalorder %s51, 1
      %p483 = por %p481, %p482
      %p485 = scmp.ne.s32.totalorder %s470, %s484
      %p486 = scmp.eq.s32.totalorder %s51, 0
      %p487 = por %p485, %p486
      %s489 = sadd.s32 %s488, 1
      %p492 = scmp.eq.s32.totalorder %s45, 1
      %p493 = scmp.ne.s32.totalorder %s488, %s490
      %p494 = scmp.eq.s32.totalorder %s45, 0
      %p495 = por %p493, %p494
      %p496 = scmp.ne.s32.totalorder %s488, %s490
      %p497 = scmp.eq.s32.totalorder %s50, 1
      %p498 = por %p496, %p497
      %p499 = scmp.ne.s32.totalorder %s490, %s491
      %p500 = scmp.eq.s32.totalorder %s50, 0
      %p501 = por %p499, %p500
      %p502 = scmp.ne.s32.totalorder %s490, %s491
      %p503 = scmp.eq.s32.totalorder %s51, 1
      %p504 = por %p502, %p503
      %p506 = scmp.ne.s32.totalorder %s491, %s505
      %p507 = scmp.eq.s32.totalorder %s51, 0
      %p508 = por %p506, %p507
      %s510 = sadd.s32 %s509, 1
      %p513 = scmp.eq.s32.totalorder %s45, 1
      %p514 = scmp.ne.s32.totalorder %s509, %s511
      %p515 = scmp.eq.s32.totalorder %s45, 0
      %p516 = por %p514, %p515
      %p517 = scmp.ne.s32.totalorder %s509, %s511
      %p518 = scmp.eq.s32.totalorder %s50, 1
      %p519 = por %p517, %p518
      %p520 = scmp.ne.s32.totalorder %s511, %s512
      %p521 = scmp.eq.s32.totalorder %s50, 0
      %p522 = por %p520, %p521
      %p523 = scmp.ne.s32.totalorder %s511, %s512
      %p524 = scmp.eq.s32.totalorder %s51, 1
      %p525 = por %p523, %p524
      %p527 = scmp.ne.s32.totalorder %s512, %s526
      %p528 = scmp.eq.s32.totalorder %s51, 0
      %p529 = por %p527, %p528
      %s531 = sadd.s32 %s530, 1
      %p534 = scmp.eq.s32.totalorder %s45, 1
      %p535 = scmp.ne.s32.totalorder %s530, %s532
      %p536 = scmp.eq.s32.totalorder %s45, 0
      %p537 = por %p535, %p536
      %p538 = scmp.ne.s32.totalorder %s530, %s532
      %p539 = scmp.eq.s32.totalorder %s50, 1
      %p540 = por %p538, %p539
      %p541 = scmp.ne.s32.totalorder %s532, %s533
      %p542 = scmp.eq.s32.totalorder %s50, 0
      %p543 = por %p541, %p542
      %p544 = scmp.ne.s32.totalorder %s532, %s533
      %p545 = scmp.eq.s32.totalorder %s51, 1
      %p546 = por %p544, %p545
      %p548 = scmp.ne.s32.totalorder %s533, %s547
      %p549 = scmp.eq.s32.totalorder %s51, 0
      %p550 = por %p548, %p549
      %s552 = sadd.s32 %s551, 1
      %p555 = scmp.eq.s32.totalorder %s45, 1
      %p556 = scmp.ne.s32.totalorder %s551, %s553
      %p557 = scmp.eq.s32.totalorder %s45, 0
      %p558 = por %p556, %p557
      %p559 = scmp.ne.s32.totalorder %s551, %s553
      %p560 = scmp.eq.s32.totalorder %s50, 1
      %p561 = por %p559, %p560
      %p562 = scmp.ne.s32.totalorder %s553, %s554
      %p563 = scmp.eq.s32.totalorder %s50, 0
      %p564 = por %p562, %p563
      %p565 = scmp.ne.s32.totalorder %s553, %s554
      %p566 = scmp.eq.s32.totalorder %s51, 1
      %p567 = por %p565, %p566
      %p569 = scmp.ne.s32.totalorder %s554, %s568
      %p570 = scmp.eq.s32.totalorder %s51, 0
      %p571 = por %p569, %p570
      %s573 = sadd.s32 %s572, 1
      %p576 = scmp.eq.s32.totalorder %s45, 1
      %p577 = scmp.ne.s32.totalorder %s572, %s574
      %p578 = scmp.eq.s32.totalorder %s45, 0
      %p579 = por %p577, %p578
      %p580 = scmp.ne.s32.totalorder %s572, %s574
      %p581 = scmp.eq.s32.totalorder %s50, 1
      %p582 = por %p580, %p581
      %p583 = scmp.ne.s32.totalorder %s574, %s575
      %p584 = scmp.eq.s32.totalorder %s50, 0
      %p585 = por %p583, %p584
      %p586 = scmp.ne.s32.totalorder %s574, %s575
      %p587 = scmp.eq.s32.totalorder %s51, 1
      %p588 = por %p586, %p587
      %p590 = scmp.ne.s32.totalorder %s575, %s589
      %p591 = scmp.eq.s32.totalorder %s51, 0
      %p592 = por %p590, %p591
      %s593 = ssub.s32 %s45, %s52
      %p594 = scmp.eq.s32.totalorder %s593, 0
      %s596 = sadd.s32 %s595, 1
      %s597 = scalar_select %p594, %s595, %s596
      %p600 = pneg %p594
      %p601 = scmp.eq.s32.totalorder %s45, 1
      %p602 = por %p600, %p601
      %p603 = scmp.ne.s32.totalorder %s595, %s598
      %p604 = scmp.eq.s32.totalorder %s45, 0
      %p605 = por %p603, %p604
      %p606 = scmp.ne.s32.totalorder %s595, %s598
      %p607 = scmp.eq.s32.totalorder %s50, 1
      %p608 = por %p606, %p607
      %p609 = scmp.ne.s32.totalorder %s598, %s599
      %p610 = scmp.eq.s32.totalorder %s50, 0
      %p611 = por %p609, %p610
      %p612 = scmp.ne.s32.totalorder %s598, %s599
      %p613 = scmp.eq.s32.totalorder %s51, 1
      %p614 = por %p612, %p613
      %p616 = scmp.ne.s32.totalorder %s599, %s615
      %p617 = scmp.eq.s32.totalorder %s51, 0
      %p618 = por %p616, %p617
      %s619 = ssub.s32 %s45, %s52
      %p620 = scmp.eq.s32.totalorder %s619, 0
      %s622 = sadd.s32 %s621, 1
      %s623 = scalar_select %p620, %s621, %s622
      %p626 = pneg %p620
      %p627 = scmp.eq.s32.totalorder %s45, 1
      %p628 = por %p626, %p627
      %p629 = scmp.ne.s32.totalorder %s621, %s624
      %p630 = scmp.eq.s32.totalorder %s45, 0
      %p631 = por %p629, %p630
      %p632 = scmp.ne.s32.totalorder %s621, %s624
      %p633 = scmp.eq.s32.totalorder %s50, 1
      %p634 = por %p632, %p633
      %p635 = scmp.ne.s32.totalorder %s624, %s625
      %p636 = scmp.eq.s32.totalorder %s50, 0
      %p637 = por %p635, %p636
      %p638 = scmp.ne.s32.totalorder %s624, %s625
      %p639 = scmp.eq.s32.totalorder %s51, 1
      %p640 = por %p638, %p639
      %p642 = scmp.ne.s32.totalorder %s625, %s641
      %p643 = scmp.eq.s32.totalorder %s51, 0
      %p644 = por %p642, %p643
      %p645 = scmp.le.s32.totalorder 1, %s45
      %p646 = scmp.lt.s32.totalorder %s45, 3
      %p647 = pnand %p645, %p646
      %p648 = pneg %p647
      // Predicated region
      $region9: #{_token_stage_impl.1} parent=5 // pred_check
        _
      $region10: #{_token_stage_impl.1} parent=5 // pred_check_branch
        %650 = sbr.rel (%p647) target = $region12
      $region11: #{_token_stage_impl.1} parent=5 // pred_region
        %s651 = ssub.s32 %s45, 1
        // Predicated region
        $region13: #{_token_stage_impl.1} parent=11 // pred_check
          %p652 = pneg %p144
        $region14: #{_token_stage_impl.1} parent=11 // pred_check_branch
          %654 = sbr.rel (%p652) target = $region16
        $region15: #{_token_stage_impl.1} parent=11 // pred_region
          _
        $region16: #{_token_stage_impl.1} parent=11 // pred_fallthru
          _
        // Predicated region
        $region17: #{_token_stage_impl.1} parent=11 // pred_check
          %p655 = pneg %p165
        $region18: #{_token_stage_impl.1} parent=11 // pred_check_branch
          %657 = sbr.rel (%p655) target = $region20
        $region19: #{_token_stage_impl.1} parent=11 // pred_region
          _
        $region20: #{_token_stage_impl.1} parent=11 // pred_fallthru
          _
        // Predicated region
        $region21: #{_token_stage_impl.1} parent=11 // pred_check
          %p658 = pneg %p186
        $region22: #{_token_stage_impl.1} parent=11 // pred_check_branch
          %660 = sbr.rel (%p658) target = $region24
        $region23: #{_token_stage_impl.1} parent=11 // pred_region
          _
        $region24: #{_token_stage_impl.1} parent=11 // pred_fallthru
          _
        // Predicated region
        $region25: #{_token_stage_impl.1} parent=11 // pred_check
          %p661 = pneg %p207
        $region26: #{_token_stage_impl.1} parent=11 // pred_check_branch
          %663 = sbr.rel (%p661) target = $region28
        $region27: #{_token_stage_impl.1} parent=11 // pred_region
          _
        $region28: #{_token_stage_impl.1} parent=11 // pred_fallthru
          _
        // Predicated region
        $region29: #{_token_stage_impl.1} parent=11 // pred_check
          %p664 = pneg %p228
        $region30: #{_token_stage_impl.1} parent=11 // pred_check_branch
          %666 = sbr.rel (%p664) target = $region32
        $region31: #{_token_stage_impl.1} parent=11 // pred_region
          _
        $region32: #{_token_stage_impl.1} parent=11 // pred_fallthru
          _
        // Predicated region
        $region33: #{_token_stage_impl.1} parent=11 // pred_check
          %p667 = pneg %p249
        $region34: #{_token_stage_impl.1} parent=11 // pred_check_branch
          %669 = sbr.rel (%p667) target = $region36
        $region35: #{_token_stage_impl.1} parent=11 // pred_region
          %s671 = ssub.s32 64, 64
          %672 = vsyncadd [#allocation6], %s671
          %s673 = sshll.u32 [#allocation5], 4
          %s674 = int_to_ptr.vmem [resolvable:$true] %s673
          %679 = dma.hbm_to_vmem [thread:$0]  %s8, 64, %s674, [#allocation6], 32, 32, 2
        $region36: #{_token_stage_impl.1} parent=11 // pred_fallthru
          _
        // Predicated region
        $region37: #{_token_stage_impl.1} parent=11 // pred_check
          %p680 = pneg %p270
        $region38: #{_token_stage_impl.1} parent=11 // pred_check_branch
          %682 = sbr.rel (%p680) target = $region40
        $region39: #{_token_stage_impl.1} parent=11 // pred_region
          _
        $region40: #{_token_stage_impl.1} parent=11 // pred_fallthru
          _
        // Predicated region
        $region41: #{_token_stage_impl.1} parent=11 // pred_check
          %p683 = pneg %p291
        $region42: #{_token_stage_impl.1} parent=11 // pred_check_branch
          %685 = sbr.rel (%p683) target = $region44
        $region43: #{_token_stage_impl.1} parent=11 // pred_region
          %s687 = ssub.s32 64, 64
          %688 = vsyncadd [#allocation6], %s687
          %s689 = sshll.u32 [#allocation7], 4
          %s690 = int_to_ptr.vmem [resolvable:$true] %s689
          %695 = dma.hbm_to_vmem [thread:$0]  %s10, 64, %s690, [#allocation6], 32, 32, 2
        $region44: #{_token_stage_impl.1} parent=11 // pred_fallthru
          _
        // Predicated region
        $region45: #{_token_stage_impl.1} parent=11 // pred_check
          %p696 = pneg %p312
        $region46: #{_token_stage_impl.1} parent=11 // pred_check_branch
          %698 = sbr.rel (%p696) target = $region48
        $region47: #{_token_stage_impl.1} parent=11 // pred_region
          _
        $region48: #{_token_stage_impl.1} parent=11 // pred_fallthru
          _
        // Predicated region
        $region49: #{_token_stage_impl.1} parent=11 // pred_check
          %p699 = pneg %p333
        $region50: #{_token_stage_impl.1} parent=11 // pred_check_branch
          %701 = sbr.rel (%p699) target = $region52
        $region51: #{_token_stage_impl.1} parent=11 // pred_region
          %s703 = ssub.s32 64, 64
          %704 = vsyncadd [#allocation9], %s703
          %s705 = sshll.u32 [#allocation8], 4
          %s706 = int_to_ptr.vmem [resolvable:$true] %s705
          %711 = dma.hbm_to_vmem [thread:$0]  %s12, 64, %s706, [#allocation9], 32, 32, 2
        $region52: #{_token_stage_impl.1} parent=11 // pred_fallthru
          _
        // Predicated region
        $region53: #{_token_stage_impl.1} parent=11 // pred_check
          %p712 = pneg %p354
        $region54: #{_token_stage_impl.1} parent=11 // pred_check_branch
          %714 = sbr.rel (%p712) target = $region56
        $region55: #{_token_stage_impl.1} parent=11 // pred_region
          _
        $region56: #{_token_stage_impl.1} parent=11 // pred_fallthru
          _
        // Predicated region
        $region57: #{_token_stage_impl.1} parent=11 // pred_check
          %p715 = pneg %p375
        $region58: #{_token_stage_impl.1} parent=11 // pred_check_branch
          %717 = sbr.rel (%p715) target = $region60
        $region59: #{_token_stage_impl.1} parent=11 // pred_region
          %s719 = ssub.s32 64, 64
          %720 = vsyncadd [#allocation9], %s719
          %s721 = sshll.u32 [#allocation10], 4
          %s722 = int_to_ptr.vmem [resolvable:$true] %s721
          %727 = dma.hbm_to_vmem [thread:$0]  %s14, 64, %s722, [#allocation9], 32, 32, 2
        $region60: #{_token_stage_impl.1} parent=11 // pred_fallthru
          _
        // Predicated region
        $region61: #{_token_stage_impl.1} parent=11 // pred_check
          %p728 = pneg %p396
        $region62: #{_token_stage_impl.1} parent=11 // pred_check_branch
          %730 = sbr.rel (%p728) target = $region64
        $region63: #{_token_stage_impl.1} parent=11 // pred_region
          %s732 = ssub.s32 8192, 8192
          %733 = vsyncadd [#allocation12], %s732
          %s734 = sshll.u32 [#allocation11], 4
          %s735 = int_to_ptr.vmem [resolvable:$true] %s734
          %740 = dma.hbm_to_vmem [thread:$0]  %s15, 8192, %s735, [#allocation12], 128, 128, 8
        $region64: #{_token_stage_impl.1} parent=11 // pred_fallthru
          _
        // Predicated region
        $region65: #{_token_stage_impl.1} parent=11 // pred_check
          %p741 = pneg %p417
        $region66: #{_token_stage_impl.1} parent=11 // pred_check_branch
          %743 = sbr.rel (%p741) target = $region68
        $region67: #{_token_stage_impl.1} parent=11 // pred_region
          %s745 = ssub.s32 64, 64
          %746 = vsyncadd [#allocation12], %s745
          %s747 = sshll.u32 [#allocation13], 4
          %s748 = int_to_ptr.vmem [resolvable:$true] %s747
          %753 = dma.hbm_to_vmem [thread:$0]  %s16, 64, %s748, [#allocation12], 32, 32, 2
        $region68: #{_token_stage_impl.1} parent=11 // pred_fallthru
          _
        // Predicated region
        $region69: #{_token_stage_impl.1} parent=11 // pred_check
          %p754 = pneg %p438
        $region70: #{_token_stage_impl.1} parent=11 // pred_check_branch
          %756 = sbr.rel (%p754) target = $region72
        $region71: #{_token_stage_impl.1} parent=11 // pred_region
          %s758 = ssub.s32 64, 64
          %759 = vsyncadd [#allocation15], %s758
          %s760 = sshll.u32 [#allocation14], 4
          %s761 = int_to_ptr.vmem [resolvable:$true] %s760
          %766 = dma.hbm_to_vmem [thread:$0]  %s17, 64, %s761, [#allocation15], 32, 32, 2
        $region72: #{_token_stage_impl.1} parent=11 // pred_fallthru
          _
        // Predicated region
        $region73: #{_token_stage_impl.1} parent=11 // pred_check
          %p767 = pneg %p459
        $region74: #{_token_stage_impl.1} parent=11 // pred_check_branch
          %769 = sbr.rel (%p767) target = $region76
        $region75: #{_token_stage_impl.1} parent=11 // pred_region
          %s771 = ssub.s32 64, 64
          %772 = vsyncadd [#allocation15], %s771
          %s773 = sshll.u32 [#allocation16], 4
          %s774 = int_to_ptr.vmem [resolvable:$true] %s773
          %779 = dma.hbm_to_vmem [thread:$0]  %s18, 64, %s774, [#allocation15], 32, 32, 2
        $region76: #{_token_stage_impl.1} parent=11 // pred_fallthru
          _
        // Predicated region
        $region77: #{_token_stage_impl.1} parent=11 // pred_check
          %p780 = pneg %p480
        $region78: #{_token_stage_impl.1} parent=11 // pred_check_branch
          %782 = sbr.rel (%p780) target = $region80
        $region79: #{_token_stage_impl.1} parent=11 // pred_region
          _
        $region80: #{_token_stage_impl.1} parent=11 // pred_fallthru
          _
        // Predicated region
        $region81: #{_token_stage_impl.1} parent=11 // pred_check
          %p783 = pneg %p501
        $region82: #{_token_stage_impl.1} parent=11 // pred_check_branch
          %785 = sbr.rel (%p783) target = $region84
        $region83: #{_token_stage_impl.1} parent=11 // pred_region
          %s787 = ssub.s32 128, 128
          %788 = vsyncadd [#allocation18], %s787
          %s789 = sshll.u32 [#allocation17], 4
          %s790 = int_to_ptr.vmem [resolvable:$true] %s789
          %795 = dma.hbm_to_vmem [thread:$0]  %s20, 128, %s790, [#allocation18], 64, 64, 4
        $region84: #{_token_stage_impl.1} parent=11 // pred_fallthru
          _
        // Predicated region
        $region85: #{_token_stage_impl.1} parent=11 // pred_check
          %p796 = pneg %p522
        $region86: #{_token_stage_impl.1} parent=11 // pred_check_branch
          %798 = sbr.rel (%p796) target = $region88
        $region87: #{_token_stage_impl.1} parent=11 // pred_region
          _
        $region88: #{_token_stage_impl.1} parent=11 // pred_fallthru
          _
        // Predicated region
        $region89: #{_token_stage_impl.1} parent=11 // pred_check
          %p799 = pneg %p543
        $region90: #{_token_stage_impl.1} parent=11 // pred_check_branch
          %801 = sbr.rel (%p799) target = $region92
        $region91: #{_token_stage_impl.1} parent=11 // pred_region
          %s803 = ssub.s32 64, 64
          %804 = vsyncadd [#allocation18], %s803
          %s805 = sshll.u32 [#allocation19], 4
          %s806 = int_to_ptr.vmem [resolvable:$true] %s805
          %811 = dma.hbm_to_vmem [thread:$0]  %s22, 64, %s806, [#allocation18], 32, 32, 2
        $region92: #{_token_stage_impl.1} parent=11 // pred_fallthru
          _
        // Predicated region
        $region93: #{_token_stage_impl.1} parent=11 // pred_check
          %p812 = pneg %p564
        $region94: #{_token_stage_impl.1} parent=11 // pred_check_branch
          %814 = sbr.rel (%p812) target = $region96
        $region95: #{_token_stage_impl.1} parent=11 // pred_region
          _
        $region96: #{_token_stage_impl.1} parent=11 // pred_fallthru
          _
        // Predicated region
        $region97: #{_token_stage_impl.1} parent=11 // pred_check
          %p815 = pneg %p585
        $region98: #{_token_stage_impl.1} parent=11 // pred_check_branch
          %817 = sbr.rel (%p815) target = $region100
        $region99: #{_token_stage_impl.1} parent=11 // pred_region
          %s819 = ssub.s32 64, 64
          %820 = vsyncadd [#allocation21], %s819
          %s821 = sshll.u32 [#allocation20], 4
          %s822 = int_to_ptr.vmem [resolvable:$true] %s821
          %827 = dma.hbm_to_vmem [thread:$0]  %s24, 64, %s822, [#allocation21], 32, 32, 2
        $region100: #{_token_stage_impl.1} parent=11 // pred_fallthru
          _
      $region12: #{_token_stage_impl.1} parent=5 // pred_fallthru
        _
      %p828 = scmp.lt.s32.totalorder %s45, 2
      // Predicated region
      $region101: #{_token_stage_impl.1} parent=5 // pred_check
        %p829 = pneg %p828
      $region102: #{_token_stage_impl.1} parent=5 // pred_check_branch
        %831 = sbr.rel (%p829) target = $region104
      $region103: #{_token_stage_impl.1} parent=5 // pred_region
        // Predicated region
        $region105: #{_token_stage_impl.1} parent=103 // pred_check
          %p832 = pneg %p65
        $region106: #{_token_stage_impl.1} parent=103 // pred_check_branch
          %834 = sbr.rel (%p832) target = $region108
        $region107: #{_token_stage_impl.1} parent=103 // pred_region
          %s835 = sand.u32 %s55, 1
          %s836 = scalar_lea.sflag [#allocation3], %s835
          %s837 = sand.u32 %s55, 1
          %s838 = smul.addr %s837, 32
          %s839 = scalar_lea.vmem [#allocation2], %s838
          %s841 = ssub.s32 512, 512
          %842 = vsyncadd %s836, %s841
          %s843 = smul.addr %s45, 4
          %s844 = smul.addr %s843, 128
          %s845 = scalar_lea.hbm %s0, %s844
          %s846 = sshll.u32 %s839, 4
          %s847 = int_to_ptr.vmem [resolvable:$true] %s846
          %852 = dma.hbm_to_vmem [thread:$0]  %s845, 512, %s847, %s836, 256, 256, 16
        $region108: #{_token_stage_impl.1} parent=103 // pred_fallthru
          _
        // Predicated region
        $region109: #{_token_stage_impl.1} parent=103 // pred_check
          %p853 = pneg %p91
        $region110: #{_token_stage_impl.1} parent=103 // pred_check_branch
          %855 = sbr.rel (%p853) target = $region112
        $region111: #{_token_stage_impl.1} parent=103 // pred_region
          %p856 = scmp.lt.s32.totalorder %s45, 1
          %s857 = scalar_select %p856, %s45, 1
          %s858 = smul.addr %s857, 8
          %s859 = smul.addr %s858, 4
          %s860 = scalar_lea.vmem %s1, %s859
        $region112: #{_token_stage_impl.1} parent=103 // pred_fallthru
          _
        // Predicated region
        $region113: #{_token_stage_impl.1} parent=103 // pred_check
          %p861 = pneg %p117
        $region114: #{_token_stage_impl.1} parent=103 // pred_check_branch
          %863 = sbr.rel (%p861) target = $region116
        $region115: #{_token_stage_impl.1} parent=103 // pred_region
          %p864 = scmp.lt.s32.totalorder %s45, 1
          %s865 = scalar_select %p864, %s45, 1
          %s866 = scalar_lea.vmem %s2, %s865
        $region116: #{_token_stage_impl.1} parent=103 // pred_fallthru
          _
      $region104: #{_token_stage_impl.1} parent=5 // pred_fallthru
        _
      %p867 = scmp.le.s32.totalorder 1, %s45
      %p868 = scmp.lt.s32.totalorder %s45, 3
      %p869 = pnand %p867, %p868
      %p870 = pneg %p869
      // Predicated region
      $region117: #{_token_stage_impl.1} parent=5 // pred_check
        _
      $region118: #{_token_stage_impl.1} parent=5 // pred_check_branch
        %872 = sbr.rel (%p869) target = $region120
      $region119: #{_token_stage_impl.1} parent=5 // pred_region
        %s873 = ssub.s32 %s45, 1
        %s874 = sand.u32 %s58, 1
        %s875 = scalar_lea.sflag [#allocation3], %s874
        %s876 = sand.u32 %s58, 1
        %s877 = smul.addr %s876, 32
        %s878 = scalar_lea.vmem [#allocation2], %s877
        // Predicated region
        $region121: #{_token_stage_impl.1} parent=119 // pred_check
          %p879 = pneg %p71
        $region122: #{_token_stage_impl.1} parent=119 // pred_check_branch
          %881 = sbr.rel (%p879) target = $region124
        $region123: #{_token_stage_impl.1} parent=119 // pred_region
          %882 = dma.done %s875, 512
        $region124: #{_token_stage_impl.1} parent=119 // pred_fallthru
          _
        // Predicated region
        $region125: #{_token_stage_impl.1} parent=119 // pred_check
          %p883 = pneg %p249
        $region126: #{_token_stage_impl.1} parent=119 // pred_check_branch
          %885 = sbr.rel (%p883) target = $region128
        $region127: #{_token_stage_impl.1} parent=119 // pred_region
          %886 = dma.done [#allocation6], 64
        $region128: #{_token_stage_impl.1} parent=119 // pred_fallthru
          _
        // Predicated region
        $region129: #{_token_stage_impl.1} parent=119 // pred_check
          %p887 = pneg %p291
        $region130: #{_token_stage_impl.1} parent=119 // pred_check_branch
          %889 = sbr.rel (%p887) target = $region132
        $region131: #{_token_stage_impl.1} parent=119 // pred_region
          %890 = dma.done [#allocation6], 64
        $region132: #{_token_stage_impl.1} parent=119 // pred_fallthru
          _
        // Predicated region
        $region133: #{_token_stage_impl.1} parent=119 // pred_check
          %p891 = pneg %p333
        $region134: #{_token_stage_impl.1} parent=119 // pred_check_branch
          %893 = sbr.rel (%p891) target = $region136
        $region135: #{_token_stage_impl.1} parent=119 // pred_region
          %894 = dma.done [#allocation9], 64
        $region136: #{_token_stage_impl.1} parent=119 // pred_fallthru
          _
        // Predicated region
        $region137: #{_token_stage_impl.1} parent=119 // pred_check
          %p895 = pneg %p375
        $region138: #{_token_stage_impl.1} parent=119 // pred_check_branch
          %897 = sbr.rel (%p895) target = $region140
        $region139: #{_token_stage_impl.1} parent=119 // pred_region
          %898 = dma.done [#allocation9], 64
        $region140: #{_token_stage_impl.1} parent=119 // pred_fallthru
          _
        // Predicated region
        $region141: #{_token_stage_impl.1} parent=119 // pred_check
          %p899 = pneg %p396
        $region142: #{_token_stage_impl.1} parent=119 // pred_check_branch
          %901 = sbr.rel (%p899) target = $region144
        $region143: #{_token_stage_impl.1} parent=119 // pred_region
          %902 = dma.done [#allocation12], 8192
        $region144: #{_token_stage_impl.1} parent=119 // pred_fallthru
          _
        // Predicated region
        $region145: #{_token_stage_impl.1} parent=119 // pred_check
          %p903 = pneg %p417
        $region146: #{_token_stage_impl.1} parent=119 // pred_check_branch
          %905 = sbr.rel (%p903) target = $region148
        $region147: #{_token_stage_impl.1} parent=119 // pred_region
          %906 = dma.done [#allocation12], 64
        $region148: #{_token_stage_impl.1} parent=119 // pred_fallthru
          _
        // Predicated region
        $region149: #{_token_stage_impl.1} parent=119 // pred_check
          %p907 = pneg %p438
        $region150: #{_token_stage_impl.1} parent=119 // pred_check_branch
          %909 = sbr.rel (%p907) target = $region152
        $region151: #{_token_stage_impl.1} parent=119 // pred_region
          %910 = dma.done [#allocation15], 64
        $region152: #{_token_stage_impl.1} parent=119 // pred_fallthru
          _
        // Predicated region
        $region153: #{_token_stage_impl.1} parent=119 // pred_check
          %p911 = pneg %p459
        $region154: #{_token_stage_impl.1} parent=119 // pred_check_branch
          %913 = sbr.rel (%p911) target = $region156
        $region155: #{_token_stage_impl.1} parent=119 // pred_region
          %914 = dma.done [#allocation15], 64
        $region156: #{_token_stage_impl.1} parent=119 // pred_fallthru
          _
        // Predicated region
        $region157: #{_token_stage_impl.1} parent=119 // pred_check
          %p915 = pneg %p501
        $region158: #{_token_stage_impl.1} parent=119 // pred_check_branch
          %917 = sbr.rel (%p915) target = $region160
        $region159: #{_token_stage_impl.1} parent=119 // pred_region
          %918 = dma.done [#allocation18], 128
        $region160: #{_token_stage_impl.1} parent=119 // pred_fallthru
          _
        // Predicated region
        $region161: #{_token_stage_impl.1} parent=119 // pred_check
          %p919 = pneg %p543
        $region162: #{_token_stage_impl.1} parent=119 // pred_check_branch
          %921 = sbr.rel (%p919) target = $region164
        $region163: #{_token_stage_impl.1} parent=119 // pred_region
          %922 = dma.done [#allocation18], 64
        $region164: #{_token_stage_impl.1} parent=119 // pred_fallthru
          _
        // Predicated region
        $region165: #{_token_stage_impl.1} parent=119 // pred_check
          %p923 = pneg %p585
        $region166: #{_token_stage_impl.1} parent=119 // pred_check_branch
          %925 = sbr.rel (%p923) target = $region168
        $region167: #{_token_stage_impl.1} parent=119 // pred_region
          %926 = dma.done [#allocation21], 64
        $region168: #{_token_stage_impl.1} parent=119 // pred_fallthru
          _
        %s927 = sand.u32 %s58, 1
        %s928 = scalar_lea.sflag [#allocation3], %s927
        %s929 = sand.u32 %s58, 1
        %s930 = smul.addr %s929, 32
        %s931 = scalar_lea.vmem [#allocation2], %s930
        %p932 = pneg %p71
        %p933 = pneg %p68
        %p934 = scmp.lt.s32.totalorder %s50, 1
        %s935 = scalar_select %p934, %s50, 1
        %s936 = smul.addr %s935, 8
        %s937 = smul.addr %s936, 4
        %s938 = scalar_lea.vmem %s1, %s937
        %p939 = pneg %p97
        %p940 = pneg %p94
        %p941 = scmp.lt.s32.totalorder %s50, 1
        %s942 = scalar_select %p941, %s50, 1
        %s943 = scalar_lea.vmem %s2, %s942
        %p944 = pneg %p123
        %p945 = pneg %p120
        %p946 = pneg %p144
        %p947 = pneg %p141
        %p948 = pneg %p165
        %p949 = pneg %p162
        %p950 = pneg %p186
        %p951 = pneg %p183
        %p952 = pneg %p207
        %p953 = pneg %p204
        %p954 = pneg %p228
        %p955 = pneg %p225
        %p956 = pneg %p249
        %p957 = pneg %p246
        %p958 = pneg %p270
        %p959 = pneg %p267
        %p960 = pneg %p291
        %p961 = pneg %p288
        %p962 = pneg %p312
        %p963 = pneg %p309
        %p964 = pneg %p333
        %p965 = pneg %p330
        %p966 = pneg %p354
        %p967 = pneg %p351
        %p968 = pneg %p375
        %p969 = pneg %p372
        %p970 = pneg %p396
        %p971 = pneg %p393
        %p972 = pneg %p417
        %p973 = pneg %p414
        %p974 = pneg %p438
        %p975 = pneg %p435
        %p976 = pneg %p459
        %p977 = pneg %p456
        %p978 = pneg %p480
        %p979 = pneg %p477
        %p980 = pneg %p501
        %p981 = pneg %p498
        %p982 = pneg %p522
        %p983 = pneg %p519
        %p984 = pneg %p543
        %p985 = pneg %p540
        %p986 = pneg %p564
        %p987 = pneg %p561
        %p988 = pneg %p585
        %p989 = pneg %p582
        %p990 = pneg %p611
        %p991 = pneg %p608
        %s992 = sand.u32 %s598, 1
        %s993 = scalar_lea.sflag [#allocation4], %s992
        %s994 = sand.u32 %s598, 1
        %s995 = smul.addr %s994, 32
        %s996 = scalar_lea.vmem [#allocation22], %s995
        %p997 = pneg %p637
        %p998 = pneg %p634
        %p999 = scmp.lt.s32.totalorder %s50, 1
        %s1000 = scalar_select %p999, %s50, 1
        %s1001 = smul.addr %s1000, 2
        %s1002 = smul.addr %s1001, 8
        %s1003 = scalar_lea.vmem %s26, %s1002
        %p1004 = scmp.lt.s32.totalorder %s50, 1
        %s1005 = scalar_select %p1004, %s50, 1
        %s1006 = smul.addr %s1005, 8
        %s1007 = smul.addr %s1006, 4
        %s1008 = scalar_lea.vmem %s1, %s1007
        %p1009 = scmp.lt.s32.totalorder %s50, 1
        %s1010 = scalar_select %p1009, %s50, 1
        %s1011 = scalar_lea.vmem %s2, %s1010
        %p1012 = scmp.lt.s32.totalorder %s50, 1
        %s1013 = scalar_select %p1012, %s50, 1
        %s1014 = smul.addr %s1013, 2
        %s1015 = smul.addr %s1014, 8
        %s1016 = scalar_lea.vmem %s26, %s1015
        %v1018 = vld [vmem:[%s878] sm:$0xff]
        %v1019 = vld [vmem:[%s878 + $0x8] sm:$0xff]
        %v1020 = vld [vmem:[%s878 + $0x10] sm:$0xff]
        %v1021 = vld [vmem:[%s878 + $0x18] sm:$0xff]
        %v1022 = vld [vmem:[%s1008] sm:$0xff]
        %v1023 = vld [vmem:[%s1008 + $0x8] sm:$0xff]
        %v1024 = vld [vmem:[%s1008 + $0x10] sm:$0xff]
        %v1025 = vld [vmem:[%s1008 + $0x18] sm:$0xff]
        %v1026 = vld [vmem:[%s1011] sm:$0x1]
        %v1027 = vpack.c.bf16 %v1020, %v1018
        %v1028 = vpack.c.bf16 %v1021, %v1019
        %v1029 = vld [vmem:[%s3] sm:$0xff]
        %v1030 = vld [vmem:[%s3 + $0x8] sm:$0xff]
        %v1031 = vld [vmem:[%s3 + $0x10] sm:$0xff]
        %v1032 = vld [vmem:[%s3 + $0x18] sm:$0xff]
        %v1033 = vld [vmem:[%s3 + $0x20] sm:$0xff]
        %v1034 = vld [vmem:[%s3 + $0x28] sm:$0xff]
        %v1035 = vld [vmem:[%s3 + $0x30] sm:$0xff]
        %v1036 = vld [vmem:[%s3 + $0x38] sm:$0xff]
        %v1037 = vld [vmem:[%s3 + $0x40] sm:$0xff]
        %v1038 = vld [vmem:[%s3 + $0x48] sm:$0xff]
        %v1039 = vld [vmem:[%s3 + $0x50] sm:$0xff]
        %v1040 = vld [vmem:[%s3 + $0x58] sm:$0xff]
        %v1041 = vld [vmem:[%s3 + $0x60] sm:$0xff]
        %v1042 = vld [vmem:[%s3 + $0x68] sm:$0xff]
        %v1043 = vld [vmem:[%s3 + $0x70] sm:$0xff]
        %v1044 = vld [vmem:[%s3 + $0x78] sm:$0xff]
        %v1045 = vld [vmem:[%s3 + $0x80] sm:$0xff]
        %v1046 = vld [vmem:[%s3 + $0x88] sm:$0xff]
        %v1047 = vld [vmem:[%s3 + $0x90] sm:$0xff]
        %v1048 = vld [vmem:[%s3 + $0x98] sm:$0xff]
        %v1049 = vld [vmem:[%s3 + $0xa0] sm:$0xff]
        %v1050 = vld [vmem:[%s3 + $0xa8] sm:$0xff]
        %v1051 = vld [vmem:[%s3 + $0xb0] sm:$0xff]
        %v1052 = vld [vmem:[%s3 + $0xb8] sm:$0xff]
        %v1053 = vld [vmem:[%s3 + $0xc0] sm:$0xff]
        %v1054 = vld [vmem:[%s3 + $0xc8] sm:$0xff]
        %v1055 = vld [vmem:[%s3 + $0xd0] sm:$0xff]
        %v1056 = vld [vmem:[%s3 + $0xd8] sm:$0xff]
        %v1057 = vld [vmem:[%s3 + $0xe0] sm:$0xff]
        %v1058 = vld [vmem:[%s3 + $0xe8] sm:$0xff]
        %v1059 = vld [vmem:[%s3 + $0xf0] sm:$0xff]
        %v1060 = vld [vmem:[%s3 + $0xf8] sm:$0xff]
        %v1061 = vld [vmem:[%s4] sm:$0x3]
        %v1063 = vlaneseq
        %v1064 = vshrl.u32 %v1063, 7
        %v1065 = vsub.s32 0, %v1064
        %v1066 = vrot.slane %v1061, %v1065
        %v1067 = vlaneseq
        %v1068 = vshrl.u32 %v1067, 7
        %v1069 = vsub.s32 1, %v1068
        %v1070 = vrot.slane %v1061, %v1069
        %v1105 = vunpack.c.l.b16 %v1029
        %v1106 = vunpack.c.h.b16 %v1029
        %v1107 = vunpack.c.l.b16 %v1030
        %v1108 = vunpack.c.h.b16 %v1030
        %v1109 = vunpack.c.l.b16 %v1031
        %v1110 = vunpack.c.h.b16 %v1031
        %v1111 = vunpack.c.l.b16 %v1032
        %v1112 = vunpack.c.h.b16 %v1032
        %v1113 = vunpack.c.l.b16 %v1033
        %v1114 = vunpack.c.h.b16 %v1033
        %v1115 = vunpack.c.l.b16 %v1034
        %v1116 = vunpack.c.h.b16 %v1034
        %v1117 = vunpack.c.l.b16 %v1035
        %v1118 = vunpack.c.h.b16 %v1035
        %v1119 = vunpack.c.l.b16 %v1036
        %v1120 = vunpack.c.h.b16 %v1036
        %v1121 = vunpack.c.l.b16 %v1037
        %v1122 = vunpack.c.h.b16 %v1037
        %v1123 = vunpack.c.l.b16 %v1038
        %v1124 = vunpack.c.h.b16 %v1038
        %v1125 = vunpack.c.l.b16 %v1039
        %v1126 = vunpack.c.h.b16 %v1039
        %v1127 = vunpack.c.l.b16 %v1040
        %v1128 = vunpack.c.h.b16 %v1040
        %v1129 = vunpack.c.l.b16 %v1041
        %v1130 = vunpack.c.h.b16 %v1041
        %v1131 = vunpack.c.l.b16 %v1042
        %v1132 = vunpack.c.h.b16 %v1042
        %v1133 = vunpack.c.l.b16 %v1043
        %v1134 = vunpack.c.h.b16 %v1043
        %v1135 = vunpack.c.l.b16 %v1044
        %v1136 = vunpack.c.h.b16 %v1044
        %v1137 = vunpack.c.l.b16 %v1045
        %v1138 = vunpack.c.h.b16 %v1045
        %v1139 = vunpack.c.l.b16 %v1046
        %v1140 = vunpack.c.h.b16 %v1046
        %v1141 = vunpack.c.l.b16 %v1047
        %v1142 = vunpack.c.h.b16 %v1047
        %v1143 = vunpack.c.l.b16 %v1048
        %v1144 = vunpack.c.h.b16 %v1048
        %v1145 = vunpack.c.l.b16 %v1049
        %v1146 = vunpack.c.h.b16 %v1049
        %v1147 = vunpack.c.l.b16 %v1050
        %v1148 = vunpack.c.h.b16 %v1050
        %v1149 = vunpack.c.l.b16 %v1051
        %v1150 = vunpack.c.h.b16 %v1051
        %v1151 = vunpack.c.l.b16 %v1052
        %v1152 = vunpack.c.h.b16 %v1052
        %v1153 = vunpack.c.l.b16 %v1053
        %v1154 = vunpack.c.h.b16 %v1053
        %v1155 = vunpack.c.l.b16 %v1054
        %v1156 = vunpack.c.h.b16 %v1054
        %v1157 = vunpack.c.l.b16 %v1055
        %v1158 = vunpack.c.h.b16 %v1055
        %v1159 = vunpack.c.l.b16 %v1056
        %v1160 = vunpack.c.h.b16 %v1056
        %v1161 = vunpack.c.l.b16 %v1057
        %v1162 = vunpack.c.h.b16 %v1057
        %v1163 = vunpack.c.l.b16 %v1058
        %v1164 = vunpack.c.h.b16 %v1058
        %v1165 = vunpack.c.l.b16 %v1059
        %v1166 = vunpack.c.h.b16 %v1059
        %v1167 = vunpack.c.l.b16 %v1060
        %v1168 = vunpack.c.h.b16 %v1060
        %v1169 = vpack.c.b16 %v1107, %v1105
        %v1170 = vpack.c.b16 %v1108, %v1106
        %v1171 = vpack.c.b16 %v1111, %v1109
        %v1172 = vpack.c.b16 %v1112, %v1110
        %v1173 = vpack.c.b16 %v1115, %v1113
        %v1174 = vpack.c.b16 %v1116, %v1114
        %v1175 = vpack.c.b16 %v1119, %v1117
        %v1176 = vpack.c.b16 %v1120, %v1118
        %v1177 = vpack.c.b16 %v1123, %v1121
        %v1178 = vpack.c.b16 %v1124, %v1122
        %v1179 = vpack.c.b16 %v1127, %v1125
        %v1180 = vpack.c.b16 %v1128, %v1126
        %v1181 = vpack.c.b16 %v1131, %v1129
        %v1182 = vpack.c.b16 %v1132, %v1130
        %v1183 = vpack.c.b16 %v1135, %v1133
        %v1184 = vpack.c.b16 %v1136, %v1134
        %v1185 = vpack.c.b16 %v1139, %v1137
        %v1186 = vpack.c.b16 %v1140, %v1138
        %v1187 = vpack.c.b16 %v1143, %v1141
        %v1188 = vpack.c.b16 %v1144, %v1142
        %v1189 = vpack.c.b16 %v1147, %v1145
        %v1190 = vpack.c.b16 %v1148, %v1146
        %v1191 = vpack.c.b16 %v1151, %v1149
        %v1192 = vpack.c.b16 %v1152, %v1150
        %v1193 = vpack.c.b16 %v1155, %v1153
        %v1194 = vpack.c.b16 %v1156, %v1154
        %v1195 = vpack.c.b16 %v1159, %v1157
        %v1196 = vpack.c.b16 %v1160, %v1158
        %v1197 = vpack.c.b16 %v1163, %v1161
        %v1198 = vpack.c.b16 %v1164, %v1162
        %v1199 = vpack.c.b16 %v1167, %v1165
        %v1200 = vpack.c.b16 %v1168, %v1166
        %1233 = vmatprep.subr.bf16.mxu0 %v1170
        %1234 = vmatpush1.bf16.msra.mxu0 %v1169
        %1235 = vmatprep.subr.bf16.mxu0 %v1172
        %1236 = vmatpush1.bf16.msra.mxu0 %v1171
        %1237 = vmatprep.subr.bf16.mxu0 %v1174
        %1238 = vmatpush1.bf16.msra.mxu0 %v1173
        %1239 = vmatprep.subr.bf16.mxu0 %v1176
        %1240 = vmatpush1.bf16.msra.mxu0 %v1175
        %1241 = vmatprep.subr.bf16.mxu0 %v1178
        %1242 = vmatpush1.bf16.msra.mxu0 %v1177
        %1243 = vmatprep.subr.bf16.mxu0 %v1180
        %1244 = vmatpush1.bf16.msra.mxu0 %v1179
        %1245 = vmatprep.subr.bf16.mxu0 %v1182
        %1246 = vmatpush1.bf16.msra.mxu0 %v1181
        %1247 = vmatprep.subr.bf16.mxu0 %v1184
        %1248 = vmatpush1.bf16.msra.mxu0 %v1183
        %1249 = vmatprep.subr.bf16.mxu0 %v1186
        %1250 = vmatpush1.bf16.msra.mxu0 %v1185
        %1251 = vmatprep.subr.bf16.mxu0 %v1188
        %1252 = vmatpush1.bf16.msra.mxu0 %v1187
        %1253 = vmatprep.subr.bf16.mxu0 %v1190
        %1254 = vmatpush1.bf16.msra.mxu0 %v1189
        %1255 = vmatprep.subr.bf16.mxu0 %v1192
        %1256 = vmatpush1.bf16.msra.mxu0 %v1191
        %1257 = vmatprep.subr.bf16.mxu0 %v1194
        %1258 = vmatpush1.bf16.msra.mxu0 %v1193
        %1259 = vmatprep.subr.bf16.mxu0 %v1196
        %1260 = vmatpush1.bf16.msra.mxu0 %v1195
        %1261 = vmatprep.subr.bf16.mxu0 %v1198
        %1262 = vmatpush1.bf16.msra.mxu0 %v1197
        %1263 = vmatprep.subr.bf16.mxu0 %v1200
        %1264 = vmatpush1.bf16.msra.mxu0 %v1199
        %1265 = vmatprep.mubr.bf16.mxu0 %v1028
        %1266 = vmatmul.mubr.bf16.gmra.mrb[0].mxu0 %v1027
        %v1267 = vpop.f32.mrb[0].mxu0
        %v1268 = vadd.f32 %v1066, %v1267
        %v1269 = vpop.f32.mrb[0].mxu0
        %v1270 = vadd.f32 %v1070, %v1269
        %v1271 = vpop.f32.mrb[0].mxu0
        %v1272 = vadd.f32 %v1066, %v1271
        %v1273 = vpop.f32.mrb[0].mxu0
        %v1274 = vadd.f32 %v1070, %v1273
        %1275 = vdwg.mxu0
        %v1276 = vmax.f32 %v1268, 0.0
        %v1277 = vmax.f32 %v1270, 0.0
        %v1278 = vmax.f32 %v1272, 0.0
        %v1279 = vmax.f32 %v1274, 0.0
        %v1280 = vpack.c.bf16 %v1278, %v1276
        %v1281 = vpack.c.bf16 %v1279, %v1277
        %v1282 = vld [vmem:[%s5] sm:$0xf]
        %v1283 = vld [vmem:[%s5 + $0x4] sm:$0xf]
        %v1284 = vld [vmem:[%s5 + $0x8] sm:$0xf]
        %v1285 = vld [vmem:[%s5 + $0xc] sm:$0xf]
        %v1286 = vld [vmem:[%s5 + $0x10] sm:$0xf]
        %v1287 = vld [vmem:[%s5 + $0x14] sm:$0xf]
        %v1288 = vld [vmem:[%s5 + $0x18] sm:$0xf]
        %v1289 = vld [vmem:[%s5 + $0x1c] sm:$0xf]
        %v1290 = vld [vmem:[%s5 + $0x20] sm:$0xf]
        %v1291 = vld [vmem:[%s5 + $0x24] sm:$0xf]
        %v1292 = vld [vmem:[%s5 + $0x28] sm:$0xf]
        %v1293 = vld [vmem:[%s5 + $0x2c] sm:$0xf]
        %v1294 = vld [vmem:[%s5 + $0x30] sm:$0xf]
        %v1295 = vld [vmem:[%s5 + $0x34] sm:$0xf]
        %v1296 = vld [vmem:[%s5 + $0x38] sm:$0xf]
        %v1297 = vld [vmem:[%s5 + $0x3c] sm:$0xf]
        %v1298 = vld [vmem:[%s5 + $0x40] sm:$0xf]
        %v1299 = vld [vmem:[%s5 + $0x44] sm:$0xf]
        %v1300 = vld [vmem:[%s5 + $0x48] sm:$0xf]
        %v1301 = vld [vmem:[%s5 + $0x4c] sm:$0xf]
        %v1302 = vld [vmem:[%s5 + $0x50] sm:$0xf]
        %v1303 = vld [vmem:[%s5 + $0x54] sm:$0xf]
        %v1304 = vld [vmem:[%s5 + $0x58] sm:$0xf]
        %v1305 = vld [vmem:[%s5 + $0x5c] sm:$0xf]
        %v1306 = vld [vmem:[%s5 + $0x60] sm:$0xf]
        %v1307 = vld [vmem:[%s5 + $0x64] sm:$0xf]
        %v1308 = vld [vmem:[%s5 + $0x68] sm:$0xf]
        %v1309 = vld [vmem:[%s5 + $0x6c] sm:$0xf]
        %v1310 = vld [vmem:[%s5 + $0x70] sm:$0xf]
        %v1311 = vld [vmem:[%s5 + $0x74] sm:$0xf]
        %v1312 = vld [vmem:[%s5 + $0x78] sm:$0xf]
        %v1313 = vld [vmem:[%s5 + $0x7c] sm:$0xf]
        %v1314 = vld [vmem:[%s6] sm:$0x1]
        %v1316 = vlaneseq
        %v1317 = vshrl.u32 %v1316, 7
        %v1318 = vsub.s32 0, %v1317
        %v1319 = vrot.slane %v1314, %v1318
        %v1353 = vunpack.c.l.b16 %v1282
        %v1354 = vunpack.c.l.b16 %v1283
        %v1355 = vunpack.c.l.b16 %v1284
        %v1356 = vunpack.c.l.b16 %v1285
        %v1357 = vunpack.c.l.b16 %v1286
        %v1358 = vunpack.c.l.b16 %v1287
        %v1359 = vunpack.c.l.b16 %v1288
        %v1360 = vunpack.c.l.b16 %v1289
        %v1361 = vunpack.c.l.b16 %v1290
        %v1362 = vunpack.c.l.b16 %v1291
        %v1363 = vunpack.c.l.b16 %v1292
        %v1364 = vunpack.c.l.b16 %v1293
        %v1365 = vunpack.c.l.b16 %v1294
        %v1366 = vunpack.c.l.b16 %v1295
        %v1367 = vunpack.c.l.b16 %v1296
        %v1368 = vunpack.c.l.b16 %v1297
        %v1369 = vunpack.c.l.b16 %v1298
        %v1370 = vunpack.c.l.b16 %v1299
        %v1371 = vunpack.c.l.b16 %v1300
        %v1372 = vunpack.c.l.b16 %v1301
        %v1373 = vunpack.c.l.b16 %v1302
        %v1374 = vunpack.c.l.b16 %v1303
        %v1375 = vunpack.c.l.b16 %v1304
        %v1376 = vunpack.c.l.b16 %v1305
        %v1377 = vunpack.c.l.b16 %v1306
        %v1378 = vunpack.c.l.b16 %v1307
        %v1379 = vunpack.c.l.b16 %v1308
        %v1380 = vunpack.c.l.b16 %v1309
        %v1381 = vunpack.c.l.b16 %v1310
        %v1382 = vunpack.c.l.b16 %v1311
        %v1383 = vunpack.c.l.b16 %v1312
        %v1384 = vunpack.c.l.b16 %v1313
        %v1385 = vpack.c.b16 %v1354, %v1353
        %v1386 = vpack.c.b16 %v1356, %v1355
        %v1387 = vpack.c.b16 %v1358, %v1357
        %v1388 = vpack.c.b16 %v1360, %v1359
        %v1389 = vpack.c.b16 %v1362, %v1361
        %v1390 = vpack.c.b16 %v1364, %v1363
        %v1391 = vpack.c.b16 %v1366, %v1365
        %v1392 = vpack.c.b16 %v1368, %v1367
        %v1393 = vpack.c.b16 %v1370, %v1369
        %v1394 = vpack.c.b16 %v1372, %v1371
        %v1395 = vpack.c.b16 %v1374, %v1373
        %v1396 = vpack.c.b16 %v1376, %v1375
        %v1397 = vpack.c.b16 %v1378, %v1377
        %v1398 = vpack.c.b16 %v1380, %v1379
        %v1399 = vpack.c.b16 %v1382, %v1381
        %v1400 = vpack.c.b16 %v1384, %v1383
        %1417 = vmatprep.subr.bf16.mxu0 0
        %1418 = vmatpush1.bf16.msra.mxu0 %v1385
        %1419 = vmatprep.subr.bf16.mxu0 0
        %1420 = vmatpush1.bf16.msra.mxu0 %v1386
        %1421 = vmatprep.subr.bf16.mxu0 0
        %1422 = vmatpush1.bf16.msra.mxu0 %v1387
        %1423 = vmatprep.subr.bf16.mxu0 0
        %1424 = vmatpush1.bf16.msra.mxu0 %v1388
        %1425 = vmatprep.subr.bf16.mxu0 0
        %1426 = vmatpush1.bf16.msra.mxu0 %v1389
        %1427 = vmatprep.subr.bf16.mxu0 0
        %1428 = vmatpush1.bf16.msra.mxu0 %v1390
        %1429 = vmatprep.subr.bf16.mxu0 0
        %1430 = vmatpush1.bf16.msra.mxu0 %v1391
        %1431 = vmatprep.subr.bf16.mxu0 0
        %1432 = vmatpush1.bf16.msra.mxu0 %v1392
        %1433 = vmatprep.subr.bf16.mxu0 0
        %1434 = vmatpush1.bf16.msra.mxu0 %v1393
        %1435 = vmatprep.subr.bf16.mxu0 0
        %1436 = vmatpush1.bf16.msra.mxu0 %v1394
        %1437 = vmatprep.subr.bf16.mxu0 0
        %1438 = vmatpush1.bf16.msra.mxu0 %v1395
        %1439 = vmatprep.subr.bf16.mxu0 0
        %1440 = vmatpush1.bf16.msra.mxu0 %v1396
        %1441 = vmatprep.subr.bf16.mxu0 0
        %1442 = vmatpush1.bf16.msra.mxu0 %v1397
        %1443 = vmatprep.subr.bf16.mxu0 0
        %1444 = vmatpush1.bf16.msra.mxu0 %v1398
        %1445 = vmatprep.subr.bf16.mxu0 0
        %1446 = vmatpush1.bf16.msra.mxu0 %v1399
        %1447 = vmatprep.subr.bf16.mxu0 0
        %1448 = vmatpush1.bf16.msra.mxu0 %v1400
        %1449 = vmatprep.mubr.bf16.mxu0 %v1281
        %1450 = vmatmul.mubr.bf16.gmra.mrb[0].mxu0 %v1280
        %v1451 = vpop.f32.mrb[0].mxu0
        %v1452 = vadd.f32 %v1319, %v1451
        %v1453 = vpop.f32.mrb[0].mxu0
        %v1454 = vpop.f32.mrb[0].mxu0
        %v1455 = vadd.f32 %v1319, %v1454
        %v1456 = vpop.f32.mrb[0].mxu0
        %1457 = vdwg.mxu0
        %v1458 = vxor.u32 %v1452, 2147483648
        %v1459 = vxor.u32 %v1455, 2147483648
        %v1460 = vmul.f32 %v1458, 1.442695
        %v1461 = vpow.pop %v1460
        %v1462 = vmul.f32 %v1459, 1.442695
        %v1463 = vpow.pop %v1462
        %v1464 = vadd.f32 %v1461, 1.0
        %v1465 = vadd.f32 %v1463, 1.0
        %v1466 = vrcp.pop %v1464
        %v1467 = vmul.f32 1.0, %v1466
        %v1468 = vrcp.pop %v1465
        %v1469 = vmul.f32 1.0, %v1468
        %1470 = vst [vmem:[%s1016] sm:$0xff] %v1467
        %1471 = vst [vmem:[%s1016 + $0x8] sm:$0xff] %v1469
        %v1472 = vld [vmem:[%s7] sm:$0xff]
        %v1473 = vld [vmem:[%s7 + $0x8] sm:$0xff]
        %v1474 = vld [vmem:[%s7 + $0x10] sm:$0xff]
        %v1475 = vld [vmem:[%s7 + $0x18] sm:$0xff]
        %v1476 = vld [vmem:[%s7 + $0x20] sm:$0xff]
        %v1477 = vld [vmem:[%s7 + $0x28] sm:$0xff]
        %v1478 = vld [vmem:[%s7 + $0x30] sm:$0xff]
        %v1479 = vld [vmem:[%s7 + $0x38] sm:$0xff]
        %v1480 = vld [vmem:[%s7 + $0x40] sm:$0xff]
        %v1481 = vld [vmem:[%s7 + $0x48] sm:$0xff]
        %v1482 = vld [vmem:[%s7 + $0x50] sm:$0xff]
        %v1483 = vld [vmem:[%s7 + $0x58] sm:$0xff]
        %v1484 = vld [vmem:[%s7 + $0x60] sm:$0xff]
        %v1485 = vld [vmem:[%s7 + $0x68] sm:$0xff]
        %v1486 = vld [vmem:[%s7 + $0x70] sm:$0xff]
        %v1487 = vld [vmem:[%s7 + $0x78] sm:$0xff]
        %v1488 = vld [vmem:[%s7 + $0x80] sm:$0xff]
        %v1489 = vld [vmem:[%s7 + $0x88] sm:$0xff]
        %v1490 = vld [vmem:[%s7 + $0x90] sm:$0xff]
        %v1491 = vld [vmem:[%s7 + $0x98] sm:$0xff]
        %v1492 = vld [vmem:[%s7 + $0xa0] sm:$0xff]
        %v1493 = vld [vmem:[%s7 + $0xa8] sm:$0xff]
        %v1494 = vld [vmem:[%s7 + $0xb0] sm:$0xff]
        %v1495 = vld [vmem:[%s7 + $0xb8] sm:$0xff]
        %v1496 = vld [vmem:[%s7 + $0xc0] sm:$0xff]
        %v1497 = vld [vmem:[%s7 + $0xc8] sm:$0xff]
        %v1498 = vld [vmem:[%s7 + $0xd0] sm:$0xff]
        %v1499 = vld [vmem:[%s7 + $0xd8] sm:$0xff]
        %v1500 = vld [vmem:[%s7 + $0xe0] sm:$0xff]
        %v1501 = vld [vmem:[%s7 + $0xe8] sm:$0xff]
        %v1502 = vld [vmem:[%s7 + $0xf0] sm:$0xff]
        %v1503 = vld [vmem:[%s7 + $0xf8] sm:$0xff]
        %v1504 = vld [vmem:[%s7 + $0x100] sm:$0xff]
        %v1505 = vld [vmem:[%s7 + $0x108] sm:$0xff]
        %v1506 = vld [vmem:[%s7 + $0x110] sm:$0xff]
        %v1507 = vld [vmem:[%s7 + $0x118] sm:$0xff]
        %v1508 = vld [vmem:[%s7 + $0x120] sm:$0xff]
        %v1509 = vld [vmem:[%s7 + $0x128] sm:$0xff]
        %v1510 = vld [vmem:[%s7 + $0x130] sm:$0xff]
        %v1511 = vld [vmem:[%s7 + $0x138] sm:$0xff]
        %v1512 = vld [vmem:[%s7 + $0x140] sm:$0xff]
        %v1513 = vld [vmem:[%s7 + $0x148] sm:$0xff]
        %v1514 = vld [vmem:[%s7 + $0x150] sm:$0xff]
        %v1515 = vld [vmem:[%s7 + $0x158] sm:$0xff]
        %v1516 = vld [vmem:[%s7 + $0x160] sm:$0xff]
        %v1517 = vld [vmem:[%s7 + $0x168] sm:$0xff]
        %v1518 = vld [vmem:[%s7 + $0x170] sm:$0xff]
        %v1519 = vld [vmem:[%s7 + $0x178] sm:$0xff]
        %v1520 = vld [vmem:[%s7 + $0x180] sm:$0xff]
        %v1521 = vld [vmem:[%s7 + $0x188] sm:$0xff]
        %v1522 = vld [vmem:[%s7 + $0x190] sm:$0xff]
        %v1523 = vld [vmem:[%s7 + $0x198] sm:$0xff]
        %v1524 = vld [vmem:[%s7 + $0x1a0] sm:$0xff]
        %v1525 = vld [vmem:[%s7 + $0x1a8] sm:$0xff]
        %v1526 = vld [vmem:[%s7 + $0x1b0] sm:$0xff]
        %v1527 = vld [vmem:[%s7 + $0x1b8] sm:$0xff]
        %v1528 = vld [vmem:[%s7 + $0x1c0] sm:$0xff]
        %v1529 = vld [vmem:[%s7 + $0x1c8] sm:$0xff]
        %v1530 = vld [vmem:[%s7 + $0x1d0] sm:$0xff]
        %v1531 = vld [vmem:[%s7 + $0x1d8] sm:$0xff]
        %v1532 = vld [vmem:[%s7 + $0x1e0] sm:$0xff]
        %v1533 = vld [vmem:[%s7 + $0x1e8] sm:$0xff]
        %v1534 = vld [vmem:[%s7 + $0x1f0] sm:$0xff]
        %v1535 = vld [vmem:[%s7 + $0x1f8] sm:$0xff]
        %v1536 = vld [vmem:[#allocation5] sm:$0x3]
        %v1538 = vlaneseq
        %v1539 = vshrl.u32 %v1538, 7
        %v1540 = vsub.s32 0, %v1539
        %v1541 = vrot.slane %v1536, %v1540
        %v1542 = vlaneseq
        %v1543 = vshrl.u32 %v1542, 7
        %v1544 = vsub.s32 1, %v1543
        %v1545 = vrot.slane %v1536, %v1544
        %v1552 = vunpack.c.l.b16 %v1022
        %v1553 = vunpack.c.h.b16 %v1022
        %v1554 = vunpack.c.l.b16 %v1023
        %v1555 = vunpack.c.h.b16 %v1023
        %v1556 = vunpack.c.l.b16 %v1024
        %v1557 = vunpack.c.h.b16 %v1024
        %v1558 = vunpack.c.l.b16 %v1025
        %v1559 = vunpack.c.h.b16 %v1025
        %v1560 = vpack.c.b16 %v1556, %v1552
        %v1561 = vpack.c.b16 %v1557, %v1553
        %v1562 = vpack.c.b16 %v1558, %v1554
        %v1563 = vpack.c.b16 %v1559, %v1555
        %v1632 = vunpack.c.l.b16 %v1472
        %v1633 = vunpack.c.h.b16 %v1472
        %v1634 = vunpack.c.l.b16 %v1473
        %v1635 = vunpack.c.h.b16 %v1473
        %v1636 = vunpack.c.l.b16 %v1474
        %v1637 = vunpack.c.h.b16 %v1474
        %v1638 = vunpack.c.l.b16 %v1475
        %v1639 = vunpack.c.h.b16 %v1475
        %v1640 = vunpack.c.l.b16 %v1476
        %v1641 = vunpack.c.h.b16 %v1476
        %v1642 = vunpack.c.l.b16 %v1477
        %v1643 = vunpack.c.h.b16 %v1477
        %v1644 = vunpack.c.l.b16 %v1478
        %v1645 = vunpack.c.h.b16 %v1478
        %v1646 = vunpack.c.l.b16 %v1479
        %v1647 = vunpack.c.h.b16 %v1479
        %v1648 = vunpack.c.l.b16 %v1480
        %v1649 = vunpack.c.h.b16 %v1480
        %v1650 = vunpack.c.l.b16 %v1481
        %v1651 = vunpack.c.h.b16 %v1481
        %v1652 = vunpack.c.l.b16 %v1482
        %v1653 = vunpack.c.h.b16 %v1482
        %v1654 = vunpack.c.l.b16 %v1483
        %v1655 = vunpack.c.h.b16 %v1483
        %v1656 = vunpack.c.l.b16 %v1484
        %v1657 = vunpack.c.h.b16 %v1484
        %v1658 = vunpack.c.l.b16 %v1485
        %v1659 = vunpack.c.h.b16 %v1485
        %v1660 = vunpack.c.l.b16 %v1486
        %v1661 = vunpack.c.h.b16 %v1486
        %v1662 = vunpack.c.l.b16 %v1487
        %v1663 = vunpack.c.h.b16 %v1487
        %v1664 = vunpack.c.l.b16 %v1488
        %v1665 = vunpack.c.h.b16 %v1488
        %v1666 = vunpack.c.l.b16 %v1489
        %v1667 = vunpack.c.h.b16 %v1489
        %v1668 = vunpack.c.l.b16 %v1490
        %v1669 = vunpack.c.h.b16 %v1490
        %v1670 = vunpack.c.l.b16 %v1491
        %v1671 = vunpack.c.h.b16 %v1491
        %v1672 = vunpack.c.l.b16 %v1492
        %v1673 = vunpack.c.h.b16 %v1492
        %v1674 = vunpack.c.l.b16 %v1493
        %v1675 = vunpack.c.h.b16 %v1493
        %v1676 = vunpack.c.l.b16 %v1494
        %v1677 = vunpack.c.h.b16 %v1494
        %v1678 = vunpack.c.l.b16 %v1495
        %v1679 = vunpack.c.h.b16 %v1495
        %v1680 = vunpack.c.l.b16 %v1496
        %v1681 = vunpack.c.h.b16 %v1496
        %v1682 = vunpack.c.l.b16 %v1497
        %v1683 = vunpack.c.h.b16 %v1497
        %v1684 = vunpack.c.l.b16 %v1498
        %v1685 = vunpack.c.h.b16 %v1498
        %v1686 = vunpack.c.l.b16 %v1499
        %v1687 = vunpack.c.h.b16 %v1499
        %v1688 = vunpack.c.l.b16 %v1500
        %v1689 = vunpack.c.h.b16 %v1500
        %v1690 = vunpack.c.l.b16 %v1501
        %v1691 = vunpack.c.h.b16 %v1501
        %v1692 = vunpack.c.l.b16 %v1502
        %v1693 = vunpack.c.h.b16 %v1502
        %v1694 = vunpack.c.l.b16 %v1503
        %v1695 = vunpack.c.h.b16 %v1503
        %v1696 = vunpack.c.l.b16 %v1504
        %v1697 = vunpack.c.h.b16 %v1504
        %v1698 = vunpack.c.l.b16 %v1505
        %v1699 = vunpack.c.h.b16 %v1505
        %v1700 = vunpack.c.l.b16 %v1506
        %v1701 = vunpack.c.h.b16 %v1506
        %v1702 = vunpack.c.l.b16 %v1507
        %v1703 = vunpack.c.h.b16 %v1507
        %v1704 = vunpack.c.l.b16 %v1508
        %v1705 = vunpack.c.h.b16 %v1508
        %v1706 = vunpack.c.l.b16 %v1509
        %v1707 = vunpack.c.h.b16 %v1509
        %v1708 = vunpack.c.l.b16 %v1510
        %v1709 = vunpack.c.h.b16 %v1510
        %v1710 = vunpack.c.l.b16 %v1511
        %v1711 = vunpack.c.h.b16 %v1511
        %v1712 = vunpack.c.l.b16 %v1512
        %v1713 = vunpack.c.h.b16 %v1512
        %v1714 = vunpack.c.l.b16 %v1513
        %v1715 = vunpack.c.h.b16 %v1513
        %v1716 = vunpack.c.l.b16 %v1514
        %v1717 = vunpack.c.h.b16 %v1514
        %v1718 = vunpack.c.l.b16 %v1515
        %v1719 = vunpack.c.h.b16 %v1515
        %v1720 = vunpack.c.l.b16 %v1516
        %v1721 = vunpack.c.h.b16 %v1516
        %v1722 = vunpack.c.l.b16 %v1517
        %v1723 = vunpack.c.h.b16 %v1517
        %v1724 = vunpack.c.l.b16 %v1518
        %v1725 = vunpack.c.h.b16 %v1518
        %v1726 = vunpack.c.l.b16 %v1519
        %v1727 = vunpack.c.h.b16 %v1519
        %v1728 = vunpack.c.l.b16 %v1520
        %v1729 = vunpack.c.h.b16 %v1520
        %v1730 = vunpack.c.l.b16 %v1521
        %v1731 = vunpack.c.h.b16 %v1521
        %v1732 = vunpack.c.l.b16 %v1522
        %v1733 = vunpack.c.h.b16 %v1522
        %v1734 = vunpack.c.l.b16 %v1523
        %v1735 = vunpack.c.h.b16 %v1523
        %v1736 = vunpack.c.l.b16 %v1524
        %v1737 = vunpack.c.h.b16 %v1524
        %v1738 = vunpack.c.l.b16 %v1525
        %v1739 = vunpack.c.h.b16 %v1525
        %v1740 = vunpack.c.l.b16 %v1526
        %v1741 = vunpack.c.h.b16 %v1526
        %v1742 = vunpack.c.l.b16 %v1527
        %v1743 = vunpack.c.h.b16 %v1527
        %v1744 = vunpack.c.l.b16 %v1528
        %v1745 = vunpack.c.h.b16 %v1528
        %v1746 = vunpack.c.l.b16 %v1529
        %v1747 = vunpack.c.h.b16 %v1529
        %v1748 = vunpack.c.l.b16 %v1530
        %v1749 = vunpack.c.h.b16 %v1530
        %v1750 = vunpack.c.l.b16 %v1531
        %v1751 = vunpack.c.h.b16 %v1531
        %v1752 = vunpack.c.l.b16 %v1532
        %v1753 = vunpack.c.h.b16 %v1532
        %v1754 = vunpack.c.l.b16 %v1533
        %v1755 = vunpack.c.h.b16 %v1533
        %v1756 = vunpack.c.l.b16 %v1534
        %v1757 = vunpack.c.h.b16 %v1534
        %v1758 = vunpack.c.l.b16 %v1535
        %v1759 = vunpack.c.h.b16 %v1535
        %v1760 = vpack.c.b16 %v1634, %v1632
        %v1761 = vpack.c.b16 %v1635, %v1633
        %v1762 = vpack.c.b16 %v1638, %v1636
        %v1763 = vpack.c.b16 %v1639, %v1637
        %v1764 = vpack.c.b16 %v1642, %v1640
        %v1765 = vpack.c.b16 %v1643, %v1641
        %v1766 = vpack.c.b16 %v1646, %v1644
        %v1767 = vpack.c.b16 %v1647, %v1645
        %v1768 = vpack.c.b16 %v1650, %v1648
        %v1769 = vpack.c.b16 %v1651, %v1649
        %v1770 = vpack.c.b16 %v1654, %v1652
        %v1771 = vpack.c.b16 %v1655, %v1653
        %v1772 = vpack.c.b16 %v1658, %v1656
        %v1773 = vpack.c.b16 %v1659, %v1657
        %v1774 = vpack.c.b16 %v1662, %v1660
        %v1775 = vpack.c.b16 %v1663, %v1661
        %v1776 = vpack.c.b16 %v1666, %v1664
        %v1777 = vpack.c.b16 %v1667, %v1665
        %v1778 = vpack.c.b16 %v1670, %v1668
        %v1779 = vpack.c.b16 %v1671, %v1669
        %v1780 = vpack.c.b16 %v1674, %v1672
        %v1781 = vpack.c.b16 %v1675, %v1673
        %v1782 = vpack.c.b16 %v1678, %v1676
        %v1783 = vpack.c.b16 %v1679, %v1677
        %v1784 = vpack.c.b16 %v1682, %v1680
        %v1785 = vpack.c.b16 %v1683, %v1681
        %v1786 = vpack.c.b16 %v1686, %v1684
        %v1787 = vpack.c.b16 %v1687, %v1685
        %v1788 = vpack.c.b16 %v1690, %v1688
        %v1789 = vpack.c.b16 %v1691, %v1689
        %v1790 = vpack.c.b16 %v1694, %v1692
        %v1791 = vpack.c.b16 %v1695, %v1693
        %v1792 = vpack.c.b16 %v1698, %v1696
        %v1793 = vpack.c.b16 %v1699, %v1697
        %v1794 = vpack.c.b16 %v1702, %v1700
        %v1795 = vpack.c.b16 %v1703, %v1701
        %v1796 = vpack.c.b16 %v1706, %v1704
        %v1797 = vpack.c.b16 %v1707, %v1705
        %v1798 = vpack.c.b16 %v1710, %v1708
        %v1799 = vpack.c.b16 %v1711, %v1709
        %v1800 = vpack.c.b16 %v1714, %v1712
        %v1801 = vpack.c.b16 %v1715, %v1713
        %v1802 = vpack.c.b16 %v1718, %v1716
        %v1803 = vpack.c.b16 %v1719, %v1717
        %v1804 = vpack.c.b16 %v1722, %v1720
        %v1805 = vpack.c.b16 %v1723, %v1721
        %v1806 = vpack.c.b16 %v1726, %v1724
        %v1807 = vpack.c.b16 %v1727, %v1725
        %v1808 = vpack.c.b16 %v1730, %v1728
        %v1809 = vpack.c.b16 %v1731, %v1729
        %v1810 = vpack.c.b16 %v1734, %v1732
        %v1811 = vpack.c.b16 %v1735, %v1733
        %v1812 = vpack.c.b16 %v1738, %v1736
        %v1813 = vpack.c.b16 %v1739, %v1737
        %v1814 = vpack.c.b16 %v1742, %v1740
        %v1815 = vpack.c.b16 %v1743, %v1741
        %v1816 = vpack.c.b16 %v1746, %v1744
        %v1817 = vpack.c.b16 %v1747, %v1745
        %v1818 = vpack.c.b16 %v1750, %v1748
        %v1819 = vpack.c.b16 %v1751, %v1749
        %v1820 = vpack.c.b16 %v1754, %v1752
        %v1821 = vpack.c.b16 %v1755, %v1753
        %v1822 = vpack.c.b16 %v1758, %v1756
        %v1823 = vpack.c.b16 %v1759, %v1757
        %1888 = vmatprep.subr.bf16.mxu0 %v1761
        %1889 = vmatpush1.bf16.msra.mxu0 %v1760
        %1890 = vmatprep.subr.bf16.mxu0 %v1763
        %1891 = vmatpush1.bf16.msra.mxu0 %v1762
        %1892 = vmatprep.subr.bf16.mxu0 %v1765
        %1893 = vmatpush1.bf16.msra.mxu0 %v1764
        %1894 = vmatprep.subr.bf16.mxu0 %v1767
        %1895 = vmatpush1.bf16.msra.mxu0 %v1766
        %1896 = vmatprep.subr.bf16.mxu0 %v1769
        %1897 = vmatpush1.bf16.msra.mxu0 %v1768
        %1898 = vmatprep.subr.bf16.mxu0 %v1771
        %1899 = vmatpush1.bf16.msra.mxu0 %v1770
        %1900 = vmatprep.subr.bf16.mxu0 %v1773
        %1901 = vmatpush1.bf16.msra.mxu0 %v1772
        %1902 = vmatprep.subr.bf16.mxu0 %v1775
        %1903 = vmatpush1.bf16.msra.mxu0 %v1774
        %1904 = vmatprep.subr.bf16.mxu0 %v1777
        %1905 = vmatpush1.bf16.msra.mxu0 %v1776
        %1906 = vmatprep.subr.bf16.mxu0 %v1779
        %1907 = vmatpush1.bf16.msra.mxu0 %v1778
        %1908 = vmatprep.subr.bf16.mxu0 %v1781
        %1909 = vmatpush1.bf16.msra.mxu0 %v1780
        %1910 = vmatprep.subr.bf16.mxu0 %v1783
        %1911 = vmatpush1.bf16.msra.mxu0 %v1782
        %1912 = vmatprep.subr.bf16.mxu0 %v1785
        %1913 = vmatpush1.bf16.msra.mxu0 %v1784
        %1914 = vmatprep.subr.bf16.mxu0 %v1787
        %1915 = vmatpush1.bf16.msra.mxu0 %v1786
        %1916 = vmatprep.subr.bf16.mxu0 %v1789
        %1917 = vmatpush1.bf16.msra.mxu0 %v1788
        %1918 = vmatprep.subr.bf16.mxu0 %v1791
        %1919 = vmatpush1.bf16.msra.mxu0 %v1790
        %1920 = vmatprep.mubr.bf16.mxu0 %v1561
        %1921 = vmatmul.mubr.bf16.gmra.mrb[0].mxu0 %v1560
        %v1922 = vpop.f32.mrb[0].mxu0
        %v1923 = vadd.f32 %v1541, %v1922
        %v1924 = vpop.f32.mrb[0].mxu0
        %v1925 = vadd.f32 %v1545, %v1924
        %v1926 = vpop.f32.mrb[0].mxu0
        %v1927 = vadd.f32 %v1541, %v1926
        %v1928 = vpop.f32.mrb[0].mxu0
        %v1929 = vadd.f32 %v1545, %v1928
        %1930 = vdwg.mxu0
        %1931 = vmatprep.subr.bf16.mxu0 %v1793
        %1932 = vmatpush1.bf16.msra.mxu0 %v1792
        %1933 = vmatprep.subr.bf16.mxu0 %v1795
        %1934 = vmatpush1.bf16.msra.mxu0 %v1794
        %1935 = vmatprep.subr.bf16.mxu0 %v1797
        %1936 = vmatpush1.bf16.msra.mxu0 %v1796
        %1937 = vmatprep.subr.bf16.mxu0 %v1799
        %1938 = vmatpush1.bf16.msra.mxu0 %v1798
        %1939 = vmatprep.subr.bf16.mxu0 %v1801
        %1940 = vmatpush1.bf16.msra.mxu0 %v1800
        %1941 = vmatprep.subr.bf16.mxu0 %v1803
        %1942 = vmatpush1.bf16.msra.mxu0 %v1802
        %1943 = vmatprep.subr.bf16.mxu0 %v1805
        %1944 = vmatpush1.bf16.msra.mxu0 %v1804
        %1945 = vmatprep.subr.bf16.mxu0 %v1807
        %1946 = vmatpush1.bf16.msra.mxu0 %v1806
        %1947 = vmatprep.subr.bf16.mxu0 %v1809
        %1948 = vmatpush1.bf16.msra.mxu0 %v1808
        %1949 = vmatprep.subr.bf16.mxu0 %v1811
        %1950 = vmatpush1.bf16.msra.mxu0 %v1810
        %1951 = vmatprep.subr.bf16.mxu0 %v1813
        %1952 = vmatpush1.bf16.msra.mxu0 %v1812
        %1953 = vmatprep.subr.bf16.mxu0 %v1815
        %1954 = vmatpush1.bf16.msra.mxu0 %v1814
        %1955 = vmatprep.subr.bf16.mxu0 %v1817
        %1956 = vmatpush1.bf16.msra.mxu0 %v1816
        %1957 = vmatprep.subr.bf16.mxu0 %v1819
        %1958 = vmatpush1.bf16.msra.mxu0 %v1818
        %1959 = vmatprep.subr.bf16.mxu0 %v1821
        %1960 = vmatpush1.bf16.msra.mxu0 %v1820
        %1961 = vmatprep.subr.bf16.mxu0 %v1823
        %1962 = vmatpush1.bf16.msra.mxu0 %v1822
        %1963 = vmatprep.mubr.bf16.mxu0 %v1563
        %1964 = vmatmul.mubr.bf16.gmra.mrb[0].mxu0 %v1562
        %v1965 = vpop.f32.mrb[0].mxu0
        %v1966 = vadd.f32 %v1923, %v1965
        %v1967 = vpop.f32.mrb[0].mxu0
        %v1968 = vadd.f32 %v1925, %v1967
        %v1969 = vpop.f32.mrb[0].mxu0
        %v1970 = vadd.f32 %v1927, %v1969
        %v1971 = vpop.f32.mrb[0].mxu0
        %v1972 = vadd.f32 %v1929, %v1971
        %1973 = vdwg.mxu0
        %v1974 = vadd.f32 %v1018, %v1966
        %v1975 = vadd.f32 %v1019, %v1968
        %v1976 = vadd.f32 %v1020, %v1970
        %v1977 = vadd.f32 %v1021, %v1972
        %v1978 = vpack.c.bf16 %v1976, %v1974
        %v1979 = vpack.c.bf16 %v1977, %v1975
        %v1980 = vld [vmem:[%s9] sm:$0xff]
        %v1981 = vld [vmem:[%s9 + $0x8] sm:$0xff]
        %v1982 = vld [vmem:[%s9 + $0x10] sm:$0xff]
        %v1983 = vld [vmem:[%s9 + $0x18] sm:$0xff]
        %v1984 = vld [vmem:[%s9 + $0x20] sm:$0xff]
        %v1985 = vld [vmem:[%s9 + $0x28] sm:$0xff]
        %v1986 = vld [vmem:[%s9 + $0x30] sm:$0xff]
        %v1987 = vld [vmem:[%s9 + $0x38] sm:$0xff]
        %v1988 = vld [vmem:[%s9 + $0x40] sm:$0xff]
        %v1989 = vld [vmem:[%s9 + $0x48] sm:$0xff]
        %v1990 = vld [vmem:[%s9 + $0x50] sm:$0xff]
        %v1991 = vld [vmem:[%s9 + $0x58] sm:$0xff]
        %v1992 = vld [vmem:[%s9 + $0x60] sm:$0xff]
        %v1993 = vld [vmem:[%s9 + $0x68] sm:$0xff]
        %v1994 = vld [vmem:[%s9 + $0x70] sm:$0xff]
        %v1995 = vld [vmem:[%s9 + $0x78] sm:$0xff]
        %v1996 = vld [vmem:[%s9 + $0x80] sm:$0xff]
        %v1997 = vld [vmem:[%s9 + $0x88] sm:$0xff]
        %v1998 = vld [vmem:[%s9 + $0x90] sm:$0xff]
        %v1999 = vld [vmem:[%s9 + $0x98] sm:$0xff]
        %v2000 = vld [vmem:[%s9 + $0xa0] sm:$0xff]
        %v2001 = vld [vmem:[%s9 + $0xa8] sm:$0xff]
        %v2002 = vld [vmem:[%s9 + $0xb0] sm:$0xff]
        %v2003 = vld [vmem:[%s9 + $0xb8] sm:$0xff]
        %v2004 = vld [vmem:[%s9 + $0xc0] sm:$0xff]
        %v2005 = vld [vmem:[%s9 + $0xc8] sm:$0xff]
        %v2006 = vld [vmem:[%s9 + $0xd0] sm:$0xff]
        %v2007 = vld [vmem:[%s9 + $0xd8] sm:$0xff]
        %v2008 = vld [vmem:[%s9 + $0xe0] sm:$0xff]
        %v2009 = vld [vmem:[%s9 + $0xe8] sm:$0xff]
        %v2010 = vld [vmem:[%s9 + $0xf0] sm:$0xff]
        %v2011 = vld [vmem:[%s9 + $0xf8] sm:$0xff]
        %v2012 = vld [vmem:[#allocation7] sm:$0x3]
        %v2014 = vlaneseq
        %v2015 = vshrl.u32 %v2014, 7
        %v2016 = vsub.s32 0, %v2015
        %v2017 = vrot.slane %v2012, %v2016
        %v2018 = vlaneseq
        %v2019 = vshrl.u32 %v2018, 7
        %v2020 = vsub.s32 1, %v2019
        %v2021 = vrot.slane %v2012, %v2020
        %v2056 = vunpack.c.l.b16 %v1980
        %v2057 = vunpack.c.h.b16 %v1980
        %v2058 = vunpack.c.l.b16 %v1981
        %v2059 = vunpack.c.h.b16 %v1981
        %v2060 = vunpack.c.l.b16 %v1982
        %v2061 = vunpack.c.h.b16 %v1982
        %v2062 = vunpack.c.l.b16 %v1983
        %v2063 = vunpack.c.h.b16 %v1983
        %v2064 = vunpack.c.l.b16 %v1984
        %v2065 = vunpack.c.h.b16 %v1984
        %v2066 = vunpack.c.l.b16 %v1985
        %v2067 = vunpack.c.h.b16 %v1985
        %v2068 = vunpack.c.l.b16 %v1986
        %v2069 = vunpack.c.h.b16 %v1986
        %v2070 = vunpack.c.l.b16 %v1987
        %v2071 = vunpack.c.h.b16 %v1987
        %v2072 = vunpack.c.l.b16 %v1988
        %v2073 = vunpack.c.h.b16 %v1988
        %v2074 = vunpack.c.l.b16 %v1989
        %v2075 = vunpack.c.h.b16 %v1989
        %v2076 = vunpack.c.l.b16 %v1990
        %v2077 = vunpack.c.h.b16 %v1990
        %v2078 = vunpack.c.l.b16 %v1991
        %v2079 = vunpack.c.h.b16 %v1991
        %v2080 = vunpack.c.l.b16 %v1992
        %v2081 = vunpack.c.h.b16 %v1992
        %v2082 = vunpack.c.l.b16 %v1993
        %v2083 = vunpack.c.h.b16 %v1993
        %v2084 = vunpack.c.l.b16 %v1994
        %v2085 = vunpack.c.h.b16 %v1994
        %v2086 = vunpack.c.l.b16 %v1995
        %v2087 = vunpack.c.h.b16 %v1995
        %v2088 = vunpack.c.l.b16 %v1996
        %v2089 = vunpack.c.h.b16 %v1996
        %v2090 = vunpack.c.l.b16 %v1997
        %v2091 = vunpack.c.h.b16 %v1997
        %v2092 = vunpack.c.l.b16 %v1998
        %v2093 = vunpack.c.h.b16 %v1998
        %v2094 = vunpack.c.l.b16 %v1999
        %v2095 = vunpack.c.h.b16 %v1999
        %v2096 = vunpack.c.l.b16 %v2000
        %v2097 = vunpack.c.h.b16 %v2000
        %v2098 = vunpack.c.l.b16 %v2001
        %v2099 = vunpack.c.h.b16 %v2001
        %v2100 = vunpack.c.l.b16 %v2002
        %v2101 = vunpack.c.h.b16 %v2002
        %v2102 = vunpack.c.l.b16 %v2003
        %v2103 = vunpack.c.h.b16 %v2003
        %v2104 = vunpack.c.l.b16 %v2004
        %v2105 = vunpack.c.h.b16 %v2004
        %v2106 = vunpack.c.l.b16 %v2005
        %v2107 = vunpack.c.h.b16 %v2005
        %v2108 = vunpack.c.l.b16 %v2006
        %v2109 = vunpack.c.h.b16 %v2006
        %v2110 = vunpack.c.l.b16 %v2007
        %v2111 = vunpack.c.h.b16 %v2007
        %v2112 = vunpack.c.l.b16 %v2008
        %v2113 = vunpack.c.h.b16 %v2008
        %v2114 = vunpack.c.l.b16 %v2009
        %v2115 = vunpack.c.h.b16 %v2009
        %v2116 = vunpack.c.l.b16 %v2010
        %v2117 = vunpack.c.h.b16 %v2010
        %v2118 = vunpack.c.l.b16 %v2011
        %v2119 = vunpack.c.h.b16 %v2011
        %v2120 = vpack.c.b16 %v2058, %v2056
        %v2121 = vpack.c.b16 %v2059, %v2057
        %v2122 = vpack.c.b16 %v2062, %v2060
        %v2123 = vpack.c.b16 %v2063, %v2061
        %v2124 = vpack.c.b16 %v2066, %v2064
        %v2125 = vpack.c.b16 %v2067, %v2065
        %v2126 = vpack.c.b16 %v2070, %v2068
        %v2127 = vpack.c.b16 %v2071, %v2069
        %v2128 = vpack.c.b16 %v2074, %v2072
        %v2129 = vpack.c.b16 %v2075, %v2073
        %v2130 = vpack.c.b16 %v2078, %v2076
        %v2131 = vpack.c.b16 %v2079, %v2077
        %v2132 = vpack.c.b16 %v2082, %v2080
        %v2133 = vpack.c.b16 %v2083, %v2081
        %v2134 = vpack.c.b16 %v2086, %v2084
        %v2135 = vpack.c.b16 %v2087, %v2085
        %v2136 = vpack.c.b16 %v2090, %v2088
        %v2137 = vpack.c.b16 %v2091, %v2089
        %v2138 = vpack.c.b16 %v2094, %v2092
        %v2139 = vpack.c.b16 %v2095, %v2093
        %v2140 = vpack.c.b16 %v2098, %v2096
        %v2141 = vpack.c.b16 %v2099, %v2097
        %v2142 = vpack.c.b16 %v2102, %v2100
        %v2143 = vpack.c.b16 %v2103, %v2101
        %v2144 = vpack.c.b16 %v2106, %v2104
        %v2145 = vpack.c.b16 %v2107, %v2105
        %v2146 = vpack.c.b16 %v2110, %v2108
        %v2147 = vpack.c.b16 %v2111, %v2109
        %v2148 = vpack.c.b16 %v2114, %v2112
        %v2149 = vpack.c.b16 %v2115, %v2113
        %v2150 = vpack.c.b16 %v2118, %v2116
        %v2151 = vpack.c.b16 %v2119, %v2117
        %2184 = vmatprep.subr.bf16.mxu0 %v2121
        %2185 = vmatpush1.bf16.msra.mxu0 %v2120
        %2186 = vmatprep.subr.bf16.mxu0 %v2123
        %2187 = vmatpush1.bf16.msra.mxu0 %v2122
        %2188 = vmatprep.subr.bf16.mxu0 %v2125
        %2189 = vmatpush1.bf16.msra.mxu0 %v2124
        %2190 = vmatprep.subr.bf16.mxu0 %v2127
        %2191 = vmatpush1.bf16.msra.mxu0 %v2126
        %2192 = vmatprep.subr.bf16.mxu0 %v2129
        %2193 = vmatpush1.bf16.msra.mxu0 %v2128
        %2194 = vmatprep.subr.bf16.mxu0 %v2131
        %2195 = vmatpush1.bf16.msra.mxu0 %v2130
        %2196 = vmatprep.subr.bf16.mxu0 %v2133
        %2197 = vmatpush1.bf16.msra.mxu0 %v2132
        %2198 = vmatprep.subr.bf16.mxu0 %v2135
        %2199 = vmatpush1.bf16.msra.mxu0 %v2134
        %2200 = vmatprep.subr.bf16.mxu0 %v2137
        %2201 = vmatpush1.bf16.msra.mxu0 %v2136
        %2202 = vmatprep.subr.bf16.mxu0 %v2139
        %2203 = vmatpush1.bf16.msra.mxu0 %v2138
        %2204 = vmatprep.subr.bf16.mxu0 %v2141
        %2205 = vmatpush1.bf16.msra.mxu0 %v2140
        %2206 = vmatprep.subr.bf16.mxu0 %v2143
        %2207 = vmatpush1.bf16.msra.mxu0 %v2142
        %2208 = vmatprep.subr.bf16.mxu0 %v2145
        %2209 = vmatpush1.bf16.msra.mxu0 %v2144
        %2210 = vmatprep.subr.bf16.mxu0 %v2147
        %2211 = vmatpush1.bf16.msra.mxu0 %v2146
        %2212 = vmatprep.subr.bf16.mxu0 %v2149
        %2213 = vmatpush1.bf16.msra.mxu0 %v2148
        %2214 = vmatprep.subr.bf16.mxu0 %v2151
        %2215 = vmatpush1.bf16.msra.mxu0 %v2150
        %2216 = vmatprep.mubr.bf16.mxu0 %v1979
        %2217 = vmatmul.mubr.bf16.gmra.mrb[0].mxu0 %v1978
        %v2218 = vpop.f32.mrb[0].mxu0
        %v2219 = vadd.f32 %v2017, %v2218
        %v2220 = vpop.f32.mrb[0].mxu0
        %v2221 = vadd.f32 %v2021, %v2220
        %v2222 = vpop.f32.mrb[0].mxu0
        %v2223 = vadd.f32 %v2017, %v2222
        %v2224 = vpop.f32.mrb[0].mxu0
        %v2225 = vadd.f32 %v2021, %v2224
        %2226 = vdwg.mxu0
        %v2227 = vld [vmem:[%s11] sm:$0xff]
        %v2228 = vld [vmem:[%s11 + $0x8] sm:$0xff]
        %v2229 = vld [vmem:[%s11 + $0x10] sm:$0xff]
        %v2230 = vld [vmem:[%s11 + $0x18] sm:$0xff]
        %v2231 = vld [vmem:[%s11 + $0x20] sm:$0xff]
        %v2232 = vld [vmem:[%s11 + $0x28] sm:$0xff]
        %v2233 = vld [vmem:[%s11 + $0x30] sm:$0xff]
        %v2234 = vld [vmem:[%s11 + $0x38] sm:$0xff]
        %v2235 = vld [vmem:[%s11 + $0x40] sm:$0xff]
        %v2236 = vld [vmem:[%s11 + $0x48] sm:$0xff]
        %v2237 = vld [vmem:[%s11 + $0x50] sm:$0xff]
        %v2238 = vld [vmem:[%s11 + $0x58] sm:$0xff]
        %v2239 = vld [vmem:[%s11 + $0x60] sm:$0xff]
        %v2240 = vld [vmem:[%s11 + $0x68] sm:$0xff]
        %v2241 = vld [vmem:[%s11 + $0x70] sm:$0xff]
        %v2242 = vld [vmem:[%s11 + $0x78] sm:$0xff]
        %v2243 = vld [vmem:[%s11 + $0x80] sm:$0xff]
        %v2244 = vld [vmem:[%s11 + $0x88] sm:$0xff]
        %v2245 = vld [vmem:[%s11 + $0x90] sm:$0xff]
        %v2246 = vld [vmem:[%s11 + $0x98] sm:$0xff]
        %v2247 = vld [vmem:[%s11 + $0xa0] sm:$0xff]
        %v2248 = vld [vmem:[%s11 + $0xa8] sm:$0xff]
        %v2249 = vld [vmem:[%s11 + $0xb0] sm:$0xff]
        %v2250 = vld [vmem:[%s11 + $0xb8] sm:$0xff]
        %v2251 = vld [vmem:[%s11 + $0xc0] sm:$0xff]
        %v2252 = vld [vmem:[%s11 + $0xc8] sm:$0xff]
        %v2253 = vld [vmem:[%s11 + $0xd0] sm:$0xff]
        %v2254 = vld [vmem:[%s11 + $0xd8] sm:$0xff]
        %v2255 = vld [vmem:[%s11 + $0xe0] sm:$0xff]
        %v2256 = vld [vmem:[%s11 + $0xe8] sm:$0xff]
        %v2257 = vld [vmem:[%s11 + $0xf0] sm:$0xff]
        %v2258 = vld [vmem:[%s11 + $0xf8] sm:$0xff]
        %v2259 = vld [vmem:[#allocation8] sm:$0x3]
        %v2261 = vlaneseq
        %v2262 = vshrl.u32 %v2261, 7
        %v2263 = vsub.s32 0, %v2262
        %v2264 = vrot.slane %v2259, %v2263
        %v2265 = vlaneseq
        %v2266 = vshrl.u32 %v2265, 7
        %v2267 = vsub.s32 1, %v2266
        %v2268 = vrot.slane %v2259, %v2267
        %v2303 = vunpack.c.l.b16 %v2227
        %v2304 = vunpack.c.h.b16 %v2227
        %v2305 = vunpack.c.l.b16 %v2228
        %v2306 = vunpack.c.h.b16 %v2228
        %v2307 = vunpack.c.l.b16 %v2229
        %v2308 = vunpack.c.h.b16 %v2229
        %v2309 = vunpack.c.l.b16 %v2230
        %v2310 = vunpack.c.h.b16 %v2230
        %v2311 = vunpack.c.l.b16 %v2231
        %v2312 = vunpack.c.h.b16 %v2231
        %v2313 = vunpack.c.l.b16 %v2232
        %v2314 = vunpack.c.h.b16 %v2232
        %v2315 = vunpack.c.l.b16 %v2233
        %v2316 = vunpack.c.h.b16 %v2233
        %v2317 = vunpack.c.l.b16 %v2234
        %v2318 = vunpack.c.h.b16 %v2234
        %v2319 = vunpack.c.l.b16 %v2235
        %v2320 = vunpack.c.h.b16 %v2235
        %v2321 = vunpack.c.l.b16 %v2236
        %v2322 = vunpack.c.h.b16 %v2236
        %v2323 = vunpack.c.l.b16 %v2237
        %v2324 = vunpack.c.h.b16 %v2237
        %v2325 = vunpack.c.l.b16 %v2238
        %v2326 = vunpack.c.h.b16 %v2238
        %v2327 = vunpack.c.l.b16 %v2239
        %v2328 = vunpack.c.h.b16 %v2239
        %v2329 = vunpack.c.l.b16 %v2240
        %v2330 = vunpack.c.h.b16 %v2240
        %v2331 = vunpack.c.l.b16 %v2241
        %v2332 = vunpack.c.h.b16 %v2241
        %v2333 = vunpack.c.l.b16 %v2242
        %v2334 = vunpack.c.h.b16 %v2242
        %v2335 = vunpack.c.l.b16 %v2243
        %v2336 = vunpack.c.h.b16 %v2243
        %v2337 = vunpack.c.l.b16 %v2244
        %v2338 = vunpack.c.h.b16 %v2244
        %v2339 = vunpack.c.l.b16 %v2245
        %v2340 = vunpack.c.h.b16 %v2245
        %v2341 = vunpack.c.l.b16 %v2246
        %v2342 = vunpack.c.h.b16 %v2246
        %v2343 = vunpack.c.l.b16 %v2247
        %v2344 = vunpack.c.h.b16 %v2247
        %v2345 = vunpack.c.l.b16 %v2248
        %v2346 = vunpack.c.h.b16 %v2248
        %v2347 = vunpack.c.l.b16 %v2249
        %v2348 = vunpack.c.h.b16 %v2249
        %v2349 = vunpack.c.l.b16 %v2250
        %v2350 = vunpack.c.h.b16 %v2250
        %v2351 = vunpack.c.l.b16 %v2251
        %v2352 = vunpack.c.h.b16 %v2251
        %v2353 = vunpack.c.l.b16 %v2252
        %v2354 = vunpack.c.h.b16 %v2252
        %v2355 = vunpack.c.l.b16 %v2253
        %v2356 = vunpack.c.h.b16 %v2253
        %v2357 = vunpack.c.l.b16 %v2254
        %v2358 = vunpack.c.h.b16 %v2254
        %v2359 = vunpack.c.l.b16 %v2255
        %v2360 = vunpack.c.h.b16 %v2255
        %v2361 = vunpack.c.l.b16 %v2256
        %v2362 = vunpack.c.h.b16 %v2256
        %v2363 = vunpack.c.l.b16 %v2257
        %v2364 = vunpack.c.h.b16 %v2257
        %v2365 = vunpack.c.l.b16 %v2258
        %v2366 = vunpack.c.h.b16 %v2258
        %v2367 = vpack.c.b16 %v2305, %v2303
        %v2368 = vpack.c.b16 %v2306, %v2304
        %v2369 = vpack.c.b16 %v2309, %v2307
        %v2370 = vpack.c.b16 %v2310, %v2308
        %v2371 = vpack.c.b16 %v2313, %v2311
        %v2372 = vpack.c.b16 %v2314, %v2312
        %v2373 = vpack.c.b16 %v2317, %v2315
        %v2374 = vpack.c.b16 %v2318, %v2316
        %v2375 = vpack.c.b16 %v2321, %v2319
        %v2376 = vpack.c.b16 %v2322, %v2320
        %v2377 = vpack.c.b16 %v2325, %v2323
        %v2378 = vpack.c.b16 %v2326, %v2324
        %v2379 = vpack.c.b16 %v2329, %v2327
        %v2380 = vpack.c.b16 %v2330, %v2328
        %v2381 = vpack.c.b16 %v2333, %v2331
        %v2382 = vpack.c.b16 %v2334, %v2332
        %v2383 = vpack.c.b16 %v2337, %v2335
        %v2384 = vpack.c.b16 %v2338, %v2336
        %v2385 = vpack.c.b16 %v2341, %v2339
        %v2386 = vpack.c.b16 %v2342, %v2340
        %v2387 = vpack.c.b16 %v2345, %v2343
        %v2388 = vpack.c.b16 %v2346, %v2344
        %v2389 = vpack.c.b16 %v2349, %v2347
        %v2390 = vpack.c.b16 %v2350, %v2348
        %v2391 = vpack.c.b16 %v2353, %v2351
        %v2392 = vpack.c.b16 %v2354, %v2352
        %v2393 = vpack.c.b16 %v2357, %v2355
        %v2394 = vpack.c.b16 %v2358, %v2356
        %v2395 = vpack.c.b16 %v2361, %v2359
        %v2396 = vpack.c.b16 %v2362, %v2360
        %v2397 = vpack.c.b16 %v2365, %v2363
        %v2398 = vpack.c.b16 %v2366, %v2364
        %2431 = vmatprep.subr.bf16.mxu0 %v2368
        %2432 = vmatpush1.bf16.msra.mxu0 %v2367
        %2433 = vmatprep.subr.bf16.mxu0 %v2370
        %2434 = vmatpush1.bf16.msra.mxu0 %v2369
        %2435 = vmatprep.subr.bf16.mxu0 %v2372
        %2436 = vmatpush1.bf16.msra.mxu0 %v2371
        %2437 = vmatprep.subr.bf16.mxu0 %v2374
        %2438 = vmatpush1.bf16.msra.mxu0 %v2373
        %2439 = vmatprep.subr.bf16.mxu0 %v2376
        %2440 = vmatpush1.bf16.msra.mxu0 %v2375
        %2441 = vmatprep.subr.bf16.mxu0 %v2378
        %2442 = vmatpush1.bf16.msra.mxu0 %v2377
        %2443 = vmatprep.subr.bf16.mxu0 %v2380
        %2444 = vmatpush1.bf16.msra.mxu0 %v2379
        %2445 = vmatprep.subr.bf16.mxu0 %v2382
        %2446 = vmatpush1.bf16.msra.mxu0 %v2381
        %2447 = vmatprep.subr.bf16.mxu0 %v2384
        %2448 = vmatpush1.bf16.msra.mxu0 %v2383
        %2449 = vmatprep.subr.bf16.mxu0 %v2386
        %2450 = vmatpush1.bf16.msra.mxu0 %v2385
        %2451 = vmatprep.subr.bf16.mxu0 %v2388
        %2452 = vmatpush1.bf16.msra.mxu0 %v2387
        %2453 = vmatprep.subr.bf16.mxu0 %v2390
        %2454 = vmatpush1.bf16.msra.mxu0 %v2389
        %2455 = vmatprep.subr.bf16.mxu0 %v2392
        %2456 = vmatpush1.bf16.msra.mxu0 %v2391
        %2457 = vmatprep.subr.bf16.mxu0 %v2394
        %2458 = vmatpush1.bf16.msra.mxu0 %v2393
        %2459 = vmatprep.subr.bf16.mxu0 %v2396
        %2460 = vmatpush1.bf16.msra.mxu0 %v2395
        %2461 = vmatprep.subr.bf16.mxu0 %v2398
        %2462 = vmatpush1.bf16.msra.mxu0 %v2397
        %2463 = vmatprep.mubr.bf16.mxu0 %v1979
        %2464 = vmatmul.mubr.bf16.gmra.mrb[0].mxu0 %v1978
        %v2465 = vpop.f32.mrb[0].mxu0
        %v2466 = vadd.f32 %v2264, %v2465
        %v2467 = vpop.f32.mrb[0].mxu0
        %v2468 = vadd.f32 %v2268, %v2467
        %v2469 = vpop.f32.mrb[0].mxu0
        %v2470 = vadd.f32 %v2264, %v2469
        %v2471 = vpop.f32.mrb[0].mxu0
        %v2472 = vadd.f32 %v2268, %v2471
        %2473 = vdwg.mxu0
        %v2474 = vld [vmem:[%s13] sm:$0xff]
        %v2475 = vld [vmem:[%s13 + $0x8] sm:$0xff]
        %v2476 = vld [vmem:[%s13 + $0x10] sm:$0xff]
        %v2477 = vld [vmem:[%s13 + $0x18] sm:$0xff]
        %v2478 = vld [vmem:[%s13 + $0x20] sm:$0xff]
        %v2479 = vld [vmem:[%s13 + $0x28] sm:$0xff]
        %v2480 = vld [vmem:[%s13 + $0x30] sm:$0xff]
        %v2481 = vld [vmem:[%s13 + $0x38] sm:$0xff]
        %v2482 = vld [vmem:[%s13 + $0x40] sm:$0xff]
        %v2483 = vld [vmem:[%s13 + $0x48] sm:$0xff]
        %v2484 = vld [vmem:[%s13 + $0x50] sm:$0xff]
        %v2485 = vld [vmem:[%s13 + $0x58] sm:$0xff]
        %v2486 = vld [vmem:[%s13 + $0x60] sm:$0xff]
        %v2487 = vld [vmem:[%s13 + $0x68] sm:$0xff]
        %v2488 = vld [vmem:[%s13 + $0x70] sm:$0xff]
        %v2489 = vld [vmem:[%s13 + $0x78] sm:$0xff]
        %v2490 = vld [vmem:[%s13 + $0x80] sm:$0xff]
        %v2491 = vld [vmem:[%s13 + $0x88] sm:$0xff]
        %v2492 = vld [vmem:[%s13 + $0x90] sm:$0xff]
        %v2493 = vld [vmem:[%s13 + $0x98] sm:$0xff]
        %v2494 = vld [vmem:[%s13 + $0xa0] sm:$0xff]
        %v2495 = vld [vmem:[%s13 + $0xa8] sm:$0xff]
        %v2496 = vld [vmem:[%s13 + $0xb0] sm:$0xff]
        %v2497 = vld [vmem:[%s13 + $0xb8] sm:$0xff]
        %v2498 = vld [vmem:[%s13 + $0xc0] sm:$0xff]
        %v2499 = vld [vmem:[%s13 + $0xc8] sm:$0xff]
        %v2500 = vld [vmem:[%s13 + $0xd0] sm:$0xff]
        %v2501 = vld [vmem:[%s13 + $0xd8] sm:$0xff]
        %v2502 = vld [vmem:[%s13 + $0xe0] sm:$0xff]
        %v2503 = vld [vmem:[%s13 + $0xe8] sm:$0xff]
        %v2504 = vld [vmem:[%s13 + $0xf0] sm:$0xff]
        %v2505 = vld [vmem:[%s13 + $0xf8] sm:$0xff]
        %v2506 = vld [vmem:[#allocation10] sm:$0x3]
        %v2508 = vlaneseq
        %v2509 = vshrl.u32 %v2508, 7
        %v2510 = vsub.s32 0, %v2509
        %v2511 = vrot.slane %v2506, %v2510
        %v2512 = vlaneseq
        %v2513 = vshrl.u32 %v2512, 7
        %v2514 = vsub.s32 1, %v2513
        %v2515 = vrot.slane %v2506, %v2514
        %v2550 = vunpack.c.l.b16 %v2474
        %v2551 = vunpack.c.h.b16 %v2474
        %v2552 = vunpack.c.l.b16 %v2475
        %v2553 = vunpack.c.h.b16 %v2475
        %v2554 = vunpack.c.l.b16 %v2476
        %v2555 = vunpack.c.h.b16 %v2476
        %v2556 = vunpack.c.l.b16 %v2477
        %v2557 = vunpack.c.h.b16 %v2477
        %v2558 = vunpack.c.l.b16 %v2478
        %v2559 = vunpack.c.h.b16 %v2478
        %v2560 = vunpack.c.l.b16 %v2479
        %v2561 = vunpack.c.h.b16 %v2479
        %v2562 = vunpack.c.l.b16 %v2480
        %v2563 = vunpack.c.h.b16 %v2480
        %v2564 = vunpack.c.l.b16 %v2481
        %v2565 = vunpack.c.h.b16 %v2481
        %v2566 = vunpack.c.l.b16 %v2482
        %v2567 = vunpack.c.h.b16 %v2482
        %v2568 = vunpack.c.l.b16 %v2483
        %v2569 = vunpack.c.h.b16 %v2483
        %v2570 = vunpack.c.l.b16 %v2484
        %v2571 = vunpack.c.h.b16 %v2484
        %v2572 = vunpack.c.l.b16 %v2485
        %v2573 = vunpack.c.h.b16 %v2485
        %v2574 = vunpack.c.l.b16 %v2486
        %v2575 = vunpack.c.h.b16 %v2486
        %v2576 = vunpack.c.l.b16 %v2487
        %v2577 = vunpack.c.h.b16 %v2487
        %v2578 = vunpack.c.l.b16 %v2488
        %v2579 = vunpack.c.h.b16 %v2488
        %v2580 = vunpack.c.l.b16 %v2489
        %v2581 = vunpack.c.h.b16 %v2489
        %v2582 = vunpack.c.l.b16 %v2490
        %v2583 = vunpack.c.h.b16 %v2490
        %v2584 = vunpack.c.l.b16 %v2491
        %v2585 = vunpack.c.h.b16 %v2491
        %v2586 = vunpack.c.l.b16 %v2492
        %v2587 = vunpack.c.h.b16 %v2492
        %v2588 = vunpack.c.l.b16 %v2493
        %v2589 = vunpack.c.h.b16 %v2493
        %v2590 = vunpack.c.l.b16 %v2494
        %v2591 = vunpack.c.h.b16 %v2494
        %v2592 = vunpack.c.l.b16 %v2495
        %v2593 = vunpack.c.h.b16 %v2495
        %v2594 = vunpack.c.l.b16 %v2496
        %v2595 = vunpack.c.h.b16 %v2496
        %v2596 = vunpack.c.l.b16 %v2497
        %v2597 = vunpack.c.h.b16 %v2497
        %v2598 = vunpack.c.l.b16 %v2498
        %v2599 = vunpack.c.h.b16 %v2498
        %v2600 = vunpack.c.l.b16 %v2499
        %v2601 = vunpack.c.h.b16 %v2499
        %v2602 = vunpack.c.l.b16 %v2500
        %v2603 = vunpack.c.h.b16 %v2500
        %v2604 = vunpack.c.l.b16 %v2501
        %v2605 = vunpack.c.h.b16 %v2501
        %v2606 = vunpack.c.l.b16 %v2502
        %v2607 = vunpack.c.h.b16 %v2502
        %v2608 = vunpack.c.l.b16 %v2503
        %v2609 = vunpack.c.h.b16 %v2503
        %v2610 = vunpack.c.l.b16 %v2504
        %v2611 = vunpack.c.h.b16 %v2504
        %v2612 = vunpack.c.l.b16 %v2505
        %v2613 = vunpack.c.h.b16 %v2505
        %v2614 = vpack.c.b16 %v2552, %v2550
        %v2615 = vpack.c.b16 %v2553, %v2551
        %v2616 = vpack.c.b16 %v2556, %v2554
        %v2617 = vpack.c.b16 %v2557, %v2555
        %v2618 = vpack.c.b16 %v2560, %v2558
        %v2619 = vpack.c.b16 %v2561, %v2559
        %v2620 = vpack.c.b16 %v2564, %v2562
        %v2621 = vpack.c.b16 %v2565, %v2563
        %v2622 = vpack.c.b16 %v2568, %v2566
        %v2623 = vpack.c.b16 %v2569, %v2567
        %v2624 = vpack.c.b16 %v2572, %v2570
        %v2625 = vpack.c.b16 %v2573, %v2571
        %v2626 = vpack.c.b16 %v2576, %v2574
        %v2627 = vpack.c.b16 %v2577, %v2575
        %v2628 = vpack.c.b16 %v2580, %v2578
        %v2629 = vpack.c.b16 %v2581, %v2579
        %v2630 = vpack.c.b16 %v2584, %v2582
        %v2631 = vpack.c.b16 %v2585, %v2583
        %v2632 = vpack.c.b16 %v2588, %v2586
        %v2633 = vpack.c.b16 %v2589, %v2587
        %v2634 = vpack.c.b16 %v2592, %v2590
        %v2635 = vpack.c.b16 %v2593, %v2591
        %v2636 = vpack.c.b16 %v2596, %v2594
        %v2637 = vpack.c.b16 %v2597, %v2595
        %v2638 = vpack.c.b16 %v2600, %v2598
        %v2639 = vpack.c.b16 %v2601, %v2599
        %v2640 = vpack.c.b16 %v2604, %v2602
        %v2641 = vpack.c.b16 %v2605, %v2603
        %v2642 = vpack.c.b16 %v2608, %v2606
        %v2643 = vpack.c.b16 %v2609, %v2607
        %v2644 = vpack.c.b16 %v2612, %v2610
        %v2645 = vpack.c.b16 %v2613, %v2611
        %2678 = vmatprep.subr.bf16.mxu0 %v2615
        %2679 = vmatpush1.bf16.msra.mxu0 %v2614
        %2680 = vmatprep.subr.bf16.mxu0 %v2617
        %2681 = vmatpush1.bf16.msra.mxu0 %v2616
        %2682 = vmatprep.subr.bf16.mxu0 %v2619
        %2683 = vmatpush1.bf16.msra.mxu0 %v2618
        %2684 = vmatprep.subr.bf16.mxu0 %v2621
        %2685 = vmatpush1.bf16.msra.mxu0 %v2620
        %2686 = vmatprep.subr.bf16.mxu0 %v2623
        %2687 = vmatpush1.bf16.msra.mxu0 %v2622
        %2688 = vmatprep.subr.bf16.mxu0 %v2625
        %2689 = vmatpush1.bf16.msra.mxu0 %v2624
        %2690 = vmatprep.subr.bf16.mxu0 %v2627
        %2691 = vmatpush1.bf16.msra.mxu0 %v2626
        %2692 = vmatprep.subr.bf16.mxu0 %v2629
        %2693 = vmatpush1.bf16.msra.mxu0 %v2628
        %2694 = vmatprep.subr.bf16.mxu0 %v2631
        %2695 = vmatpush1.bf16.msra.mxu0 %v2630
        %2696 = vmatprep.subr.bf16.mxu0 %v2633
        %2697 = vmatpush1.bf16.msra.mxu0 %v2632
        %2698 = vmatprep.subr.bf16.mxu0 %v2635
        %2699 = vmatpush1.bf16.msra.mxu0 %v2634
        %2700 = vmatprep.subr.bf16.mxu0 %v2637
        %2701 = vmatpush1.bf16.msra.mxu0 %v2636
        %2702 = vmatprep.subr.bf16.mxu0 %v2639
        %2703 = vmatpush1.bf16.msra.mxu0 %v2638
        %2704 = vmatprep.subr.bf16.mxu0 %v2641
        %2705 = vmatpush1.bf16.msra.mxu0 %v2640
        %2706 = vmatprep.subr.bf16.mxu0 %v2643
        %2707 = vmatpush1.bf16.msra.mxu0 %v2642
        %2708 = vmatprep.subr.bf16.mxu0 %v2645
        %2709 = vmatpush1.bf16.msra.mxu0 %v2644
        %2710 = vmatprep.mubr.bf16.mxu0 %v1028
        %2711 = vmatmul.mubr.bf16.gmra.mrb[0].mxu0 %v1027
        %v2712 = vpop.f32.mrb[0].mxu0
        %v2713 = vadd.f32 %v2511, %v2712
        %v2714 = vpop.f32.mrb[0].mxu0
        %v2715 = vadd.f32 %v2515, %v2714
        %v2716 = vpop.f32.mrb[0].mxu0
        %v2717 = vadd.f32 %v2511, %v2716
        %v2718 = vpop.f32.mrb[0].mxu0
        %v2719 = vadd.f32 %v2515, %v2718
        %2720 = vdwg.mxu0
        %v2721 = vld [vmem:[#allocation11] sm:$0xff]
        %v2722 = vld [vmem:[#allocation11 + $0x8] sm:$0xff]
        %v2723 = vld [vmem:[#allocation11 + $0x10] sm:$0xff]
        %v2724 = vld [vmem:[#allocation11 + $0x18] sm:$0xff]
        %v2725 = vld [vmem:[#allocation11 + $0x20] sm:$0xff]
        %v2726 = vld [vmem:[#allocation11 + $0x28] sm:$0xff]
        %v2727 = vld [vmem:[#allocation11 + $0x30] sm:$0xff]
        %v2728 = vld [vmem:[#allocation11 + $0x38] sm:$0xff]
        %v2729 = vld [vmem:[#allocation11 + $0x40] sm:$0xff]
        %v2730 = vld [vmem:[#allocation11 + $0x48] sm:$0xff]
        %v2731 = vld [vmem:[#allocation11 + $0x50] sm:$0xff]
        %v2732 = vld [vmem:[#allocation11 + $0x58] sm:$0xff]
        %v2733 = vld [vmem:[#allocation11 + $0x60] sm:$0xff]
        %v2734 = vld [vmem:[#allocation11 + $0x68] sm:$0xff]
        %v2735 = vld [vmem:[#allocation11 + $0x70] sm:$0xff]
        %v2736 = vld [vmem:[#allocation11 + $0x78] sm:$0xff]
        %v2737 = vld [vmem:[#allocation11 + $0x80] sm:$0xff]
        %v2738 = vld [vmem:[#allocation11 + $0x88] sm:$0xff]
        %v2739 = vld [vmem:[#allocation11 + $0x90] sm:$0xff]
        %v2740 = vld [vmem:[#allocation11 + $0x98] sm:$0xff]
        %v2741 = vld [vmem:[#allocation11 + $0xa0] sm:$0xff]
        %v2742 = vld [vmem:[#allocation11 + $0xa8] sm:$0xff]
        %v2743 = vld [vmem:[#allocation11 + $0xb0] sm:$0xff]
        %v2744 = vld [vmem:[#allocation11 + $0xb8] sm:$0xff]
        %v2745 = vld [vmem:[#allocation11 + $0xc0] sm:$0xff]
        %v2746 = vld [vmem:[#allocation11 + $0xc8] sm:$0xff]
        %v2747 = vld [vmem:[#allocation11 + $0xd0] sm:$0xff]
        %v2748 = vld [vmem:[#allocation11 + $0xd8] sm:$0xff]
        %v2749 = vld [vmem:[#allocation11 + $0xe0] sm:$0xff]
        %v2750 = vld [vmem:[#allocation11 + $0xe8] sm:$0xff]
        %v2751 = vld [vmem:[#allocation11 + $0xf0] sm:$0xff]
        %v2752 = vld [vmem:[#allocation11 + $0xf8] sm:$0xff]
        %v2753 = vpack.c.bf16 %v2223, %v2219
        %v2754 = vpack.c.bf16 %v2470, %v2466
        %v2755 = vpack.c.bf16 %v2717, %v2713
        %vm2756 = vcmask 261120
        %v2758 = vsel %vm2756, %v2753, 0
        %v2761 = vsel %vm2756, %v2754, 0
        %2763 = vmatprep.subr.bf16.mxu0 0
        %2764 = vmatpush1.bf16.xpose.msra.mxu0 %v2761
        %2765 = vmatprep.subr.bf16.mxu0 0
        %2766 = vmatpush1.bf16.xpose.msra.mxu0 0
        %2767 = vmatprep.subr.bf16.mxu0 0
        %2768 = vmatpush1.bf16.xpose.msra.mxu0 0
        %2769 = vmatprep.subr.bf16.mxu0 0
        %2770 = vmatpush1.bf16.xpose.msra.mxu0 0
        %2771 = vmatprep.subr.bf16.mxu0 0
        %2772 = vmatpush1.bf16.xpose.msra.mxu0 0
        %2773 = vmatprep.subr.bf16.mxu0 0
        %2774 = vmatpush1.bf16.xpose.msra.mxu0 0
        %2775 = vmatprep.subr.bf16.mxu0 0
        %2776 = vmatpush1.bf16.xpose.msra.mxu0 0
        %2777 = vmatprep.subr.bf16.mxu0 0
        %2778 = vmatpush1.bf16.xpose.msra.mxu0 0
        %2779 = vmatprep.subr.bf16.mxu0 0
        %2780 = vmatpush1.bf16.xpose.msra.mxu0 0
        %2781 = vmatprep.subr.bf16.mxu0 0
        %2782 = vmatpush1.bf16.xpose.msra.mxu0 0
        %2783 = vmatprep.subr.bf16.mxu0 0
        %2784 = vmatpush1.bf16.xpose.msra.mxu0 0
        %2785 = vmatprep.subr.bf16.mxu0 0
        %2786 = vmatpush1.bf16.xpose.msra.mxu0 0
        %2787 = vmatprep.subr.bf16.mxu0 0
        %2788 = vmatpush1.bf16.xpose.msra.mxu0 0
        %2789 = vmatprep.subr.bf16.mxu0 0
        %2790 = vmatpush1.bf16.xpose.msra.mxu0 0
        %2791 = vmatprep.subr.bf16.mxu0 0
        %2792 = vmatpush1.bf16.xpose.msra.mxu0 0
        %2793 = vmatprep.subr.bf16.mxu0 0
        %2794 = vmatpush1.bf16.xpose.msra.mxu0 0
        %2795 = vmatprep.mubr.bf16.mxu0 0
        %2796 = vmatmul.mubr.bf16.gmra.mrb[0].mxu0 %v2758
        %v2797 = vpop.f32.mrb[0].mxu0
        %v2798 = vadd.f32 0.0, %v2797
        %v2799 = vpop.f32.mrb[0].mxu0
        %v2800 = vpop.f32.mrb[0].mxu0
        %v2801 = vadd.f32 0.0, %v2800
        %v2802 = vpop.f32.mrb[0].mxu0
        %2803 = vdwg.mxu0
        %v2804 = vmul.f32 %v2798, 0.17677669
        %v2805 = vmul.f32 %v2801, 0.17677669
        %v2807 = vlaneseq
        %v2808 = vshrl.u32 %v2807, 7
        %v2809 = vsub.s32 0, %v2808
        %v2810 = vrot.slane %v1026, %v2809
        %v2812 = vadd.f32 %v2804, %v2810
        %v2813 = vadd.f32 %v2805, %v2810
        %vm2814 = vcmask 130048
        %v2815 = vsel %vm2814, %v2812, -inf
        %2816 = vmax.xlane.f32.xlu0 %v2815
        %v2817 = vpop.xlane.xlu0 %2816
        %v2818 = vsel %vm2814, %v2813, -inf
        %2819 = vmax.xlane.f32.xlu0 %v2818
        %v2820 = vpop.xlane.xlu0 %2819
        %v2821 = vsub.f32 %v2812, %v2817
        %v2822 = vsub.f32 %v2813, %v2820
        %v2823 = vmul.f32 %v2821, 1.442695
        %v2824 = vpow.pop %v2823
        %v2825 = vmul.f32 %v2822, 1.442695
        %v2826 = vpow.pop %v2825
        %v2827 = vsel %vm2814, %v2824, 0.0
        %2828 = vadd.xlane.f32.xlu0 %v2827
        %v2829 = vpop.xlane.xlu0 %2828
        %v2830 = vsel %vm2814, %v2826, 0.0
        %2831 = vadd.xlane.f32.xlu0 %v2830
        %v2832 = vpop.xlane.xlu0 %2831
        %v2833 = vrcp.pop %v2829
        %v2834 = vmul.f32 %v2824, %v2833
        %v2835 = vrcp.pop %v2832
        %v2836 = vmul.f32 %v2826, %v2835
        %v2837 = vpack.c.bf16 %v2836, %v2834
        %v2839 = vsel %vm2814, %v2837, 0
        %2841 = vmatprep.subr.bf16.mxu0 0
        %2842 = vmatpush1.bf16.msra.mxu0 %v2755
        %2843 = vmatprep.subr.bf16.mxu0 0
        %2844 = vmatpush1.bf16.msra.mxu0 0
        %2845 = vmatprep.subr.bf16.mxu0 0
        %2846 = vmatpush1.bf16.msra.mxu0 0
        %2847 = vmatprep.subr.bf16.mxu0 0
        %2848 = vmatpush1.bf16.msra.mxu0 0
        %2849 = vmatprep.subr.bf16.mxu0 0
        %2850 = vmatpush1.bf16.msra.mxu0 0
        %2851 = vmatprep.subr.bf16.mxu0 0
        %2852 = vmatpush1.bf16.msra.mxu0 0
        %2853 = vmatprep.subr.bf16.mxu0 0
        %2854 = vmatpush1.bf16.msra.mxu0 0
        %2855 = vmatprep.subr.bf16.mxu0 0
        %2856 = vmatpush1.bf16.msra.mxu0 0
        %2857 = vmatprep.subr.bf16.mxu0 0
        %2858 = vmatpush1.bf16.msra.mxu0 0
        %2859 = vmatprep.subr.bf16.mxu0 0
        %2860 = vmatpush1.bf16.msra.mxu0 0
        %2861 = vmatprep.subr.bf16.mxu0 0
        %2862 = vmatpush1.bf16.msra.mxu0 0
        %2863 = vmatprep.subr.bf16.mxu0 0
        %2864 = vmatpush1.bf16.msra.mxu0 0
        %2865 = vmatprep.subr.bf16.mxu0 0
        %2866 = vmatpush1.bf16.msra.mxu0 0
        %2867 = vmatprep.subr.bf16.mxu0 0
        %2868 = vmatpush1.bf16.msra.mxu0 0
        %2869 = vmatprep.subr.bf16.mxu0 0
        %2870 = vmatpush1.bf16.msra.mxu0 0
        %2871 = vmatprep.subr.bf16.mxu0 0
        %2872 = vmatpush1.bf16.msra.mxu0 0
        %2873 = vmatprep.mubr.bf16.mxu0 0
        %2874 = vmatmul.mubr.bf16.gmra.mrb[0].mxu0 %v2839
        %v2875 = vpop.f32.mrb[0].mxu0
        %v2876 = vadd.f32 0.0, %v2875
        %v2877 = vpop.f32.mrb[0].mxu0
        %v2878 = vpop.f32.mrb[0].mxu0
        %v2879 = vadd.f32 0.0, %v2878
        %v2880 = vpop.f32.mrb[0].mxu0
        %2881 = vdwg.mxu0
        %v2882 = vpack.c.bf16 %v2879, %v2876
        %2884 = vrot.lane.b32.xlu0 %v2753, 96
        %v2885 = vpop.permute.xlu0 %2884
        %2887 = vrot.lane.b32.xlu0 %v2754, 96
        %v2888 = vpop.permute.xlu0 %2887
        %v2890 = vsel %vm2756, %v2885, 0
        %v2893 = vsel %vm2756, %v2888, 0
        %2895 = vmatprep.subr.bf16.mxu0 0
        %2896 = vmatpush1.bf16.xpose.msra.mxu0 %v2893
        %2897 = vmatprep.subr.bf16.mxu0 0
        %2898 = vmatpush1.bf16.xpose.msra.mxu0 0
        %2899 = vmatprep.subr.bf16.mxu0 0
        %2900 = vmatpush1.bf16.xpose.msra.mxu0 0
        %2901 = vmatprep.subr.bf16.mxu0 0
        %2902 = vmatpush1.bf16.xpose.msra.mxu0 0
        %2903 = vmatprep.subr.bf16.mxu0 0
        %2904 = vmatpush1.bf16.xpose.msra.mxu0 0
        %2905 = vmatprep.subr.bf16.mxu0 0
        %2906 = vmatpush1.bf16.xpose.msra.mxu0 0
        %2907 = vmatprep.subr.bf16.mxu0 0
        %2908 = vmatpush1.bf16.xpose.msra.mxu0 0
        %2909 = vmatprep.subr.bf16.mxu0 0
        %2910 = vmatpush1.bf16.xpose.msra.mxu0 0
        %2911 = vmatprep.subr.bf16.mxu0 0
        %2912 = vmatpush1.bf16.xpose.msra.mxu0 0
        %2913 = vmatprep.subr.bf16.mxu0 0
        %2914 = vmatpush1.bf16.xpose.msra.mxu0 0
        %2915 = vmatprep.subr.bf16.mxu0 0
        %2916 = vmatpush1.bf16.xpose.msra.mxu0 0
        %2917 = vmatprep.subr.bf16.mxu0 0
        %2918 = vmatpush1.bf16.xpose.msra.mxu0 0
        %2919 = vmatprep.subr.bf16.mxu0 0
        %2920 = vmatpush1.bf16.xpose.msra.mxu0 0
        %2921 = vmatprep.subr.bf16.mxu0 0
        %2922 = vmatpush1.bf16.xpose.msra.mxu0 0
        %2923 = vmatprep.subr.bf16.mxu0 0
        %2924 = vmatpush1.bf16.xpose.msra.mxu0 0
        %2925 = vmatprep.subr.bf16.mxu0 0
        %2926 = vmatpush1.bf16.xpose.msra.mxu0 0
        %2927 = vmatprep.mubr.bf16.mxu0 0
        %2928 = vmatmul.mubr.bf16.gmra.mrb[0].mxu0 %v2890
        %v2929 = vpop.f32.mrb[0].mxu0
        %v2930 = vadd.f32 0.0, %v2929
        %v2931 = vpop.f32.mrb[0].mxu0
        %v2932 = vpop.f32.mrb[0].mxu0
        %v2933 = vadd.f32 0.0, %v2932
        %v2934 = vpop.f32.mrb[0].mxu0
        %2935 = vdwg.mxu0
        %v2936 = vmul.f32 %v2930, 0.17677669
        %v2937 = vmul.f32 %v2933, 0.17677669
        %v2938 = vadd.f32 %v2936, %v2810
        %v2939 = vadd.f32 %v2937, %v2810
        %v2940 = vsel %vm2814, %v2938, -inf
        %2941 = vmax.xlane.f32.xlu0 %v2940
        %v2942 = vpop.xlane.xlu0 %2941
        %v2943 = vsel %vm2814, %v2939, -inf
        %2944 = vmax.xlane.f32.xlu0 %v2943
        %v2945 = vpop.xlane.xlu0 %2944
        %v2946 = vsub.f32 %v2938, %v2942
        %v2947 = vsub.f32 %v2939, %v2945
        %v2948 = vmul.f32 %v2946, 1.442695
        %v2949 = vpow.pop %v2948
        %v2950 = vmul.f32 %v2947, 1.442695
        %v2951 = vpow.pop %v2950
        %v2952 = vsel %vm2814, %v2949, 0.0
        %2953 = vadd.xlane.f32.xlu0 %v2952
        %v2954 = vpop.xlane.xlu0 %2953
        %v2955 = vsel %vm2814, %v2951, 0.0
        %2956 = vadd.xlane.f32.xlu0 %v2955
        %v2957 = vpop.xlane.xlu0 %2956
        %v2958 = vrcp.pop %v2954
        %v2959 = vmul.f32 %v2949, %v2958
        %v2960 = vrcp.pop %v2957
        %v2961 = vmul.f32 %v2951, %v2960
        %v2962 = vpack.c.bf16 %v2961, %v2959
        %2964 = vrot.lane.b32.xlu0 %v2755, 96
        %v2965 = vpop.permute.xlu0 %2964
        %v2968 = vsel %vm2814, %v2962, 0
        %2970 = vmatprep.subr.bf16.mxu0 0
        %2971 = vmatpush1.bf16.msra.mxu0 %v2965
        %2972 = vmatprep.subr.bf16.mxu0 0
        %2973 = vmatpush1.bf16.msra.mxu0 0
        %2974 = vmatprep.subr.bf16.mxu0 0
        %2975 = vmatpush1.bf16.msra.mxu0 0
        %2976 = vmatprep.subr.bf16.mxu0 0
        %2977 = vmatpush1.bf16.msra.mxu0 0
        %2978 = vmatprep.subr.bf16.mxu0 0
        %2979 = vmatpush1.bf16.msra.mxu0 0
        %2980 = vmatprep.subr.bf16.mxu0 0
        %2981 = vmatpush1.bf16.msra.mxu0 0
        %2982 = vmatprep.subr.bf16.mxu0 0
        %2983 = vmatpush1.bf16.msra.mxu0 0
        %2984 = vmatprep.subr.bf16.mxu0 0
        %2985 = vmatpush1.bf16.msra.mxu0 0
        %2986 = vmatprep.subr.bf16.mxu0 0
        %2987 = vmatpush1.bf16.msra.mxu0 0
        %2988 = vmatprep.subr.bf16.mxu0 0
        %2989 = vmatpush1.bf16.msra.mxu0 0
        %2990 = vmatprep.subr.bf16.mxu0 0
        %2991 = vmatpush1.bf16.msra.mxu0 0
        %2992 = vmatprep.subr.bf16.mxu0 0
        %2993 = vmatpush1.bf16.msra.mxu0 0
        %2994 = vmatprep.subr.bf16.mxu0 0
        %2995 = vmatpush1.bf16.msra.mxu0 0
        %2996 = vmatprep.subr.bf16.mxu0 0
        %2997 = vmatpush1.bf16.msra.mxu0 0
        %2998 = vmatprep.subr.bf16.mxu0 0
        %2999 = vmatpush1.bf16.msra.mxu0 0
        %3000 = vmatprep.subr.bf16.mxu0 0
        %3001 = vmatpush1.bf16.msra.mxu0 0
        %3002 = vmatprep.mubr.bf16.mxu0 0
        %3003 = vmatmul.mubr.bf16.gmra.mrb[0].mxu0 %v2968
        %v3004 = vpop.f32.mrb[0].mxu0
        %v3005 = vadd.f32 0.0, %v3004
        %v3006 = vpop.f32.mrb[0].mxu0
        %v3007 = vpop.f32.mrb[0].mxu0
        %v3008 = vadd.f32 0.0, %v3007
        %v3009 = vpop.f32.mrb[0].mxu0
        %3010 = vdwg.mxu0
        %v3011 = vpack.c.bf16 %v3008, %v3005
        %v3016 = vunpack.c.l.b16 %v2725
        %v3017 = vunpack.c.h.b16 %v2725
        %v3018 = vunpack.c.l.b16 %v2726
        %v3019 = vunpack.c.h.b16 %v2726
        %v3020 = vunpack.c.l.b16 %v2727
        %v3021 = vunpack.c.h.b16 %v2727
        %v3022 = vunpack.c.l.b16 %v2728
        %v3023 = vunpack.c.h.b16 %v2728
        %v3024 = vpack.c.b16 %v3018, %v3016
        %v3025 = vpack.c.b16 %v3019, %v3017
        %v3026 = vpack.c.b16 %v3022, %v3020
        %v3027 = vpack.c.b16 %v3023, %v3021
        %v3033 = vsel %vm2756, %v3011, 0
        %3035 = vmatprep.subr.bf16.mxu0 %v3025
        %3036 = vmatpush1.bf16.msra.mxu0 %v3024
        %3037 = vmatprep.subr.bf16.mxu0 %v3027
        %3038 = vmatpush1.bf16.msra.mxu0 %v3026
        %3039 = vmatprep.subr.bf16.mxu0 0
        %3040 = vmatpush1.bf16.msra.mxu0 0
        %3041 = vmatprep.subr.bf16.mxu0 0
        %3042 = vmatpush1.bf16.msra.mxu0 0
        %3043 = vmatprep.subr.bf16.mxu0 0
        %3044 = vmatpush1.bf16.msra.mxu0 0
        %3045 = vmatprep.subr.bf16.mxu0 0
        %3046 = vmatpush1.bf16.msra.mxu0 0
        %3047 = vmatprep.subr.bf16.mxu0 0
        %3048 = vmatpush1.bf16.msra.mxu0 0
        %3049 = vmatprep.subr.bf16.mxu0 0
        %3050 = vmatpush1.bf16.msra.mxu0 0
        %3051 = vmatprep.subr.bf16.mxu0 0
        %3052 = vmatpush1.bf16.msra.mxu0 0
        %3053 = vmatprep.subr.bf16.mxu0 0
        %3054 = vmatpush1.bf16.msra.mxu0 0
        %3055 = vmatprep.subr.bf16.mxu0 0
        %3056 = vmatpush1.bf16.msra.mxu0 0
        %3057 = vmatprep.subr.bf16.mxu0 0
        %3058 = vmatpush1.bf16.msra.mxu0 0
        %3059 = vmatprep.subr.bf16.mxu0 0
        %3060 = vmatpush1.bf16.msra.mxu0 0
        %3061 = vmatprep.subr.bf16.mxu0 0
        %3062 = vmatpush1.bf16.msra.mxu0 0
        %3063 = vmatprep.subr.bf16.mxu0 0
        %3064 = vmatpush1.bf16.msra.mxu0 0
        %3065 = vmatprep.subr.bf16.mxu0 0
        %3066 = vmatpush1.bf16.msra.mxu0 0
        %3067 = vmatprep.mubr.bf16.mxu0 0
        %3068 = vmatmul.mubr.bf16.gmra.mrb[0].mxu0 %v3033
        %v3069 = vpop.f32.mrb[0].mxu0
        %v3070 = vadd.f32 0.0, %v3069
        %v3071 = vpop.f32.mrb[0].mxu0
        %v3072 = vadd.f32 0.0, %v3071
        %v3073 = vpop.f32.mrb[0].mxu0
        %v3074 = vadd.f32 0.0, %v3073
        %v3075 = vpop.f32.mrb[0].mxu0
        %v3076 = vadd.f32 0.0, %v3075
        %3077 = vdwg.mxu0
        %v3082 = vunpack.c.l.b16 %v2721
        %v3083 = vunpack.c.h.b16 %v2721
        %v3084 = vunpack.c.l.b16 %v2722
        %v3085 = vunpack.c.h.b16 %v2722
        %v3086 = vunpack.c.l.b16 %v2723
        %v3087 = vunpack.c.h.b16 %v2723
        %v3088 = vunpack.c.l.b16 %v2724
        %v3089 = vunpack.c.h.b16 %v2724
        %v3090 = vpack.c.b16 %v3084, %v3082
        %v3091 = vpack.c.b16 %v3085, %v3083
        %v3092 = vpack.c.b16 %v3088, %v3086
        %v3093 = vpack.c.b16 %v3089, %v3087
        %v3099 = vsel %vm2756, %v2882, 0
        %3101 = vmatprep.subr.bf16.mxu0 %v3091
        %3102 = vmatpush1.bf16.msra.mxu0 %v3090
        %3103 = vmatprep.subr.bf16.mxu0 %v3093
        %3104 = vmatpush1.bf16.msra.mxu0 %v3092
        %3105 = vmatprep.subr.bf16.mxu0 0
        %3106 = vmatpush1.bf16.msra.mxu0 0
        %3107 = vmatprep.subr.bf16.mxu0 0
        %3108 = vmatpush1.bf16.msra.mxu0 0
        %3109 = vmatprep.subr.bf16.mxu0 0
        %3110 = vmatpush1.bf16.msra.mxu0 0
        %3111 = vmatprep.subr.bf16.mxu0 0
        %3112 = vmatpush1.bf16.msra.mxu0 0
        %3113 = vmatprep.subr.bf16.mxu0 0
        %3114 = vmatpush1.bf16.msra.mxu0 0
        %3115 = vmatprep.subr.bf16.mxu0 0
        %3116 = vmatpush1.bf16.msra.mxu0 0
        %3117 = vmatprep.subr.bf16.mxu0 0
        %3118 = vmatpush1.bf16.msra.mxu0 0
        %3119 = vmatprep.subr.bf16.mxu0 0
        %3120 = vmatpush1.bf16.msra.mxu0 0
        %3121 = vmatprep.subr.bf16.mxu0 0
        %3122 = vmatpush1.bf16.msra.mxu0 0
        %3123 = vmatprep.subr.bf16.mxu0 0
        %3124 = vmatpush1.bf16.msra.mxu0 0
        %3125 = vmatprep.subr.bf16.mxu0 0
        %3126 = vmatpush1.bf16.msra.mxu0 0
        %3127 = vmatprep.subr.bf16.mxu0 0
        %3128 = vmatpush1.bf16.msra.mxu0 0
        %3129 = vmatprep.subr.bf16.mxu0 0
        %3130 = vmatpush1.bf16.msra.mxu0 0
        %3131 = vmatprep.subr.bf16.mxu0 0
        %3132 = vmatpush1.bf16.msra.mxu0 0
        %3133 = vmatprep.mubr.bf16.mxu0 0
        %3134 = vmatmul.mubr.bf16.gmra.mrb[0].mxu0 %v3099
        %v3135 = vpop.f32.mrb[0].mxu0
        %v3136 = vadd.f32 %v3070, %v3135
        %v3137 = vpop.f32.mrb[0].mxu0
        %v3138 = vadd.f32 %v3072, %v3137
        %v3139 = vpop.f32.mrb[0].mxu0
        %v3140 = vadd.f32 %v3074, %v3139
        %v3141 = vpop.f32.mrb[0].mxu0
        %v3142 = vadd.f32 %v3076, %v3141
        %3143 = vdwg.mxu0
        %3144 = vrot.lane.b32.xlu0 %v2753, 64
        %v3145 = vpop.permute.xlu0 %3144
        %3146 = vrot.lane.b32.xlu0 %v2754, 64
        %v3147 = vpop.permute.xlu0 %3146
        %v3149 = vsel %vm2756, %v3145, 0
        %v3152 = vsel %vm2756, %v3147, 0
        %3154 = vmatprep.subr.bf16.mxu0 0
        %3155 = vmatpush1.bf16.xpose.msra.mxu0 %v3152
        %3156 = vmatprep.subr.bf16.mxu0 0
        %3157 = vmatpush1.bf16.xpose.msra.mxu0 0
        %3158 = vmatprep.subr.bf16.mxu0 0
        %3159 = vmatpush1.bf16.xpose.msra.mxu0 0
        %3160 = vmatprep.subr.bf16.mxu0 0
        %3161 = vmatpush1.bf16.xpose.msra.mxu0 0
        %3162 = vmatprep.subr.bf16.mxu0 0
        %3163 = vmatpush1.bf16.xpose.msra.mxu0 0
        %3164 = vmatprep.subr.bf16.mxu0 0
        %3165 = vmatpush1.bf16.xpose.msra.mxu0 0
        %3166 = vmatprep.subr.bf16.mxu0 0
        %3167 = vmatpush1.bf16.xpose.msra.mxu0 0
        %3168 = vmatprep.subr.bf16.mxu0 0
        %3169 = vmatpush1.bf16.xpose.msra.mxu0 0
        %3170 = vmatprep.subr.bf16.mxu0 0
        %3171 = vmatpush1.bf16.xpose.msra.mxu0 0
        %3172 = vmatprep.subr.bf16.mxu0 0
        %3173 = vmatpush1.bf16.xpose.msra.mxu0 0
        %3174 = vmatprep.subr.bf16.mxu0 0
        %3175 = vmatpush1.bf16.xpose.msra.mxu0 0
        %3176 = vmatprep.subr.bf16.mxu0 0
        %3177 = vmatpush1.bf16.xpose.msra.mxu0 0
        %3178 = vmatprep.subr.bf16.mxu0 0
        %3179 = vmatpush1.bf16.xpose.msra.mxu0 0
        %3180 = vmatprep.subr.bf16.mxu0 0
        %3181 = vmatpush1.bf16.xpose.msra.mxu0 0
        %3182 = vmatprep.subr.bf16.mxu0 0
        %3183 = vmatpush1.bf16.xpose.msra.mxu0 0
        %3184 = vmatprep.subr.bf16.mxu0 0
        %3185 = vmatpush1.bf16.xpose.msra.mxu0 0
        %3186 = vmatprep.mubr.bf16.mxu0 0
        %3187 = vmatmul.mubr.bf16.gmra.mrb[0].mxu0 %v3149
        %v3188 = vpop.f32.mrb[0].mxu0
        %v3189 = vadd.f32 0.0, %v3188
        %v3190 = vpop.f32.mrb[0].mxu0
        %v3191 = vpop.f32.mrb[0].mxu0
        %v3192 = vadd.f32 0.0, %v3191
        %v3193 = vpop.f32.mrb[0].mxu0
        %3194 = vdwg.mxu0
        %v3195 = vmul.f32 %v3189, 0.17677669
        %v3196 = vmul.f32 %v3192, 0.17677669
        %v3197 = vadd.f32 %v3195, %v2810
        %v3198 = vadd.f32 %v3196, %v2810
        %v3199 = vsel %vm2814, %v3197, -inf
        %3200 = vmax.xlane.f32.xlu0 %v3199
        %v3201 = vpop.xlane.xlu0 %3200
        %v3202 = vsel %vm2814, %v3198, -inf
        %3203 = vmax.xlane.f32.xlu0 %v3202
        %v3204 = vpop.xlane.xlu0 %3203
        %v3205 = vsub.f32 %v3197, %v3201
        %v3206 = vsub.f32 %v3198, %v3204
        %v3207 = vmul.f32 %v3205, 1.442695
        %v3208 = vpow.pop %v3207
        %v3209 = vmul.f32 %v3206, 1.442695
        %v3210 = vpow.pop %v3209
        %v3211 = vsel %vm2814, %v3208, 0.0
        %3212 = vadd.xlane.f32.xlu0 %v3211
        %v3213 = vpop.xlane.xlu0 %3212
        %v3214 = vsel %vm2814, %v3210, 0.0
        %3215 = vadd.xlane.f32.xlu0 %v3214
        %v3216 = vpop.xlane.xlu0 %3215
        %v3217 = vrcp.pop %v3213
        %v3218 = vmul.f32 %v3208, %v3217
        %v3219 = vrcp.pop %v3216
        %v3220 = vmul.f32 %v3210, %v3219
        %v3221 = vpack.c.bf16 %v3220, %v3218
        %3222 = vrot.lane.b32.xlu0 %v2755, 64
        %v3223 = vpop.permute.xlu0 %3222
        %v3226 = vsel %vm2814, %v3221, 0
        %3228 = vmatprep.subr.bf16.mxu0 0
        %3229 = vmatpush1.bf16.msra.mxu0 %v3223
        %3230 = vmatprep.subr.bf16.mxu0 0
        %3231 = vmatpush1.bf16.msra.mxu0 0
        %3232 = vmatprep.subr.bf16.mxu0 0
        %3233 = vmatpush1.bf16.msra.mxu0 0
        %3234 = vmatprep.subr.bf16.mxu0 0
        %3235 = vmatpush1.bf16.msra.mxu0 0
        %3236 = vmatprep.subr.bf16.mxu0 0
        %3237 = vmatpush1.bf16.msra.mxu0 0
        %3238 = vmatprep.subr.bf16.mxu0 0
        %3239 = vmatpush1.bf16.msra.mxu0 0
        %3240 = vmatprep.subr.bf16.mxu0 0
        %3241 = vmatpush1.bf16.msra.mxu0 0
        %3242 = vmatprep.subr.bf16.mxu0 0
        %3243 = vmatpush1.bf16.msra.mxu0 0
        %3244 = vmatprep.subr.bf16.mxu0 0
        %3245 = vmatpush1.bf16.msra.mxu0 0
        %3246 = vmatprep.subr.bf16.mxu0 0
        %3247 = vmatpush1.bf16.msra.mxu0 0
        %3248 = vmatprep.subr.bf16.mxu0 0
        %3249 = vmatpush1.bf16.msra.mxu0 0
        %3250 = vmatprep.subr.bf16.mxu0 0
        %3251 = vmatpush1.bf16.msra.mxu0 0
        %3252 = vmatprep.subr.bf16.mxu0 0
        %3253 = vmatpush1.bf16.msra.mxu0 0
        %3254 = vmatprep.subr.bf16.mxu0 0
        %3255 = vmatpush1.bf16.msra.mxu0 0
        %3256 = vmatprep.subr.bf16.mxu0 0
        %3257 = vmatpush1.bf16.msra.mxu0 0
        %3258 = vmatprep.subr.bf16.mxu0 0
        %3259 = vmatpush1.bf16.msra.mxu0 0
        %3260 = vmatprep.mubr.bf16.mxu0 0
        %3261 = vmatmul.mubr.bf16.gmra.mrb[0].mxu0 %v3226
        %v3262 = vpop.f32.mrb[0].mxu0
        %v3263 = vadd.f32 0.0, %v3262
        %v3264 = vpop.f32.mrb[0].mxu0
        %v3265 = vpop.f32.mrb[0].mxu0
        %v3266 = vadd.f32 0.0, %v3265
        %v3267 = vpop.f32.mrb[0].mxu0
        %3268 = vdwg.mxu0
        %v3269 = vpack.c.bf16 %v3266, %v3263
        %v3274 = vunpack.c.l.b16 %v2729
        %v3275 = vunpack.c.h.b16 %v2729
        %v3276 = vunpack.c.l.b16 %v2730
        %v3277 = vunpack.c.h.b16 %v2730
        %v3278 = vunpack.c.l.b16 %v2731
        %v3279 = vunpack.c.h.b16 %v2731
        %v3280 = vunpack.c.l.b16 %v2732
        %v3281 = vunpack.c.h.b16 %v2732
        %v3282 = vpack.c.b16 %v3276, %v3274
        %v3283 = vpack.c.b16 %v3277, %v3275
        %v3284 = vpack.c.b16 %v3280, %v3278
        %v3285 = vpack.c.b16 %v3281, %v3279
        %v3291 = vsel %vm2756, %v3269, 0
        %3293 = vmatprep.subr.bf16.mxu0 %v3283
        %3294 = vmatpush1.bf16.msra.mxu0 %v3282
        %3295 = vmatprep.subr.bf16.mxu0 %v3285
        %3296 = vmatpush1.bf16.msra.mxu0 %v3284
        %3297 = vmatprep.subr.bf16.mxu0 0
        %3298 = vmatpush1.bf16.msra.mxu0 0
        %3299 = vmatprep.subr.bf16.mxu0 0
        %3300 = vmatpush1.bf16.msra.mxu0 0
        %3301 = vmatprep.subr.bf16.mxu0 0
        %3302 = vmatpush1.bf16.msra.mxu0 0
        %3303 = vmatprep.subr.bf16.mxu0 0
        %3304 = vmatpush1.bf16.msra.mxu0 0
        %3305 = vmatprep.subr.bf16.mxu0 0
        %3306 = vmatpush1.bf16.msra.mxu0 0
        %3307 = vmatprep.subr.bf16.mxu0 0
        %3308 = vmatpush1.bf16.msra.mxu0 0
        %3309 = vmatprep.subr.bf16.mxu0 0
        %3310 = vmatpush1.bf16.msra.mxu0 0
        %3311 = vmatprep.subr.bf16.mxu0 0
        %3312 = vmatpush1.bf16.msra.mxu0 0
        %3313 = vmatprep.subr.bf16.mxu0 0
        %3314 = vmatpush1.bf16.msra.mxu0 0
        %3315 = vmatprep.subr.bf16.mxu0 0
        %3316 = vmatpush1.bf16.msra.mxu0 0
        %3317 = vmatprep.subr.bf16.mxu0 0
        %3318 = vmatpush1.bf16.msra.mxu0 0
        %3319 = vmatprep.subr.bf16.mxu0 0
        %3320 = vmatpush1.bf16.msra.mxu0 0
        %3321 = vmatprep.subr.bf16.mxu0 0
        %3322 = vmatpush1.bf16.msra.mxu0 0
        %3323 = vmatprep.subr.bf16.mxu0 0
        %3324 = vmatpush1.bf16.msra.mxu0 0
        %3325 = vmatprep.mubr.bf16.mxu0 0
        %3326 = vmatmul.mubr.bf16.gmra.mrb[0].mxu0 %v3291
        %v3327 = vpop.f32.mrb[0].mxu0
        %v3328 = vadd.f32 0.0, %v3327
        %v3329 = vpop.f32.mrb[0].mxu0
        %v3330 = vadd.f32 0.0, %v3329
        %v3331 = vpop.f32.mrb[0].mxu0
        %v3332 = vadd.f32 0.0, %v3331
        %v3333 = vpop.f32.mrb[0].mxu0
        %v3334 = vadd.f32 0.0, %v3333
        %3335 = vdwg.mxu0
        %v3336 = vadd.f32 %v3136, %v3328
        %v3337 = vadd.f32 %v3138, %v3330
        %v3338 = vadd.f32 %v3140, %v3332
        %v3339 = vadd.f32 %v3142, %v3334
        %3340 = vrot.lane.b32.xlu0 %v2753, 32
        %v3341 = vpop.permute.xlu0 %3340
        %3342 = vrot.lane.b32.xlu0 %v2754, 32
        %v3343 = vpop.permute.xlu0 %3342
        %v3345 = vsel %vm2756, %v3341, 0
        %v3348 = vsel %vm2756, %v3343, 0
        %3350 = vmatprep.subr.bf16.mxu0 0
        %3351 = vmatpush1.bf16.xpose.msra.mxu0 %v3348
        %3352 = vmatprep.subr.bf16.mxu0 0
        %3353 = vmatpush1.bf16.xpose.msra.mxu0 0
        %3354 = vmatprep.subr.bf16.mxu0 0
        %3355 = vmatpush1.bf16.xpose.msra.mxu0 0
        %3356 = vmatprep.subr.bf16.mxu0 0
        %3357 = vmatpush1.bf16.xpose.msra.mxu0 0
        %3358 = vmatprep.subr.bf16.mxu0 0
        %3359 = vmatpush1.bf16.xpose.msra.mxu0 0
        %3360 = vmatprep.subr.bf16.mxu0 0
        %3361 = vmatpush1.bf16.xpose.msra.mxu0 0
        %3362 = vmatprep.subr.bf16.mxu0 0
        %3363 = vmatpush1.bf16.xpose.msra.mxu0 0
        %3364 = vmatprep.subr.bf16.mxu0 0
        %3365 = vmatpush1.bf16.xpose.msra.mxu0 0
        %3366 = vmatprep.subr.bf16.mxu0 0
        %3367 = vmatpush1.bf16.xpose.msra.mxu0 0
        %3368 = vmatprep.subr.bf16.mxu0 0
        %3369 = vmatpush1.bf16.xpose.msra.mxu0 0
        %3370 = vmatprep.subr.bf16.mxu0 0
        %3371 = vmatpush1.bf16.xpose.msra.mxu0 0
        %3372 = vmatprep.subr.bf16.mxu0 0
        %3373 = vmatpush1.bf16.xpose.msra.mxu0 0
        %3374 = vmatprep.subr.bf16.mxu0 0
        %3375 = vmatpush1.bf16.xpose.msra.mxu0 0
        %3376 = vmatprep.subr.bf16.mxu0 0
        %3377 = vmatpush1.bf16.xpose.msra.mxu0 0
        %3378 = vmatprep.subr.bf16.mxu0 0
        %3379 = vmatpush1.bf16.xpose.msra.mxu0 0
        %3380 = vmatprep.subr.bf16.mxu0 0
        %3381 = vmatpush1.bf16.xpose.msra.mxu0 0
        %3382 = vmatprep.mubr.bf16.mxu0 0
        %3383 = vmatmul.mubr.bf16.gmra.mrb[0].mxu0 %v3345
        %v3384 = vpop.f32.mrb[0].mxu0
        %v3385 = vadd.f32 0.0, %v3384
        %v3386 = vpop.f32.mrb[0].mxu0
        %v3387 = vpop.f32.mrb[0].mxu0
        %v3388 = vadd.f32 0.0, %v3387
        %v3389 = vpop.f32.mrb[0].mxu0
        %3390 = vdwg.mxu0
        %v3391 = vmul.f32 %v3385, 0.17677669
        %v3392 = vmul.f32 %v3388, 0.17677669
        %v3393 = vadd.f32 %v3391, %v2810
        %v3394 = vadd.f32 %v3392, %v2810
        %v3395 = vsel %vm2814, %v3393, -inf
        %3396 = vmax.xlane.f32.xlu0 %v3395
        %v3397 = vpop.xlane.xlu0 %3396
        %v3398 = vsel %vm2814, %v3394, -inf
        %3399 = vmax.xlane.f32.xlu0 %v3398
        %v3400 = vpop.xlane.xlu0 %3399
        %v3401 = vsub.f32 %v3393, %v3397
        %v3402 = vsub.f32 %v3394, %v3400
        %v3403 = vmul.f32 %v3401, 1.442695
        %v3404 = vpow.pop %v3403
        %v3405 = vmul.f32 %v3402, 1.442695
        %v3406 = vpow.pop %v3405
        %v3407 = vsel %vm2814, %v3404, 0.0
        %3408 = vadd.xlane.f32.xlu0 %v3407
        %v3409 = vpop.xlane.xlu0 %3408
        %v3410 = vsel %vm2814, %v3406, 0.0
        %3411 = vadd.xlane.f32.xlu0 %v3410
        %v3412 = vpop.xlane.xlu0 %3411
        %v3413 = vrcp.pop %v3409
        %v3414 = vmul.f32 %v3404, %v3413
        %v3415 = vrcp.pop %v3412
        %v3416 = vmul.f32 %v3406, %v3415
        %v3417 = vpack.c.bf16 %v3416, %v3414
        %3418 = vrot.lane.b32.xlu0 %v2755, 32
        %v3419 = vpop.permute.xlu0 %3418
        %v3422 = vsel %vm2814, %v3417, 0
        %3424 = vmatprep.subr.bf16.mxu0 0
        %3425 = vmatpush1.bf16.msra.mxu0 %v3419
        %3426 = vmatprep.subr.bf16.mxu0 0
        %3427 = vmatpush1.bf16.msra.mxu0 0
        %3428 = vmatprep.subr.bf16.mxu0 0
        %3429 = vmatpush1.bf16.msra.mxu0 0
        %3430 = vmatprep.subr.bf16.mxu0 0
        %3431 = vmatpush1.bf16.msra.mxu0 0
        %3432 = vmatprep.subr.bf16.mxu0 0
        %3433 = vmatpush1.bf16.msra.mxu0 0
        %3434 = vmatprep.subr.bf16.mxu0 0
        %3435 = vmatpush1.bf16.msra.mxu0 0
        %3436 = vmatprep.subr.bf16.mxu0 0
        %3437 = vmatpush1.bf16.msra.mxu0 0
        %3438 = vmatprep.subr.bf16.mxu0 0
        %3439 = vmatpush1.bf16.msra.mxu0 0
        %3440 = vmatprep.subr.bf16.mxu0 0
        %3441 = vmatpush1.bf16.msra.mxu0 0
        %3442 = vmatprep.subr.bf16.mxu0 0
        %3443 = vmatpush1.bf16.msra.mxu0 0
        %3444 = vmatprep.subr.bf16.mxu0 0
        %3445 = vmatpush1.bf16.msra.mxu0 0
        %3446 = vmatprep.subr.bf16.mxu0 0
        %3447 = vmatpush1.bf16.msra.mxu0 0
        %3448 = vmatprep.subr.bf16.mxu0 0
        %3449 = vmatpush1.bf16.msra.mxu0 0
        %3450 = vmatprep.subr.bf16.mxu0 0
        %3451 = vmatpush1.bf16.msra.mxu0 0
        %3452 = vmatprep.subr.bf16.mxu0 0
        %3453 = vmatpush1.bf16.msra.mxu0 0
        %3454 = vmatprep.subr.bf16.mxu0 0
        %3455 = vmatpush1.bf16.msra.mxu0 0
        %3456 = vmatprep.mubr.bf16.mxu0 0
        %3457 = vmatmul.mubr.bf16.gmra.mrb[0].mxu0 %v3422
        %v3458 = vpop.f32.mrb[0].mxu0
        %v3459 = vadd.f32 0.0, %v3458
        %v3460 = vpop.f32.mrb[0].mxu0
        %v3461 = vpop.f32.mrb[0].mxu0
        %v3462 = vadd.f32 0.0, %v3461
        %v3463 = vpop.f32.mrb[0].mxu0
        %3464 = vdwg.mxu0
        %v3465 = vpack.c.bf16 %v3462, %v3459
        %v3470 = vunpack.c.l.b16 %v2733
        %v3471 = vunpack.c.h.b16 %v2733
        %v3472 = vunpack.c.l.b16 %v2734
        %v3473 = vunpack.c.h.b16 %v2734
        %v3474 = vunpack.c.l.b16 %v2735
        %v3475 = vunpack.c.h.b16 %v2735
        %v3476 = vunpack.c.l.b16 %v2736
        %v3477 = vunpack.c.h.b16 %v2736
        %v3478 = vpack.c.b16 %v3472, %v3470
        %v3479 = vpack.c.b16 %v3473, %v3471
        %v3480 = vpack.c.b16 %v3476, %v3474
        %v3481 = vpack.c.b16 %v3477, %v3475
        %v3487 = vsel %vm2756, %v3465, 0
        %3489 = vmatprep.subr.bf16.mxu0 %v3479
        %3490 = vmatpush1.bf16.msra.mxu0 %v3478
        %3491 = vmatprep.subr.bf16.mxu0 %v3481
        %3492 = vmatpush1.bf16.msra.mxu0 %v3480
        %3493 = vmatprep.subr.bf16.mxu0 0
        %3494 = vmatpush1.bf16.msra.mxu0 0
        %3495 = vmatprep.subr.bf16.mxu0 0
        %3496 = vmatpush1.bf16.msra.mxu0 0
        %3497 = vmatprep.subr.bf16.mxu0 0
        %3498 = vmatpush1.bf16.msra.mxu0 0
        %3499 = vmatprep.subr.bf16.mxu0 0
        %3500 = vmatpush1.bf16.msra.mxu0 0
        %3501 = vmatprep.subr.bf16.mxu0 0
        %3502 = vmatpush1.bf16.msra.mxu0 0
        %3503 = vmatprep.subr.bf16.mxu0 0
        %3504 = vmatpush1.bf16.msra.mxu0 0
        %3505 = vmatprep.subr.bf16.mxu0 0
        %3506 = vmatpush1.bf16.msra.mxu0 0
        %3507 = vmatprep.subr.bf16.mxu0 0
        %3508 = vmatpush1.bf16.msra.mxu0 0
        %3509 = vmatprep.subr.bf16.mxu0 0
        %3510 = vmatpush1.bf16.msra.mxu0 0
        %3511 = vmatprep.subr.bf16.mxu0 0
        %3512 = vmatpush1.bf16.msra.mxu0 0
        %3513 = vmatprep.subr.bf16.mxu0 0
        %3514 = vmatpush1.bf16.msra.mxu0 0
        %3515 = vmatprep.subr.bf16.mxu0 0
        %3516 = vmatpush1.bf16.msra.mxu0 0
        %3517 = vmatprep.subr.bf16.mxu0 0
        %3518 = vmatpush1.bf16.msra.mxu0 0
        %3519 = vmatprep.subr.bf16.mxu0 0
        %3520 = vmatpush1.bf16.msra.mxu0 0
        %3521 = vmatprep.mubr.bf16.mxu0 0
        %3522 = vmatmul.mubr.bf16.gmra.mrb[0].mxu0 %v3487
        %v3523 = vpop.f32.mrb[0].mxu0
        %v3524 = vadd.f32 0.0, %v3523
        %v3525 = vpop.f32.mrb[0].mxu0
        %v3526 = vadd.f32 0.0, %v3525
        %v3527 = vpop.f32.mrb[0].mxu0
        %v3528 = vadd.f32 0.0, %v3527
        %v3529 = vpop.f32.mrb[0].mxu0
        %v3530 = vadd.f32 0.0, %v3529
        %3531 = vdwg.mxu0
        %v3532 = vadd.f32 %v3336, %v3524
        %v3533 = vadd.f32 %v3337, %v3526
        %v3534 = vadd.f32 %v3338, %v3528
        %v3535 = vadd.f32 %v3339, %v3530
        %v3536 = vpack.c.bf16 %v2225, %v2221
        %v3537 = vpack.c.bf16 %v2472, %v2468
        %v3538 = vpack.c.bf16 %v2719, %v2715
        %v3540 = vsel %vm2756, %v3536, 0
        %v3543 = vsel %vm2756, %v3537, 0
        %3545 = vmatprep.subr.bf16.mxu0 0
        %3546 = vmatpush1.bf16.xpose.msra.mxu0 %v3543
        %3547 = vmatprep.subr.bf16.mxu0 0
        %3548 = vmatpush1.bf16.xpose.msra.mxu0 0
        %3549 = vmatprep.subr.bf16.mxu0 0
        %3550 = vmatpush1.bf16.xpose.msra.mxu0 0
        %3551 = vmatprep.subr.bf16.mxu0 0
        %3552 = vmatpush1.bf16.xpose.msra.mxu0 0
        %3553 = vmatprep.subr.bf16.mxu0 0
        %3554 = vmatpush1.bf16.xpose.msra.mxu0 0
        %3555 = vmatprep.subr.bf16.mxu0 0
        %3556 = vmatpush1.bf16.xpose.msra.mxu0 0
        %3557 = vmatprep.subr.bf16.mxu0 0
        %3558 = vmatpush1.bf16.xpose.msra.mxu0 0
        %3559 = vmatprep.subr.bf16.mxu0 0
        %3560 = vmatpush1.bf16.xpose.msra.mxu0 0
        %3561 = vmatprep.subr.bf16.mxu0 0
        %3562 = vmatpush1.bf16.xpose.msra.mxu0 0
        %3563 = vmatprep.subr.bf16.mxu0 0
        %3564 = vmatpush1.bf16.xpose.msra.mxu0 0
        %3565 = vmatprep.subr.bf16.mxu0 0
        %3566 = vmatpush1.bf16.xpose.msra.mxu0 0
        %3567 = vmatprep.subr.bf16.mxu0 0
        %3568 = vmatpush1.bf16.xpose.msra.mxu0 0
        %3569 = vmatprep.subr.bf16.mxu0 0
        %3570 = vmatpush1.bf16.xpose.msra.mxu0 0
        %3571 = vmatprep.subr.bf16.mxu0 0
        %3572 = vmatpush1.bf16.xpose.msra.mxu0 0
        %3573 = vmatprep.subr.bf16.mxu0 0
        %3574 = vmatpush1.bf16.xpose.msra.mxu0 0
        %3575 = vmatprep.subr.bf16.mxu0 0
        %3576 = vmatpush1.bf16.xpose.msra.mxu0 0
        %3577 = vmatprep.mubr.bf16.mxu0 0
        %3578 = vmatmul.mubr.bf16.gmra.mrb[0].mxu0 %v3540
        %v3579 = vpop.f32.mrb[0].mxu0
        %v3580 = vadd.f32 0.0, %v3579
        %v3581 = vpop.f32.mrb[0].mxu0
        %v3582 = vpop.f32.mrb[0].mxu0
        %v3583 = vadd.f32 0.0, %v3582
        %v3584 = vpop.f32.mrb[0].mxu0
        %3585 = vdwg.mxu0
        %v3586 = vmul.f32 %v3580, 0.17677669
        %v3587 = vmul.f32 %v3583, 0.17677669
        %v3588 = vadd.f32 %v3586, %v2810
        %v3589 = vadd.f32 %v3587, %v2810
        %v3590 = vsel %vm2814, %v3588, -inf
        %3591 = vmax.xlane.f32.xlu0 %v3590
        %v3592 = vpop.xlane.xlu0 %3591
        %v3593 = vsel %vm2814, %v3589, -inf
        %3594 = vmax.xlane.f32.xlu0 %v3593
        %v3595 = vpop.xlane.xlu0 %3594
        %v3596 = vsub.f32 %v3588, %v3592
        %v3597 = vsub.f32 %v3589, %v3595
        %v3598 = vmul.f32 %v3596, 1.442695
        %v3599 = vpow.pop %v3598
        %v3600 = vmul.f32 %v3597, 1.442695
        %v3601 = vpow.pop %v3600
        %v3602 = vsel %vm2814, %v3599, 0.0
        %3603 = vadd.xlane.f32.xlu0 %v3602
        %v3604 = vpop.xlane.xlu0 %3603
        %v3605 = vsel %vm2814, %v3601, 0.0
        %3606 = vadd.xlane.f32.xlu0 %v3605
        %v3607 = vpop.xlane.xlu0 %3606
        %v3608 = vrcp.pop %v3604
        %v3609 = vmul.f32 %v3599, %v3608
        %v3610 = vrcp.pop %v3607
        %v3611 = vmul.f32 %v3601, %v3610
        %v3612 = vpack.c.bf16 %v3611, %v3609
        %v3614 = vsel %vm2814, %v3612, 0
        %3616 = vmatprep.subr.bf16.mxu0 0
        %3617 = vmatpush1.bf16.msra.mxu0 %v3538
        %3618 = vmatprep.subr.bf16.mxu0 0
        %3619 = vmatpush1.bf16.msra.mxu0 0
        %3620 = vmatprep.subr.bf16.mxu0 0
        %3621 = vmatpush1.bf16.msra.mxu0 0
        %3622 = vmatprep.subr.bf16.mxu0 0
        %3623 = vmatpush1.bf16.msra.mxu0 0
        %3624 = vmatprep.subr.bf16.mxu0 0
        %3625 = vmatpush1.bf16.msra.mxu0 0
        %3626 = vmatprep.subr.bf16.mxu0 0
        %3627 = vmatpush1.bf16.msra.mxu0 0
        %3628 = vmatprep.subr.bf16.mxu0 0
        %3629 = vmatpush1.bf16.msra.mxu0 0
        %3630 = vmatprep.subr.bf16.mxu0 0
        %3631 = vmatpush1.bf16.msra.mxu0 0
        %3632 = vmatprep.subr.bf16.mxu0 0
        %3633 = vmatpush1.bf16.msra.mxu0 0
        %3634 = vmatprep.subr.bf16.mxu0 0
        %3635 = vmatpush1.bf16.msra.mxu0 0
        %3636 = vmatprep.subr.bf16.mxu0 0
        %3637 = vmatpush1.bf16.msra.mxu0 0
        %3638 = vmatprep.subr.bf16.mxu0 0
        %3639 = vmatpush1.bf16.msra.mxu0 0
        %3640 = vmatprep.subr.bf16.mxu0 0
        %3641 = vmatpush1.bf16.msra.mxu0 0
        %3642 = vmatprep.subr.bf16.mxu0 0
        %3643 = vmatpush1.bf16.msra.mxu0 0
        %3644 = vmatprep.subr.bf16.mxu0 0
        %3645 = vmatpush1.bf16.msra.mxu0 0
        %3646 = vmatprep.subr.bf16.mxu0 0
        %3647 = vmatpush1.bf16.msra.mxu0 0
        %3648 = vmatprep.mubr.bf16.mxu0 0
        %3649 = vmatmul.mubr.bf16.gmra.mrb[0].mxu0 %v3614
        %v3650 = vpop.f32.mrb[0].mxu0
        %v3651 = vadd.f32 0.0, %v3650
        %v3652 = vpop.f32.mrb[0].mxu0
        %v3653 = vpop.f32.mrb[0].mxu0
        %v3654 = vadd.f32 0.0, %v3653
        %v3655 = vpop.f32.mrb[0].mxu0
        %3656 = vdwg.mxu0
        %v3657 = vpack.c.bf16 %v3654, %v3651
        %v3662 = vunpack.c.l.b16 %v2737
        %v3663 = vunpack.c.h.b16 %v2737
        %v3664 = vunpack.c.l.b16 %v2738
        %v3665 = vunpack.c.h.b16 %v2738
        %v3666 = vunpack.c.l.b16 %v2739
        %v3667 = vunpack.c.h.b16 %v2739
        %v3668 = vunpack.c.l.b16 %v2740
        %v3669 = vunpack.c.h.b16 %v2740
        %v3670 = vpack.c.b16 %v3664, %v3662
        %v3671 = vpack.c.b16 %v3665, %v3663
        %v3672 = vpack.c.b16 %v3668, %v3666
        %v3673 = vpack.c.b16 %v3669, %v3667
        %v3679 = vsel %vm2756, %v3657, 0
        %3681 = vmatprep.subr.bf16.mxu0 %v3671
        %3682 = vmatpush1.bf16.msra.mxu0 %v3670
        %3683 = vmatprep.subr.bf16.mxu0 %v3673
        %3684 = vmatpush1.bf16.msra.mxu0 %v3672
        %3685 = vmatprep.subr.bf16.mxu0 0
        %3686 = vmatpush1.bf16.msra.mxu0 0
        %3687 = vmatprep.subr.bf16.mxu0 0
        %3688 = vmatpush1.bf16.msra.mxu0 0
        %3689 = vmatprep.subr.bf16.mxu0 0
        %3690 = vmatpush1.bf16.msra.mxu0 0
        %3691 = vmatprep.subr.bf16.mxu0 0
        %3692 = vmatpush1.bf16.msra.mxu0 0
        %3693 = vmatprep.subr.bf16.mxu0 0
        %3694 = vmatpush1.bf16.msra.mxu0 0
        %3695 = vmatprep.subr.bf16.mxu0 0
        %3696 = vmatpush1.bf16.msra.mxu0 0
        %3697 = vmatprep.subr.bf16.mxu0 0
        %3698 = vmatpush1.bf16.msra.mxu0 0
        %3699 = vmatprep.subr.bf16.mxu0 0
        %3700 = vmatpush1.bf16.msra.mxu0 0
        %3701 = vmatprep.subr.bf16.mxu0 0
        %3702 = vmatpush1.bf16.msra.mxu0 0
        %3703 = vmatprep.subr.bf16.mxu0 0
        %3704 = vmatpush1.bf16.msra.mxu0 0
        %3705 = vmatprep.subr.bf16.mxu0 0
        %3706 = vmatpush1.bf16.msra.mxu0 0
        %3707 = vmatprep.subr.bf16.mxu0 0
        %3708 = vmatpush1.bf16.msra.mxu0 0
        %3709 = vmatprep.subr.bf16.mxu0 0
        %3710 = vmatpush1.bf16.msra.mxu0 0
        %3711 = vmatprep.subr.bf16.mxu0 0
        %3712 = vmatpush1.bf16.msra.mxu0 0
        %3713 = vmatprep.mubr.bf16.mxu0 0
        %3714 = vmatmul.mubr.bf16.gmra.mrb[0].mxu0 %v3679
        %v3715 = vpop.f32.mrb[0].mxu0
        %v3716 = vadd.f32 0.0, %v3715
        %v3717 = vpop.f32.mrb[0].mxu0
        %v3718 = vadd.f32 0.0, %v3717
        %v3719 = vpop.f32.mrb[0].mxu0
        %v3720 = vadd.f32 0.0, %v3719
        %v3721 = vpop.f32.mrb[0].mxu0
        %v3722 = vadd.f32 0.0, %v3721
        %3723 = vdwg.mxu0
        %v3724 = vadd.f32 %v3532, %v3716
        %v3725 = vadd.f32 %v3533, %v3718
        %v3726 = vadd.f32 %v3534, %v3720
        %v3727 = vadd.f32 %v3535, %v3722
        %3729 = vrot.lane.b32.xlu0 %v3536, 96
        %v3730 = vpop.permute.xlu0 %3729
        %3732 = vrot.lane.b32.xlu0 %v3537, 96
        %v3733 = vpop.permute.xlu0 %3732
        %v3735 = vsel %vm2756, %v3730, 0
        %v3738 = vsel %vm2756, %v3733, 0
        %3740 = vmatprep.subr.bf16.mxu0 0
        %3741 = vmatpush1.bf16.xpose.msra.mxu0 %v3738
        %3742 = vmatprep.subr.bf16.mxu0 0
        %3743 = vmatpush1.bf16.xpose.msra.mxu0 0
        %3744 = vmatprep.subr.bf16.mxu0 0
        %3745 = vmatpush1.bf16.xpose.msra.mxu0 0
        %3746 = vmatprep.subr.bf16.mxu0 0
        %3747 = vmatpush1.bf16.xpose.msra.mxu0 0
        %3748 = vmatprep.subr.bf16.mxu0 0
        %3749 = vmatpush1.bf16.xpose.msra.mxu0 0
        %3750 = vmatprep.subr.bf16.mxu0 0
        %3751 = vmatpush1.bf16.xpose.msra.mxu0 0
        %3752 = vmatprep.subr.bf16.mxu0 0
        %3753 = vmatpush1.bf16.xpose.msra.mxu0 0
        %3754 = vmatprep.subr.bf16.mxu0 0
        %3755 = vmatpush1.bf16.xpose.msra.mxu0 0
        %3756 = vmatprep.subr.bf16.mxu0 0
        %3757 = vmatpush1.bf16.xpose.msra.mxu0 0
        %3758 = vmatprep.subr.bf16.mxu0 0
        %3759 = vmatpush1.bf16.xpose.msra.mxu0 0
        %3760 = vmatprep.subr.bf16.mxu0 0
        %3761 = vmatpush1.bf16.xpose.msra.mxu0 0
        %3762 = vmatprep.subr.bf16.mxu0 0
        %3763 = vmatpush1.bf16.xpose.msra.mxu0 0
        %3764 = vmatprep.subr.bf16.mxu0 0
        %3765 = vmatpush1.bf16.xpose.msra.mxu0 0
        %3766 = vmatprep.subr.bf16.mxu0 0
        %3767 = vmatpush1.bf16.xpose.msra.mxu0 0
        %3768 = vmatprep.subr.bf16.mxu0 0
        %3769 = vmatpush1.bf16.xpose.msra.mxu0 0
        %3770 = vmatprep.subr.bf16.mxu0 0
        %3771 = vmatpush1.bf16.xpose.msra.mxu0 0
        %3772 = vmatprep.mubr.bf16.mxu0 0
        %3773 = vmatmul.mubr.bf16.gmra.mrb[0].mxu0 %v3735
        %v3774 = vpop.f32.mrb[0].mxu0
        %v3775 = vadd.f32 0.0, %v3774
        %v3776 = vpop.f32.mrb[0].mxu0
        %v3777 = vpop.f32.mrb[0].mxu0
        %v3778 = vadd.f32 0.0, %v3777
        %v3779 = vpop.f32.mrb[0].mxu0
        %3780 = vdwg.mxu0
        %v3781 = vmul.f32 %v3775, 0.17677669
        %v3782 = vmul.f32 %v3778, 0.17677669
        %v3783 = vadd.f32 %v3781, %v2810
        %v3784 = vadd.f32 %v3782, %v2810
        %v3785 = vsel %vm2814, %v3783, -inf
        %3786 = vmax.xlane.f32.xlu0 %v3785
        %v3787 = vpop.xlane.xlu0 %3786
        %v3788 = vsel %vm2814, %v3784, -inf
        %3789 = vmax.xlane.f32.xlu0 %v3788
        %v3790 = vpop.xlane.xlu0 %3789
        %v3791 = vsub.f32 %v3783, %v3787
        %v3792 = vsub.f32 %v3784, %v3790
        %v3793 = vmul.f32 %v3791, 1.442695
        %v3794 = vpow.pop %v3793
        %v3795 = vmul.f32 %v3792, 1.442695
        %v3796 = vpow.pop %v3795
        %v3797 = vsel %vm2814, %v3794, 0.0
        %3798 = vadd.xlane.f32.xlu0 %v3797
        %v3799 = vpop.xlane.xlu0 %3798
        %v3800 = vsel %vm2814, %v3796, 0.0
        %3801 = vadd.xlane.f32.xlu0 %v3800
        %v3802 = vpop.xlane.xlu0 %3801
        %v3803 = vrcp.pop %v3799
        %v3804 = vmul.f32 %v3794, %v3803
        %v3805 = vrcp.pop %v3802
        %v3806 = vmul.f32 %v3796, %v3805
        %v3807 = vpack.c.bf16 %v3806, %v3804
        %3809 = vrot.lane.b32.xlu0 %v3538, 96
        %v3810 = vpop.permute.xlu0 %3809
        %v3813 = vsel %vm2814, %v3807, 0
        %3815 = vmatprep.subr.bf16.mxu0 0
        %3816 = vmatpush1.bf16.msra.mxu0 %v3810
        %3817 = vmatprep.subr.bf16.mxu0 0
        %3818 = vmatpush1.bf16.msra.mxu0 0
        %3819 = vmatprep.subr.bf16.mxu0 0
        %3820 = vmatpush1.bf16.msra.mxu0 0
        %3821 = vmatprep.subr.bf16.mxu0 0
        %3822 = vmatpush1.bf16.msra.mxu0 0
        %3823 = vmatprep.subr.bf16.mxu0 0
        %3824 = vmatpush1.bf16.msra.mxu0 0
        %3825 = vmatprep.subr.bf16.mxu0 0
        %3826 = vmatpush1.bf16.msra.mxu0 0
        %3827 = vmatprep.subr.bf16.mxu0 0
        %3828 = vmatpush1.bf16.msra.mxu0 0
        %3829 = vmatprep.subr.bf16.mxu0 0
        %3830 = vmatpush1.bf16.msra.mxu0 0
        %3831 = vmatprep.subr.bf16.mxu0 0
        %3832 = vmatpush1.bf16.msra.mxu0 0
        %3833 = vmatprep.subr.bf16.mxu0 0
        %3834 = vmatpush1.bf16.msra.mxu0 0
        %3835 = vmatprep.subr.bf16.mxu0 0
        %3836 = vmatpush1.bf16.msra.mxu0 0
        %3837 = vmatprep.subr.bf16.mxu0 0
        %3838 = vmatpush1.bf16.msra.mxu0 0
        %3839 = vmatprep.subr.bf16.mxu0 0
        %3840 = vmatpush1.bf16.msra.mxu0 0
        %3841 = vmatprep.subr.bf16.mxu0 0
        %3842 = vmatpush1.bf16.msra.mxu0 0
        %3843 = vmatprep.subr.bf16.mxu0 0
        %3844 = vmatpush1.bf16.msra.mxu0 0
        %3845 = vmatprep.subr.bf16.mxu0 0
        %3846 = vmatpush1.bf16.msra.mxu0 0
        %3847 = vmatprep.mubr.bf16.mxu0 0
        %3848 = vmatmul.mubr.bf16.gmra.mrb[0].mxu0 %v3813
        %v3849 = vpop.f32.mrb[0].mxu0
        %v3850 = vadd.f32 0.0, %v3849
        %v3851 = vpop.f32.mrb[0].mxu0
        %v3852 = vpop.f32.mrb[0].mxu0
        %v3853 = vadd.f32 0.0, %v3852
        %v3854 = vpop.f32.mrb[0].mxu0
        %3855 = vdwg.mxu0
        %v3856 = vpack.c.bf16 %v3853, %v3850
        %v3861 = vunpack.c.l.b16 %v2741
        %v3862 = vunpack.c.h.b16 %v2741
        %v3863 = vunpack.c.l.b16 %v2742
        %v3864 = vunpack.c.h.b16 %v2742
        %v3865 = vunpack.c.l.b16 %v2743
        %v3866 = vunpack.c.h.b16 %v2743
        %v3867 = vunpack.c.l.b16 %v2744
        %v3868 = vunpack.c.h.b16 %v2744
        %v3869 = vpack.c.b16 %v3863, %v3861
        %v3870 = vpack.c.b16 %v3864, %v3862
        %v3871 = vpack.c.b16 %v3867, %v3865
        %v3872 = vpack.c.b16 %v3868, %v3866
        %v3878 = vsel %vm2756, %v3856, 0
        %3880 = vmatprep.subr.bf16.mxu0 %v3870
        %3881 = vmatpush1.bf16.msra.mxu0 %v3869
        %3882 = vmatprep.subr.bf16.mxu0 %v3872
        %3883 = vmatpush1.bf16.msra.mxu0 %v3871
        %3884 = vmatprep.subr.bf16.mxu0 0
        %3885 = vmatpush1.bf16.msra.mxu0 0
        %3886 = vmatprep.subr.bf16.mxu0 0
        %3887 = vmatpush1.bf16.msra.mxu0 0
        %3888 = vmatprep.subr.bf16.mxu0 0
        %3889 = vmatpush1.bf16.msra.mxu0 0
        %3890 = vmatprep.subr.bf16.mxu0 0
        %3891 = vmatpush1.bf16.msra.mxu0 0
        %3892 = vmatprep.subr.bf16.mxu0 0
        %3893 = vmatpush1.bf16.msra.mxu0 0
        %3894 = vmatprep.subr.bf16.mxu0 0
        %3895 = vmatpush1.bf16.msra.mxu0 0
        %3896 = vmatprep.subr.bf16.mxu0 0
        %3897 = vmatpush1.bf16.msra.mxu0 0
        %3898 = vmatprep.subr.bf16.mxu0 0
        %3899 = vmatpush1.bf16.msra.mxu0 0
        %3900 = vmatprep.subr.bf16.mxu0 0
        %3901 = vmatpush1.bf16.msra.mxu0 0
        %3902 = vmatprep.subr.bf16.mxu0 0
        %3903 = vmatpush1.bf16.msra.mxu0 0
        %3904 = vmatprep.subr.bf16.mxu0 0
        %3905 = vmatpush1.bf16.msra.mxu0 0
        %3906 = vmatprep.subr.bf16.mxu0 0
        %3907 = vmatpush1.bf16.msra.mxu0 0
        %3908 = vmatprep.subr.bf16.mxu0 0
        %3909 = vmatpush1.bf16.msra.mxu0 0
        %3910 = vmatprep.subr.bf16.mxu0 0
        %3911 = vmatpush1.bf16.msra.mxu0 0
        %3912 = vmatprep.mubr.bf16.mxu0 0
        %3913 = vmatmul.mubr.bf16.gmra.mrb[0].mxu0 %v3878
        %v3914 = vpop.f32.mrb[0].mxu0
        %v3915 = vadd.f32 0.0, %v3914
        %v3916 = vpop.f32.mrb[0].mxu0
        %v3917 = vadd.f32 0.0, %v3916
        %v3918 = vpop.f32.mrb[0].mxu0
        %v3919 = vadd.f32 0.0, %v3918
        %v3920 = vpop.f32.mrb[0].mxu0
        %v3921 = vadd.f32 0.0, %v3920
        %3922 = vdwg.mxu0
        %v3923 = vadd.f32 %v3724, %v3915
        %v3924 = vadd.f32 %v3725, %v3917
        %v3925 = vadd.f32 %v3726, %v3919
        %v3926 = vadd.f32 %v3727, %v3921
        %3927 = vrot.lane.b32.xlu0 %v3536, 64
        %v3928 = vpop.permute.xlu0 %3927
        %3929 = vrot.lane.b32.xlu0 %v3537, 64
        %v3930 = vpop.permute.xlu0 %3929
        %v3932 = vsel %vm2756, %v3928, 0
        %v3935 = vsel %vm2756, %v3930, 0
        %3937 = vmatprep.subr.bf16.mxu0 0
        %3938 = vmatpush1.bf16.xpose.msra.mxu0 %v3935
        %3939 = vmatprep.subr.bf16.mxu0 0
        %3940 = vmatpush1.bf16.xpose.msra.mxu0 0
        %3941 = vmatprep.subr.bf16.mxu0 0
        %3942 = vmatpush1.bf16.xpose.msra.mxu0 0
        %3943 = vmatprep.subr.bf16.mxu0 0
        %3944 = vmatpush1.bf16.xpose.msra.mxu0 0
        %3945 = vmatprep.subr.bf16.mxu0 0
        %3946 = vmatpush1.bf16.xpose.msra.mxu0 0
        %3947 = vmatprep.subr.bf16.mxu0 0
        %3948 = vmatpush1.bf16.xpose.msra.mxu0 0
        %3949 = vmatprep.subr.bf16.mxu0 0
        %3950 = vmatpush1.bf16.xpose.msra.mxu0 0
        %3951 = vmatprep.subr.bf16.mxu0 0
        %3952 = vmatpush1.bf16.xpose.msra.mxu0 0
        %3953 = vmatprep.subr.bf16.mxu0 0
        %3954 = vmatpush1.bf16.xpose.msra.mxu0 0
        %3955 = vmatprep.subr.bf16.mxu0 0
        %3956 = vmatpush1.bf16.xpose.msra.mxu0 0
        %3957 = vmatprep.subr.bf16.mxu0 0
        %3958 = vmatpush1.bf16.xpose.msra.mxu0 0
        %3959 = vmatprep.subr.bf16.mxu0 0
        %3960 = vmatpush1.bf16.xpose.msra.mxu0 0
        %3961 = vmatprep.subr.bf16.mxu0 0
        %3962 = vmatpush1.bf16.xpose.msra.mxu0 0
        %3963 = vmatprep.subr.bf16.mxu0 0
        %3964 = vmatpush1.bf16.xpose.msra.mxu0 0
        %3965 = vmatprep.subr.bf16.mxu0 0
        %3966 = vmatpush1.bf16.xpose.msra.mxu0 0
        %3967 = vmatprep.subr.bf16.mxu0 0
        %3968 = vmatpush1.bf16.xpose.msra.mxu0 0
        %3969 = vmatprep.mubr.bf16.mxu0 0
        %3970 = vmatmul.mubr.bf16.gmra.mrb[0].mxu0 %v3932
        %v3971 = vpop.f32.mrb[0].mxu0
        %v3972 = vadd.f32 0.0, %v3971
        %v3973 = vpop.f32.mrb[0].mxu0
        %v3974 = vpop.f32.mrb[0].mxu0
        %v3975 = vadd.f32 0.0, %v3974
        %v3976 = vpop.f32.mrb[0].mxu0
        %3977 = vdwg.mxu0
        %v3978 = vmul.f32 %v3972, 0.17677669
        %v3979 = vmul.f32 %v3975, 0.17677669
        %v3980 = vadd.f32 %v3978, %v2810
        %v3981 = vadd.f32 %v3979, %v2810
        %v3982 = vsel %vm2814, %v3980, -inf
        %3983 = vmax.xlane.f32.xlu0 %v3982
        %v3984 = vpop.xlane.xlu0 %3983
        %v3985 = vsel %vm2814, %v3981, -inf
        %3986 = vmax.xlane.f32.xlu0 %v3985
        %v3987 = vpop.xlane.xlu0 %3986
        %v3988 = vsub.f32 %v3980, %v3984
        %v3989 = vsub.f32 %v3981, %v3987
        %v3990 = vmul.f32 %v3988, 1.442695
        %v3991 = vpow.pop %v3990
        %v3992 = vmul.f32 %v3989, 1.442695
        %v3993 = vpow.pop %v3992
        %v3994 = vsel %vm2814, %v3991, 0.0
        %3995 = vadd.xlane.f32.xlu0 %v3994
        %v3996 = vpop.xlane.xlu0 %3995
        %v3997 = vsel %vm2814, %v3993, 0.0
        %3998 = vadd.xlane.f32.xlu0 %v3997
        %v3999 = vpop.xlane.xlu0 %3998
        %v4000 = vrcp.pop %v3996
        %v4001 = vmul.f32 %v3991, %v4000
        %v4002 = vrcp.pop %v3999
        %v4003 = vmul.f32 %v3993, %v4002
        %v4004 = vpack.c.bf16 %v4003, %v4001
        %4005 = vrot.lane.b32.xlu0 %v3538, 64
        %v4006 = vpop.permute.xlu0 %4005
        %v4009 = vsel %vm2814, %v4004, 0
        %4011 = vmatprep.subr.bf16.mxu0 0
        %4012 = vmatpush1.bf16.msra.mxu0 %v4006
        %4013 = vmatprep.subr.bf16.mxu0 0
        %4014 = vmatpush1.bf16.msra.mxu0 0
        %4015 = vmatprep.subr.bf16.mxu0 0
        %4016 = vmatpush1.bf16.msra.mxu0 0
        %4017 = vmatprep.subr.bf16.mxu0 0
        %4018 = vmatpush1.bf16.msra.mxu0 0
        %4019 = vmatprep.subr.bf16.mxu0 0
        %4020 = vmatpush1.bf16.msra.mxu0 0
        %4021 = vmatprep.subr.bf16.mxu0 0
        %4022 = vmatpush1.bf16.msra.mxu0 0
        %4023 = vmatprep.subr.bf16.mxu0 0
        %4024 = vmatpush1.bf16.msra.mxu0 0
        %4025 = vmatprep.subr.bf16.mxu0 0
        %4026 = vmatpush1.bf16.msra.mxu0 0
        %4027 = vmatprep.subr.bf16.mxu0 0
        %4028 = vmatpush1.bf16.msra.mxu0 0
        %4029 = vmatprep.subr.bf16.mxu0 0
        %4030 = vmatpush1.bf16.msra.mxu0 0
        %4031 = vmatprep.subr.bf16.mxu0 0
        %4032 = vmatpush1.bf16.msra.mxu0 0
        %4033 = vmatprep.subr.bf16.mxu0 0
        %4034 = vmatpush1.bf16.msra.mxu0 0
        %4035 = vmatprep.subr.bf16.mxu0 0
        %4036 = vmatpush1.bf16.msra.mxu0 0
        %4037 = vmatprep.subr.bf16.mxu0 0
        %4038 = vmatpush1.bf16.msra.mxu0 0
        %4039 = vmatprep.subr.bf16.mxu0 0
        %4040 = vmatpush1.bf16.msra.mxu0 0
        %4041 = vmatprep.subr.bf16.mxu0 0
        %4042 = vmatpush1.bf16.msra.mxu0 0
        %4043 = vmatprep.mubr.bf16.mxu0 0
        %4044 = vmatmul.mubr.bf16.gmra.mrb[0].mxu0 %v4009
        %v4045 = vpop.f32.mrb[0].mxu0
        %v4046 = vadd.f32 0.0, %v4045
        %v4047 = vpop.f32.mrb[0].mxu0
        %v4048 = vpop.f32.mrb[0].mxu0
        %v4049 = vadd.f32 0.0, %v4048
        %v4050 = vpop.f32.mrb[0].mxu0
        %4051 = vdwg.mxu0
        %v4052 = vpack.c.bf16 %v4049, %v4046
        %v4057 = vunpack.c.l.b16 %v2745
        %v4058 = vunpack.c.h.b16 %v2745
        %v4059 = vunpack.c.l.b16 %v2746
        %v4060 = vunpack.c.h.b16 %v2746
        %v4061 = vunpack.c.l.b16 %v2747
        %v4062 = vunpack.c.h.b16 %v2747
        %v4063 = vunpack.c.l.b16 %v2748
        %v4064 = vunpack.c.h.b16 %v2748
        %v4065 = vpack.c.b16 %v4059, %v4057
        %v4066 = vpack.c.b16 %v4060, %v4058
        %v4067 = vpack.c.b16 %v4063, %v4061
        %v4068 = vpack.c.b16 %v4064, %v4062
        %v4074 = vsel %vm2756, %v4052, 0
        %4076 = vmatprep.subr.bf16.mxu0 %v4066
        %4077 = vmatpush1.bf16.msra.mxu0 %v4065
        %4078 = vmatprep.subr.bf16.mxu0 %v4068
        %4079 = vmatpush1.bf16.msra.mxu0 %v4067
        %4080 = vmatprep.subr.bf16.mxu0 0
        %4081 = vmatpush1.bf16.msra.mxu0 0
        %4082 = vmatprep.subr.bf16.mxu0 0
        %4083 = vmatpush1.bf16.msra.mxu0 0
        %4084 = vmatprep.subr.bf16.mxu0 0
        %4085 = vmatpush1.bf16.msra.mxu0 0
        %4086 = vmatprep.subr.bf16.mxu0 0
        %4087 = vmatpush1.bf16.msra.mxu0 0
        %4088 = vmatprep.subr.bf16.mxu0 0
        %4089 = vmatpush1.bf16.msra.mxu0 0
        %4090 = vmatprep.subr.bf16.mxu0 0
        %4091 = vmatpush1.bf16.msra.mxu0 0
        %4092 = vmatprep.subr.bf16.mxu0 0
        %4093 = vmatpush1.bf16.msra.mxu0 0
        %4094 = vmatprep.subr.bf16.mxu0 0
        %4095 = vmatpush1.bf16.msra.mxu0 0
        %4096 = vmatprep.subr.bf16.mxu0 0
        %4097 = vmatpush1.bf16.msra.mxu0 0
        %4098 = vmatprep.subr.bf16.mxu0 0
        %4099 = vmatpush1.bf16.msra.mxu0 0
        %4100 = vmatprep.subr.bf16.mxu0 0
        %4101 = vmatpush1.bf16.msra.mxu0 0
        %4102 = vmatprep.subr.bf16.mxu0 0
        %4103 = vmatpush1.bf16.msra.mxu0 0
        %4104 = vmatprep.subr.bf16.mxu0 0
        %4105 = vmatpush1.bf16.msra.mxu0 0
        %4106 = vmatprep.subr.bf16.mxu0 0
        %4107 = vmatpush1.bf16.msra.mxu0 0
        %4108 = vmatprep.mubr.bf16.mxu0 0
        %4109 = vmatmul.mubr.bf16.gmra.mrb[0].mxu0 %v4074
        %v4110 = vpop.f32.mrb[0].mxu0
        %v4111 = vadd.f32 0.0, %v4110
        %v4112 = vpop.f32.mrb[0].mxu0
        %v4113 = vadd.f32 0.0, %v4112
        %v4114 = vpop.f32.mrb[0].mxu0
        %v4115 = vadd.f32 0.0, %v4114
        %v4116 = vpop.f32.mrb[0].mxu0
        %v4117 = vadd.f32 0.0, %v4116
        %4118 = vdwg.mxu0
        %v4119 = vadd.f32 %v3923, %v4111
        %v4120 = vadd.f32 %v3924, %v4113
        %v4121 = vadd.f32 %v3925, %v4115
        %v4122 = vadd.f32 %v3926, %v4117
        %4123 = vrot.lane.b32.xlu0 %v3536, 32
        %v4124 = vpop.permute.xlu0 %4123
        %4125 = vrot.lane.b32.xlu0 %v3537, 32
        %v4126 = vpop.permute.xlu0 %4125
        %v4128 = vsel %vm2756, %v4124, 0
        %v4131 = vsel %vm2756, %v4126, 0
        %4133 = vmatprep.subr.bf16.mxu0 0
        %4134 = vmatpush1.bf16.xpose.msra.mxu0 %v4131
        %4135 = vmatprep.subr.bf16.mxu0 0
        %4136 = vmatpush1.bf16.xpose.msra.mxu0 0
        %4137 = vmatprep.subr.bf16.mxu0 0
        %4138 = vmatpush1.bf16.xpose.msra.mxu0 0
        %4139 = vmatprep.subr.bf16.mxu0 0
        %4140 = vmatpush1.bf16.xpose.msra.mxu0 0
        %4141 = vmatprep.subr.bf16.mxu0 0
        %4142 = vmatpush1.bf16.xpose.msra.mxu0 0
        %4143 = vmatprep.subr.bf16.mxu0 0
        %4144 = vmatpush1.bf16.xpose.msra.mxu0 0
        %4145 = vmatprep.subr.bf16.mxu0 0
        %4146 = vmatpush1.bf16.xpose.msra.mxu0 0
        %4147 = vmatprep.subr.bf16.mxu0 0
        %4148 = vmatpush1.bf16.xpose.msra.mxu0 0
        %4149 = vmatprep.subr.bf16.mxu0 0
        %4150 = vmatpush1.bf16.xpose.msra.mxu0 0
        %4151 = vmatprep.subr.bf16.mxu0 0
        %4152 = vmatpush1.bf16.xpose.msra.mxu0 0
        %4153 = vmatprep.subr.bf16.mxu0 0
        %4154 = vmatpush1.bf16.xpose.msra.mxu0 0
        %4155 = vmatprep.subr.bf16.mxu0 0
        %4156 = vmatpush1.bf16.xpose.msra.mxu0 0
        %4157 = vmatprep.subr.bf16.mxu0 0
        %4158 = vmatpush1.bf16.xpose.msra.mxu0 0
        %4159 = vmatprep.subr.bf16.mxu0 0
        %4160 = vmatpush1.bf16.xpose.msra.mxu0 0
        %4161 = vmatprep.subr.bf16.mxu0 0
        %4162 = vmatpush1.bf16.xpose.msra.mxu0 0
        %4163 = vmatprep.subr.bf16.mxu0 0
        %4164 = vmatpush1.bf16.xpose.msra.mxu0 0
        %4165 = vmatprep.mubr.bf16.mxu0 0
        %4166 = vmatmul.mubr.bf16.gmra.mrb[0].mxu0 %v4128
        %v4167 = vpop.f32.mrb[0].mxu0
        %v4168 = vadd.f32 0.0, %v4167
        %v4169 = vpop.f32.mrb[0].mxu0
        %v4170 = vpop.f32.mrb[0].mxu0
        %v4171 = vadd.f32 0.0, %v4170
        %v4172 = vpop.f32.mrb[0].mxu0
        %4173 = vdwg.mxu0
        %v4174 = vmul.f32 %v4168, 0.17677669
        %v4175 = vmul.f32 %v4171, 0.17677669
        %v4176 = vadd.f32 %v4174, %v2810
        %v4177 = vadd.f32 %v4175, %v2810
        %v4178 = vsel %vm2814, %v4176, -inf
        %4179 = vmax.xlane.f32.xlu0 %v4178
        %v4180 = vpop.xlane.xlu0 %4179
        %v4181 = vsel %vm2814, %v4177, -inf
        %4182 = vmax.xlane.f32.xlu0 %v4181
        %v4183 = vpop.xlane.xlu0 %4182
        %v4184 = vsub.f32 %v4176, %v4180
        %v4185 = vsub.f32 %v4177, %v4183
        %v4186 = vmul.f32 %v4184, 1.442695
        %v4187 = vpow.pop %v4186
        %v4188 = vmul.f32 %v4185, 1.442695
        %v4189 = vpow.pop %v4188
        %v4190 = vsel %vm2814, %v4187, 0.0
        %4191 = vadd.xlane.f32.xlu0 %v4190
        %v4192 = vpop.xlane.xlu0 %4191
        %v4193 = vsel %vm2814, %v4189, 0.0
        %4194 = vadd.xlane.f32.xlu0 %v4193
        %v4195 = vpop.xlane.xlu0 %4194
        %v4196 = vrcp.pop %v4192
        %v4197 = vmul.f32 %v4187, %v4196
        %v4198 = vrcp.pop %v4195
        %v4199 = vmul.f32 %v4189, %v4198
        %v4200 = vpack.c.bf16 %v4199, %v4197
        %4201 = vrot.lane.b32.xlu0 %v3538, 32
        %v4202 = vpop.permute.xlu0 %4201
        %v4205 = vsel %vm2814, %v4200, 0
        %4207 = vmatprep.subr.bf16.mxu0 0
        %4208 = vmatpush1.bf16.msra.mxu0 %v4202
        %4209 = vmatprep.subr.bf16.mxu0 0
        %4210 = vmatpush1.bf16.msra.mxu0 0
        %4211 = vmatprep.subr.bf16.mxu0 0
        %4212 = vmatpush1.bf16.msra.mxu0 0
        %4213 = vmatprep.subr.bf16.mxu0 0
        %4214 = vmatpush1.bf16.msra.mxu0 0
        %4215 = vmatprep.subr.bf16.mxu0 0
        %4216 = vmatpush1.bf16.msra.mxu0 0
        %4217 = vmatprep.subr.bf16.mxu0 0
        %4218 = vmatpush1.bf16.msra.mxu0 0
        %4219 = vmatprep.subr.bf16.mxu0 0
        %4220 = vmatpush1.bf16.msra.mxu0 0
        %4221 = vmatprep.subr.bf16.mxu0 0
        %4222 = vmatpush1.bf16.msra.mxu0 0
        %4223 = vmatprep.subr.bf16.mxu0 0
        %4224 = vmatpush1.bf16.msra.mxu0 0
        %4225 = vmatprep.subr.bf16.mxu0 0
        %4226 = vmatpush1.bf16.msra.mxu0 0
        %4227 = vmatprep.subr.bf16.mxu0 0
        %4228 = vmatpush1.bf16.msra.mxu0 0
        %4229 = vmatprep.subr.bf16.mxu0 0
        %4230 = vmatpush1.bf16.msra.mxu0 0
        %4231 = vmatprep.subr.bf16.mxu0 0
        %4232 = vmatpush1.bf16.msra.mxu0 0
        %4233 = vmatprep.subr.bf16.mxu0 0
        %4234 = vmatpush1.bf16.msra.mxu0 0
        %4235 = vmatprep.subr.bf16.mxu0 0
        %4236 = vmatpush1.bf16.msra.mxu0 0
        %4237 = vmatprep.subr.bf16.mxu0 0
        %4238 = vmatpush1.bf16.msra.mxu0 0
        %4239 = vmatprep.mubr.bf16.mxu0 0
        %4240 = vmatmul.mubr.bf16.gmra.mrb[0].mxu0 %v4205
        %v4241 = vpop.f32.mrb[0].mxu0
        %v4242 = vadd.f32 0.0, %v4241
        %v4243 = vpop.f32.mrb[0].mxu0
        %v4244 = vpop.f32.mrb[0].mxu0
        %v4245 = vadd.f32 0.0, %v4244
        %v4246 = vpop.f32.mrb[0].mxu0
        %4247 = vdwg.mxu0
        %v4248 = vpack.c.bf16 %v4245, %v4242
        %v4253 = vunpack.c.l.b16 %v2749
        %v4254 = vunpack.c.h.b16 %v2749
        %v4255 = vunpack.c.l.b16 %v2750
        %v4256 = vunpack.c.h.b16 %v2750
        %v4257 = vunpack.c.l.b16 %v2751
        %v4258 = vunpack.c.h.b16 %v2751
        %v4259 = vunpack.c.l.b16 %v2752
        %v4260 = vunpack.c.h.b16 %v2752
        %v4261 = vpack.c.b16 %v4255, %v4253
        %v4262 = vpack.c.b16 %v4256, %v4254
        %v4263 = vpack.c.b16 %v4259, %v4257
        %v4264 = vpack.c.b16 %v4260, %v4258
        %v4270 = vsel %vm2756, %v4248, 0
        %4272 = vmatprep.subr.bf16.mxu0 %v4262
        %4273 = vmatpush1.bf16.msra.mxu0 %v4261
        %4274 = vmatprep.subr.bf16.mxu0 %v4264
        %4275 = vmatpush1.bf16.msra.mxu0 %v4263
        %4276 = vmatprep.subr.bf16.mxu0 0
        %4277 = vmatpush1.bf16.msra.mxu0 0
        %4278 = vmatprep.subr.bf16.mxu0 0
        %4279 = vmatpush1.bf16.msra.mxu0 0
        %4280 = vmatprep.subr.bf16.mxu0 0
        %4281 = vmatpush1.bf16.msra.mxu0 0
        %4282 = vmatprep.subr.bf16.mxu0 0
        %4283 = vmatpush1.bf16.msra.mxu0 0
        %4284 = vmatprep.subr.bf16.mxu0 0
        %4285 = vmatpush1.bf16.msra.mxu0 0
        %4286 = vmatprep.subr.bf16.mxu0 0
        %4287 = vmatpush1.bf16.msra.mxu0 0
        %4288 = vmatprep.subr.bf16.mxu0 0
        %4289 = vmatpush1.bf16.msra.mxu0 0
        %4290 = vmatprep.subr.bf16.mxu0 0
        %4291 = vmatpush1.bf16.msra.mxu0 0
        %4292 = vmatprep.subr.bf16.mxu0 0
        %4293 = vmatpush1.bf16.msra.mxu0 0
        %4294 = vmatprep.subr.bf16.mxu0 0
        %4295 = vmatpush1.bf16.msra.mxu0 0
        %4296 = vmatprep.subr.bf16.mxu0 0
        %4297 = vmatpush1.bf16.msra.mxu0 0
        %4298 = vmatprep.subr.bf16.mxu0 0
        %4299 = vmatpush1.bf16.msra.mxu0 0
        %4300 = vmatprep.subr.bf16.mxu0 0
        %4301 = vmatpush1.bf16.msra.mxu0 0
        %4302 = vmatprep.subr.bf16.mxu0 0
        %4303 = vmatpush1.bf16.msra.mxu0 0
        %4304 = vmatprep.mubr.bf16.mxu0 0
        %4305 = vmatmul.mubr.bf16.gmra.mrb[0].mxu0 %v4270
        %v4306 = vpop.f32.mrb[0].mxu0
        %v4307 = vadd.f32 0.0, %v4306
        %v4308 = vpop.f32.mrb[0].mxu0
        %v4309 = vadd.f32 0.0, %v4308
        %v4310 = vpop.f32.mrb[0].mxu0
        %v4311 = vadd.f32 0.0, %v4310
        %v4312 = vpop.f32.mrb[0].mxu0
        %v4313 = vadd.f32 0.0, %v4312
        %4314 = vdwg.mxu0
        %v4315 = vadd.f32 %v4119, %v4307
        %v4316 = vadd.f32 %v4120, %v4309
        %v4317 = vadd.f32 %v4121, %v4311
        %v4318 = vadd.f32 %v4122, %v4313
        %v4319 = vld [vmem:[#allocation13] sm:$0x3]
        %v4321 = vlaneseq
        %v4322 = vshrl.u32 %v4321, 7
        %v4323 = vsub.s32 0, %v4322
        %v4324 = vrot.slane %v4319, %v4323
        %v4325 = vlaneseq
        %v4326 = vshrl.u32 %v4325, 7
        %v4327 = vsub.s32 1, %v4326
        %v4328 = vrot.slane %v4319, %v4327
        %v4331 = vadd.f32 %v4315, %v4324
        %v4332 = vadd.f32 %v4316, %v4328
        %v4333 = vadd.f32 %v4317, %v4324
        %v4334 = vadd.f32 %v4318, %v4328
        %v4335 = vadd.f32 %v1018, %v4331
        %v4336 = vadd.f32 %v1019, %v4332
        %v4337 = vadd.f32 %v1020, %v4333
        %v4338 = vadd.f32 %v1021, %v4334
        %v4339 = vld [vmem:[#allocation14] sm:$0x3]
        %v4340 = vld [vmem:[#allocation16] sm:$0x3]
        %v4341 = vadd.f32 %v4335, %v4336
        %4342 = vadd.xlane.f32.xlu0 %v4341
        %v4343 = vpop.xlane.xlu0 %4342
        %v4344 = vadd.f32 %v4337, %v4338
        %4345 = vadd.xlane.f32.xlu0 %v4344
        %v4346 = vpop.xlane.xlu0 %4345
        %v4347 = vrcp.pop 256.0
        %v4348 = vmul.f32 %v4343, %v4347
        %v4349 = vmul.f32 %v4346, %v4347
        %v4350 = vsub.f32 %v4335, %v4348
        %v4351 = vsub.f32 %v4336, %v4348
        %v4352 = vsub.f32 %v4337, %v4349
        %v4353 = vsub.f32 %v4338, %v4349
        %v4354 = vmul.f32 %v4350, %v4350
        %v4355 = vmul.f32 %v4351, %v4351
        %v4356 = vmul.f32 %v4352, %v4352
        %v4357 = vmul.f32 %v4353, %v4353
        %v4358 = vadd.f32 %v4354, %v4355
        %4359 = vadd.xlane.f32.xlu0 %v4358
        %v4360 = vpop.xlane.xlu0 %4359
        %v4361 = vadd.f32 %v4356, %v4357
        %4362 = vadd.xlane.f32.xlu0 %v4361
        %v4363 = vpop.xlane.xlu0 %4362
        %v4364 = vmul.f32 %v4360, %v4347
        %v4365 = vmul.f32 %v4363, %v4347
        %v4366 = vadd.f32 %v4364, 1e-05
        %v4367 = vadd.f32 %v4365, 1e-05
        %v4368 = vrsqrt.pop %v4366
        %v4369 = vrsqrt.pop %v4367
        %v4370 = vmul.f32 %v4350, %v4368
        %v4371 = vmul.f32 %v4351, %v4368
        %v4372 = vmul.f32 %v4352, %v4369
        %v4373 = vmul.f32 %v4353, %v4369
        %v4375 = vlaneseq
        %v4376 = vshrl.u32 %v4375, 7
        %v4377 = vsub.s32 0, %v4376
        %v4378 = vrot.slane %v4339, %v4377
        %v4379 = vlaneseq
        %v4380 = vshrl.u32 %v4379, 7
        %v4381 = vsub.s32 1, %v4380
        %v4382 = vrot.slane %v4339, %v4381
        %v4385 = vmul.f32 %v4370, %v4378
        %v4386 = vmul.f32 %v4371, %v4382
        %v4387 = vmul.f32 %v4372, %v4378
        %v4388 = vmul.f32 %v4373, %v4382
        %v4390 = vlaneseq
        %v4391 = vshrl.u32 %v4390, 7
        %v4392 = vsub.s32 0, %v4391
        %v4393 = vrot.slane %v4340, %v4392
        %v4394 = vlaneseq
        %v4395 = vshrl.u32 %v4394, 7
        %v4396 = vsub.s32 1, %v4395
        %v4397 = vrot.slane %v4340, %v4396
        %v4400 = vadd.f32 %v4385, %v4393
        %v4401 = vadd.f32 %v4386, %v4397
        %v4402 = vadd.f32 %v4387, %v4393
        %v4403 = vadd.f32 %v4388, %v4397
        %v4404 = vpack.c.bf16 %v4402, %v4400
        %v4405 = vpack.c.bf16 %v4403, %v4401
        %v4406 = vld [vmem:[%s19] sm:$0xff]
        %v4407 = vld [vmem:[%s19 + $0x8] sm:$0xff]
        %v4408 = vld [vmem:[%s19 + $0x10] sm:$0xff]
        %v4409 = vld [vmem:[%s19 + $0x18] sm:$0xff]
        %v4410 = vld [vmem:[%s19 + $0x20] sm:$0xff]
        %v4411 = vld [vmem:[%s19 + $0x28] sm:$0xff]
        %v4412 = vld [vmem:[%s19 + $0x30] sm:$0xff]
        %v4413 = vld [vmem:[%s19 + $0x38] sm:$0xff]
        %v4414 = vld [vmem:[%s19 + $0x40] sm:$0xff]
        %v4415 = vld [vmem:[%s19 + $0x48] sm:$0xff]
        %v4416 = vld [vmem:[%s19 + $0x50] sm:$0xff]
        %v4417 = vld [vmem:[%s19 + $0x58] sm:$0xff]
        %v4418 = vld [vmem:[%s19 + $0x60] sm:$0xff]
        %v4419 = vld [vmem:[%s19 + $0x68] sm:$0xff]
        %v4420 = vld [vmem:[%s19 + $0x70] sm:$0xff]
        %v4421 = vld [vmem:[%s19 + $0x78] sm:$0xff]
        %v4422 = vld [vmem:[%s19 + $0x80] sm:$0xff]
        %v4423 = vld [vmem:[%s19 + $0x88] sm:$0xff]
        %v4424 = vld [vmem:[%s19 + $0x90] sm:$0xff]
        %v4425 = vld [vmem:[%s19 + $0x98] sm:$0xff]
        %v4426 = vld [vmem:[%s19 + $0xa0] sm:$0xff]
        %v4427 = vld [vmem:[%s19 + $0xa8] sm:$0xff]
        %v4428 = vld [vmem:[%s19 + $0xb0] sm:$0xff]
        %v4429 = vld [vmem:[%s19 + $0xb8] sm:$0xff]
        %v4430 = vld [vmem:[%s19 + $0xc0] sm:$0xff]
        %v4431 = vld [vmem:[%s19 + $0xc8] sm:$0xff]
        %v4432 = vld [vmem:[%s19 + $0xd0] sm:$0xff]
        %v4433 = vld [vmem:[%s19 + $0xd8] sm:$0xff]
        %v4434 = vld [vmem:[%s19 + $0xe0] sm:$0xff]
        %v4435 = vld [vmem:[%s19 + $0xe8] sm:$0xff]
        %v4436 = vld [vmem:[%s19 + $0xf0] sm:$0xff]
        %v4437 = vld [vmem:[%s19 + $0xf8] sm:$0xff]
        %v4438 = vld [vmem:[%s19 + $0x100] sm:$0xff]
        %v4439 = vld [vmem:[%s19 + $0x108] sm:$0xff]
        %v4440 = vld [vmem:[%s19 + $0x110] sm:$0xff]
        %v4441 = vld [vmem:[%s19 + $0x118] sm:$0xff]
        %v4442 = vld [vmem:[%s19 + $0x120] sm:$0xff]
        %v4443 = vld [vmem:[%s19 + $0x128] sm:$0xff]
        %v4444 = vld [vmem:[%s19 + $0x130] sm:$0xff]
        %v4445 = vld [vmem:[%s19 + $0x138] sm:$0xff]
        %v4446 = vld [vmem:[%s19 + $0x140] sm:$0xff]
        %v4447 = vld [vmem:[%s19 + $0x148] sm:$0xff]
        %v4448 = vld [vmem:[%s19 + $0x150] sm:$0xff]
        %v4449 = vld [vmem:[%s19 + $0x158] sm:$0xff]
        %v4450 = vld [vmem:[%s19 + $0x160] sm:$0xff]
        %v4451 = vld [vmem:[%s19 + $0x168] sm:$0xff]
        %v4452 = vld [vmem:[%s19 + $0x170] sm:$0xff]
        %v4453 = vld [vmem:[%s19 + $0x178] sm:$0xff]
        %v4454 = vld [vmem:[%s19 + $0x180] sm:$0xff]
        %v4455 = vld [vmem:[%s19 + $0x188] sm:$0xff]
        %v4456 = vld [vmem:[%s19 + $0x190] sm:$0xff]
        %v4457 = vld [vmem:[%s19 + $0x198] sm:$0xff]
        %v4458 = vld [vmem:[%s19 + $0x1a0] sm:$0xff]
        %v4459 = vld [vmem:[%s19 + $0x1a8] sm:$0xff]
        %v4460 = vld [vmem:[%s19 + $0x1b0] sm:$0xff]
        %v4461 = vld [vmem:[%s19 + $0x1b8] sm:$0xff]
        %v4462 = vld [vmem:[%s19 + $0x1c0] sm:$0xff]
        %v4463 = vld [vmem:[%s19 + $0x1c8] sm:$0xff]
        %v4464 = vld [vmem:[%s19 + $0x1d0] sm:$0xff]
        %v4465 = vld [vmem:[%s19 + $0x1d8] sm:$0xff]
        %v4466 = vld [vmem:[%s19 + $0x1e0] sm:$0xff]
        %v4467 = vld [vmem:[%s19 + $0x1e8] sm:$0xff]
        %v4468 = vld [vmem:[%s19 + $0x1f0] sm:$0xff]
        %v4469 = vld [vmem:[%s19 + $0x1f8] sm:$0xff]
        %v4470 = vld [vmem:[#allocation17] sm:$0xf]
        %v4472 = vlaneseq
        %v4473 = vshrl.u32 %v4472, 7
        %v4474 = vsub.s32 0, %v4473
        %v4475 = vrot.slane %v4470, %v4474
        %v4476 = vlaneseq
        %v4477 = vshrl.u32 %v4476, 7
        %v4478 = vsub.s32 1, %v4477
        %v4479 = vrot.slane %v4470, %v4478
        %v4480 = vlaneseq
        %v4481 = vshrl.u32 %v4480, 7
        %v4482 = vsub.s32 2, %v4481
        %v4483 = vrot.slane %v4470, %v4482
        %v4484 = vlaneseq
        %v4485 = vshrl.u32 %v4484, 7
        %v4486 = vsub.s32 3, %v4485
        %v4487 = vrot.slane %v4470, %v4486
        %v4556 = vunpack.c.l.b16 %v4406
        %v4557 = vunpack.c.h.b16 %v4406
        %v4558 = vunpack.c.l.b16 %v4407
        %v4559 = vunpack.c.h.b16 %v4407
        %v4560 = vunpack.c.l.b16 %v4408
        %v4561 = vunpack.c.h.b16 %v4408
        %v4562 = vunpack.c.l.b16 %v4409
        %v4563 = vunpack.c.h.b16 %v4409
        %v4564 = vunpack.c.l.b16 %v4410
        %v4565 = vunpack.c.h.b16 %v4410
        %v4566 = vunpack.c.l.b16 %v4411
        %v4567 = vunpack.c.h.b16 %v4411
        %v4568 = vunpack.c.l.b16 %v4412
        %v4569 = vunpack.c.h.b16 %v4412
        %v4570 = vunpack.c.l.b16 %v4413
        %v4571 = vunpack.c.h.b16 %v4413
        %v4572 = vunpack.c.l.b16 %v4414
        %v4573 = vunpack.c.h.b16 %v4414
        %v4574 = vunpack.c.l.b16 %v4415
        %v4575 = vunpack.c.h.b16 %v4415
        %v4576 = vunpack.c.l.b16 %v4416
        %v4577 = vunpack.c.h.b16 %v4416
        %v4578 = vunpack.c.l.b16 %v4417
        %v4579 = vunpack.c.h.b16 %v4417
        %v4580 = vunpack.c.l.b16 %v4418
        %v4581 = vunpack.c.h.b16 %v4418
        %v4582 = vunpack.c.l.b16 %v4419
        %v4583 = vunpack.c.h.b16 %v4419
        %v4584 = vunpack.c.l.b16 %v4420
        %v4585 = vunpack.c.h.b16 %v4420
        %v4586 = vunpack.c.l.b16 %v4421
        %v4587 = vunpack.c.h.b16 %v4421
        %v4588 = vunpack.c.l.b16 %v4422
        %v4589 = vunpack.c.h.b16 %v4422
        %v4590 = vunpack.c.l.b16 %v4423
        %v4591 = vunpack.c.h.b16 %v4423
        %v4592 = vunpack.c.l.b16 %v4424
        %v4593 = vunpack.c.h.b16 %v4424
        %v4594 = vunpack.c.l.b16 %v4425
        %v4595 = vunpack.c.h.b16 %v4425
        %v4596 = vunpack.c.l.b16 %v4426
        %v4597 = vunpack.c.h.b16 %v4426
        %v4598 = vunpack.c.l.b16 %v4427
        %v4599 = vunpack.c.h.b16 %v4427
        %v4600 = vunpack.c.l.b16 %v4428
        %v4601 = vunpack.c.h.b16 %v4428
        %v4602 = vunpack.c.l.b16 %v4429
        %v4603 = vunpack.c.h.b16 %v4429
        %v4604 = vunpack.c.l.b16 %v4430
        %v4605 = vunpack.c.h.b16 %v4430
        %v4606 = vunpack.c.l.b16 %v4431
        %v4607 = vunpack.c.h.b16 %v4431
        %v4608 = vunpack.c.l.b16 %v4432
        %v4609 = vunpack.c.h.b16 %v4432
        %v4610 = vunpack.c.l.b16 %v4433
        %v4611 = vunpack.c.h.b16 %v4433
        %v4612 = vunpack.c.l.b16 %v4434
        %v4613 = vunpack.c.h.b16 %v4434
        %v4614 = vunpack.c.l.b16 %v4435
        %v4615 = vunpack.c.h.b16 %v4435
        %v4616 = vunpack.c.l.b16 %v4436
        %v4617 = vunpack.c.h.b16 %v4436
        %v4618 = vunpack.c.l.b16 %v4437
        %v4619 = vunpack.c.h.b16 %v4437
        %v4620 = vunpack.c.l.b16 %v4438
        %v4621 = vunpack.c.h.b16 %v4438
        %v4622 = vunpack.c.l.b16 %v4439
        %v4623 = vunpack.c.h.b16 %v4439
        %v4624 = vunpack.c.l.b16 %v4440
        %v4625 = vunpack.c.h.b16 %v4440
        %v4626 = vunpack.c.l.b16 %v4441
        %v4627 = vunpack.c.h.b16 %v4441
        %v4628 = vunpack.c.l.b16 %v4442
        %v4629 = vunpack.c.h.b16 %v4442
        %v4630 = vunpack.c.l.b16 %v4443
        %v4631 = vunpack.c.h.b16 %v4443
        %v4632 = vunpack.c.l.b16 %v4444
        %v4633 = vunpack.c.h.b16 %v4444
        %v4634 = vunpack.c.l.b16 %v4445
        %v4635 = vunpack.c.h.b16 %v4445
        %v4636 = vunpack.c.l.b16 %v4446
        %v4637 = vunpack.c.h.b16 %v4446
        %v4638 = vunpack.c.l.b16 %v4447
        %v4639 = vunpack.c.h.b16 %v4447
        %v4640 = vunpack.c.l.b16 %v4448
        %v4641 = vunpack.c.h.b16 %v4448
        %v4642 = vunpack.c.l.b16 %v4449
        %v4643 = vunpack.c.h.b16 %v4449
        %v4644 = vunpack.c.l.b16 %v4450
        %v4645 = vunpack.c.h.b16 %v4450
        %v4646 = vunpack.c.l.b16 %v4451
        %v4647 = vunpack.c.h.b16 %v4451
        %v4648 = vunpack.c.l.b16 %v4452
        %v4649 = vunpack.c.h.b16 %v4452
        %v4650 = vunpack.c.l.b16 %v4453
        %v4651 = vunpack.c.h.b16 %v4453
        %v4652 = vunpack.c.l.b16 %v4454
        %v4653 = vunpack.c.h.b16 %v4454
        %v4654 = vunpack.c.l.b16 %v4455
        %v4655 = vunpack.c.h.b16 %v4455
        %v4656 = vunpack.c.l.b16 %v4456
        %v4657 = vunpack.c.h.b16 %v4456
        %v4658 = vunpack.c.l.b16 %v4457
        %v4659 = vunpack.c.h.b16 %v4457
        %v4660 = vunpack.c.l.b16 %v4458
        %v4661 = vunpack.c.h.b16 %v4458
        %v4662 = vunpack.c.l.b16 %v4459
        %v4663 = vunpack.c.h.b16 %v4459
        %v4664 = vunpack.c.l.b16 %v4460
        %v4665 = vunpack.c.h.b16 %v4460
        %v4666 = vunpack.c.l.b16 %v4461
        %v4667 = vunpack.c.h.b16 %v4461
        %v4668 = vunpack.c.l.b16 %v4462
        %v4669 = vunpack.c.h.b16 %v4462
        %v4670 = vunpack.c.l.b16 %v4463
        %v4671 = vunpack.c.h.b16 %v4463
        %v4672 = vunpack.c.l.b16 %v4464
        %v4673 = vunpack.c.h.b16 %v4464
        %v4674 = vunpack.c.l.b16 %v4465
        %v4675 = vunpack.c.h.b16 %v4465
        %v4676 = vunpack.c.l.b16 %v4466
        %v4677 = vunpack.c.h.b16 %v4466
        %v4678 = vunpack.c.l.b16 %v4467
        %v4679 = vunpack.c.h.b16 %v4467
        %v4680 = vunpack.c.l.b16 %v4468
        %v4681 = vunpack.c.h.b16 %v4468
        %v4682 = vunpack.c.l.b16 %v4469
        %v4683 = vunpack.c.h.b16 %v4469
        %v4684 = vpack.c.b16 %v4560, %v4556
        %v4685 = vpack.c.b16 %v4561, %v4557
        %v4686 = vpack.c.b16 %v4562, %v4558
        %v4687 = vpack.c.b16 %v4563, %v4559
        %v4688 = vpack.c.b16 %v4568, %v4564
        %v4689 = vpack.c.b16 %v4569, %v4565
        %v4690 = vpack.c.b16 %v4570, %v4566
        %v4691 = vpack.c.b16 %v4571, %v4567
        %v4692 = vpack.c.b16 %v4576, %v4572
        %v4693 = vpack.c.b16 %v4577, %v4573
        %v4694 = vpack.c.b16 %v4578, %v4574
        %v4695 = vpack.c.b16 %v4579, %v4575
        %v4696 = vpack.c.b16 %v4584, %v4580
        %v4697 = vpack.c.b16 %v4585, %v4581
        %v4698 = vpack.c.b16 %v4586, %v4582
        %v4699 = vpack.c.b16 %v4587, %v4583
        %v4700 = vpack.c.b16 %v4592, %v4588
        %v4701 = vpack.c.b16 %v4593, %v4589
        %v4702 = vpack.c.b16 %v4594, %v4590
        %v4703 = vpack.c.b16 %v4595, %v4591
        %v4704 = vpack.c.b16 %v4600, %v4596
        %v4705 = vpack.c.b16 %v4601, %v4597
        %v4706 = vpack.c.b16 %v4602, %v4598
        %v4707 = vpack.c.b16 %v4603, %v4599
        %v4708 = vpack.c.b16 %v4608, %v4604
        %v4709 = vpack.c.b16 %v4609, %v4605
        %v4710 = vpack.c.b16 %v4610, %v4606
        %v4711 = vpack.c.b16 %v4611, %v4607
        %v4712 = vpack.c.b16 %v4616, %v4612
        %v4713 = vpack.c.b16 %v4617, %v4613
        %v4714 = vpack.c.b16 %v4618, %v4614
        %v4715 = vpack.c.b16 %v4619, %v4615
        %v4716 = vpack.c.b16 %v4624, %v4620
        %v4717 = vpack.c.b16 %v4625, %v4621
        %v4718 = vpack.c.b16 %v4626, %v4622
        %v4719 = vpack.c.b16 %v4627, %v4623
        %v4720 = vpack.c.b16 %v4632, %v4628
        %v4721 = vpack.c.b16 %v4633, %v4629
        %v4722 = vpack.c.b16 %v4634, %v4630
        %v4723 = vpack.c.b16 %v4635, %v4631
        %v4724 = vpack.c.b16 %v4640, %v4636
        %v4725 = vpack.c.b16 %v4641, %v4637
        %v4726 = vpack.c.b16 %v4642, %v4638
        %v4727 = vpack.c.b16 %v4643, %v4639
        %v4728 = vpack.c.b16 %v4648, %v4644
        %v4729 = vpack.c.b16 %v4649, %v4645
        %v4730 = vpack.c.b16 %v4650, %v4646
        %v4731 = vpack.c.b16 %v4651, %v4647
        %v4732 = vpack.c.b16 %v4656, %v4652
        %v4733 = vpack.c.b16 %v4657, %v4653
        %v4734 = vpack.c.b16 %v4658, %v4654
        %v4735 = vpack.c.b16 %v4659, %v4655
        %v4736 = vpack.c.b16 %v4664, %v4660
        %v4737 = vpack.c.b16 %v4665, %v4661
        %v4738 = vpack.c.b16 %v4666, %v4662
        %v4739 = vpack.c.b16 %v4667, %v4663
        %v4740 = vpack.c.b16 %v4672, %v4668
        %v4741 = vpack.c.b16 %v4673, %v4669
        %v4742 = vpack.c.b16 %v4674, %v4670
        %v4743 = vpack.c.b16 %v4675, %v4671
        %v4744 = vpack.c.b16 %v4680, %v4676
        %v4745 = vpack.c.b16 %v4681, %v4677
        %v4746 = vpack.c.b16 %v4682, %v4678
        %v4747 = vpack.c.b16 %v4683, %v4679
        %4812 = vmatprep.subr.bf16.mxu0 %v4685
        %4813 = vmatpush1.bf16.msra.mxu0 %v4684
        %4814 = vmatprep.subr.bf16.mxu0 %v4689
        %4815 = vmatpush1.bf16.msra.mxu0 %v4688
        %4816 = vmatprep.subr.bf16.mxu0 %v4693
        %4817 = vmatpush1.bf16.msra.mxu0 %v4692
        %4818 = vmatprep.subr.bf16.mxu0 %v4697
        %4819 = vmatpush1.bf16.msra.mxu0 %v4696
        %4820 = vmatprep.subr.bf16.mxu0 %v4701
        %4821 = vmatpush1.bf16.msra.mxu0 %v4700
        %4822 = vmatprep.subr.bf16.mxu0 %v4705
        %4823 = vmatpush1.bf16.msra.mxu0 %v4704
        %4824 = vmatprep.subr.bf16.mxu0 %v4709
        %4825 = vmatpush1.bf16.msra.mxu0 %v4708
        %4826 = vmatprep.subr.bf16.mxu0 %v4713
        %4827 = vmatpush1.bf16.msra.mxu0 %v4712
        %4828 = vmatprep.subr.bf16.mxu0 %v4717
        %4829 = vmatpush1.bf16.msra.mxu0 %v4716
        %4830 = vmatprep.subr.bf16.mxu0 %v4721
        %4831 = vmatpush1.bf16.msra.mxu0 %v4720
        %4832 = vmatprep.subr.bf16.mxu0 %v4725
        %4833 = vmatpush1.bf16.msra.mxu0 %v4724
        %4834 = vmatprep.subr.bf16.mxu0 %v4729
        %4835 = vmatpush1.bf16.msra.mxu0 %v4728
        %4836 = vmatprep.subr.bf16.mxu0 %v4733
        %4837 = vmatpush1.bf16.msra.mxu0 %v4732
        %4838 = vmatprep.subr.bf16.mxu0 %v4737
        %4839 = vmatpush1.bf16.msra.mxu0 %v4736
        %4840 = vmatprep.subr.bf16.mxu0 %v4741
        %4841 = vmatpush1.bf16.msra.mxu0 %v4740
        %4842 = vmatprep.subr.bf16.mxu0 %v4745
        %4843 = vmatpush1.bf16.msra.mxu0 %v4744
        %4844 = vmatprep.mubr.bf16.mxu0 %v4405
        %4845 = vmatmul.mubr.bf16.gmra.mrb[0].mxu0 %v4404
        %v4846 = vpop.f32.mrb[0].mxu0
        %v4847 = vadd.f32 %v4475, %v4846
        %v4848 = vpop.f32.mrb[0].mxu0
        %v4849 = vadd.f32 %v4479, %v4848
        %v4850 = vpop.f32.mrb[0].mxu0
        %v4851 = vadd.f32 %v4475, %v4850
        %v4852 = vpop.f32.mrb[0].mxu0
        %v4853 = vadd.f32 %v4479, %v4852
        %4854 = vdwg.mxu0
        %4855 = vmatprep.subr.bf16.mxu0 %v4687
        %4856 = vmatpush1.bf16.msra.mxu0 %v4686
        %4857 = vmatprep.subr.bf16.mxu0 %v4691
        %4858 = vmatpush1.bf16.msra.mxu0 %v4690
        %4859 = vmatprep.subr.bf16.mxu0 %v4695
        %4860 = vmatpush1.bf16.msra.mxu0 %v4694
        %4861 = vmatprep.subr.bf16.mxu0 %v4699
        %4862 = vmatpush1.bf16.msra.mxu0 %v4698
        %4863 = vmatprep.subr.bf16.mxu0 %v4703
        %4864 = vmatpush1.bf16.msra.mxu0 %v4702
        %4865 = vmatprep.subr.bf16.mxu0 %v4707
        %4866 = vmatpush1.bf16.msra.mxu0 %v4706
        %4867 = vmatprep.subr.bf16.mxu0 %v4711
        %4868 = vmatpush1.bf16.msra.mxu0 %v4710
        %4869 = vmatprep.subr.bf16.mxu0 %v4715
        %4870 = vmatpush1.bf16.msra.mxu0 %v4714
        %4871 = vmatprep.subr.bf16.mxu0 %v4719
        %4872 = vmatpush1.bf16.msra.mxu0 %v4718
        %4873 = vmatprep.subr.bf16.mxu0 %v4723
        %4874 = vmatpush1.bf16.msra.mxu0 %v4722
        %4875 = vmatprep.subr.bf16.mxu0 %v4727
        %4876 = vmatpush1.bf16.msra.mxu0 %v4726
        %4877 = vmatprep.subr.bf16.mxu0 %v4731
        %4878 = vmatpush1.bf16.msra.mxu0 %v4730
        %4879 = vmatprep.subr.bf16.mxu0 %v4735
        %4880 = vmatpush1.bf16.msra.mxu0 %v4734
        %4881 = vmatprep.subr.bf16.mxu0 %v4739
        %4882 = vmatpush1.bf16.msra.mxu0 %v4738
        %4883 = vmatprep.subr.bf16.mxu0 %v4743
        %4884 = vmatpush1.bf16.msra.mxu0 %v4742
        %4885 = vmatprep.subr.bf16.mxu0 %v4747
        %4886 = vmatpush1.bf16.msra.mxu0 %v4746
        %4887 = vmatprep.mubr.bf16.mxu0 %v4405
        %4888 = vmatmul.mubr.bf16.gmra.mrb[0].mxu0 %v4404
        %v4889 = vpop.f32.mrb[0].mxu0
        %v4890 = vadd.f32 %v4483, %v4889
        %v4891 = vpop.f32.mrb[0].mxu0
        %v4892 = vadd.f32 %v4487, %v4891
        %v4893 = vpop.f32.mrb[0].mxu0
        %v4894 = vadd.f32 %v4483, %v4893
        %v4895 = vpop.f32.mrb[0].mxu0
        %v4896 = vadd.f32 %v4487, %v4895
        %4897 = vdwg.mxu0
        %v4898 = vmax.f32 %v4847, 0.0
        %v4899 = vmax.f32 %v4849, 0.0
        %v4900 = vmax.f32 %v4890, 0.0
        %v4901 = vmax.f32 %v4892, 0.0
        %v4902 = vmax.f32 %v4851, 0.0
        %v4903 = vmax.f32 %v4853, 0.0
        %v4904 = vmax.f32 %v4894, 0.0
        %v4905 = vmax.f32 %v4896, 0.0
        %v4906 = vpack.c.bf16 %v4902, %v4898
        %v4907 = vpack.c.bf16 %v4903, %v4899
        %v4908 = vpack.c.bf16 %v4904, %v4900
        %v4909 = vpack.c.bf16 %v4905, %v4901
        %v4910 = vld [vmem:[%s21] sm:$0xff]
        %v4911 = vld [vmem:[%s21 + $0x8] sm:$0xff]
        %v4912 = vld [vmem:[%s21 + $0x10] sm:$0xff]
        %v4913 = vld [vmem:[%s21 + $0x18] sm:$0xff]
        %v4914 = vld [vmem:[%s21 + $0x20] sm:$0xff]
        %v4915 = vld [vmem:[%s21 + $0x28] sm:$0xff]
        %v4916 = vld [vmem:[%s21 + $0x30] sm:$0xff]
        %v4917 = vld [vmem:[%s21 + $0x38] sm:$0xff]
        %v4918 = vld [vmem:[%s21 + $0x40] sm:$0xff]
        %v4919 = vld [vmem:[%s21 + $0x48] sm:$0xff]
        %v4920 = vld [vmem:[%s21 + $0x50] sm:$0xff]
        %v4921 = vld [vmem:[%s21 + $0x58] sm:$0xff]
        %v4922 = vld [vmem:[%s21 + $0x60] sm:$0xff]
        %v4923 = vld [vmem:[%s21 + $0x68] sm:$0xff]
        %v4924 = vld [vmem:[%s21 + $0x70] sm:$0xff]
        %v4925 = vld [vmem:[%s21 + $0x78] sm:$0xff]
        %v4926 = vld [vmem:[%s21 + $0x80] sm:$0xff]
        %v4927 = vld [vmem:[%s21 + $0x88] sm:$0xff]
        %v4928 = vld [vmem:[%s21 + $0x90] sm:$0xff]
        %v4929 = vld [vmem:[%s21 + $0x98] sm:$0xff]
        %v4930 = vld [vmem:[%s21 + $0xa0] sm:$0xff]
        %v4931 = vld [vmem:[%s21 + $0xa8] sm:$0xff]
        %v4932 = vld [vmem:[%s21 + $0xb0] sm:$0xff]
        %v4933 = vld [vmem:[%s21 + $0xb8] sm:$0xff]
        %v4934 = vld [vmem:[%s21 + $0xc0] sm:$0xff]
        %v4935 = vld [vmem:[%s21 + $0xc8] sm:$0xff]
        %v4936 = vld [vmem:[%s21 + $0xd0] sm:$0xff]
        %v4937 = vld [vmem:[%s21 + $0xd8] sm:$0xff]
        %v4938 = vld [vmem:[%s21 + $0xe0] sm:$0xff]
        %v4939 = vld [vmem:[%s21 + $0xe8] sm:$0xff]
        %v4940 = vld [vmem:[%s21 + $0xf0] sm:$0xff]
        %v4941 = vld [vmem:[%s21 + $0xf8] sm:$0xff]
        %v4942 = vld [vmem:[%s21 + $0x100] sm:$0xff]
        %v4943 = vld [vmem:[%s21 + $0x108] sm:$0xff]
        %v4944 = vld [vmem:[%s21 + $0x110] sm:$0xff]
        %v4945 = vld [vmem:[%s21 + $0x118] sm:$0xff]
        %v4946 = vld [vmem:[%s21 + $0x120] sm:$0xff]
        %v4947 = vld [vmem:[%s21 + $0x128] sm:$0xff]
        %v4948 = vld [vmem:[%s21 + $0x130] sm:$0xff]
        %v4949 = vld [vmem:[%s21 + $0x138] sm:$0xff]
        %v4950 = vld [vmem:[%s21 + $0x140] sm:$0xff]
        %v4951 = vld [vmem:[%s21 + $0x148] sm:$0xff]
        %v4952 = vld [vmem:[%s21 + $0x150] sm:$0xff]
        %v4953 = vld [vmem:[%s21 + $0x158] sm:$0xff]
        %v4954 = vld [vmem:[%s21 + $0x160] sm:$0xff]
        %v4955 = vld [vmem:[%s21 + $0x168] sm:$0xff]
        %v4956 = vld [vmem:[%s21 + $0x170] sm:$0xff]
        %v4957 = vld [vmem:[%s21 + $0x178] sm:$0xff]
        %v4958 = vld [vmem:[%s21 + $0x180] sm:$0xff]
        %v4959 = vld [vmem:[%s21 + $0x188] sm:$0xff]
        %v4960 = vld [vmem:[%s21 + $0x190] sm:$0xff]
        %v4961 = vld [vmem:[%s21 + $0x198] sm:$0xff]
        %v4962 = vld [vmem:[%s21 + $0x1a0] sm:$0xff]
        %v4963 = vld [vmem:[%s21 + $0x1a8] sm:$0xff]
        %v4964 = vld [vmem:[%s21 + $0x1b0] sm:$0xff]
        %v4965 = vld [vmem:[%s21 + $0x1b8] sm:$0xff]
        %v4966 = vld [vmem:[%s21 + $0x1c0] sm:$0xff]
        %v4967 = vld [vmem:[%s21 + $0x1c8] sm:$0xff]
        %v4968 = vld [vmem:[%s21 + $0x1d0] sm:$0xff]
        %v4969 = vld [vmem:[%s21 + $0x1d8] sm:$0xff]
        %v4970 = vld [vmem:[%s21 + $0x1e0] sm:$0xff]
        %v4971 = vld [vmem:[%s21 + $0x1e8] sm:$0xff]
        %v4972 = vld [vmem:[%s21 + $0x1f0] sm:$0xff]
        %v4973 = vld [vmem:[%s21 + $0x1f8] sm:$0xff]
        %v4974 = vld [vmem:[#allocation19] sm:$0x3]
        %v4976 = vlaneseq
        %v4977 = vshrl.u32 %v4976, 7
        %v4978 = vsub.s32 0, %v4977
        %v4979 = vrot.slane %v4974, %v4978
        %v4980 = vlaneseq
        %v4981 = vshrl.u32 %v4980, 7
        %v4982 = vsub.s32 1, %v4981
        %v4983 = vrot.slane %v4974, %v4982
        %v5050 = vunpack.c.l.b16 %v4910
        %v5051 = vunpack.c.h.b16 %v4910
        %v5052 = vunpack.c.l.b16 %v4911
        %v5053 = vunpack.c.h.b16 %v4911
        %v5054 = vunpack.c.l.b16 %v4912
        %v5055 = vunpack.c.h.b16 %v4912
        %v5056 = vunpack.c.l.b16 %v4913
        %v5057 = vunpack.c.h.b16 %v4913
        %v5058 = vunpack.c.l.b16 %v4914
        %v5059 = vunpack.c.h.b16 %v4914
        %v5060 = vunpack.c.l.b16 %v4915
        %v5061 = vunpack.c.h.b16 %v4915
        %v5062 = vunpack.c.l.b16 %v4916
        %v5063 = vunpack.c.h.b16 %v4916
        %v5064 = vunpack.c.l.b16 %v4917
        %v5065 = vunpack.c.h.b16 %v4917
        %v5066 = vunpack.c.l.b16 %v4918
        %v5067 = vunpack.c.h.b16 %v4918
        %v5068 = vunpack.c.l.b16 %v4919
        %v5069 = vunpack.c.h.b16 %v4919
        %v5070 = vunpack.c.l.b16 %v4920
        %v5071 = vunpack.c.h.b16 %v4920
        %v5072 = vunpack.c.l.b16 %v4921
        %v5073 = vunpack.c.h.b16 %v4921
        %v5074 = vunpack.c.l.b16 %v4922
        %v5075 = vunpack.c.h.b16 %v4922
        %v5076 = vunpack.c.l.b16 %v4923
        %v5077 = vunpack.c.h.b16 %v4923
        %v5078 = vunpack.c.l.b16 %v4924
        %v5079 = vunpack.c.h.b16 %v4924
        %v5080 = vunpack.c.l.b16 %v4925
        %v5081 = vunpack.c.h.b16 %v4925
        %v5082 = vunpack.c.l.b16 %v4926
        %v5083 = vunpack.c.h.b16 %v4926
        %v5084 = vunpack.c.l.b16 %v4927
        %v5085 = vunpack.c.h.b16 %v4927
        %v5086 = vunpack.c.l.b16 %v4928
        %v5087 = vunpack.c.h.b16 %v4928
        %v5088 = vunpack.c.l.b16 %v4929
        %v5089 = vunpack.c.h.b16 %v4929
        %v5090 = vunpack.c.l.b16 %v4930
        %v5091 = vunpack.c.h.b16 %v4930
        %v5092 = vunpack.c.l.b16 %v4931
        %v5093 = vunpack.c.h.b16 %v4931
        %v5094 = vunpack.c.l.b16 %v4932
        %v5095 = vunpack.c.h.b16 %v4932
        %v5096 = vunpack.c.l.b16 %v4933
        %v5097 = vunpack.c.h.b16 %v4933
        %v5098 = vunpack.c.l.b16 %v4934
        %v5099 = vunpack.c.h.b16 %v4934
        %v5100 = vunpack.c.l.b16 %v4935
        %v5101 = vunpack.c.h.b16 %v4935
        %v5102 = vunpack.c.l.b16 %v4936
        %v5103 = vunpack.c.h.b16 %v4936
        %v5104 = vunpack.c.l.b16 %v4937
        %v5105 = vunpack.c.h.b16 %v4937
        %v5106 = vunpack.c.l.b16 %v4938
        %v5107 = vunpack.c.h.b16 %v4938
        %v5108 = vunpack.c.l.b16 %v4939
        %v5109 = vunpack.c.h.b16 %v4939
        %v5110 = vunpack.c.l.b16 %v4940
        %v5111 = vunpack.c.h.b16 %v4940
        %v5112 = vunpack.c.l.b16 %v4941
        %v5113 = vunpack.c.h.b16 %v4941
        %v5114 = vunpack.c.l.b16 %v4942
        %v5115 = vunpack.c.h.b16 %v4942
        %v5116 = vunpack.c.l.b16 %v4943
        %v5117 = vunpack.c.h.b16 %v4943
        %v5118 = vunpack.c.l.b16 %v4944
        %v5119 = vunpack.c.h.b16 %v4944
        %v5120 = vunpack.c.l.b16 %v4945
        %v5121 = vunpack.c.h.b16 %v4945
        %v5122 = vunpack.c.l.b16 %v4946
        %v5123 = vunpack.c.h.b16 %v4946
        %v5124 = vunpack.c.l.b16 %v4947
        %v5125 = vunpack.c.h.b16 %v4947
        %v5126 = vunpack.c.l.b16 %v4948
        %v5127 = vunpack.c.h.b16 %v4948
        %v5128 = vunpack.c.l.b16 %v4949
        %v5129 = vunpack.c.h.b16 %v4949
        %v5130 = vunpack.c.l.b16 %v4950
        %v5131 = vunpack.c.h.b16 %v4950
        %v5132 = vunpack.c.l.b16 %v4951
        %v5133 = vunpack.c.h.b16 %v4951
        %v5134 = vunpack.c.l.b16 %v4952
        %v5135 = vunpack.c.h.b16 %v4952
        %v5136 = vunpack.c.l.b16 %v4953
        %v5137 = vunpack.c.h.b16 %v4953
        %v5138 = vunpack.c.l.b16 %v4954
        %v5139 = vunpack.c.h.b16 %v4954
        %v5140 = vunpack.c.l.b16 %v4955
        %v5141 = vunpack.c.h.b16 %v4955
        %v5142 = vunpack.c.l.b16 %v4956
        %v5143 = vunpack.c.h.b16 %v4956
        %v5144 = vunpack.c.l.b16 %v4957
        %v5145 = vunpack.c.h.b16 %v4957
        %v5146 = vunpack.c.l.b16 %v4958
        %v5147 = vunpack.c.h.b16 %v4958
        %v5148 = vunpack.c.l.b16 %v4959
        %v5149 = vunpack.c.h.b16 %v4959
        %v5150 = vunpack.c.l.b16 %v4960
        %v5151 = vunpack.c.h.b16 %v4960
        %v5152 = vunpack.c.l.b16 %v4961
        %v5153 = vunpack.c.h.b16 %v4961
        %v5154 = vunpack.c.l.b16 %v4962
        %v5155 = vunpack.c.h.b16 %v4962
        %v5156 = vunpack.c.l.b16 %v4963
        %v5157 = vunpack.c.h.b16 %v4963
        %v5158 = vunpack.c.l.b16 %v4964
        %v5159 = vunpack.c.h.b16 %v4964
        %v5160 = vunpack.c.l.b16 %v4965
        %v5161 = vunpack.c.h.b16 %v4965
        %v5162 = vunpack.c.l.b16 %v4966
        %v5163 = vunpack.c.h.b16 %v4966
        %v5164 = vunpack.c.l.b16 %v4967
        %v5165 = vunpack.c.h.b16 %v4967
        %v5166 = vunpack.c.l.b16 %v4968
        %v5167 = vunpack.c.h.b16 %v4968
        %v5168 = vunpack.c.l.b16 %v4969
        %v5169 = vunpack.c.h.b16 %v4969
        %v5170 = vunpack.c.l.b16 %v4970
        %v5171 = vunpack.c.h.b16 %v4970
        %v5172 = vunpack.c.l.b16 %v4971
        %v5173 = vunpack.c.h.b16 %v4971
        %v5174 = vunpack.c.l.b16 %v4972
        %v5175 = vunpack.c.h.b16 %v4972
        %v5176 = vunpack.c.l.b16 %v4973
        %v5177 = vunpack.c.h.b16 %v4973
        %v5178 = vpack.c.b16 %v5052, %v5050
        %v5179 = vpack.c.b16 %v5053, %v5051
        %v5180 = vpack.c.b16 %v5056, %v5054
        %v5181 = vpack.c.b16 %v5057, %v5055
        %v5182 = vpack.c.b16 %v5060, %v5058
        %v5183 = vpack.c.b16 %v5061, %v5059
        %v5184 = vpack.c.b16 %v5064, %v5062
        %v5185 = vpack.c.b16 %v5065, %v5063
        %v5186 = vpack.c.b16 %v5068, %v5066
        %v5187 = vpack.c.b16 %v5069, %v5067
        %v5188 = vpack.c.b16 %v5072, %v5070
        %v5189 = vpack.c.b16 %v5073, %v5071
        %v5190 = vpack.c.b16 %v5076, %v5074
        %v5191 = vpack.c.b16 %v5077, %v5075
        %v5192 = vpack.c.b16 %v5080, %v5078
        %v5193 = vpack.c.b16 %v5081, %v5079
        %v5194 = vpack.c.b16 %v5084, %v5082
        %v5195 = vpack.c.b16 %v5085, %v5083
        %v5196 = vpack.c.b16 %v5088, %v5086
        %v5197 = vpack.c.b16 %v5089, %v5087
        %v5198 = vpack.c.b16 %v5092, %v5090
        %v5199 = vpack.c.b16 %v5093, %v5091
        %v5200 = vpack.c.b16 %v5096, %v5094
        %v5201 = vpack.c.b16 %v5097, %v5095
        %v5202 = vpack.c.b16 %v5100, %v5098
        %v5203 = vpack.c.b16 %v5101, %v5099
        %v5204 = vpack.c.b16 %v5104, %v5102
        %v5205 = vpack.c.b16 %v5105, %v5103
        %v5206 = vpack.c.b16 %v5108, %v5106
        %v5207 = vpack.c.b16 %v5109, %v5107
        %v5208 = vpack.c.b16 %v5112, %v5110
        %v5209 = vpack.c.b16 %v5113, %v5111
        %v5210 = vpack.c.b16 %v5116, %v5114
        %v5211 = vpack.c.b16 %v5117, %v5115
        %v5212 = vpack.c.b16 %v5120, %v5118
        %v5213 = vpack.c.b16 %v5121, %v5119
        %v5214 = vpack.c.b16 %v5124, %v5122
        %v5215 = vpack.c.b16 %v5125, %v5123
        %v5216 = vpack.c.b16 %v5128, %v5126
        %v5217 = vpack.c.b16 %v5129, %v5127
        %v5218 = vpack.c.b16 %v5132, %v5130
        %v5219 = vpack.c.b16 %v5133, %v5131
        %v5220 = vpack.c.b16 %v5136, %v5134
        %v5221 = vpack.c.b16 %v5137, %v5135
        %v5222 = vpack.c.b16 %v5140, %v5138
        %v5223 = vpack.c.b16 %v5141, %v5139
        %v5224 = vpack.c.b16 %v5144, %v5142
        %v5225 = vpack.c.b16 %v5145, %v5143
        %v5226 = vpack.c.b16 %v5148, %v5146
        %v5227 = vpack.c.b16 %v5149, %v5147
        %v5228 = vpack.c.b16 %v5152, %v5150
        %v5229 = vpack.c.b16 %v5153, %v5151
        %v5230 = vpack.c.b16 %v5156, %v5154
        %v5231 = vpack.c.b16 %v5157, %v5155
        %v5232 = vpack.c.b16 %v5160, %v5158
        %v5233 = vpack.c.b16 %v5161, %v5159
        %v5234 = vpack.c.b16 %v5164, %v5162
        %v5235 = vpack.c.b16 %v5165, %v5163
        %v5236 = vpack.c.b16 %v5168, %v5166
        %v5237 = vpack.c.b16 %v5169, %v5167
        %v5238 = vpack.c.b16 %v5172, %v5170
        %v5239 = vpack.c.b16 %v5173, %v5171
        %v5240 = vpack.c.b16 %v5176, %v5174
        %v5241 = vpack.c.b16 %v5177, %v5175
        %5306 = vmatprep.subr.bf16.mxu0 %v5179
        %5307 = vmatpush1.bf16.msra.mxu0 %v5178
        %5308 = vmatprep.subr.bf16.mxu0 %v5181
        %5309 = vmatpush1.bf16.msra.mxu0 %v5180
        %5310 = vmatprep.subr.bf16.mxu0 %v5183
        %5311 = vmatpush1.bf16.msra.mxu0 %v5182
        %5312 = vmatprep.subr.bf16.mxu0 %v5185
        %5313 = vmatpush1.bf16.msra.mxu0 %v5184
        %5314 = vmatprep.subr.bf16.mxu0 %v5187
        %5315 = vmatpush1.bf16.msra.mxu0 %v5186
        %5316 = vmatprep.subr.bf16.mxu0 %v5189
        %5317 = vmatpush1.bf16.msra.mxu0 %v5188
        %5318 = vmatprep.subr.bf16.mxu0 %v5191
        %5319 = vmatpush1.bf16.msra.mxu0 %v5190
        %5320 = vmatprep.subr.bf16.mxu0 %v5193
        %5321 = vmatpush1.bf16.msra.mxu0 %v5192
        %5322 = vmatprep.subr.bf16.mxu0 %v5195
        %5323 = vmatpush1.bf16.msra.mxu0 %v5194
        %5324 = vmatprep.subr.bf16.mxu0 %v5197
        %5325 = vmatpush1.bf16.msra.mxu0 %v5196
        %5326 = vmatprep.subr.bf16.mxu0 %v5199
        %5327 = vmatpush1.bf16.msra.mxu0 %v5198
        %5328 = vmatprep.subr.bf16.mxu0 %v5201
        %5329 = vmatpush1.bf16.msra.mxu0 %v5200
        %5330 = vmatprep.subr.bf16.mxu0 %v5203
        %5331 = vmatpush1.bf16.msra.mxu0 %v5202
        %5332 = vmatprep.subr.bf16.mxu0 %v5205
        %5333 = vmatpush1.bf16.msra.mxu0 %v5204
        %5334 = vmatprep.subr.bf16.mxu0 %v5207
        %5335 = vmatpush1.bf16.msra.mxu0 %v5206
        %5336 = vmatprep.subr.bf16.mxu0 %v5209
        %5337 = vmatpush1.bf16.msra.mxu0 %v5208
        %5338 = vmatprep.mubr.bf16.mxu0 %v4907
        %5339 = vmatmul.mubr.bf16.gmra.mrb[0].mxu0 %v4906
        %v5340 = vpop.f32.mrb[0].mxu0
        %v5341 = vadd.f32 %v4979, %v5340
        %v5342 = vpop.f32.mrb[0].mxu0
        %v5343 = vadd.f32 %v4983, %v5342
        %v5344 = vpop.f32.mrb[0].mxu0
        %v5345 = vadd.f32 %v4979, %v5344
        %v5346 = vpop.f32.mrb[0].mxu0
        %v5347 = vadd.f32 %v4983, %v5346
        %5348 = vdwg.mxu0
        %5349 = vmatprep.subr.bf16.mxu0 %v5211
        %5350 = vmatpush1.bf16.msra.mxu0 %v5210
        %5351 = vmatprep.subr.bf16.mxu0 %v5213
        %5352 = vmatpush1.bf16.msra.mxu0 %v5212
        %5353 = vmatprep.subr.bf16.mxu0 %v5215
        %5354 = vmatpush1.bf16.msra.mxu0 %v5214
        %5355 = vmatprep.subr.bf16.mxu0 %v5217
        %5356 = vmatpush1.bf16.msra.mxu0 %v5216
        %5357 = vmatprep.subr.bf16.mxu0 %v5219
        %5358 = vmatpush1.bf16.msra.mxu0 %v5218
        %5359 = vmatprep.subr.bf16.mxu0 %v5221
        %5360 = vmatpush1.bf16.msra.mxu0 %v5220
        %5361 = vmatprep.subr.bf16.mxu0 %v5223
        %5362 = vmatpush1.bf16.msra.mxu0 %v5222
        %5363 = vmatprep.subr.bf16.mxu0 %v5225
        %5364 = vmatpush1.bf16.msra.mxu0 %v5224
        %5365 = vmatprep.subr.bf16.mxu0 %v5227
        %5366 = vmatpush1.bf16.msra.mxu0 %v5226
        %5367 = vmatprep.subr.bf16.mxu0 %v5229
        %5368 = vmatpush1.bf16.msra.mxu0 %v5228
        %5369 = vmatprep.subr.bf16.mxu0 %v5231
        %5370 = vmatpush1.bf16.msra.mxu0 %v5230
        %5371 = vmatprep.subr.bf16.mxu0 %v5233
        %5372 = vmatpush1.bf16.msra.mxu0 %v5232
        %5373 = vmatprep.subr.bf16.mxu0 %v5235
        %5374 = vmatpush1.bf16.msra.mxu0 %v5234
        %5375 = vmatprep.subr.bf16.mxu0 %v5237
        %5376 = vmatpush1.bf16.msra.mxu0 %v5236
        %5377 = vmatprep.subr.bf16.mxu0 %v5239
        %5378 = vmatpush1.bf16.msra.mxu0 %v5238
        %5379 = vmatprep.subr.bf16.mxu0 %v5241
        %5380 = vmatpush1.bf16.msra.mxu0 %v5240
        %5381 = vmatprep.mubr.bf16.mxu0 %v4909
        %5382 = vmatmul.mubr.bf16.gmra.mrb[0].mxu0 %v4908
        %v5383 = vpop.f32.mrb[0].mxu0
        %v5384 = vadd.f32 %v5341, %v5383
        %v5385 = vpop.f32.mrb[0].mxu0
        %v5386 = vadd.f32 %v5343, %v5385
        %v5387 = vpop.f32.mrb[0].mxu0
        %v5388 = vadd.f32 %v5345, %v5387
        %v5389 = vpop.f32.mrb[0].mxu0
        %v5390 = vadd.f32 %v5347, %v5389
        %5391 = vdwg.mxu0
        %v5392 = vadd.f32 %v4400, %v5384
        %v5393 = vadd.f32 %v4401, %v5386
        %v5394 = vadd.f32 %v4402, %v5388
        %v5395 = vadd.f32 %v4403, %v5390
        %v5396 = vld [vmem:[%s23] sm:$0x3]
        %v5397 = vld [vmem:[#allocation20] sm:$0x3]
        %v5398 = vadd.f32 %v5392, %v5393
        %5399 = vadd.xlane.f32.xlu0 %v5398
        %v5400 = vpop.xlane.xlu0 %5399
        %v5401 = vadd.f32 %v5394, %v5395
        %5402 = vadd.xlane.f32.xlu0 %v5401
        %v5403 = vpop.xlane.xlu0 %5402
        %v5404 = vmul.f32 %v5400, %v4347
        %v5405 = vmul.f32 %v5403, %v4347
        %v5406 = vsub.f32 %v5392, %v5404
        %v5407 = vsub.f32 %v5393, %v5404
        %v5408 = vsub.f32 %v5394, %v5405
        %v5409 = vsub.f32 %v5395, %v5405
        %v5410 = vmul.f32 %v5406, %v5406
        %v5411 = vmul.f32 %v5407, %v5407
        %v5412 = vmul.f32 %v5408, %v5408
        %v5413 = vmul.f32 %v5409, %v5409
        %v5414 = vadd.f32 %v5410, %v5411
        %5415 = vadd.xlane.f32.xlu0 %v5414
        %v5416 = vpop.xlane.xlu0 %5415
        %v5417 = vadd.f32 %v5412, %v5413
        %5418 = vadd.xlane.f32.xlu0 %v5417
        %v5419 = vpop.xlane.xlu0 %5418
        %v5420 = vmul.f32 %v5416, %v4347
        %v5421 = vmul.f32 %v5419, %v4347
        %v5422 = vadd.f32 %v5420, 1e-05
        %v5423 = vadd.f32 %v5421, 1e-05
        %v5424 = vrsqrt.pop %v5422
        %v5425 = vrsqrt.pop %v5423
        %v5426 = vmul.f32 %v5406, %v5424
        %v5427 = vmul.f32 %v5407, %v5424
        %v5428 = vmul.f32 %v5408, %v5425
        %v5429 = vmul.f32 %v5409, %v5425
        %v5431 = vlaneseq
        %v5432 = vshrl.u32 %v5431, 7
        %v5433 = vsub.s32 0, %v5432
        %v5434 = vrot.slane %v5396, %v5433
        %v5435 = vlaneseq
        %v5436 = vshrl.u32 %v5435, 7
        %v5437 = vsub.s32 1, %v5436
        %v5438 = vrot.slane %v5396, %v5437
        %v5441 = vmul.f32 %v5426, %v5434
        %v5442 = vmul.f32 %v5427, %v5438
        %v5443 = vmul.f32 %v5428, %v5434
        %v5444 = vmul.f32 %v5429, %v5438
        %v5446 = vlaneseq
        %v5447 = vshrl.u32 %v5446, 7
        %v5448 = vsub.s32 0, %v5447
        %v5449 = vrot.slane %v5397, %v5448
        %v5450 = vlaneseq
        %v5451 = vshrl.u32 %v5450, 7
        %v5452 = vsub.s32 1, %v5451
        %v5453 = vrot.slane %v5397, %v5452
        %v5456 = vadd.f32 %v5441, %v5449
        %v5457 = vadd.f32 %v5442, %v5453
        %v5458 = vadd.f32 %v5443, %v5449
        %v5459 = vadd.f32 %v5444, %v5453
        %s5460 = scalar_lea.vmem %s7, 512
        %v5461 = vld [vmem:[%s5460] sm:$0xff]
        %v5462 = vld [vmem:[%s5460 + $0x8] sm:$0xff]
        %v5463 = vld [vmem:[%s5460 + $0x10] sm:$0xff]
        %v5464 = vld [vmem:[%s5460 + $0x18] sm:$0xff]
        %v5465 = vld [vmem:[%s5460 + $0x20] sm:$0xff]
        %v5466 = vld [vmem:[%s5460 + $0x28] sm:$0xff]
        %v5467 = vld [vmem:[%s5460 + $0x30] sm:$0xff]
        %v5468 = vld [vmem:[%s5460 + $0x38] sm:$0xff]
        %v5469 = vld [vmem:[%s5460 + $0x40] sm:$0xff]
        %v5470 = vld [vmem:[%s5460 + $0x48] sm:$0xff]
        %v5471 = vld [vmem:[%s5460 + $0x50] sm:$0xff]
        %v5472 = vld [vmem:[%s5460 + $0x58] sm:$0xff]
        %v5473 = vld [vmem:[%s5460 + $0x60] sm:$0xff]
        %v5474 = vld [vmem:[%s5460 + $0x68] sm:$0xff]
        %v5475 = vld [vmem:[%s5460 + $0x70] sm:$0xff]
        %v5476 = vld [vmem:[%s5460 + $0x78] sm:$0xff]
        %v5477 = vld [vmem:[%s5460 + $0x80] sm:$0xff]
        %v5478 = vld [vmem:[%s5460 + $0x88] sm:$0xff]
        %v5479 = vld [vmem:[%s5460 + $0x90] sm:$0xff]
        %v5480 = vld [vmem:[%s5460 + $0x98] sm:$0xff]
        %v5481 = vld [vmem:[%s5460 + $0xa0] sm:$0xff]
        %v5482 = vld [vmem:[%s5460 + $0xa8] sm:$0xff]
        %v5483 = vld [vmem:[%s5460 + $0xb0] sm:$0xff]
        %v5484 = vld [vmem:[%s5460 + $0xb8] sm:$0xff]
        %v5485 = vld [vmem:[%s5460 + $0xc0] sm:$0xff]
        %v5486 = vld [vmem:[%s5460 + $0xc8] sm:$0xff]
        %v5487 = vld [vmem:[%s5460 + $0xd0] sm:$0xff]
        %v5488 = vld [vmem:[%s5460 + $0xd8] sm:$0xff]
        %v5489 = vld [vmem:[%s5460 + $0xe0] sm:$0xff]
        %v5490 = vld [vmem:[%s5460 + $0xe8] sm:$0xff]
        %v5491 = vld [vmem:[%s5460 + $0xf0] sm:$0xff]
        %v5492 = vld [vmem:[%s5460 + $0xf8] sm:$0xff]
        %v5493 = vld [vmem:[%s5460 + $0x100] sm:$0xff]
        %v5494 = vld [vmem:[%s5460 + $0x108] sm:$0xff]
        %v5495 = vld [vmem:[%s5460 + $0x110] sm:$0xff]
        %v5496 = vld [vmem:[%s5460 + $0x118] sm:$0xff]
        %v5497 = vld [vmem:[%s5460 + $0x120] sm:$0xff]
        %v5498 = vld [vmem:[%s5460 + $0x128] sm:$0xff]
        %v5499 = vld [vmem:[%s5460 + $0x130] sm:$0xff]
        %v5500 = vld [vmem:[%s5460 + $0x138] sm:$0xff]
        %v5501 = vld [vmem:[%s5460 + $0x140] sm:$0xff]
        %v5502 = vld [vmem:[%s5460 + $0x148] sm:$0xff]
        %v5503 = vld [vmem:[%s5460 + $0x150] sm:$0xff]
        %v5504 = vld [vmem:[%s5460 + $0x158] sm:$0xff]
        %v5505 = vld [vmem:[%s5460 + $0x160] sm:$0xff]
        %v5506 = vld [vmem:[%s5460 + $0x168] sm:$0xff]
        %v5507 = vld [vmem:[%s5460 + $0x170] sm:$0xff]
        %v5508 = vld [vmem:[%s5460 + $0x178] sm:$0xff]
        %v5509 = vld [vmem:[%s5460 + $0x180] sm:$0xff]
        %v5510 = vld [vmem:[%s5460 + $0x188] sm:$0xff]
        %v5511 = vld [vmem:[%s5460 + $0x190] sm:$0xff]
        %v5512 = vld [vmem:[%s5460 + $0x198] sm:$0xff]
        %v5513 = vld [vmem:[%s5460 + $0x1a0] sm:$0xff]
        %v5514 = vld [vmem:[%s5460 + $0x1a8] sm:$0xff]
        %v5515 = vld [vmem:[%s5460 + $0x1b0] sm:$0xff]
        %v5516 = vld [vmem:[%s5460 + $0x1b8] sm:$0xff]
        %v5517 = vld [vmem:[%s5460 + $0x1c0] sm:$0xff]
        %v5518 = vld [vmem:[%s5460 + $0x1c8] sm:$0xff]
        %v5519 = vld [vmem:[%s5460 + $0x1d0] sm:$0xff]
        %v5520 = vld [vmem:[%s5460 + $0x1d8] sm:$0xff]
        %v5521 = vld [vmem:[%s5460 + $0x1e0] sm:$0xff]
        %v5522 = vld [vmem:[%s5460 + $0x1e8] sm:$0xff]
        %v5523 = vld [vmem:[%s5460 + $0x1f0] sm:$0xff]
        %v5524 = vld [vmem:[%s5460 + $0x1f8] sm:$0xff]
        %s5525 = scalar_lea.vmem [#allocation5], 2
        %v5526 = vld [vmem:[%s5525] sm:$0x3]
        %v5528 = vlaneseq
        %v5529 = vshrl.u32 %v5528, 7
        %v5530 = vsub.s32 0, %v5529
        %v5531 = vrot.slane %v5526, %v5530
        %v5532 = vlaneseq
        %v5533 = vshrl.u32 %v5532, 7
        %v5534 = vsub.s32 1, %v5533
        %v5535 = vrot.slane %v5526, %v5534
        %v5602 = vunpack.c.l.b16 %v5461
        %v5603 = vunpack.c.h.b16 %v5461
        %v5604 = vunpack.c.l.b16 %v5462
        %v5605 = vunpack.c.h.b16 %v5462
        %v5606 = vunpack.c.l.b16 %v5463
        %v5607 = vunpack.c.h.b16 %v5463
        %v5608 = vunpack.c.l.b16 %v5464
        %v5609 = vunpack.c.h.b16 %v5464
        %v5610 = vunpack.c.l.b16 %v5465
        %v5611 = vunpack.c.h.b16 %v5465
        %v5612 = vunpack.c.l.b16 %v5466
        %v5613 = vunpack.c.h.b16 %v5466
        %v5614 = vunpack.c.l.b16 %v5467
        %v5615 = vunpack.c.h.b16 %v5467
        %v5616 = vunpack.c.l.b16 %v5468
        %v5617 = vunpack.c.h.b16 %v5468
        %v5618 = vunpack.c.l.b16 %v5469
        %v5619 = vunpack.c.h.b16 %v5469
        %v5620 = vunpack.c.l.b16 %v5470
        %v5621 = vunpack.c.h.b16 %v5470
        %v5622 = vunpack.c.l.b16 %v5471
        %v5623 = vunpack.c.h.b16 %v5471
        %v5624 = vunpack.c.l.b16 %v5472
        %v5625 = vunpack.c.h.b16 %v5472
        %v5626 = vunpack.c.l.b16 %v5473
        %v5627 = vunpack.c.h.b16 %v5473
        %v5628 = vunpack.c.l.b16 %v5474
        %v5629 = vunpack.c.h.b16 %v5474
        %v5630 = vunpack.c.l.b16 %v5475
        %v5631 = vunpack.c.h.b16 %v5475
        %v5632 = vunpack.c.l.b16 %v5476
        %v5633 = vunpack.c.h.b16 %v5476
        %v5634 = vunpack.c.l.b16 %v5477
        %v5635 = vunpack.c.h.b16 %v5477
        %v5636 = vunpack.c.l.b16 %v5478
        %v5637 = vunpack.c.h.b16 %v5478
        %v5638 = vunpack.c.l.b16 %v5479
        %v5639 = vunpack.c.h.b16 %v5479
        %v5640 = vunpack.c.l.b16 %v5480
        %v5641 = vunpack.c.h.b16 %v5480
        %v5642 = vunpack.c.l.b16 %v5481
        %v5643 = vunpack.c.h.b16 %v5481
        %v5644 = vunpack.c.l.b16 %v5482
        %v5645 = vunpack.c.h.b16 %v5482
        %v5646 = vunpack.c.l.b16 %v5483
        %v5647 = vunpack.c.h.b16 %v5483
        %v5648 = vunpack.c.l.b16 %v5484
        %v5649 = vunpack.c.h.b16 %v5484
        %v5650 = vunpack.c.l.b16 %v5485
        %v5651 = vunpack.c.h.b16 %v5485
        %v5652 = vunpack.c.l.b16 %v5486
        %v5653 = vunpack.c.h.b16 %v5486
        %v5654 = vunpack.c.l.b16 %v5487
        %v5655 = vunpack.c.h.b16 %v5487
        %v5656 = vunpack.c.l.b16 %v5488
        %v5657 = vunpack.c.h.b16 %v5488
        %v5658 = vunpack.c.l.b16 %v5489
        %v5659 = vunpack.c.h.b16 %v5489
        %v5660 = vunpack.c.l.b16 %v5490
        %v5661 = vunpack.c.h.b16 %v5490
        %v5662 = vunpack.c.l.b16 %v5491
        %v5663 = vunpack.c.h.b16 %v5491
        %v5664 = vunpack.c.l.b16 %v5492
        %v5665 = vunpack.c.h.b16 %v5492
        %v5666 = vunpack.c.l.b16 %v5493
        %v5667 = vunpack.c.h.b16 %v5493
        %v5668 = vunpack.c.l.b16 %v5494
        %v5669 = vunpack.c.h.b16 %v5494
        %v5670 = vunpack.c.l.b16 %v5495
        %v5671 = vunpack.c.h.b16 %v5495
        %v5672 = vunpack.c.l.b16 %v5496
        %v5673 = vunpack.c.h.b16 %v5496
        %v5674 = vunpack.c.l.b16 %v5497
        %v5675 = vunpack.c.h.b16 %v5497
        %v5676 = vunpack.c.l.b16 %v5498
        %v5677 = vunpack.c.h.b16 %v5498
        %v5678 = vunpack.c.l.b16 %v5499
        %v5679 = vunpack.c.h.b16 %v5499
        %v5680 = vunpack.c.l.b16 %v5500
        %v5681 = vunpack.c.h.b16 %v5500
        %v5682 = vunpack.c.l.b16 %v5501
        %v5683 = vunpack.c.h.b16 %v5501
        %v5684 = vunpack.c.l.b16 %v5502
        %v5685 = vunpack.c.h.b16 %v5502
        %v5686 = vunpack.c.l.b16 %v5503
        %v5687 = vunpack.c.h.b16 %v5503
        %v5688 = vunpack.c.l.b16 %v5504
        %v5689 = vunpack.c.h.b16 %v5504
        %v5690 = vunpack.c.l.b16 %v5505
        %v5691 = vunpack.c.h.b16 %v5505
        %v5692 = vunpack.c.l.b16 %v5506
        %v5693 = vunpack.c.h.b16 %v5506
        %v5694 = vunpack.c.l.b16 %v5507
        %v5695 = vunpack.c.h.b16 %v5507
        %v5696 = vunpack.c.l.b16 %v5508
        %v5697 = vunpack.c.h.b16 %v5508
        %v5698 = vunpack.c.l.b16 %v5509
        %v5699 = vunpack.c.h.b16 %v5509
        %v5700 = vunpack.c.l.b16 %v5510
        %v5701 = vunpack.c.h.b16 %v5510
        %v5702 = vunpack.c.l.b16 %v5511
        %v5703 = vunpack.c.h.b16 %v5511
        %v5704 = vunpack.c.l.b16 %v5512
        %v5705 = vunpack.c.h.b16 %v5512
        %v5706 = vunpack.c.l.b16 %v5513
        %v5707 = vunpack.c.h.b16 %v5513
        %v5708 = vunpack.c.l.b16 %v5514
        %v5709 = vunpack.c.h.b16 %v5514
        %v5710 = vunpack.c.l.b16 %v5515
        %v5711 = vunpack.c.h.b16 %v5515
        %v5712 = vunpack.c.l.b16 %v5516
        %v5713 = vunpack.c.h.b16 %v5516
        %v5714 = vunpack.c.l.b16 %v5517
        %v5715 = vunpack.c.h.b16 %v5517
        %v5716 = vunpack.c.l.b16 %v5518
        %v5717 = vunpack.c.h.b16 %v5518
        %v5718 = vunpack.c.l.b16 %v5519
        %v5719 = vunpack.c.h.b16 %v5519
        %v5720 = vunpack.c.l.b16 %v5520
        %v5721 = vunpack.c.h.b16 %v5520
        %v5722 = vunpack.c.l.b16 %v5521
        %v5723 = vunpack.c.h.b16 %v5521
        %v5724 = vunpack.c.l.b16 %v5522
        %v5725 = vunpack.c.h.b16 %v5522
        %v5726 = vunpack.c.l.b16 %v5523
        %v5727 = vunpack.c.h.b16 %v5523
        %v5728 = vunpack.c.l.b16 %v5524
        %v5729 = vunpack.c.h.b16 %v5524
        %v5730 = vpack.c.b16 %v5604, %v5602
        %v5731 = vpack.c.b16 %v5605, %v5603
        %v5732 = vpack.c.b16 %v5608, %v5606
        %v5733 = vpack.c.b16 %v5609, %v5607
        %v5734 = vpack.c.b16 %v5612, %v5610
        %v5735 = vpack.c.b16 %v5613, %v5611
        %v5736 = vpack.c.b16 %v5616, %v5614
        %v5737 = vpack.c.b16 %v5617, %v5615
        %v5738 = vpack.c.b16 %v5620, %v5618
        %v5739 = vpack.c.b16 %v5621, %v5619
        %v5740 = vpack.c.b16 %v5624, %v5622
        %v5741 = vpack.c.b16 %v5625, %v5623
        %v5742 = vpack.c.b16 %v5628, %v5626
        %v5743 = vpack.c.b16 %v5629, %v5627
        %v5744 = vpack.c.b16 %v5632, %v5630
        %v5745 = vpack.c.b16 %v5633, %v5631
        %v5746 = vpack.c.b16 %v5636, %v5634
        %v5747 = vpack.c.b16 %v5637, %v5635
        %v5748 = vpack.c.b16 %v5640, %v5638
        %v5749 = vpack.c.b16 %v5641, %v5639
        %v5750 = vpack.c.b16 %v5644, %v5642
        %v5751 = vpack.c.b16 %v5645, %v5643
        %v5752 = vpack.c.b16 %v5648, %v5646
        %v5753 = vpack.c.b16 %v5649, %v5647
        %v5754 = vpack.c.b16 %v5652, %v5650
        %v5755 = vpack.c.b16 %v5653, %v5651
        %v5756 = vpack.c.b16 %v5656, %v5654
        %v5757 = vpack.c.b16 %v5657, %v5655
        %v5758 = vpack.c.b16 %v5660, %v5658
        %v5759 = vpack.c.b16 %v5661, %v5659
        %v5760 = vpack.c.b16 %v5664, %v5662
        %v5761 = vpack.c.b16 %v5665, %v5663
        %v5762 = vpack.c.b16 %v5668, %v5666
        %v5763 = vpack.c.b16 %v5669, %v5667
        %v5764 = vpack.c.b16 %v5672, %v5670
        %v5765 = vpack.c.b16 %v5673, %v5671
        %v5766 = vpack.c.b16 %v5676, %v5674
        %v5767 = vpack.c.b16 %v5677, %v5675
        %v5768 = vpack.c.b16 %v5680, %v5678
        %v5769 = vpack.c.b16 %v5681, %v5679
        %v5770 = vpack.c.b16 %v5684, %v5682
        %v5771 = vpack.c.b16 %v5685, %v5683
        %v5772 = vpack.c.b16 %v5688, %v5686
        %v5773 = vpack.c.b16 %v5689, %v5687
        %v5774 = vpack.c.b16 %v5692, %v5690
        %v5775 = vpack.c.b16 %v5693, %v5691
        %v5776 = vpack.c.b16 %v5696, %v5694
        %v5777 = vpack.c.b16 %v5697, %v5695
        %v5778 = vpack.c.b16 %v5700, %v5698
        %v5779 = vpack.c.b16 %v5701, %v5699
        %v5780 = vpack.c.b16 %v5704, %v5702
        %v5781 = vpack.c.b16 %v5705, %v5703
        %v5782 = vpack.c.b16 %v5708, %v5706
        %v5783 = vpack.c.b16 %v5709, %v5707
        %v5784 = vpack.c.b16 %v5712, %v5710
        %v5785 = vpack.c.b16 %v5713, %v5711
        %v5786 = vpack.c.b16 %v5716, %v5714
        %v5787 = vpack.c.b16 %v5717, %v5715
        %v5788 = vpack.c.b16 %v5720, %v5718
        %v5789 = vpack.c.b16 %v5721, %v5719
        %v5790 = vpack.c.b16 %v5724, %v5722
        %v5791 = vpack.c.b16 %v5725, %v5723
        %v5792 = vpack.c.b16 %v5728, %v5726
        %v5793 = vpack.c.b16 %v5729, %v5727
        %5858 = vmatprep.subr.bf16.mxu0 %v5731
        %5859 = vmatpush1.bf16.msra.mxu0 %v5730
        %5860 = vmatprep.subr.bf16.mxu0 %v5733
        %5861 = vmatpush1.bf16.msra.mxu0 %v5732
        %5862 = vmatprep.subr.bf16.mxu0 %v5735
        %5863 = vmatpush1.bf16.msra.mxu0 %v5734
        %5864 = vmatprep.subr.bf16.mxu0 %v5737
        %5865 = vmatpush1.bf16.msra.mxu0 %v5736
        %5866 = vmatprep.subr.bf16.mxu0 %v5739
        %5867 = vmatpush1.bf16.msra.mxu0 %v5738
        %5868 = vmatprep.subr.bf16.mxu0 %v5741
        %5869 = vmatpush1.bf16.msra.mxu0 %v5740
        %5870 = vmatprep.subr.bf16.mxu0 %v5743
        %5871 = vmatpush1.bf16.msra.mxu0 %v5742
        %5872 = vmatprep.subr.bf16.mxu0 %v5745
        %5873 = vmatpush1.bf16.msra.mxu0 %v5744
        %5874 = vmatprep.subr.bf16.mxu0 %v5747
        %5875 = vmatpush1.bf16.msra.mxu0 %v5746
        %5876 = vmatprep.subr.bf16.mxu0 %v5749
        %5877 = vmatpush1.bf16.msra.mxu0 %v5748
        %5878 = vmatprep.subr.bf16.mxu0 %v5751
        %5879 = vmatpush1.bf16.msra.mxu0 %v5750
        %5880 = vmatprep.subr.bf16.mxu0 %v5753
        %5881 = vmatpush1.bf16.msra.mxu0 %v5752
        %5882 = vmatprep.subr.bf16.mxu0 %v5755
        %5883 = vmatpush1.bf16.msra.mxu0 %v5754
        %5884 = vmatprep.subr.bf16.mxu0 %v5757
        %5885 = vmatpush1.bf16.msra.mxu0 %v5756
        %5886 = vmatprep.subr.bf16.mxu0 %v5759
        %5887 = vmatpush1.bf16.msra.mxu0 %v5758
        %5888 = vmatprep.subr.bf16.mxu0 %v5761
        %5889 = vmatpush1.bf16.msra.mxu0 %v5760
        %5890 = vmatprep.mubr.bf16.mxu0 %v1561
        %5891 = vmatmul.mubr.bf16.gmra.mrb[0].mxu0 %v1560
        %v5892 = vpop.f32.mrb[0].mxu0
        %v5893 = vadd.f32 %v5531, %v5892
        %v5894 = vpop.f32.mrb[0].mxu0
        %v5895 = vadd.f32 %v5535, %v5894
        %v5896 = vpop.f32.mrb[0].mxu0
        %v5897 = vadd.f32 %v5531, %v5896
        %v5898 = vpop.f32.mrb[0].mxu0
        %v5899 = vadd.f32 %v5535, %v5898
        %5900 = vdwg.mxu0
        %5901 = vmatprep.subr.bf16.mxu0 %v5763
        %5902 = vmatpush1.bf16.msra.mxu0 %v5762
        %5903 = vmatprep.subr.bf16.mxu0 %v5765
        %5904 = vmatpush1.bf16.msra.mxu0 %v5764
        %5905 = vmatprep.subr.bf16.mxu0 %v5767
        %5906 = vmatpush1.bf16.msra.mxu0 %v5766
        %5907 = vmatprep.subr.bf16.mxu0 %v5769
        %5908 = vmatpush1.bf16.msra.mxu0 %v5768
        %5909 = vmatprep.subr.bf16.mxu0 %v5771
        %5910 = vmatpush1.bf16.msra.mxu0 %v5770
        %5911 = vmatprep.subr.bf16.mxu0 %v5773
        %5912 = vmatpush1.bf16.msra.mxu0 %v5772
        %5913 = vmatprep.subr.bf16.mxu0 %v5775
        %5914 = vmatpush1.bf16.msra.mxu0 %v5774
        %5915 = vmatprep.subr.bf16.mxu0 %v5777
        %5916 = vmatpush1.bf16.msra.mxu0 %v5776
        %5917 = vmatprep.subr.bf16.mxu0 %v5779
        %5918 = vmatpush1.bf16.msra.mxu0 %v5778
        %5919 = vmatprep.subr.bf16.mxu0 %v5781
        %5920 = vmatpush1.bf16.msra.mxu0 %v5780
        %5921 = vmatprep.subr.bf16.mxu0 %v5783
        %5922 = vmatpush1.bf16.msra.mxu0 %v5782
        %5923 = vmatprep.subr.bf16.mxu0 %v5785
        %5924 = vmatpush1.bf16.msra.mxu0 %v5784
        %5925 = vmatprep.subr.bf16.mxu0 %v5787
        %5926 = vmatpush1.bf16.msra.mxu0 %v5786
        %5927 = vmatprep.subr.bf16.mxu0 %v5789
        %5928 = vmatpush1.bf16.msra.mxu0 %v5788
        %5929 = vmatprep.subr.bf16.mxu0 %v5791
        %5930 = vmatpush1.bf16.msra.mxu0 %v5790
        %5931 = vmatprep.subr.bf16.mxu0 %v5793
        %5932 = vmatpush1.bf16.msra.mxu0 %v5792
        %5933 = vmatprep.mubr.bf16.mxu0 %v1563
        %5934 = vmatmul.mubr.bf16.gmra.mrb[0].mxu0 %v1562
        %v5935 = vpop.f32.mrb[0].mxu0
        %v5936 = vadd.f32 %v5893, %v5935
        %v5937 = vpop.f32.mrb[0].mxu0
        %v5938 = vadd.f32 %v5895, %v5937
        %v5939 = vpop.f32.mrb[0].mxu0
        %v5940 = vadd.f32 %v5897, %v5939
        %v5941 = vpop.f32.mrb[0].mxu0
        %v5942 = vadd.f32 %v5899, %v5941
        %5943 = vdwg.mxu0
        %v5944 = vadd.f32 %v5456, %v5936
        %v5945 = vadd.f32 %v5457, %v5938
        %v5946 = vadd.f32 %v5458, %v5940
        %v5947 = vadd.f32 %v5459, %v5942
        %v5948 = vpack.c.bf16 %v5946, %v5944
        %v5949 = vpack.c.bf16 %v5947, %v5945
        %s5950 = scalar_lea.vmem %s9, 256
        %v5951 = vld [vmem:[%s5950] sm:$0xff]
        %v5952 = vld [vmem:[%s5950 + $0x8] sm:$0xff]
        %v5953 = vld [vmem:[%s5950 + $0x10] sm:$0xff]
        %v5954 = vld [vmem:[%s5950 + $0x18] sm:$0xff]
        %v5955 = vld [vmem:[%s5950 + $0x20] sm:$0xff]
        %v5956 = vld [vmem:[%s5950 + $0x28] sm:$0xff]
        %v5957 = vld [vmem:[%s5950 + $0x30] sm:$0xff]
        %v5958 = vld [vmem:[%s5950 + $0x38] sm:$0xff]
        %v5959 = vld [vmem:[%s5950 + $0x40] sm:$0xff]
        %v5960 = vld [vmem:[%s5950 + $0x48] sm:$0xff]
        %v5961 = vld [vmem:[%s5950 + $0x50] sm:$0xff]
        %v5962 = vld [vmem:[%s5950 + $0x58] sm:$0xff]
        %v5963 = vld [vmem:[%s5950 + $0x60] sm:$0xff]
        %v5964 = vld [vmem:[%s5950 + $0x68] sm:$0xff]
        %v5965 = vld [vmem:[%s5950 + $0x70] sm:$0xff]
        %v5966 = vld [vmem:[%s5950 + $0x78] sm:$0xff]
        %v5967 = vld [vmem:[%s5950 + $0x80] sm:$0xff]
        %v5968 = vld [vmem:[%s5950 + $0x88] sm:$0xff]
        %v5969 = vld [vmem:[%s5950 + $0x90] sm:$0xff]
        %v5970 = vld [vmem:[%s5950 + $0x98] sm:$0xff]
        %v5971 = vld [vmem:[%s5950 + $0xa0] sm:$0xff]
        %v5972 = vld [vmem:[%s5950 + $0xa8] sm:$0xff]
        %v5973 = vld [vmem:[%s5950 + $0xb0] sm:$0xff]
        %v5974 = vld [vmem:[%s5950 + $0xb8] sm:$0xff]
        %v5975 = vld [vmem:[%s5950 + $0xc0] sm:$0xff]
        %v5976 = vld [vmem:[%s5950 + $0xc8] sm:$0xff]
        %v5977 = vld [vmem:[%s5950 + $0xd0] sm:$0xff]
        %v5978 = vld [vmem:[%s5950 + $0xd8] sm:$0xff]
        %v5979 = vld [vmem:[%s5950 + $0xe0] sm:$0xff]
        %v5980 = vld [vmem:[%s5950 + $0xe8] sm:$0xff]
        %v5981 = vld [vmem:[%s5950 + $0xf0] sm:$0xff]
        %v5982 = vld [vmem:[%s5950 + $0xf8] sm:$0xff]
        %s5983 = scalar_lea.vmem [#allocation7], 2
        %v5984 = vld [vmem:[%s5983] sm:$0x3]
        %v5986 = vlaneseq
        %v5987 = vshrl.u32 %v5986, 7
        %v5988 = vsub.s32 0, %v5987
        %v5989 = vrot.slane %v5984, %v5988
        %v5990 = vlaneseq
        %v5991 = vshrl.u32 %v5990, 7
        %v5992 = vsub.s32 1, %v5991
        %v5993 = vrot.slane %v5984, %v5992
        %v6028 = vunpack.c.l.b16 %v5951
        %v6029 = vunpack.c.h.b16 %v5951
        %v6030 = vunpack.c.l.b16 %v5952
        %v6031 = vunpack.c.h.b16 %v5952
        %v6032 = vunpack.c.l.b16 %v5953
        %v6033 = vunpack.c.h.b16 %v5953
        %v6034 = vunpack.c.l.b16 %v5954
        %v6035 = vunpack.c.h.b16 %v5954
        %v6036 = vunpack.c.l.b16 %v5955
        %v6037 = vunpack.c.h.b16 %v5955
        %v6038 = vunpack.c.l.b16 %v5956
        %v6039 = vunpack.c.h.b16 %v5956
        %v6040 = vunpack.c.l.b16 %v5957
        %v6041 = vunpack.c.h.b16 %v5957
        %v6042 = vunpack.c.l.b16 %v5958
        %v6043 = vunpack.c.h.b16 %v5958
        %v6044 = vunpack.c.l.b16 %v5959
        %v6045 = vunpack.c.h.b16 %v5959
        %v6046 = vunpack.c.l.b16 %v5960
        %v6047 = vunpack.c.h.b16 %v5960
        %v6048 = vunpack.c.l.b16 %v5961
        %v6049 = vunpack.c.h.b16 %v5961
        %v6050 = vunpack.c.l.b16 %v5962
        %v6051 = vunpack.c.h.b16 %v5962
        %v6052 = vunpack.c.l.b16 %v5963
        %v6053 = vunpack.c.h.b16 %v5963
        %v6054 = vunpack.c.l.b16 %v5964
        %v6055 = vunpack.c.h.b16 %v5964
        %v6056 = vunpack.c.l.b16 %v5965
        %v6057 = vunpack.c.h.b16 %v5965
        %v6058 = vunpack.c.l.b16 %v5966
        %v6059 = vunpack.c.h.b16 %v5966
        %v6060 = vunpack.c.l.b16 %v5967
        %v6061 = vunpack.c.h.b16 %v5967
        %v6062 = vunpack.c.l.b16 %v5968
        %v6063 = vunpack.c.h.b16 %v5968
        %v6064 = vunpack.c.l.b16 %v5969
        %v6065 = vunpack.c.h.b16 %v5969
        %v6066 = vunpack.c.l.b16 %v5970
        %v6067 = vunpack.c.h.b16 %v5970
        %v6068 = vunpack.c.l.b16 %v5971
        %v6069 = vunpack.c.h.b16 %v5971
        %v6070 = vunpack.c.l.b16 %v5972
        %v6071 = vunpack.c.h.b16 %v5972
        %v6072 = vunpack.c.l.b16 %v5973
        %v6073 = vunpack.c.h.b16 %v5973
        %v6074 = vunpack.c.l.b16 %v5974
        %v6075 = vunpack.c.h.b16 %v5974
        %v6076 = vunpack.c.l.b16 %v5975
        %v6077 = vunpack.c.h.b16 %v5975
        %v6078 = vunpack.c.l.b16 %v5976
        %v6079 = vunpack.c.h.b16 %v5976
        %v6080 = vunpack.c.l.b16 %v5977
        %v6081 = vunpack.c.h.b16 %v5977
        %v6082 = vunpack.c.l.b16 %v5978
        %v6083 = vunpack.c.h.b16 %v5978
        %v6084 = vunpack.c.l.b16 %v5979
        %v6085 = vunpack.c.h.b16 %v5979
        %v6086 = vunpack.c.l.b16 %v5980
        %v6087 = vunpack.c.h.b16 %v5980
        %v6088 = vunpack.c.l.b16 %v5981
        %v6089 = vunpack.c.h.b16 %v5981
        %v6090 = vunpack.c.l.b16 %v5982
        %v6091 = vunpack.c.h.b16 %v5982
        %v6092 = vpack.c.b16 %v6030, %v6028
        %v6093 = vpack.c.b16 %v6031, %v6029
        %v6094 = vpack.c.b16 %v6034, %v6032
        %v6095 = vpack.c.b16 %v6035, %v6033
        %v6096 = vpack.c.b16 %v6038, %v6036
        %v6097 = vpack.c.b16 %v6039, %v6037
        %v6098 = vpack.c.b16 %v6042, %v6040
        %v6099 = vpack.c.b16 %v6043, %v6041
        %v6100 = vpack.c.b16 %v6046, %v6044
        %v6101 = vpack.c.b16 %v6047, %v6045
        %v6102 = vpack.c.b16 %v6050, %v6048
        %v6103 = vpack.c.b16 %v6051, %v6049
        %v6104 = vpack.c.b16 %v6054, %v6052
        %v6105 = vpack.c.b16 %v6055, %v6053
        %v6106 = vpack.c.b16 %v6058, %v6056
        %v6107 = vpack.c.b16 %v6059, %v6057
        %v6108 = vpack.c.b16 %v6062, %v6060
        %v6109 = vpack.c.b16 %v6063, %v6061
        %v6110 = vpack.c.b16 %v6066, %v6064
        %v6111 = vpack.c.b16 %v6067, %v6065
        %v6112 = vpack.c.b16 %v6070, %v6068
        %v6113 = vpack.c.b16 %v6071, %v6069
        %v6114 = vpack.c.b16 %v6074, %v6072
        %v6115 = vpack.c.b16 %v6075, %v6073
        %v6116 = vpack.c.b16 %v6078, %v6076
        %v6117 = vpack.c.b16 %v6079, %v6077
        %v6118 = vpack.c.b16 %v6082, %v6080
        %v6119 = vpack.c.b16 %v6083, %v6081
        %v6120 = vpack.c.b16 %v6086, %v6084
        %v6121 = vpack.c.b16 %v6087, %v6085
        %v6122 = vpack.c.b16 %v6090, %v6088
        %v6123 = vpack.c.b16 %v6091, %v6089
        %6156 = vmatprep.subr.bf16.mxu0 %v6093
        %6157 = vmatpush1.bf16.msra.mxu0 %v6092
        %6158 = vmatprep.subr.bf16.mxu0 %v6095
        %6159 = vmatpush1.bf16.msra.mxu0 %v6094
        %6160 = vmatprep.subr.bf16.mxu0 %v6097
        %6161 = vmatpush1.bf16.msra.mxu0 %v6096
        %6162 = vmatprep.subr.bf16.mxu0 %v6099
        %6163 = vmatpush1.bf16.msra.mxu0 %v6098
        %6164 = vmatprep.subr.bf16.mxu0 %v6101
        %6165 = vmatpush1.bf16.msra.mxu0 %v6100
        %6166 = vmatprep.subr.bf16.mxu0 %v6103
        %6167 = vmatpush1.bf16.msra.mxu0 %v6102
        %6168 = vmatprep.subr.bf16.mxu0 %v6105
        %6169 = vmatpush1.bf16.msra.mxu0 %v6104
        %6170 = vmatprep.subr.bf16.mxu0 %v6107
        %6171 = vmatpush1.bf16.msra.mxu0 %v6106
        %6172 = vmatprep.subr.bf16.mxu0 %v6109
        %6173 = vmatpush1.bf16.msra.mxu0 %v6108
        %6174 = vmatprep.subr.bf16.mxu0 %v6111
        %6175 = vmatpush1.bf16.msra.mxu0 %v6110
        %6176 = vmatprep.subr.bf16.mxu0 %v6113
        %6177 = vmatpush1.bf16.msra.mxu0 %v6112
        %6178 = vmatprep.subr.bf16.mxu0 %v6115
        %6179 = vmatpush1.bf16.msra.mxu0 %v6114
        %6180 = vmatprep.subr.bf16.mxu0 %v6117
        %6181 = vmatpush1.bf16.msra.mxu0 %v6116
        %6182 = vmatprep.subr.bf16.mxu0 %v6119
        %6183 = vmatpush1.bf16.msra.mxu0 %v6118
        %6184 = vmatprep.subr.bf16.mxu0 %v6121
        %6185 = vmatpush1.bf16.msra.mxu0 %v6120
        %6186 = vmatprep.subr.bf16.mxu0 %v6123
        %6187 = vmatpush1.bf16.msra.mxu0 %v6122
        %6188 = vmatprep.mubr.bf16.mxu0 %v5949
        %6189 = vmatmul.mubr.bf16.gmra.mrb[0].mxu0 %v5948
        %v6190 = vpop.f32.mrb[0].mxu0
        %v6191 = vadd.f32 %v5989, %v6190
        %v6192 = vpop.f32.mrb[0].mxu0
        %v6193 = vadd.f32 %v5993, %v6192
        %v6194 = vpop.f32.mrb[0].mxu0
        %v6195 = vadd.f32 %v5989, %v6194
        %v6196 = vpop.f32.mrb[0].mxu0
        %v6197 = vadd.f32 %v5993, %v6196
        %6198 = vdwg.mxu0
        %s6199 = scalar_lea.vmem %s11, 256
        %v6200 = vld [vmem:[%s6199] sm:$0xff]
        %v6201 = vld [vmem:[%s6199 + $0x8] sm:$0xff]
        %v6202 = vld [vmem:[%s6199 + $0x10] sm:$0xff]
        %v6203 = vld [vmem:[%s6199 + $0x18] sm:$0xff]
        %v6204 = vld [vmem:[%s6199 + $0x20] sm:$0xff]
        %v6205 = vld [vmem:[%s6199 + $0x28] sm:$0xff]
        %v6206 = vld [vmem:[%s6199 + $0x30] sm:$0xff]
        %v6207 = vld [vmem:[%s6199 + $0x38] sm:$0xff]
        %v6208 = vld [vmem:[%s6199 + $0x40] sm:$0xff]
        %v6209 = vld [vmem:[%s6199 + $0x48] sm:$0xff]
        %v6210 = vld [vmem:[%s6199 + $0x50] sm:$0xff]
        %v6211 = vld [vmem:[%s6199 + $0x58] sm:$0xff]
        %v6212 = vld [vmem:[%s6199 + $0x60] sm:$0xff]
        %v6213 = vld [vmem:[%s6199 + $0x68] sm:$0xff]
        %v6214 = vld [vmem:[%s6199 + $0x70] sm:$0xff]
        %v6215 = vld [vmem:[%s6199 + $0x78] sm:$0xff]
        %v6216 = vld [vmem:[%s6199 + $0x80] sm:$0xff]
        %v6217 = vld [vmem:[%s6199 + $0x88] sm:$0xff]
        %v6218 = vld [vmem:[%s6199 + $0x90] sm:$0xff]
        %v6219 = vld [vmem:[%s6199 + $0x98] sm:$0xff]
        %v6220 = vld [vmem:[%s6199 + $0xa0] sm:$0xff]
        %v6221 = vld [vmem:[%s6199 + $0xa8] sm:$0xff]
        %v6222 = vld [vmem:[%s6199 + $0xb0] sm:$0xff]
        %v6223 = vld [vmem:[%s6199 + $0xb8] sm:$0xff]
        %v6224 = vld [vmem:[%s6199 + $0xc0] sm:$0xff]
        %v6225 = vld [vmem:[%s6199 + $0xc8] sm:$0xff]
        %v6226 = vld [vmem:[%s6199 + $0xd0] sm:$0xff]
        %v6227 = vld [vmem:[%s6199 + $0xd8] sm:$0xff]
        %v6228 = vld [vmem:[%s6199 + $0xe0] sm:$0xff]
        %v6229 = vld [vmem:[%s6199 + $0xe8] sm:$0xff]
        %v6230 = vld [vmem:[%s6199 + $0xf0] sm:$0xff]
        %v6231 = vld [vmem:[%s6199 + $0xf8] sm:$0xff]
        %s6232 = scalar_lea.vmem [#allocation8], 2
        %v6233 = vld [vmem:[%s6232] sm:$0x3]
        %v6235 = vlaneseq
        %v6236 = vshrl.u32 %v6235, 7
        %v6237 = vsub.s32 0, %v6236
        %v6238 = vrot.slane %v6233, %v6237
        %v6239 = vlaneseq
        %v6240 = vshrl.u32 %v6239, 7
        %v6241 = vsub.s32 1, %v6240
        %v6242 = vrot.slane %v6233, %v6241
        %v6277 = vunpack.c.l.b16 %v6200
        %v6278 = vunpack.c.h.b16 %v6200
        %v6279 = vunpack.c.l.b16 %v6201
        %v6280 = vunpack.c.h.b16 %v6201
        %v6281 = vunpack.c.l.b16 %v6202
        %v6282 = vunpack.c.h.b16 %v6202
        %v6283 = vunpack.c.l.b16 %v6203
        %v6284 = vunpack.c.h.b16 %v6203
        %v6285 = vunpack.c.l.b16 %v6204
        %v6286 = vunpack.c.h.b16 %v6204
        %v6287 = vunpack.c.l.b16 %v6205
        %v6288 = vunpack.c.h.b16 %v6205
        %v6289 = vunpack.c.l.b16 %v6206
        %v6290 = vunpack.c.h.b16 %v6206
        %v6291 = vunpack.c.l.b16 %v6207
        %v6292 = vunpack.c.h.b16 %v6207
        %v6293 = vunpack.c.l.b16 %v6208
        %v6294 = vunpack.c.h.b16 %v6208
        %v6295 = vunpack.c.l.b16 %v6209
        %v6296 = vunpack.c.h.b16 %v6209
        %v6297 = vunpack.c.l.b16 %v6210
        %v6298 = vunpack.c.h.b16 %v6210
        %v6299 = vunpack.c.l.b16 %v6211
        %v6300 = vunpack.c.h.b16 %v6211
        %v6301 = vunpack.c.l.b16 %v6212
        %v6302 = vunpack.c.h.b16 %v6212
        %v6303 = vunpack.c.l.b16 %v6213
        %v6304 = vunpack.c.h.b16 %v6213
        %v6305 = vunpack.c.l.b16 %v6214
        %v6306 = vunpack.c.h.b16 %v6214
        %v6307 = vunpack.c.l.b16 %v6215
        %v6308 = vunpack.c.h.b16 %v6215
        %v6309 = vunpack.c.l.b16 %v6216
        %v6310 = vunpack.c.h.b16 %v6216
        %v6311 = vunpack.c.l.b16 %v6217
        %v6312 = vunpack.c.h.b16 %v6217
        %v6313 = vunpack.c.l.b16 %v6218
        %v6314 = vunpack.c.h.b16 %v6218
        %v6315 = vunpack.c.l.b16 %v6219
        %v6316 = vunpack.c.h.b16 %v6219
        %v6317 = vunpack.c.l.b16 %v6220
        %v6318 = vunpack.c.h.b16 %v6220
        %v6319 = vunpack.c.l.b16 %v6221
        %v6320 = vunpack.c.h.b16 %v6221
        %v6321 = vunpack.c.l.b16 %v6222
        %v6322 = vunpack.c.h.b16 %v6222
        %v6323 = vunpack.c.l.b16 %v6223
        %v6324 = vunpack.c.h.b16 %v6223
        %v6325 = vunpack.c.l.b16 %v6224
        %v6326 = vunpack.c.h.b16 %v6224
        %v6327 = vunpack.c.l.b16 %v6225
        %v6328 = vunpack.c.h.b16 %v6225
        %v6329 = vunpack.c.l.b16 %v6226
        %v6330 = vunpack.c.h.b16 %v6226
        %v6331 = vunpack.c.l.b16 %v6227
        %v6332 = vunpack.c.h.b16 %v6227
        %v6333 = vunpack.c.l.b16 %v6228
        %v6334 = vunpack.c.h.b16 %v6228
        %v6335 = vunpack.c.l.b16 %v6229
        %v6336 = vunpack.c.h.b16 %v6229
        %v6337 = vunpack.c.l.b16 %v6230
        %v6338 = vunpack.c.h.b16 %v6230
        %v6339 = vunpack.c.l.b16 %v6231
        %v6340 = vunpack.c.h.b16 %v6231
        %v6341 = vpack.c.b16 %v6279, %v6277
        %v6342 = vpack.c.b16 %v6280, %v6278
        %v6343 = vpack.c.b16 %v6283, %v6281
        %v6344 = vpack.c.b16 %v6284, %v6282
        %v6345 = vpack.c.b16 %v6287, %v6285
        %v6346 = vpack.c.b16 %v6288, %v6286
        %v6347 = vpack.c.b16 %v6291, %v6289
        %v6348 = vpack.c.b16 %v6292, %v6290
        %v6349 = vpack.c.b16 %v6295, %v6293
        %v6350 = vpack.c.b16 %v6296, %v6294
        %v6351 = vpack.c.b16 %v6299, %v6297
        %v6352 = vpack.c.b16 %v6300, %v6298
        %v6353 = vpack.c.b16 %v6303, %v6301
        %v6354 = vpack.c.b16 %v6304, %v6302
        %v6355 = vpack.c.b16 %v6307, %v6305
        %v6356 = vpack.c.b16 %v6308, %v6306
        %v6357 = vpack.c.b16 %v6311, %v6309
        %v6358 = vpack.c.b16 %v6312, %v6310
        %v6359 = vpack.c.b16 %v6315, %v6313
        %v6360 = vpack.c.b16 %v6316, %v6314
        %v6361 = vpack.c.b16 %v6319, %v6317
        %v6362 = vpack.c.b16 %v6320, %v6318
        %v6363 = vpack.c.b16 %v6323, %v6321
        %v6364 = vpack.c.b16 %v6324, %v6322
        %v6365 = vpack.c.b16 %v6327, %v6325
        %v6366 = vpack.c.b16 %v6328, %v6326
        %v6367 = vpack.c.b16 %v6331, %v6329
        %v6368 = vpack.c.b16 %v6332, %v6330
        %v6369 = vpack.c.b16 %v6335, %v6333
        %v6370 = vpack.c.b16 %v6336, %v6334
        %v6371 = vpack.c.b16 %v6339, %v6337
        %v6372 = vpack.c.b16 %v6340, %v6338
        %6405 = vmatprep.subr.bf16.mxu0 %v6342
        %6406 = vmatpush1.bf16.msra.mxu0 %v6341
        %6407 = vmatprep.subr.bf16.mxu0 %v6344
        %6408 = vmatpush1.bf16.msra.mxu0 %v6343
        %6409 = vmatprep.subr.bf16.mxu0 %v6346
        %6410 = vmatpush1.bf16.msra.mxu0 %v6345
        %6411 = vmatprep.subr.bf16.mxu0 %v6348
        %6412 = vmatpush1.bf16.msra.mxu0 %v6347
        %6413 = vmatprep.subr.bf16.mxu0 %v6350
        %6414 = vmatpush1.bf16.msra.mxu0 %v6349
        %6415 = vmatprep.subr.bf16.mxu0 %v6352
        %6416 = vmatpush1.bf16.msra.mxu0 %v6351
        %6417 = vmatprep.subr.bf16.mxu0 %v6354
        %6418 = vmatpush1.bf16.msra.mxu0 %v6353
        %6419 = vmatprep.subr.bf16.mxu0 %v6356
        %6420 = vmatpush1.bf16.msra.mxu0 %v6355
        %6421 = vmatprep.subr.bf16.mxu0 %v6358
        %6422 = vmatpush1.bf16.msra.mxu0 %v6357
        %6423 = vmatprep.subr.bf16.mxu0 %v6360
        %6424 = vmatpush1.bf16.msra.mxu0 %v6359
        %6425 = vmatprep.subr.bf16.mxu0 %v6362
        %6426 = vmatpush1.bf16.msra.mxu0 %v6361
        %6427 = vmatprep.subr.bf16.mxu0 %v6364
        %6428 = vmatpush1.bf16.msra.mxu0 %v6363
        %6429 = vmatprep.subr.bf16.mxu0 %v6366
        %6430 = vmatpush1.bf16.msra.mxu0 %v6365
        %6431 = vmatprep.subr.bf16.mxu0 %v6368
        %6432 = vmatpush1.bf16.msra.mxu0 %v6367
        %6433 = vmatprep.subr.bf16.mxu0 %v6370
        %6434 = vmatpush1.bf16.msra.mxu0 %v6369
        %6435 = vmatprep.subr.bf16.mxu0 %v6372
        %6436 = vmatpush1.bf16.msra.mxu0 %v6371
        %6437 = vmatprep.mubr.bf16.mxu0 %v5949
        %6438 = vmatmul.mubr.bf16.gmra.mrb[0].mxu0 %v5948
        %v6439 = vpop.f32.mrb[0].mxu0
        %v6440 = vadd.f32 %v6238, %v6439
        %v6441 = vpop.f32.mrb[0].mxu0
        %v6442 = vadd.f32 %v6242, %v6441
        %v6443 = vpop.f32.mrb[0].mxu0
        %v6444 = vadd.f32 %v6238, %v6443
        %v6445 = vpop.f32.mrb[0].mxu0
        %v6446 = vadd.f32 %v6242, %v6445
        %6447 = vdwg.mxu0
        %v6448 = vpack.c.bf16 %v5458, %v5456
        %v6449 = vpack.c.bf16 %v5459, %v5457
        %s6450 = scalar_lea.vmem %s13, 256
        %v6451 = vld [vmem:[%s6450] sm:$0xff]
        %v6452 = vld [vmem:[%s6450 + $0x8] sm:$0xff]
        %v6453 = vld [vmem:[%s6450 + $0x10] sm:$0xff]
        %v6454 = vld [vmem:[%s6450 + $0x18] sm:$0xff]
        %v6455 = vld [vmem:[%s6450 + $0x20] sm:$0xff]
        %v6456 = vld [vmem:[%s6450 + $0x28] sm:$0xff]
        %v6457 = vld [vmem:[%s6450 + $0x30] sm:$0xff]
        %v6458 = vld [vmem:[%s6450 + $0x38] sm:$0xff]
        %v6459 = vld [vmem:[%s6450 + $0x40] sm:$0xff]
        %v6460 = vld [vmem:[%s6450 + $0x48] sm:$0xff]
        %v6461 = vld [vmem:[%s6450 + $0x50] sm:$0xff]
        %v6462 = vld [vmem:[%s6450 + $0x58] sm:$0xff]
        %v6463 = vld [vmem:[%s6450 + $0x60] sm:$0xff]
        %v6464 = vld [vmem:[%s6450 + $0x68] sm:$0xff]
        %v6465 = vld [vmem:[%s6450 + $0x70] sm:$0xff]
        %v6466 = vld [vmem:[%s6450 + $0x78] sm:$0xff]
        %v6467 = vld [vmem:[%s6450 + $0x80] sm:$0xff]
        %v6468 = vld [vmem:[%s6450 + $0x88] sm:$0xff]
        %v6469 = vld [vmem:[%s6450 + $0x90] sm:$0xff]
        %v6470 = vld [vmem:[%s6450 + $0x98] sm:$0xff]
        %v6471 = vld [vmem:[%s6450 + $0xa0] sm:$0xff]
        %v6472 = vld [vmem:[%s6450 + $0xa8] sm:$0xff]
        %v6473 = vld [vmem:[%s6450 + $0xb0] sm:$0xff]
        %v6474 = vld [vmem:[%s6450 + $0xb8] sm:$0xff]
        %v6475 = vld [vmem:[%s6450 + $0xc0] sm:$0xff]
        %v6476 = vld [vmem:[%s6450 + $0xc8] sm:$0xff]
        %v6477 = vld [vmem:[%s6450 + $0xd0] sm:$0xff]
        %v6478 = vld [vmem:[%s6450 + $0xd8] sm:$0xff]
        %v6479 = vld [vmem:[%s6450 + $0xe0] sm:$0xff]
        %v6480 = vld [vmem:[%s6450 + $0xe8] sm:$0xff]
        %v6481 = vld [vmem:[%s6450 + $0xf0] sm:$0xff]
        %v6482 = vld [vmem:[%s6450 + $0xf8] sm:$0xff]
        %s6483 = scalar_lea.vmem [#allocation10], 2
        %v6484 = vld [vmem:[%s6483] sm:$0x3]
        %v6486 = vlaneseq
        %v6487 = vshrl.u32 %v6486, 7
        %v6488 = vsub.s32 0, %v6487
        %v6489 = vrot.slane %v6484, %v6488
        %v6490 = vlaneseq
        %v6491 = vshrl.u32 %v6490, 7
        %v6492 = vsub.s32 1, %v6491
        %v6493 = vrot.slane %v6484, %v6492
        %v6528 = vunpack.c.l.b16 %v6451
        %v6529 = vunpack.c.h.b16 %v6451
        %v6530 = vunpack.c.l.b16 %v6452
        %v6531 = vunpack.c.h.b16 %v6452
        %v6532 = vunpack.c.l.b16 %v6453
        %v6533 = vunpack.c.h.b16 %v6453
        %v6534 = vunpack.c.l.b16 %v6454
        %v6535 = vunpack.c.h.b16 %v6454
        %v6536 = vunpack.c.l.b16 %v6455
        %v6537 = vunpack.c.h.b16 %v6455
        %v6538 = vunpack.c.l.b16 %v6456
        %v6539 = vunpack.c.h.b16 %v6456
        %v6540 = vunpack.c.l.b16 %v6457
        %v6541 = vunpack.c.h.b16 %v6457
        %v6542 = vunpack.c.l.b16 %v6458
        %v6543 = vunpack.c.h.b16 %v6458
        %v6544 = vunpack.c.l.b16 %v6459
        %v6545 = vunpack.c.h.b16 %v6459
        %v6546 = vunpack.c.l.b16 %v6460
        %v6547 = vunpack.c.h.b16 %v6460
        %v6548 = vunpack.c.l.b16 %v6461
        %v6549 = vunpack.c.h.b16 %v6461
        %v6550 = vunpack.c.l.b16 %v6462
        %v6551 = vunpack.c.h.b16 %v6462
        %v6552 = vunpack.c.l.b16 %v6463
        %v6553 = vunpack.c.h.b16 %v6463
        %v6554 = vunpack.c.l.b16 %v6464
        %v6555 = vunpack.c.h.b16 %v6464
        %v6556 = vunpack.c.l.b16 %v6465
        %v6557 = vunpack.c.h.b16 %v6465
        %v6558 = vunpack.c.l.b16 %v6466
        %v6559 = vunpack.c.h.b16 %v6466
        %v6560 = vunpack.c.l.b16 %v6467
        %v6561 = vunpack.c.h.b16 %v6467
        %v6562 = vunpack.c.l.b16 %v6468
        %v6563 = vunpack.c.h.b16 %v6468
        %v6564 = vunpack.c.l.b16 %v6469
        %v6565 = vunpack.c.h.b16 %v6469
        %v6566 = vunpack.c.l.b16 %v6470
        %v6567 = vunpack.c.h.b16 %v6470
        %v6568 = vunpack.c.l.b16 %v6471
        %v6569 = vunpack.c.h.b16 %v6471
        %v6570 = vunpack.c.l.b16 %v6472
        %v6571 = vunpack.c.h.b16 %v6472
        %v6572 = vunpack.c.l.b16 %v6473
        %v6573 = vunpack.c.h.b16 %v6473
        %v6574 = vunpack.c.l.b16 %v6474
        %v6575 = vunpack.c.h.b16 %v6474
        %v6576 = vunpack.c.l.b16 %v6475
        %v6577 = vunpack.c.h.b16 %v6475
        %v6578 = vunpack.c.l.b16 %v6476
        %v6579 = vunpack.c.h.b16 %v6476
        %v6580 = vunpack.c.l.b16 %v6477
        %v6581 = vunpack.c.h.b16 %v6477
        %v6582 = vunpack.c.l.b16 %v6478
        %v6583 = vunpack.c.h.b16 %v6478
        %v6584 = vunpack.c.l.b16 %v6479
        %v6585 = vunpack.c.h.b16 %v6479
        %v6586 = vunpack.c.l.b16 %v6480
        %v6587 = vunpack.c.h.b16 %v6480
        %v6588 = vunpack.c.l.b16 %v6481
        %v6589 = vunpack.c.h.b16 %v6481
        %v6590 = vunpack.c.l.b16 %v6482
        %v6591 = vunpack.c.h.b16 %v6482
        %v6592 = vpack.c.b16 %v6530, %v6528
        %v6593 = vpack.c.b16 %v6531, %v6529
        %v6594 = vpack.c.b16 %v6534, %v6532
        %v6595 = vpack.c.b16 %v6535, %v6533
        %v6596 = vpack.c.b16 %v6538, %v6536
        %v6597 = vpack.c.b16 %v6539, %v6537
        %v6598 = vpack.c.b16 %v6542, %v6540
        %v6599 = vpack.c.b16 %v6543, %v6541
        %v6600 = vpack.c.b16 %v6546, %v6544
        %v6601 = vpack.c.b16 %v6547, %v6545
        %v6602 = vpack.c.b16 %v6550, %v6548
        %v6603 = vpack.c.b16 %v6551, %v6549
        %v6604 = vpack.c.b16 %v6554, %v6552
        %v6605 = vpack.c.b16 %v6555, %v6553
        %v6606 = vpack.c.b16 %v6558, %v6556
        %v6607 = vpack.c.b16 %v6559, %v6557
        %v6608 = vpack.c.b16 %v6562, %v6560
        %v6609 = vpack.c.b16 %v6563, %v6561
        %v6610 = vpack.c.b16 %v6566, %v6564
        %v6611 = vpack.c.b16 %v6567, %v6565
        %v6612 = vpack.c.b16 %v6570, %v6568
        %v6613 = vpack.c.b16 %v6571, %v6569
        %v6614 = vpack.c.b16 %v6574, %v6572
        %v6615 = vpack.c.b16 %v6575, %v6573
        %v6616 = vpack.c.b16 %v6578, %v6576
        %v6617 = vpack.c.b16 %v6579, %v6577
        %v6618 = vpack.c.b16 %v6582, %v6580
        %v6619 = vpack.c.b16 %v6583, %v6581
        %v6620 = vpack.c.b16 %v6586, %v6584
        %v6621 = vpack.c.b16 %v6587, %v6585
        %v6622 = vpack.c.b16 %v6590, %v6588
        %v6623 = vpack.c.b16 %v6591, %v6589
        %6656 = vmatprep.subr.bf16.mxu0 %v6593
        %6657 = vmatpush1.bf16.msra.mxu0 %v6592
        %6658 = vmatprep.subr.bf16.mxu0 %v6595
        %6659 = vmatpush1.bf16.msra.mxu0 %v6594
        %6660 = vmatprep.subr.bf16.mxu0 %v6597
        %6661 = vmatpush1.bf16.msra.mxu0 %v6596
        %6662 = vmatprep.subr.bf16.mxu0 %v6599
        %6663 = vmatpush1.bf16.msra.mxu0 %v6598
        %6664 = vmatprep.subr.bf16.mxu0 %v6601
        %6665 = vmatpush1.bf16.msra.mxu0 %v6600
        %6666 = vmatprep.subr.bf16.mxu0 %v6603
        %6667 = vmatpush1.bf16.msra.mxu0 %v6602
        %6668 = vmatprep.subr.bf16.mxu0 %v6605
        %6669 = vmatpush1.bf16.msra.mxu0 %v6604
        %6670 = vmatprep.subr.bf16.mxu0 %v6607
        %6671 = vmatpush1.bf16.msra.mxu0 %v6606
        %6672 = vmatprep.subr.bf16.mxu0 %v6609
        %6673 = vmatpush1.bf16.msra.mxu0 %v6608
        %6674 = vmatprep.subr.bf16.mxu0 %v6611
        %6675 = vmatpush1.bf16.msra.mxu0 %v6610
        %6676 = vmatprep.subr.bf16.mxu0 %v6613
        %6677 = vmatpush1.bf16.msra.mxu0 %v6612
        %6678 = vmatprep.subr.bf16.mxu0 %v6615
        %6679 = vmatpush1.bf16.msra.mxu0 %v6614
        %6680 = vmatprep.subr.bf16.mxu0 %v6617
        %6681 = vmatpush1.bf16.msra.mxu0 %v6616
        %6682 = vmatprep.subr.bf16.mxu0 %v6619
        %6683 = vmatpush1.bf16.msra.mxu0 %v6618
        %6684 = vmatprep.subr.bf16.mxu0 %v6621
        %6685 = vmatpush1.bf16.msra.mxu0 %v6620
        %6686 = vmatprep.subr.bf16.mxu0 %v6623
        %6687 = vmatpush1.bf16.msra.mxu0 %v6622
        %6688 = vmatprep.mubr.bf16.mxu0 %v6449
        %6689 = vmatmul.mubr.bf16.gmra.mrb[0].mxu0 %v6448
        %v6690 = vpop.f32.mrb[0].mxu0
        %v6691 = vadd.f32 %v6489, %v6690
        %v6692 = vpop.f32.mrb[0].mxu0
        %v6693 = vadd.f32 %v6493, %v6692
        %v6694 = vpop.f32.mrb[0].mxu0
        %v6695 = vadd.f32 %v6489, %v6694
        %v6696 = vpop.f32.mrb[0].mxu0
        %v6697 = vadd.f32 %v6493, %v6696
        %6698 = vdwg.mxu0
        %s6699 = scalar_lea.vmem [#allocation11], 256
        %v6700 = vld [vmem:[%s6699] sm:$0xff]
        %v6701 = vld [vmem:[%s6699 + $0x8] sm:$0xff]
        %v6702 = vld [vmem:[%s6699 + $0x10] sm:$0xff]
        %v6703 = vld [vmem:[%s6699 + $0x18] sm:$0xff]
        %v6704 = vld [vmem:[%s6699 + $0x20] sm:$0xff]
        %v6705 = vld [vmem:[%s6699 + $0x28] sm:$0xff]
        %v6706 = vld [vmem:[%s6699 + $0x30] sm:$0xff]
        %v6707 = vld [vmem:[%s6699 + $0x38] sm:$0xff]
        %v6708 = vld [vmem:[%s6699 + $0x40] sm:$0xff]
        %v6709 = vld [vmem:[%s6699 + $0x48] sm:$0xff]
        %v6710 = vld [vmem:[%s6699 + $0x50] sm:$0xff]
        %v6711 = vld [vmem:[%s6699 + $0x58] sm:$0xff]
        %v6712 = vld [vmem:[%s6699 + $0x60] sm:$0xff]
        %v6713 = vld [vmem:[%s6699 + $0x68] sm:$0xff]
        %v6714 = vld [vmem:[%s6699 + $0x70] sm:$0xff]
        %v6715 = vld [vmem:[%s6699 + $0x78] sm:$0xff]
        %v6716 = vld [vmem:[%s6699 + $0x80] sm:$0xff]
        %v6717 = vld [vmem:[%s6699 + $0x88] sm:$0xff]
        %v6718 = vld [vmem:[%s6699 + $0x90] sm:$0xff]
        %v6719 = vld [vmem:[%s6699 + $0x98] sm:$0xff]
        %v6720 = vld [vmem:[%s6699 + $0xa0] sm:$0xff]
        %v6721 = vld [vmem:[%s6699 + $0xa8] sm:$0xff]
        %v6722 = vld [vmem:[%s6699 + $0xb0] sm:$0xff]
        %v6723 = vld [vmem:[%s6699 + $0xb8] sm:$0xff]
        %v6724 = vld [vmem:[%s6699 + $0xc0] sm:$0xff]
        %v6725 = vld [vmem:[%s6699 + $0xc8] sm:$0xff]
        %v6726 = vld [vmem:[%s6699 + $0xd0] sm:$0xff]
        %v6727 = vld [vmem:[%s6699 + $0xd8] sm:$0xff]
        %v6728 = vld [vmem:[%s6699 + $0xe0] sm:$0xff]
        %v6729 = vld [vmem:[%s6699 + $0xe8] sm:$0xff]
        %v6730 = vld [vmem:[%s6699 + $0xf0] sm:$0xff]
        %v6731 = vld [vmem:[%s6699 + $0xf8] sm:$0xff]
        %v6732 = vpack.c.bf16 %v6195, %v6191
        %v6733 = vpack.c.bf16 %v6444, %v6440
        %v6734 = vpack.c.bf16 %v6695, %v6691
        %v6736 = vsel %vm2756, %v6732, 0
        %v6739 = vsel %vm2756, %v6733, 0
        %6741 = vmatprep.subr.bf16.mxu0 0
        %6742 = vmatpush1.bf16.xpose.msra.mxu0 %v6739
        %6743 = vmatprep.subr.bf16.mxu0 0
        %6744 = vmatpush1.bf16.xpose.msra.mxu0 0
        %6745 = vmatprep.subr.bf16.mxu0 0
        %6746 = vmatpush1.bf16.xpose.msra.mxu0 0
        %6747 = vmatprep.subr.bf16.mxu0 0
        %6748 = vmatpush1.bf16.xpose.msra.mxu0 0
        %6749 = vmatprep.subr.bf16.mxu0 0
        %6750 = vmatpush1.bf16.xpose.msra.mxu0 0
        %6751 = vmatprep.subr.bf16.mxu0 0
        %6752 = vmatpush1.bf16.xpose.msra.mxu0 0
        %6753 = vmatprep.subr.bf16.mxu0 0
        %6754 = vmatpush1.bf16.xpose.msra.mxu0 0
        %6755 = vmatprep.subr.bf16.mxu0 0
        %6756 = vmatpush1.bf16.xpose.msra.mxu0 0
        %6757 = vmatprep.subr.bf16.mxu0 0
        %6758 = vmatpush1.bf16.xpose.msra.mxu0 0
        %6759 = vmatprep.subr.bf16.mxu0 0
        %6760 = vmatpush1.bf16.xpose.msra.mxu0 0
        %6761 = vmatprep.subr.bf16.mxu0 0
        %6762 = vmatpush1.bf16.xpose.msra.mxu0 0
        %6763 = vmatprep.subr.bf16.mxu0 0
        %6764 = vmatpush1.bf16.xpose.msra.mxu0 0
        %6765 = vmatprep.subr.bf16.mxu0 0
        %6766 = vmatpush1.bf16.xpose.msra.mxu0 0
        %6767 = vmatprep.subr.bf16.mxu0 0
        %6768 = vmatpush1.bf16.xpose.msra.mxu0 0
        %6769 = vmatprep.subr.bf16.mxu0 0
        %6770 = vmatpush1.bf16.xpose.msra.mxu0 0
        %6771 = vmatprep.subr.bf16.mxu0 0
        %6772 = vmatpush1.bf16.xpose.msra.mxu0 0
        %6773 = vmatprep.mubr.bf16.mxu0 0
        %6774 = vmatmul.mubr.bf16.gmra.mrb[0].mxu0 %v6736
        %v6775 = vpop.f32.mrb[0].mxu0
        %v6776 = vadd.f32 0.0, %v6775
        %v6777 = vpop.f32.mrb[0].mxu0
        %v6778 = vpop.f32.mrb[0].mxu0
        %v6779 = vadd.f32 0.0, %v6778
        %v6780 = vpop.f32.mrb[0].mxu0
        %6781 = vdwg.mxu0
        %v6782 = vmul.f32 %v6776, 0.17677669
        %v6783 = vmul.f32 %v6779, 0.17677669
        %v6784 = vadd.f32 %v6782, %v2810
        %v6785 = vadd.f32 %v6783, %v2810
        %v6786 = vsel %vm2814, %v6784, -inf
        %6787 = vmax.xlane.f32.xlu0 %v6786
        %v6788 = vpop.xlane.xlu0 %6787
        %v6789 = vsel %vm2814, %v6785, -inf
        %6790 = vmax.xlane.f32.xlu0 %v6789
        %v6791 = vpop.xlane.xlu0 %6790
        %v6792 = vsub.f32 %v6784, %v6788
        %v6793 = vsub.f32 %v6785, %v6791
        %v6794 = vmul.f32 %v6792, 1.442695
        %v6795 = vpow.pop %v6794
        %v6796 = vmul.f32 %v6793, 1.442695
        %v6797 = vpow.pop %v6796
        %v6798 = vsel %vm2814, %v6795, 0.0
        %6799 = vadd.xlane.f32.xlu0 %v6798
        %v6800 = vpop.xlane.xlu0 %6799
        %v6801 = vsel %vm2814, %v6797, 0.0
        %6802 = vadd.xlane.f32.xlu0 %v6801
        %v6803 = vpop.xlane.xlu0 %6802
        %v6804 = vrcp.pop %v6800
        %v6805 = vmul.f32 %v6795, %v6804
        %v6806 = vrcp.pop %v6803
        %v6807 = vmul.f32 %v6797, %v6806
        %v6808 = vpack.c.bf16 %v6807, %v6805
        %v6810 = vsel %vm2814, %v6808, 0
        %6812 = vmatprep.subr.bf16.mxu0 0
        %6813 = vmatpush1.bf16.msra.mxu0 %v6734
        %6814 = vmatprep.subr.bf16.mxu0 0
        %6815 = vmatpush1.bf16.msra.mxu0 0
        %6816 = vmatprep.subr.bf16.mxu0 0
        %6817 = vmatpush1.bf16.msra.mxu0 0
        %6818 = vmatprep.subr.bf16.mxu0 0
        %6819 = vmatpush1.bf16.msra.mxu0 0
        %6820 = vmatprep.subr.bf16.mxu0 0
        %6821 = vmatpush1.bf16.msra.mxu0 0
        %6822 = vmatprep.subr.bf16.mxu0 0
        %6823 = vmatpush1.bf16.msra.mxu0 0
        %6824 = vmatprep.subr.bf16.mxu0 0
        %6825 = vmatpush1.bf16.msra.mxu0 0
        %6826 = vmatprep.subr.bf16.mxu0 0
        %6827 = vmatpush1.bf16.msra.mxu0 0
        %6828 = vmatprep.subr.bf16.mxu0 0
        %6829 = vmatpush1.bf16.msra.mxu0 0
        %6830 = vmatprep.subr.bf16.mxu0 0
        %6831 = vmatpush1.bf16.msra.mxu0 0
        %6832 = vmatprep.subr.bf16.mxu0 0
        %6833 = vmatpush1.bf16.msra.mxu0 0
        %6834 = vmatprep.subr.bf16.mxu0 0
        %6835 = vmatpush1.bf16.msra.mxu0 0
        %6836 = vmatprep.subr.bf16.mxu0 0
        %6837 = vmatpush1.bf16.msra.mxu0 0
        %6838 = vmatprep.subr.bf16.mxu0 0
        %6839 = vmatpush1.bf16.msra.mxu0 0
        %6840 = vmatprep.subr.bf16.mxu0 0
        %6841 = vmatpush1.bf16.msra.mxu0 0
        %6842 = vmatprep.subr.bf16.mxu0 0
        %6843 = vmatpush1.bf16.msra.mxu0 0
        %6844 = vmatprep.mubr.bf16.mxu0 0
        %6845 = vmatmul.mubr.bf16.gmra.mrb[0].mxu0 %v6810
        %v6846 = vpop.f32.mrb[0].mxu0
        %v6847 = vadd.f32 0.0, %v6846
        %v6848 = vpop.f32.mrb[0].mxu0
        %v6849 = vpop.f32.mrb[0].mxu0
        %v6850 = vadd.f32 0.0, %v6849
        %v6851 = vpop.f32.mrb[0].mxu0
        %6852 = vdwg.mxu0
        %v6853 = vpack.c.bf16 %v6850, %v6847
        %6855 = vrot.lane.b32.xlu0 %v6732, 96
        %v6856 = vpop.permute.xlu0 %6855
        %6858 = vrot.lane.b32.xlu0 %v6733, 96
        %v6859 = vpop.permute.xlu0 %6858
        %v6861 = vsel %vm2756, %v6856, 0
        %v6864 = vsel %vm2756, %v6859, 0
        %6866 = vmatprep.subr.bf16.mxu0 0
        %6867 = vmatpush1.bf16.xpose.msra.mxu0 %v6864
        %6868 = vmatprep.subr.bf16.mxu0 0
        %6869 = vmatpush1.bf16.xpose.msra.mxu0 0
        %6870 = vmatprep.subr.bf16.mxu0 0
        %6871 = vmatpush1.bf16.xpose.msra.mxu0 0
        %6872 = vmatprep.subr.bf16.mxu0 0
        %6873 = vmatpush1.bf16.xpose.msra.mxu0 0
        %6874 = vmatprep.subr.bf16.mxu0 0
        %6875 = vmatpush1.bf16.xpose.msra.mxu0 0
        %6876 = vmatprep.subr.bf16.mxu0 0
        %6877 = vmatpush1.bf16.xpose.msra.mxu0 0
        %6878 = vmatprep.subr.bf16.mxu0 0
        %6879 = vmatpush1.bf16.xpose.msra.mxu0 0
        %6880 = vmatprep.subr.bf16.mxu0 0
        %6881 = vmatpush1.bf16.xpose.msra.mxu0 0
        %6882 = vmatprep.subr.bf16.mxu0 0
        %6883 = vmatpush1.bf16.xpose.msra.mxu0 0
        %6884 = vmatprep.subr.bf16.mxu0 0
        %6885 = vmatpush1.bf16.xpose.msra.mxu0 0
        %6886 = vmatprep.subr.bf16.mxu0 0
        %6887 = vmatpush1.bf16.xpose.msra.mxu0 0
        %6888 = vmatprep.subr.bf16.mxu0 0
        %6889 = vmatpush1.bf16.xpose.msra.mxu0 0
        %6890 = vmatprep.subr.bf16.mxu0 0
        %6891 = vmatpush1.bf16.xpose.msra.mxu0 0
        %6892 = vmatprep.subr.bf16.mxu0 0
        %6893 = vmatpush1.bf16.xpose.msra.mxu0 0
        %6894 = vmatprep.subr.bf16.mxu0 0
        %6895 = vmatpush1.bf16.xpose.msra.mxu0 0
        %6896 = vmatprep.subr.bf16.mxu0 0
        %6897 = vmatpush1.bf16.xpose.msra.mxu0 0
        %6898 = vmatprep.mubr.bf16.mxu0 0
        %6899 = vmatmul.mubr.bf16.gmra.mrb[0].mxu0 %v6861
        %v6900 = vpop.f32.mrb[0].mxu0
        %v6901 = vadd.f32 0.0, %v6900
        %v6902 = vpop.f32.mrb[0].mxu0
        %v6903 = vpop.f32.mrb[0].mxu0
        %v6904 = vadd.f32 0.0, %v6903
        %v6905 = vpop.f32.mrb[0].mxu0
        %6906 = vdwg.mxu0
        %v6907 = vmul.f32 %v6901, 0.17677669
        %v6908 = vmul.f32 %v6904, 0.17677669
        %v6909 = vadd.f32 %v6907, %v2810
        %v6910 = vadd.f32 %v6908, %v2810
        %v6911 = vsel %vm2814, %v6909, -inf
        %6912 = vmax.xlane.f32.xlu0 %v6911
        %v6913 = vpop.xlane.xlu0 %6912
        %v6914 = vsel %vm2814, %v6910, -inf
        %6915 = vmax.xlane.f32.xlu0 %v6914
        %v6916 = vpop.xlane.xlu0 %6915
        %v6917 = vsub.f32 %v6909, %v6913
        %v6918 = vsub.f32 %v6910, %v6916
        %v6919 = vmul.f32 %v6917, 1.442695
        %v6920 = vpow.pop %v6919
        %v6921 = vmul.f32 %v6918, 1.442695
        %v6922 = vpow.pop %v6921
        %v6923 = vsel %vm2814, %v6920, 0.0
        %6924 = vadd.xlane.f32.xlu0 %v6923
        %v6925 = vpop.xlane.xlu0 %6924
        %v6926 = vsel %vm2814, %v6922, 0.0
        %6927 = vadd.xlane.f32.xlu0 %v6926
        %v6928 = vpop.xlane.xlu0 %6927
        %v6929 = vrcp.pop %v6925
        %v6930 = vmul.f32 %v6920, %v6929
        %v6931 = vrcp.pop %v6928
        %v6932 = vmul.f32 %v6922, %v6931
        %v6933 = vpack.c.bf16 %v6932, %v6930
        %6935 = vrot.lane.b32.xlu0 %v6734, 96
        %v6936 = vpop.permute.xlu0 %6935
        %v6939 = vsel %vm2814, %v6933, 0
        %6941 = vmatprep.subr.bf16.mxu0 0
        %6942 = vmatpush1.bf16.msra.mxu0 %v6936
        %6943 = vmatprep.subr.bf16.mxu0 0
        %6944 = vmatpush1.bf16.msra.mxu0 0
        %6945 = vmatprep.subr.bf16.mxu0 0
        %6946 = vmatpush1.bf16.msra.mxu0 0
        %6947 = vmatprep.subr.bf16.mxu0 0
        %6948 = vmatpush1.bf16.msra.mxu0 0
        %6949 = vmatprep.subr.bf16.mxu0 0
        %6950 = vmatpush1.bf16.msra.mxu0 0
        %6951 = vmatprep.subr.bf16.mxu0 0
        %6952 = vmatpush1.bf16.msra.mxu0 0
        %6953 = vmatprep.subr.bf16.mxu0 0
        %6954 = vmatpush1.bf16.msra.mxu0 0
        %6955 = vmatprep.subr.bf16.mxu0 0
        %6956 = vmatpush1.bf16.msra.mxu0 0
        %6957 = vmatprep.subr.bf16.mxu0 0
        %6958 = vmatpush1.bf16.msra.mxu0 0
        %6959 = vmatprep.subr.bf16.mxu0 0
        %6960 = vmatpush1.bf16.msra.mxu0 0
        %6961 = vmatprep.subr.bf16.mxu0 0
        %6962 = vmatpush1.bf16.msra.mxu0 0
        %6963 = vmatprep.subr.bf16.mxu0 0
        %6964 = vmatpush1.bf16.msra.mxu0 0
        %6965 = vmatprep.subr.bf16.mxu0 0
        %6966 = vmatpush1.bf16.msra.mxu0 0
        %6967 = vmatprep.subr.bf16.mxu0 0
        %6968 = vmatpush1.bf16.msra.mxu0 0
        %6969 = vmatprep.subr.bf16.mxu0 0
        %6970 = vmatpush1.bf16.msra.mxu0 0
        %6971 = vmatprep.subr.bf16.mxu0 0
        %6972 = vmatpush1.bf16.msra.mxu0 0
        %6973 = vmatprep.mubr.bf16.mxu0 0
        %6974 = vmatmul.mubr.bf16.gmra.mrb[0].mxu0 %v6939
        %v6975 = vpop.f32.mrb[0].mxu0
        %v6976 = vadd.f32 0.0, %v6975
        %v6977 = vpop.f32.mrb[0].mxu0
        %v6978 = vpop.f32.mrb[0].mxu0
        %v6979 = vadd.f32 0.0, %v6978
        %v6980 = vpop.f32.mrb[0].mxu0
        %6981 = vdwg.mxu0
        %v6982 = vpack.c.bf16 %v6979, %v6976
        %v6987 = vunpack.c.l.b16 %v6704
        %v6988 = vunpack.c.h.b16 %v6704
        %v6989 = vunpack.c.l.b16 %v6705
        %v6990 = vunpack.c.h.b16 %v6705
        %v6991 = vunpack.c.l.b16 %v6706
        %v6992 = vunpack.c.h.b16 %v6706
        %v6993 = vunpack.c.l.b16 %v6707
        %v6994 = vunpack.c.h.b16 %v6707
        %v6995 = vpack.c.b16 %v6989, %v6987
        %v6996 = vpack.c.b16 %v6990, %v6988
        %v6997 = vpack.c.b16 %v6993, %v6991
        %v6998 = vpack.c.b16 %v6994, %v6992
        %v7004 = vsel %vm2756, %v6982, 0
        %7006 = vmatprep.subr.bf16.mxu0 %v6996
        %7007 = vmatpush1.bf16.msra.mxu0 %v6995
        %7008 = vmatprep.subr.bf16.mxu0 %v6998
        %7009 = vmatpush1.bf16.msra.mxu0 %v6997
        %7010 = vmatprep.subr.bf16.mxu0 0
        %7011 = vmatpush1.bf16.msra.mxu0 0
        %7012 = vmatprep.subr.bf16.mxu0 0
        %7013 = vmatpush1.bf16.msra.mxu0 0
        %7014 = vmatprep.subr.bf16.mxu0 0
        %7015 = vmatpush1.bf16.msra.mxu0 0
        %7016 = vmatprep.subr.bf16.mxu0 0
        %7017 = vmatpush1.bf16.msra.mxu0 0
        %7018 = vmatprep.subr.bf16.mxu0 0
        %7019 = vmatpush1.bf16.msra.mxu0 0
        %7020 = vmatprep.subr.bf16.mxu0 0
        %7021 = vmatpush1.bf16.msra.mxu0 0
        %7022 = vmatprep.subr.bf16.mxu0 0
        %7023 = vmatpush1.bf16.msra.mxu0 0
        %7024 = vmatprep.subr.bf16.mxu0 0
        %7025 = vmatpush1.bf16.msra.mxu0 0
        %7026 = vmatprep.subr.bf16.mxu0 0
        %7027 = vmatpush1.bf16.msra.mxu0 0
        %7028 = vmatprep.subr.bf16.mxu0 0
        %7029 = vmatpush1.bf16.msra.mxu0 0
        %7030 = vmatprep.subr.bf16.mxu0 0
        %7031 = vmatpush1.bf16.msra.mxu0 0
        %7032 = vmatprep.subr.bf16.mxu0 0
        %7033 = vmatpush1.bf16.msra.mxu0 0
        %7034 = vmatprep.subr.bf16.mxu0 0
        %7035 = vmatpush1.bf16.msra.mxu0 0
        %7036 = vmatprep.subr.bf16.mxu0 0
        %7037 = vmatpush1.bf16.msra.mxu0 0
        %7038 = vmatprep.mubr.bf16.mxu0 0
        %7039 = vmatmul.mubr.bf16.gmra.mrb[0].mxu0 %v7004
        %v7040 = vpop.f32.mrb[0].mxu0
        %v7041 = vadd.f32 0.0, %v7040
        %v7042 = vpop.f32.mrb[0].mxu0
        %v7043 = vadd.f32 0.0, %v7042
        %v7044 = vpop.f32.mrb[0].mxu0
        %v7045 = vadd.f32 0.0, %v7044
        %v7046 = vpop.f32.mrb[0].mxu0
        %v7047 = vadd.f32 0.0, %v7046
        %7048 = vdwg.mxu0
        %v7053 = vunpack.c.l.b16 %v6700
        %v7054 = vunpack.c.h.b16 %v6700
        %v7055 = vunpack.c.l.b16 %v6701
        %v7056 = vunpack.c.h.b16 %v6701
        %v7057 = vunpack.c.l.b16 %v6702
        %v7058 = vunpack.c.h.b16 %v6702
        %v7059 = vunpack.c.l.b16 %v6703
        %v7060 = vunpack.c.h.b16 %v6703
        %v7061 = vpack.c.b16 %v7055, %v7053
        %v7062 = vpack.c.b16 %v7056, %v7054
        %v7063 = vpack.c.b16 %v7059, %v7057
        %v7064 = vpack.c.b16 %v7060, %v7058
        %v7070 = vsel %vm2756, %v6853, 0
        %7072 = vmatprep.subr.bf16.mxu0 %v7062
        %7073 = vmatpush1.bf16.msra.mxu0 %v7061
        %7074 = vmatprep.subr.bf16.mxu0 %v7064
        %7075 = vmatpush1.bf16.msra.mxu0 %v7063
        %7076 = vmatprep.subr.bf16.mxu0 0
        %7077 = vmatpush1.bf16.msra.mxu0 0
        %7078 = vmatprep.subr.bf16.mxu0 0
        %7079 = vmatpush1.bf16.msra.mxu0 0
        %7080 = vmatprep.subr.bf16.mxu0 0
        %7081 = vmatpush1.bf16.msra.mxu0 0
        %7082 = vmatprep.subr.bf16.mxu0 0
        %7083 = vmatpush1.bf16.msra.mxu0 0
        %7084 = vmatprep.subr.bf16.mxu0 0
        %7085 = vmatpush1.bf16.msra.mxu0 0
        %7086 = vmatprep.subr.bf16.mxu0 0
        %7087 = vmatpush1.bf16.msra.mxu0 0
        %7088 = vmatprep.subr.bf16.mxu0 0
        %7089 = vmatpush1.bf16.msra.mxu0 0
        %7090 = vmatprep.subr.bf16.mxu0 0
        %7091 = vmatpush1.bf16.msra.mxu0 0
        %7092 = vmatprep.subr.bf16.mxu0 0
        %7093 = vmatpush1.bf16.msra.mxu0 0
        %7094 = vmatprep.subr.bf16.mxu0 0
        %7095 = vmatpush1.bf16.msra.mxu0 0
        %7096 = vmatprep.subr.bf16.mxu0 0
        %7097 = vmatpush1.bf16.msra.mxu0 0
        %7098 = vmatprep.subr.bf16.mxu0 0
        %7099 = vmatpush1.bf16.msra.mxu0 0
        %7100 = vmatprep.subr.bf16.mxu0 0
        %7101 = vmatpush1.bf16.msra.mxu0 0
        %7102 = vmatprep.subr.bf16.mxu0 0
        %7103 = vmatpush1.bf16.msra.mxu0 0
        %7104 = vmatprep.mubr.bf16.mxu0 0
        %7105 = vmatmul.mubr.bf16.gmra.mrb[0].mxu0 %v7070
        %v7106 = vpop.f32.mrb[0].mxu0
        %v7107 = vadd.f32 %v7041, %v7106
        %v7108 = vpop.f32.mrb[0].mxu0
        %v7109 = vadd.f32 %v7043, %v7108
        %v7110 = vpop.f32.mrb[0].mxu0
        %v7111 = vadd.f32 %v7045, %v7110
        %v7112 = vpop.f32.mrb[0].mxu0
        %v7113 = vadd.f32 %v7047, %v7112
        %7114 = vdwg.mxu0
        %7115 = vrot.lane.b32.xlu0 %v6732, 64
        %v7116 = vpop.permute.xlu0 %7115
        %7117 = vrot.lane.b32.xlu0 %v6733, 64
        %v7118 = vpop.permute.xlu0 %7117
        %v7120 = vsel %vm2756, %v7116, 0
        %v7123 = vsel %vm2756, %v7118, 0
        %7125 = vmatprep.subr.bf16.mxu0 0
        %7126 = vmatpush1.bf16.xpose.msra.mxu0 %v7123
        %7127 = vmatprep.subr.bf16.mxu0 0
        %7128 = vmatpush1.bf16.xpose.msra.mxu0 0
        %7129 = vmatprep.subr.bf16.mxu0 0
        %7130 = vmatpush1.bf16.xpose.msra.mxu0 0
        %7131 = vmatprep.subr.bf16.mxu0 0
        %7132 = vmatpush1.bf16.xpose.msra.mxu0 0
        %7133 = vmatprep.subr.bf16.mxu0 0
        %7134 = vmatpush1.bf16.xpose.msra.mxu0 0
        %7135 = vmatprep.subr.bf16.mxu0 0
        %7136 = vmatpush1.bf16.xpose.msra.mxu0 0
        %7137 = vmatprep.subr.bf16.mxu0 0
        %7138 = vmatpush1.bf16.xpose.msra.mxu0 0
        %7139 = vmatprep.subr.bf16.mxu0 0
        %7140 = vmatpush1.bf16.xpose.msra.mxu0 0
        %7141 = vmatprep.subr.bf16.mxu0 0
        %7142 = vmatpush1.bf16.xpose.msra.mxu0 0
        %7143 = vmatprep.subr.bf16.mxu0 0
        %7144 = vmatpush1.bf16.xpose.msra.mxu0 0
        %7145 = vmatprep.subr.bf16.mxu0 0
        %7146 = vmatpush1.bf16.xpose.msra.mxu0 0
        %7147 = vmatprep.subr.bf16.mxu0 0
        %7148 = vmatpush1.bf16.xpose.msra.mxu0 0
        %7149 = vmatprep.subr.bf16.mxu0 0
        %7150 = vmatpush1.bf16.xpose.msra.mxu0 0
        %7151 = vmatprep.subr.bf16.mxu0 0
        %7152 = vmatpush1.bf16.xpose.msra.mxu0 0
        %7153 = vmatprep.subr.bf16.mxu0 0
        %7154 = vmatpush1.bf16.xpose.msra.mxu0 0
        %7155 = vmatprep.subr.bf16.mxu0 0
        %7156 = vmatpush1.bf16.xpose.msra.mxu0 0
        %7157 = vmatprep.mubr.bf16.mxu0 0
        %7158 = vmatmul.mubr.bf16.gmra.mrb[0].mxu0 %v7120
        %v7159 = vpop.f32.mrb[0].mxu0
        %v7160 = vadd.f32 0.0, %v7159
        %v7161 = vpop.f32.mrb[0].mxu0
        %v7162 = vpop.f32.mrb[0].mxu0
        %v7163 = vadd.f32 0.0, %v7162
        %v7164 = vpop.f32.mrb[0].mxu0
        %7165 = vdwg.mxu0
        %v7166 = vmul.f32 %v7160, 0.17677669
        %v7167 = vmul.f32 %v7163, 0.17677669
        %v7168 = vadd.f32 %v7166, %v2810
        %v7169 = vadd.f32 %v7167, %v2810
        %v7170 = vsel %vm2814, %v7168, -inf
        %7171 = vmax.xlane.f32.xlu0 %v7170
        %v7172 = vpop.xlane.xlu0 %7171
        %v7173 = vsel %vm2814, %v7169, -inf
        %7174 = vmax.xlane.f32.xlu0 %v7173
        %v7175 = vpop.xlane.xlu0 %7174
        %v7176 = vsub.f32 %v7168, %v7172
        %v7177 = vsub.f32 %v7169, %v7175
        %v7178 = vmul.f32 %v7176, 1.442695
        %v7179 = vpow.pop %v7178
        %v7180 = vmul.f32 %v7177, 1.442695
        %v7181 = vpow.pop %v7180
        %v7182 = vsel %vm2814, %v7179, 0.0
        %7183 = vadd.xlane.f32.xlu0 %v7182
        %v7184 = vpop.xlane.xlu0 %7183
        %v7185 = vsel %vm2814, %v7181, 0.0
        %7186 = vadd.xlane.f32.xlu0 %v7185
        %v7187 = vpop.xlane.xlu0 %7186
        %v7188 = vrcp.pop %v7184
        %v7189 = vmul.f32 %v7179, %v7188
        %v7190 = vrcp.pop %v7187
        %v7191 = vmul.f32 %v7181, %v7190
        %v7192 = vpack.c.bf16 %v7191, %v7189
        %7193 = vrot.lane.b32.xlu0 %v6734, 64
        %v7194 = vpop.permute.xlu0 %7193
        %v7197 = vsel %vm2814, %v7192, 0
        %7199 = vmatprep.subr.bf16.mxu0 0
        %7200 = vmatpush1.bf16.msra.mxu0 %v7194
        %7201 = vmatprep.subr.bf16.mxu0 0
        %7202 = vmatpush1.bf16.msra.mxu0 0
        %7203 = vmatprep.subr.bf16.mxu0 0
        %7204 = vmatpush1.bf16.msra.mxu0 0
        %7205 = vmatprep.subr.bf16.mxu0 0
        %7206 = vmatpush1.bf16.msra.mxu0 0
        %7207 = vmatprep.subr.bf16.mxu0 0
        %7208 = vmatpush1.bf16.msra.mxu0 0
        %7209 = vmatprep.subr.bf16.mxu0 0
        %7210 = vmatpush1.bf16.msra.mxu0 0
        %7211 = vmatprep.subr.bf16.mxu0 0
        %7212 = vmatpush1.bf16.msra.mxu0 0
        %7213 = vmatprep.subr.bf16.mxu0 0
        %7214 = vmatpush1.bf16.msra.mxu0 0
        %7215 = vmatprep.subr.bf16.mxu0 0
        %7216 = vmatpush1.bf16.msra.mxu0 0
        %7217 = vmatprep.subr.bf16.mxu0 0
        %7218 = vmatpush1.bf16.msra.mxu0 0
        %7219 = vmatprep.subr.bf16.mxu0 0
        %7220 = vmatpush1.bf16.msra.mxu0 0
        %7221 = vmatprep.subr.bf16.mxu0 0
        %7222 = vmatpush1.bf16.msra.mxu0 0
        %7223 = vmatprep.subr.bf16.mxu0 0
        %7224 = vmatpush1.bf16.msra.mxu0 0
        %7225 = vmatprep.subr.bf16.mxu0 0
        %7226 = vmatpush1.bf16.msra.mxu0 0
        %7227 = vmatprep.subr.bf16.mxu0 0
        %7228 = vmatpush1.bf16.msra.mxu0 0
        %7229 = vmatprep.subr.bf16.mxu0 0
        %7230 = vmatpush1.bf16.msra.mxu0 0
        %7231 = vmatprep.mubr.bf16.mxu0 0
        %7232 = vmatmul.mubr.bf16.gmra.mrb[0].mxu0 %v7197
        %v7233 = vpop.f32.mrb[0].mxu0
        %v7234 = vadd.f32 0.0, %v7233
        %v7235 = vpop.f32.mrb[0].mxu0
        %v7236 = vpop.f32.mrb[0].mxu0
        %v7237 = vadd.f32 0.0, %v7236
        %v7238 = vpop.f32.mrb[0].mxu0
        %7239 = vdwg.mxu0
        %v7240 = vpack.c.bf16 %v7237, %v7234
        %v7245 = vunpack.c.l.b16 %v6708
        %v7246 = vunpack.c.h.b16 %v6708
        %v7247 = vunpack.c.l.b16 %v6709
        %v7248 = vunpack.c.h.b16 %v6709
        %v7249 = vunpack.c.l.b16 %v6710
        %v7250 = vunpack.c.h.b16 %v6710
        %v7251 = vunpack.c.l.b16 %v6711
        %v7252 = vunpack.c.h.b16 %v6711
        %v7253 = vpack.c.b16 %v7247, %v7245
        %v7254 = vpack.c.b16 %v7248, %v7246
        %v7255 = vpack.c.b16 %v7251, %v7249
        %v7256 = vpack.c.b16 %v7252, %v7250
        %v7262 = vsel %vm2756, %v7240, 0
        %7264 = vmatprep.subr.bf16.mxu0 %v7254
        %7265 = vmatpush1.bf16.msra.mxu0 %v7253
        %7266 = vmatprep.subr.bf16.mxu0 %v7256
        %7267 = vmatpush1.bf16.msra.mxu0 %v7255
        %7268 = vmatprep.subr.bf16.mxu0 0
        %7269 = vmatpush1.bf16.msra.mxu0 0
        %7270 = vmatprep.subr.bf16.mxu0 0
        %7271 = vmatpush1.bf16.msra.mxu0 0
        %7272 = vmatprep.subr.bf16.mxu0 0
        %7273 = vmatpush1.bf16.msra.mxu0 0
        %7274 = vmatprep.subr.bf16.mxu0 0
        %7275 = vmatpush1.bf16.msra.mxu0 0
        %7276 = vmatprep.subr.bf16.mxu0 0
        %7277 = vmatpush1.bf16.msra.mxu0 0
        %7278 = vmatprep.subr.bf16.mxu0 0
        %7279 = vmatpush1.bf16.msra.mxu0 0
        %7280 = vmatprep.subr.bf16.mxu0 0
        %7281 = vmatpush1.bf16.msra.mxu0 0
        %7282 = vmatprep.subr.bf16.mxu0 0
        %7283 = vmatpush1.bf16.msra.mxu0 0
        %7284 = vmatprep.subr.bf16.mxu0 0
        %7285 = vmatpush1.bf16.msra.mxu0 0
        %7286 = vmatprep.subr.bf16.mxu0 0
        %7287 = vmatpush1.bf16.msra.mxu0 0
        %7288 = vmatprep.subr.bf16.mxu0 0
        %7289 = vmatpush1.bf16.msra.mxu0 0
        %7290 = vmatprep.subr.bf16.mxu0 0
        %7291 = vmatpush1.bf16.msra.mxu0 0
        %7292 = vmatprep.subr.bf16.mxu0 0
        %7293 = vmatpush1.bf16.msra.mxu0 0
        %7294 = vmatprep.subr.bf16.mxu0 0
        %7295 = vmatpush1.bf16.msra.mxu0 0
        %7296 = vmatprep.mubr.bf16.mxu0 0
        %7297 = vmatmul.mubr.bf16.gmra.mrb[0].mxu0 %v7262
        %v7298 = vpop.f32.mrb[0].mxu0
        %v7299 = vadd.f32 0.0, %v7298
        %v7300 = vpop.f32.mrb[0].mxu0
        %v7301 = vadd.f32 0.0, %v7300
        %v7302 = vpop.f32.mrb[0].mxu0
        %v7303 = vadd.f32 0.0, %v7302
        %v7304 = vpop.f32.mrb[0].mxu0
        %v7305 = vadd.f32 0.0, %v7304
        %7306 = vdwg.mxu0
        %v7307 = vadd.f32 %v7107, %v7299
        %v7308 = vadd.f32 %v7109, %v7301
        %v7309 = vadd.f32 %v7111, %v7303
        %v7310 = vadd.f32 %v7113, %v7305
        %7311 = vrot.lane.b32.xlu0 %v6732, 32
        %v7312 = vpop.permute.xlu0 %7311
        %7313 = vrot.lane.b32.xlu0 %v6733, 32
        %v7314 = vpop.permute.xlu0 %7313
        %v7316 = vsel %vm2756, %v7312, 0
        %v7319 = vsel %vm2756, %v7314, 0
        %7321 = vmatprep.subr.bf16.mxu0 0
        %7322 = vmatpush1.bf16.xpose.msra.mxu0 %v7319
        %7323 = vmatprep.subr.bf16.mxu0 0
        %7324 = vmatpush1.bf16.xpose.msra.mxu0 0
        %7325 = vmatprep.subr.bf16.mxu0 0
        %7326 = vmatpush1.bf16.xpose.msra.mxu0 0
        %7327 = vmatprep.subr.bf16.mxu0 0
        %7328 = vmatpush1.bf16.xpose.msra.mxu0 0
        %7329 = vmatprep.subr.bf16.mxu0 0
        %7330 = vmatpush1.bf16.xpose.msra.mxu0 0
        %7331 = vmatprep.subr.bf16.mxu0 0
        %7332 = vmatpush1.bf16.xpose.msra.mxu0 0
        %7333 = vmatprep.subr.bf16.mxu0 0
        %7334 = vmatpush1.bf16.xpose.msra.mxu0 0
        %7335 = vmatprep.subr.bf16.mxu0 0
        %7336 = vmatpush1.bf16.xpose.msra.mxu0 0
        %7337 = vmatprep.subr.bf16.mxu0 0
        %7338 = vmatpush1.bf16.xpose.msra.mxu0 0
        %7339 = vmatprep.subr.bf16.mxu0 0
        %7340 = vmatpush1.bf16.xpose.msra.mxu0 0
        %7341 = vmatprep.subr.bf16.mxu0 0
        %7342 = vmatpush1.bf16.xpose.msra.mxu0 0
        %7343 = vmatprep.subr.bf16.mxu0 0
        %7344 = vmatpush1.bf16.xpose.msra.mxu0 0
        %7345 = vmatprep.subr.bf16.mxu0 0
        %7346 = vmatpush1.bf16.xpose.msra.mxu0 0
        %7347 = vmatprep.subr.bf16.mxu0 0
        %7348 = vmatpush1.bf16.xpose.msra.mxu0 0
        %7349 = vmatprep.subr.bf16.mxu0 0
        %7350 = vmatpush1.bf16.xpose.msra.mxu0 0
        %7351 = vmatprep.subr.bf16.mxu0 0
        %7352 = vmatpush1.bf16.xpose.msra.mxu0 0
        %7353 = vmatprep.mubr.bf16.mxu0 0
        %7354 = vmatmul.mubr.bf16.gmra.mrb[0].mxu0 %v7316
        %v7355 = vpop.f32.mrb[0].mxu0
        %v7356 = vadd.f32 0.0, %v7355
        %v7357 = vpop.f32.mrb[0].mxu0
        %v7358 = vpop.f32.mrb[0].mxu0
        %v7359 = vadd.f32 0.0, %v7358
        %v7360 = vpop.f32.mrb[0].mxu0
        %7361 = vdwg.mxu0
        %v7362 = vmul.f32 %v7356, 0.17677669
        %v7363 = vmul.f32 %v7359, 0.17677669
        %v7364 = vadd.f32 %v7362, %v2810
        %v7365 = vadd.f32 %v7363, %v2810
        %v7366 = vsel %vm2814, %v7364, -inf
        %7367 = vmax.xlane.f32.xlu0 %v7366
        %v7368 = vpop.xlane.xlu0 %7367
        %v7369 = vsel %vm2814, %v7365, -inf
        %7370 = vmax.xlane.f32.xlu0 %v7369
        %v7371 = vpop.xlane.xlu0 %7370
        %v7372 = vsub.f32 %v7364, %v7368
        %v7373 = vsub.f32 %v7365, %v7371
        %v7374 = vmul.f32 %v7372, 1.442695
        %v7375 = vpow.pop %v7374
        %v7376 = vmul.f32 %v7373, 1.442695
        %v7377 = vpow.pop %v7376
        %v7378 = vsel %vm2814, %v7375, 0.0
        %7379 = vadd.xlane.f32.xlu0 %v7378
        %v7380 = vpop.xlane.xlu0 %7379
        %v7381 = vsel %vm2814, %v7377, 0.0
        %7382 = vadd.xlane.f32.xlu0 %v7381
        %v7383 = vpop.xlane.xlu0 %7382
        %v7384 = vrcp.pop %v7380
        %v7385 = vmul.f32 %v7375, %v7384
        %v7386 = vrcp.pop %v7383
        %v7387 = vmul.f32 %v7377, %v7386
        %v7388 = vpack.c.bf16 %v7387, %v7385
        %7389 = vrot.lane.b32.xlu0 %v6734, 32
        %v7390 = vpop.permute.xlu0 %7389
        %v7393 = vsel %vm2814, %v7388, 0
        %7395 = vmatprep.subr.bf16.mxu0 0
        %7396 = vmatpush1.bf16.msra.mxu0 %v7390
        %7397 = vmatprep.subr.bf16.mxu0 0
        %7398 = vmatpush1.bf16.msra.mxu0 0
        %7399 = vmatprep.subr.bf16.mxu0 0
        %7400 = vmatpush1.bf16.msra.mxu0 0
        %7401 = vmatprep.subr.bf16.mxu0 0
        %7402 = vmatpush1.bf16.msra.mxu0 0
        %7403 = vmatprep.subr.bf16.mxu0 0
        %7404 = vmatpush1.bf16.msra.mxu0 0
        %7405 = vmatprep.subr.bf16.mxu0 0
        %7406 = vmatpush1.bf16.msra.mxu0 0
        %7407 = vmatprep.subr.bf16.mxu0 0
        %7408 = vmatpush1.bf16.msra.mxu0 0
        %7409 = vmatprep.subr.bf16.mxu0 0
        %7410 = vmatpush1.bf16.msra.mxu0 0
        %7411 = vmatprep.subr.bf16.mxu0 0
        %7412 = vmatpush1.bf16.msra.mxu0 0
        %7413 = vmatprep.subr.bf16.mxu0 0
        %7414 = vmatpush1.bf16.msra.mxu0 0
        %7415 = vmatprep.subr.bf16.mxu0 0
        %7416 = vmatpush1.bf16.msra.mxu0 0
        %7417 = vmatprep.subr.bf16.mxu0 0
        %7418 = vmatpush1.bf16.msra.mxu0 0
        %7419 = vmatprep.subr.bf16.mxu0 0
        %7420 = vmatpush1.bf16.msra.mxu0 0
        %7421 = vmatprep.subr.bf16.mxu0 0
        %7422 = vmatpush1.bf16.msra.mxu0 0
        %7423 = vmatprep.subr.bf16.mxu0 0
        %7424 = vmatpush1.bf16.msra.mxu0 0
        %7425 = vmatprep.subr.bf16.mxu0 0
        %7426 = vmatpush1.bf16.msra.mxu0 0
        %7427 = vmatprep.mubr.bf16.mxu0 0
        %7428 = vmatmul.mubr.bf16.gmra.mrb[0].mxu0 %v7393
        %v7429 = vpop.f32.mrb[0].mxu0
        %v7430 = vadd.f32 0.0, %v7429
        %v7431 = vpop.f32.mrb[0].mxu0
        %v7432 = vpop.f32.mrb[0].mxu0
        %v7433 = vadd.f32 0.0, %v7432
        %v7434 = vpop.f32.mrb[0].mxu0
        %7435 = vdwg.mxu0
        %v7436 = vpack.c.bf16 %v7433, %v7430
        %v7441 = vunpack.c.l.b16 %v6712
        %v7442 = vunpack.c.h.b16 %v6712
        %v7443 = vunpack.c.l.b16 %v6713
        %v7444 = vunpack.c.h.b16 %v6713
        %v7445 = vunpack.c.l.b16 %v6714
        %v7446 = vunpack.c.h.b16 %v6714
        %v7447 = vunpack.c.l.b16 %v6715
        %v7448 = vunpack.c.h.b16 %v6715
        %v7449 = vpack.c.b16 %v7443, %v7441
        %v7450 = vpack.c.b16 %v7444, %v7442
        %v7451 = vpack.c.b16 %v7447, %v7445
        %v7452 = vpack.c.b16 %v7448, %v7446
        %v7458 = vsel %vm2756, %v7436, 0
        %7460 = vmatprep.subr.bf16.mxu0 %v7450
        %7461 = vmatpush1.bf16.msra.mxu0 %v7449
        %7462 = vmatprep.subr.bf16.mxu0 %v7452
        %7463 = vmatpush1.bf16.msra.mxu0 %v7451
        %7464 = vmatprep.subr.bf16.mxu0 0
        %7465 = vmatpush1.bf16.msra.mxu0 0
        %7466 = vmatprep.subr.bf16.mxu0 0
        %7467 = vmatpush1.bf16.msra.mxu0 0
        %7468 = vmatprep.subr.bf16.mxu0 0
        %7469 = vmatpush1.bf16.msra.mxu0 0
        %7470 = vmatprep.subr.bf16.mxu0 0
        %7471 = vmatpush1.bf16.msra.mxu0 0
        %7472 = vmatprep.subr.bf16.mxu0 0
        %7473 = vmatpush1.bf16.msra.mxu0 0
        %7474 = vmatprep.subr.bf16.mxu0 0
        %7475 = vmatpush1.bf16.msra.mxu0 0
        %7476 = vmatprep.subr.bf16.mxu0 0
        %7477 = vmatpush1.bf16.msra.mxu0 0
        %7478 = vmatprep.subr.bf16.mxu0 0
        %7479 = vmatpush1.bf16.msra.mxu0 0
        %7480 = vmatprep.subr.bf16.mxu0 0
        %7481 = vmatpush1.bf16.msra.mxu0 0
        %7482 = vmatprep.subr.bf16.mxu0 0
        %7483 = vmatpush1.bf16.msra.mxu0 0
        %7484 = vmatprep.subr.bf16.mxu0 0
        %7485 = vmatpush1.bf16.msra.mxu0 0
        %7486 = vmatprep.subr.bf16.mxu0 0
        %7487 = vmatpush1.bf16.msra.mxu0 0
        %7488 = vmatprep.subr.bf16.mxu0 0
        %7489 = vmatpush1.bf16.msra.mxu0 0
        %7490 = vmatprep.subr.bf16.mxu0 0
        %7491 = vmatpush1.bf16.msra.mxu0 0
        %7492 = vmatprep.mubr.bf16.mxu0 0
        %7493 = vmatmul.mubr.bf16.gmra.mrb[0].mxu0 %v7458
        %v7494 = vpop.f32.mrb[0].mxu0
        %v7495 = vadd.f32 0.0, %v7494
        %v7496 = vpop.f32.mrb[0].mxu0
        %v7497 = vadd.f32 0.0, %v7496
        %v7498 = vpop.f32.mrb[0].mxu0
        %v7499 = vadd.f32 0.0, %v7498
        %v7500 = vpop.f32.mrb[0].mxu0
        %v7501 = vadd.f32 0.0, %v7500
        %7502 = vdwg.mxu0
        %v7503 = vadd.f32 %v7307, %v7495
        %v7504 = vadd.f32 %v7308, %v7497
        %v7505 = vadd.f32 %v7309, %v7499
        %v7506 = vadd.f32 %v7310, %v7501
        %v7507 = vpack.c.bf16 %v6197, %v6193
        %v7508 = vpack.c.bf16 %v6446, %v6442
        %v7509 = vpack.c.bf16 %v6697, %v6693
        %v7511 = vsel %vm2756, %v7507, 0
        %v7514 = vsel %vm2756, %v7508, 0
        %7516 = vmatprep.subr.bf16.mxu0 0
        %7517 = vmatpush1.bf16.xpose.msra.mxu0 %v7514
        %7518 = vmatprep.subr.bf16.mxu0 0
        %7519 = vmatpush1.bf16.xpose.msra.mxu0 0
        %7520 = vmatprep.subr.bf16.mxu0 0
        %7521 = vmatpush1.bf16.xpose.msra.mxu0 0
        %7522 = vmatprep.subr.bf16.mxu0 0
        %7523 = vmatpush1.bf16.xpose.msra.mxu0 0
        %7524 = vmatprep.subr.bf16.mxu0 0
        %7525 = vmatpush1.bf16.xpose.msra.mxu0 0
        %7526 = vmatprep.subr.bf16.mxu0 0
        %7527 = vmatpush1.bf16.xpose.msra.mxu0 0
        %7528 = vmatprep.subr.bf16.mxu0 0
        %7529 = vmatpush1.bf16.xpose.msra.mxu0 0
        %7530 = vmatprep.subr.bf16.mxu0 0
        %7531 = vmatpush1.bf16.xpose.msra.mxu0 0
        %7532 = vmatprep.subr.bf16.mxu0 0
        %7533 = vmatpush1.bf16.xpose.msra.mxu0 0
        %7534 = vmatprep.subr.bf16.mxu0 0
        %7535 = vmatpush1.bf16.xpose.msra.mxu0 0
        %7536 = vmatprep.subr.bf16.mxu0 0
        %7537 = vmatpush1.bf16.xpose.msra.mxu0 0
        %7538 = vmatprep.subr.bf16.mxu0 0
        %7539 = vmatpush1.bf16.xpose.msra.mxu0 0
        %7540 = vmatprep.subr.bf16.mxu0 0
        %7541 = vmatpush1.bf16.xpose.msra.mxu0 0
        %7542 = vmatprep.subr.bf16.mxu0 0
        %7543 = vmatpush1.bf16.xpose.msra.mxu0 0
        %7544 = vmatprep.subr.bf16.mxu0 0
        %7545 = vmatpush1.bf16.xpose.msra.mxu0 0
        %7546 = vmatprep.subr.bf16.mxu0 0
        %7547 = vmatpush1.bf16.xpose.msra.mxu0 0
        %7548 = vmatprep.mubr.bf16.mxu0 0
        %7549 = vmatmul.mubr.bf16.gmra.mrb[0].mxu0 %v7511
        %v7550 = vpop.f32.mrb[0].mxu0
        %v7551 = vadd.f32 0.0, %v7550
        %v7552 = vpop.f32.mrb[0].mxu0
        %v7553 = vpop.f32.mrb[0].mxu0
        %v7554 = vadd.f32 0.0, %v7553
        %v7555 = vpop.f32.mrb[0].mxu0
        %7556 = vdwg.mxu0
        %v7557 = vmul.f32 %v7551, 0.17677669
        %v7558 = vmul.f32 %v7554, 0.17677669
        %v7559 = vadd.f32 %v7557, %v2810
        %v7560 = vadd.f32 %v7558, %v2810
        %v7561 = vsel %vm2814, %v7559, -inf
        %7562 = vmax.xlane.f32.xlu0 %v7561
        %v7563 = vpop.xlane.xlu0 %7562
        %v7564 = vsel %vm2814, %v7560, -inf
        %7565 = vmax.xlane.f32.xlu0 %v7564
        %v7566 = vpop.xlane.xlu0 %7565
        %v7567 = vsub.f32 %v7559, %v7563
        %v7568 = vsub.f32 %v7560, %v7566
        %v7569 = vmul.f32 %v7567, 1.442695
        %v7570 = vpow.pop %v7569
        %v7571 = vmul.f32 %v7568, 1.442695
        %v7572 = vpow.pop %v7571
        %v7573 = vsel %vm2814, %v7570, 0.0
        %7574 = vadd.xlane.f32.xlu0 %v7573
        %v7575 = vpop.xlane.xlu0 %7574
        %v7576 = vsel %vm2814, %v7572, 0.0
        %7577 = vadd.xlane.f32.xlu0 %v7576
        %v7578 = vpop.xlane.xlu0 %7577
        %v7579 = vrcp.pop %v7575
        %v7580 = vmul.f32 %v7570, %v7579
        %v7581 = vrcp.pop %v7578
        %v7582 = vmul.f32 %v7572, %v7581
        %v7583 = vpack.c.bf16 %v7582, %v7580
        %v7585 = vsel %vm2814, %v7583, 0
        %7587 = vmatprep.subr.bf16.mxu0 0
        %7588 = vmatpush1.bf16.msra.mxu0 %v7509
        %7589 = vmatprep.subr.bf16.mxu0 0
        %7590 = vmatpush1.bf16.msra.mxu0 0
        %7591 = vmatprep.subr.bf16.mxu0 0
        %7592 = vmatpush1.bf16.msra.mxu0 0
        %7593 = vmatprep.subr.bf16.mxu0 0
        %7594 = vmatpush1.bf16.msra.mxu0 0
        %7595 = vmatprep.subr.bf16.mxu0 0
        %7596 = vmatpush1.bf16.msra.mxu0 0
        %7597 = vmatprep.subr.bf16.mxu0 0
        %7598 = vmatpush1.bf16.msra.mxu0 0
        %7599 = vmatprep.subr.bf16.mxu0 0
        %7600 = vmatpush1.bf16.msra.mxu0 0
        %7601 = vmatprep.subr.bf16.mxu0 0
        %7602 = vmatpush1.bf16.msra.mxu0 0
        %7603 = vmatprep.subr.bf16.mxu0 0
        %7604 = vmatpush1.bf16.msra.mxu0 0
        %7605 = vmatprep.subr.bf16.mxu0 0
        %7606 = vmatpush1.bf16.msra.mxu0 0
        %7607 = vmatprep.subr.bf16.mxu0 0
        %7608 = vmatpush1.bf16.msra.mxu0 0
        %7609 = vmatprep.subr.bf16.mxu0 0
        %7610 = vmatpush1.bf16.msra.mxu0 0
        %7611 = vmatprep.subr.bf16.mxu0 0
        %7612 = vmatpush1.bf16.msra.mxu0 0
        %7613 = vmatprep.subr.bf16.mxu0 0
        %7614 = vmatpush1.bf16.msra.mxu0 0
        %7615 = vmatprep.subr.bf16.mxu0 0
        %7616 = vmatpush1.bf16.msra.mxu0 0
        %7617 = vmatprep.subr.bf16.mxu0 0
        %7618 = vmatpush1.bf16.msra.mxu0 0
        %7619 = vmatprep.mubr.bf16.mxu0 0
        %7620 = vmatmul.mubr.bf16.gmra.mrb[0].mxu0 %v7585
        %v7621 = vpop.f32.mrb[0].mxu0
        %v7622 = vadd.f32 0.0, %v7621
        %v7623 = vpop.f32.mrb[0].mxu0
        %v7624 = vpop.f32.mrb[0].mxu0
        %v7625 = vadd.f32 0.0, %v7624
        %v7626 = vpop.f32.mrb[0].mxu0
        %7627 = vdwg.mxu0
        %v7628 = vpack.c.bf16 %v7625, %v7622
        %v7633 = vunpack.c.l.b16 %v6716
        %v7634 = vunpack.c.h.b16 %v6716
        %v7635 = vunpack.c.l.b16 %v6717
        %v7636 = vunpack.c.h.b16 %v6717
        %v7637 = vunpack.c.l.b16 %v6718
        %v7638 = vunpack.c.h.b16 %v6718
        %v7639 = vunpack.c.l.b16 %v6719
        %v7640 = vunpack.c.h.b16 %v6719
        %v7641 = vpack.c.b16 %v7635, %v7633
        %v7642 = vpack.c.b16 %v7636, %v7634
        %v7643 = vpack.c.b16 %v7639, %v7637
        %v7644 = vpack.c.b16 %v7640, %v7638
        %v7650 = vsel %vm2756, %v7628, 0
        %7652 = vmatprep.subr.bf16.mxu0 %v7642
        %7653 = vmatpush1.bf16.msra.mxu0 %v7641
        %7654 = vmatprep.subr.bf16.mxu0 %v7644
        %7655 = vmatpush1.bf16.msra.mxu0 %v7643
        %7656 = vmatprep.subr.bf16.mxu0 0
        %7657 = vmatpush1.bf16.msra.mxu0 0
        %7658 = vmatprep.subr.bf16.mxu0 0
        %7659 = vmatpush1.bf16.msra.mxu0 0
        %7660 = vmatprep.subr.bf16.mxu0 0
        %7661 = vmatpush1.bf16.msra.mxu0 0
        %7662 = vmatprep.subr.bf16.mxu0 0
        %7663 = vmatpush1.bf16.msra.mxu0 0
        %7664 = vmatprep.subr.bf16.mxu0 0
        %7665 = vmatpush1.bf16.msra.mxu0 0
        %7666 = vmatprep.subr.bf16.mxu0 0
        %7667 = vmatpush1.bf16.msra.mxu0 0
        %7668 = vmatprep.subr.bf16.mxu0 0
        %7669 = vmatpush1.bf16.msra.mxu0 0
        %7670 = vmatprep.subr.bf16.mxu0 0
        %7671 = vmatpush1.bf16.msra.mxu0 0
        %7672 = vmatprep.subr.bf16.mxu0 0
        %7673 = vmatpush1.bf16.msra.mxu0 0
        %7674 = vmatprep.subr.bf16.mxu0 0
        %7675 = vmatpush1.bf16.msra.mxu0 0
        %7676 = vmatprep.subr.bf16.mxu0 0
        %7677 = vmatpush1.bf16.msra.mxu0 0
        %7678 = vmatprep.subr.bf16.mxu0 0
        %7679 = vmatpush1.bf16.msra.mxu0 0
        %7680 = vmatprep.subr.bf16.mxu0 0
        %7681 = vmatpush1.bf16.msra.mxu0 0
        %7682 = vmatprep.subr.bf16.mxu0 0
        %7683 = vmatpush1.bf16.msra.mxu0 0
        %7684 = vmatprep.mubr.bf16.mxu0 0
        %7685 = vmatmul.mubr.bf16.gmra.mrb[0].mxu0 %v7650
        %v7686 = vpop.f32.mrb[0].mxu0
        %v7687 = vadd.f32 0.0, %v7686
        %v7688 = vpop.f32.mrb[0].mxu0
        %v7689 = vadd.f32 0.0, %v7688
        %v7690 = vpop.f32.mrb[0].mxu0
        %v7691 = vadd.f32 0.0, %v7690
        %v7692 = vpop.f32.mrb[0].mxu0
        %v7693 = vadd.f32 0.0, %v7692
        %7694 = vdwg.mxu0
        %v7695 = vadd.f32 %v7503, %v7687
        %v7696 = vadd.f32 %v7504, %v7689
        %v7697 = vadd.f32 %v7505, %v7691
        %v7698 = vadd.f32 %v7506, %v7693
        %7700 = vrot.lane.b32.xlu0 %v7507, 96
        %v7701 = vpop.permute.xlu0 %7700
        %7703 = vrot.lane.b32.xlu0 %v7508, 96
        %v7704 = vpop.permute.xlu0 %7703
        %v7706 = vsel %vm2756, %v7701, 0
        %v7709 = vsel %vm2756, %v7704, 0
        %7711 = vmatprep.subr.bf16.mxu0 0
        %7712 = vmatpush1.bf16.xpose.msra.mxu0 %v7709
        %7713 = vmatprep.subr.bf16.mxu0 0
        %7714 = vmatpush1.bf16.xpose.msra.mxu0 0
        %7715 = vmatprep.subr.bf16.mxu0 0
        %7716 = vmatpush1.bf16.xpose.msra.mxu0 0
        %7717 = vmatprep.subr.bf16.mxu0 0
        %7718 = vmatpush1.bf16.xpose.msra.mxu0 0
        %7719 = vmatprep.subr.bf16.mxu0 0
        %7720 = vmatpush1.bf16.xpose.msra.mxu0 0
        %7721 = vmatprep.subr.bf16.mxu0 0
        %7722 = vmatpush1.bf16.xpose.msra.mxu0 0
        %7723 = vmatprep.subr.bf16.mxu0 0
        %7724 = vmatpush1.bf16.xpose.msra.mxu0 0
        %7725 = vmatprep.subr.bf16.mxu0 0
        %7726 = vmatpush1.bf16.xpose.msra.mxu0 0
        %7727 = vmatprep.subr.bf16.mxu0 0
        %7728 = vmatpush1.bf16.xpose.msra.mxu0 0
        %7729 = vmatprep.subr.bf16.mxu0 0
        %7730 = vmatpush1.bf16.xpose.msra.mxu0 0
        %7731 = vmatprep.subr.bf16.mxu0 0
        %7732 = vmatpush1.bf16.xpose.msra.mxu0 0
        %7733 = vmatprep.subr.bf16.mxu0 0
        %7734 = vmatpush1.bf16.xpose.msra.mxu0 0
        %7735 = vmatprep.subr.bf16.mxu0 0
        %7736 = vmatpush1.bf16.xpose.msra.mxu0 0
        %7737 = vmatprep.subr.bf16.mxu0 0
        %7738 = vmatpush1.bf16.xpose.msra.mxu0 0
        %7739 = vmatprep.subr.bf16.mxu0 0
        %7740 = vmatpush1.bf16.xpose.msra.mxu0 0
        %7741 = vmatprep.subr.bf16.mxu0 0
        %7742 = vmatpush1.bf16.xpose.msra.mxu0 0
        %7743 = vmatprep.mubr.bf16.mxu0 0
        %7744 = vmatmul.mubr.bf16.gmra.mrb[0].mxu0 %v7706
        %v7745 = vpop.f32.mrb[0].mxu0
        %v7746 = vadd.f32 0.0, %v7745
        %v7747 = vpop.f32.mrb[0].mxu0
        %v7748 = vpop.f32.mrb[0].mxu0
        %v7749 = vadd.f32 0.0, %v7748
        %v7750 = vpop.f32.mrb[0].mxu0
        %7751 = vdwg.mxu0
        %v7752 = vmul.f32 %v7746, 0.17677669
        %v7753 = vmul.f32 %v7749, 0.17677669
        %v7754 = vadd.f32 %v7752, %v2810
        %v7755 = vadd.f32 %v7753, %v2810
        %v7756 = vsel %vm2814, %v7754, -inf
        %7757 = vmax.xlane.f32.xlu0 %v7756
        %v7758 = vpop.xlane.xlu0 %7757
        %v7759 = vsel %vm2814, %v7755, -inf
        %7760 = vmax.xlane.f32.xlu0 %v7759
        %v7761 = vpop.xlane.xlu0 %7760
        %v7762 = vsub.f32 %v7754, %v7758
        %v7763 = vsub.f32 %v7755, %v7761
        %v7764 = vmul.f32 %v7762, 1.442695
        %v7765 = vpow.pop %v7764
        %v7766 = vmul.f32 %v7763, 1.442695
        %v7767 = vpow.pop %v7766
        %v7768 = vsel %vm2814, %v7765, 0.0
        %7769 = vadd.xlane.f32.xlu0 %v7768
        %v7770 = vpop.xlane.xlu0 %7769
        %v7771 = vsel %vm2814, %v7767, 0.0
        %7772 = vadd.xlane.f32.xlu0 %v7771
        %v7773 = vpop.xlane.xlu0 %7772
        %v7774 = vrcp.pop %v7770
        %v7775 = vmul.f32 %v7765, %v7774
        %v7776 = vrcp.pop %v7773
        %v7777 = vmul.f32 %v7767, %v7776
        %v7778 = vpack.c.bf16 %v7777, %v7775
        %7780 = vrot.lane.b32.xlu0 %v7509, 96
        %v7781 = vpop.permute.xlu0 %7780
        %v7784 = vsel %vm2814, %v7778, 0
        %7786 = vmatprep.subr.bf16.mxu0 0
        %7787 = vmatpush1.bf16.msra.mxu0 %v7781
        %7788 = vmatprep.subr.bf16.mxu0 0
        %7789 = vmatpush1.bf16.msra.mxu0 0
        %7790 = vmatprep.subr.bf16.mxu0 0
        %7791 = vmatpush1.bf16.msra.mxu0 0
        %7792 = vmatprep.subr.bf16.mxu0 0
        %7793 = vmatpush1.bf16.msra.mxu0 0
        %7794 = vmatprep.subr.bf16.mxu0 0
        %7795 = vmatpush1.bf16.msra.mxu0 0
        %7796 = vmatprep.subr.bf16.mxu0 0
        %7797 = vmatpush1.bf16.msra.mxu0 0
        %7798 = vmatprep.subr.bf16.mxu0 0
        %7799 = vmatpush1.bf16.msra.mxu0 0
        %7800 = vmatprep.subr.bf16.mxu0 0
        %7801 = vmatpush1.bf16.msra.mxu0 0
        %7802 = vmatprep.subr.bf16.mxu0 0
        %7803 = vmatpush1.bf16.msra.mxu0 0
        %7804 = vmatprep.subr.bf16.mxu0 0
        %7805 = vmatpush1.bf16.msra.mxu0 0
        %7806 = vmatprep.subr.bf16.mxu0 0
        %7807 = vmatpush1.bf16.msra.mxu0 0
        %7808 = vmatprep.subr.bf16.mxu0 0
        %7809 = vmatpush1.bf16.msra.mxu0 0
        %7810 = vmatprep.subr.bf16.mxu0 0
        %7811 = vmatpush1.bf16.msra.mxu0 0
        %7812 = vmatprep.subr.bf16.mxu0 0
        %7813 = vmatpush1.bf16.msra.mxu0 0
        %7814 = vmatprep.subr.bf16.mxu0 0
        %7815 = vmatpush1.bf16.msra.mxu0 0
        %7816 = vmatprep.subr.bf16.mxu0 0
        %7817 = vmatpush1.bf16.msra.mxu0 0
        %7818 = vmatprep.mubr.bf16.mxu0 0
        %7819 = vmatmul.mubr.bf16.gmra.mrb[0].mxu0 %v7784
        %v7820 = vpop.f32.mrb[0].mxu0
        %v7821 = vadd.f32 0.0, %v7820
        %v7822 = vpop.f32.mrb[0].mxu0
        %v7823 = vpop.f32.mrb[0].mxu0
        %v7824 = vadd.f32 0.0, %v7823
        %v7825 = vpop.f32.mrb[0].mxu0
        %7826 = vdwg.mxu0
        %v7827 = vpack.c.bf16 %v7824, %v7821
        %v7832 = vunpack.c.l.b16 %v6720
        %v7833 = vunpack.c.h.b16 %v6720
        %v7834 = vunpack.c.l.b16 %v6721
        %v7835 = vunpack.c.h.b16 %v6721
        %v7836 = vunpack.c.l.b16 %v6722
        %v7837 = vunpack.c.h.b16 %v6722
        %v7838 = vunpack.c.l.b16 %v6723
        %v7839 = vunpack.c.h.b16 %v6723
        %v7840 = vpack.c.b16 %v7834, %v7832
        %v7841 = vpack.c.b16 %v7835, %v7833
        %v7842 = vpack.c.b16 %v7838, %v7836
        %v7843 = vpack.c.b16 %v7839, %v7837
        %v7849 = vsel %vm2756, %v7827, 0
        %7851 = vmatprep.subr.bf16.mxu0 %v7841
        %7852 = vmatpush1.bf16.msra.mxu0 %v7840
        %7853 = vmatprep.subr.bf16.mxu0 %v7843
        %7854 = vmatpush1.bf16.msra.mxu0 %v7842
        %7855 = vmatprep.subr.bf16.mxu0 0
        %7856 = vmatpush1.bf16.msra.mxu0 0
        %7857 = vmatprep.subr.bf16.mxu0 0
        %7858 = vmatpush1.bf16.msra.mxu0 0
        %7859 = vmatprep.subr.bf16.mxu0 0
        %7860 = vmatpush1.bf16.msra.mxu0 0
        %7861 = vmatprep.subr.bf16.mxu0 0
        %7862 = vmatpush1.bf16.msra.mxu0 0
        %7863 = vmatprep.subr.bf16.mxu0 0
        %7864 = vmatpush1.bf16.msra.mxu0 0
        %7865 = vmatprep.subr.bf16.mxu0 0
        %7866 = vmatpush1.bf16.msra.mxu0 0
        %7867 = vmatprep.subr.bf16.mxu0 0
        %7868 = vmatpush1.bf16.msra.mxu0 0
        %7869 = vmatprep.subr.bf16.mxu0 0
        %7870 = vmatpush1.bf16.msra.mxu0 0
        %7871 = vmatprep.subr.bf16.mxu0 0
        %7872 = vmatpush1.bf16.msra.mxu0 0
        %7873 = vmatprep.subr.bf16.mxu0 0
        %7874 = vmatpush1.bf16.msra.mxu0 0
        %7875 = vmatprep.subr.bf16.mxu0 0
        %7876 = vmatpush1.bf16.msra.mxu0 0
        %7877 = vmatprep.subr.bf16.mxu0 0
        %7878 = vmatpush1.bf16.msra.mxu0 0
        %7879 = vmatprep.subr.bf16.mxu0 0
        %7880 = vmatpush1.bf16.msra.mxu0 0
        %7881 = vmatprep.subr.bf16.mxu0 0
        %7882 = vmatpush1.bf16.msra.mxu0 0
        %7883 = vmatprep.mubr.bf16.mxu0 0
        %7884 = vmatmul.mubr.bf16.gmra.mrb[0].mxu0 %v7849
        %v7885 = vpop.f32.mrb[0].mxu0
        %v7886 = vadd.f32 0.0, %v7885
        %v7887 = vpop.f32.mrb[0].mxu0
        %v7888 = vadd.f32 0.0, %v7887
        %v7889 = vpop.f32.mrb[0].mxu0
        %v7890 = vadd.f32 0.0, %v7889
        %v7891 = vpop.f32.mrb[0].mxu0
        %v7892 = vadd.f32 0.0, %v7891
        %7893 = vdwg.mxu0
        %v7894 = vadd.f32 %v7695, %v7886
        %v7895 = vadd.f32 %v7696, %v7888
        %v7896 = vadd.f32 %v7697, %v7890
        %v7897 = vadd.f32 %v7698, %v7892
        %7898 = vrot.lane.b32.xlu0 %v7507, 64
        %v7899 = vpop.permute.xlu0 %7898
        %7900 = vrot.lane.b32.xlu0 %v7508, 64
        %v7901 = vpop.permute.xlu0 %7900
        %v7903 = vsel %vm2756, %v7899, 0
        %v7906 = vsel %vm2756, %v7901, 0
        %7908 = vmatprep.subr.bf16.mxu0 0
        %7909 = vmatpush1.bf16.xpose.msra.mxu0 %v7906
        %7910 = vmatprep.subr.bf16.mxu0 0
        %7911 = vmatpush1.bf16.xpose.msra.mxu0 0
        %7912 = vmatprep.subr.bf16.mxu0 0
        %7913 = vmatpush1.bf16.xpose.msra.mxu0 0
        %7914 = vmatprep.subr.bf16.mxu0 0
        %7915 = vmatpush1.bf16.xpose.msra.mxu0 0
        %7916 = vmatprep.subr.bf16.mxu0 0
        %7917 = vmatpush1.bf16.xpose.msra.mxu0 0
        %7918 = vmatprep.subr.bf16.mxu0 0
        %7919 = vmatpush1.bf16.xpose.msra.mxu0 0
        %7920 = vmatprep.subr.bf16.mxu0 0
        %7921 = vmatpush1.bf16.xpose.msra.mxu0 0
        %7922 = vmatprep.subr.bf16.mxu0 0
        %7923 = vmatpush1.bf16.xpose.msra.mxu0 0
        %7924 = vmatprep.subr.bf16.mxu0 0
        %7925 = vmatpush1.bf16.xpose.msra.mxu0 0
        %7926 = vmatprep.subr.bf16.mxu0 0
        %7927 = vmatpush1.bf16.xpose.msra.mxu0 0
        %7928 = vmatprep.subr.bf16.mxu0 0
        %7929 = vmatpush1.bf16.xpose.msra.mxu0 0
        %7930 = vmatprep.subr.bf16.mxu0 0
        %7931 = vmatpush1.bf16.xpose.msra.mxu0 0
        %7932 = vmatprep.subr.bf16.mxu0 0
        %7933 = vmatpush1.bf16.xpose.msra.mxu0 0
        %7934 = vmatprep.subr.bf16.mxu0 0
        %7935 = vmatpush1.bf16.xpose.msra.mxu0 0
        %7936 = vmatprep.subr.bf16.mxu0 0
        %7937 = vmatpush1.bf16.xpose.msra.mxu0 0
        %7938 = vmatprep.subr.bf16.mxu0 0
        %7939 = vmatpush1.bf16.xpose.msra.mxu0 0
        %7940 = vmatprep.mubr.bf16.mxu0 0
        %7941 = vmatmul.mubr.bf16.gmra.mrb[0].mxu0 %v7903
        %v7942 = vpop.f32.mrb[0].mxu0
        %v7943 = vadd.f32 0.0, %v7942
        %v7944 = vpop.f32.mrb[0].mxu0
        %v7945 = vpop.f32.mrb[0].mxu0
        %v7946 = vadd.f32 0.0, %v7945
        %v7947 = vpop.f32.mrb[0].mxu0
        %7948 = vdwg.mxu0
        %v7949 = vmul.f32 %v7943, 0.17677669
        %v7950 = vmul.f32 %v7946, 0.17677669
        %v7951 = vadd.f32 %v7949, %v2810
        %v7952 = vadd.f32 %v7950, %v2810
        %v7953 = vsel %vm2814, %v7951, -inf
        %7954 = vmax.xlane.f32.xlu0 %v7953
        %v7955 = vpop.xlane.xlu0 %7954
        %v7956 = vsel %vm2814, %v7952, -inf
        %7957 = vmax.xlane.f32.xlu0 %v7956
        %v7958 = vpop.xlane.xlu0 %7957
        %v7959 = vsub.f32 %v7951, %v7955
        %v7960 = vsub.f32 %v7952, %v7958
        %v7961 = vmul.f32 %v7959, 1.442695
        %v7962 = vpow.pop %v7961
        %v7963 = vmul.f32 %v7960, 1.442695
        %v7964 = vpow.pop %v7963
        %v7965 = vsel %vm2814, %v7962, 0.0
        %7966 = vadd.xlane.f32.xlu0 %v7965
        %v7967 = vpop.xlane.xlu0 %7966
        %v7968 = vsel %vm2814, %v7964, 0.0
        %7969 = vadd.xlane.f32.xlu0 %v7968
        %v7970 = vpop.xlane.xlu0 %7969
        %v7971 = vrcp.pop %v7967
        %v7972 = vmul.f32 %v7962, %v7971
        %v7973 = vrcp.pop %v7970
        %v7974 = vmul.f32 %v7964, %v7973
        %v7975 = vpack.c.bf16 %v7974, %v7972
        %7976 = vrot.lane.b32.xlu0 %v7509, 64
        %v7977 = vpop.permute.xlu0 %7976
        %v7980 = vsel %vm2814, %v7975, 0
        %7982 = vmatprep.subr.bf16.mxu0 0
        %7983 = vmatpush1.bf16.msra.mxu0 %v7977
        %7984 = vmatprep.subr.bf16.mxu0 0
        %7985 = vmatpush1.bf16.msra.mxu0 0
        %7986 = vmatprep.subr.bf16.mxu0 0
        %7987 = vmatpush1.bf16.msra.mxu0 0
        %7988 = vmatprep.subr.bf16.mxu0 0
        %7989 = vmatpush1.bf16.msra.mxu0 0
        %7990 = vmatprep.subr.bf16.mxu0 0
        %7991 = vmatpush1.bf16.msra.mxu0 0
        %7992 = vmatprep.subr.bf16.mxu0 0
        %7993 = vmatpush1.bf16.msra.mxu0 0
        %7994 = vmatprep.subr.bf16.mxu0 0
        %7995 = vmatpush1.bf16.msra.mxu0 0
        %7996 = vmatprep.subr.bf16.mxu0 0
        %7997 = vmatpush1.bf16.msra.mxu0 0
        %7998 = vmatprep.subr.bf16.mxu0 0
        %7999 = vmatpush1.bf16.msra.mxu0 0
        %8000 = vmatprep.subr.bf16.mxu0 0
        %8001 = vmatpush1.bf16.msra.mxu0 0
        %8002 = vmatprep.subr.bf16.mxu0 0
        %8003 = vmatpush1.bf16.msra.mxu0 0
        %8004 = vmatprep.subr.bf16.mxu0 0
        %8005 = vmatpush1.bf16.msra.mxu0 0
        %8006 = vmatprep.subr.bf16.mxu0 0
        %8007 = vmatpush1.bf16.msra.mxu0 0
        %8008 = vmatprep.subr.bf16.mxu0 0
        %8009 = vmatpush1.bf16.msra.mxu0 0
        %8010 = vmatprep.subr.bf16.mxu0 0
        %8011 = vmatpush1.bf16.msra.mxu0 0
        %8012 = vmatprep.subr.bf16.mxu0 0
        %8013 = vmatpush1.bf16.msra.mxu0 0
        %8014 = vmatprep.mubr.bf16.mxu0 0
        %8015 = vmatmul.mubr.bf16.gmra.mrb[0].mxu0 %v7980
        %v8016 = vpop.f32.mrb[0].mxu0
        %v8017 = vadd.f32 0.0, %v8016
        %v8018 = vpop.f32.mrb[0].mxu0
        %v8019 = vpop.f32.mrb[0].mxu0
        %v8020 = vadd.f32 0.0, %v8019
        %v8021 = vpop.f32.mrb[0].mxu0
        %8022 = vdwg.mxu0
        %v8023 = vpack.c.bf16 %v8020, %v8017
        %v8028 = vunpack.c.l.b16 %v6724
        %v8029 = vunpack.c.h.b16 %v6724
        %v8030 = vunpack.c.l.b16 %v6725
        %v8031 = vunpack.c.h.b16 %v6725
        %v8032 = vunpack.c.l.b16 %v6726
        %v8033 = vunpack.c.h.b16 %v6726
        %v8034 = vunpack.c.l.b16 %v6727
        %v8035 = vunpack.c.h.b16 %v6727
        %v8036 = vpack.c.b16 %v8030, %v8028
        %v8037 = vpack.c.b16 %v8031, %v8029
        %v8038 = vpack.c.b16 %v8034, %v8032
        %v8039 = vpack.c.b16 %v8035, %v8033
        %v8045 = vsel %vm2756, %v8023, 0
        %8047 = vmatprep.subr.bf16.mxu0 %v8037
        %8048 = vmatpush1.bf16.msra.mxu0 %v8036
        %8049 = vmatprep.subr.bf16.mxu0 %v8039
        %8050 = vmatpush1.bf16.msra.mxu0 %v8038
        %8051 = vmatprep.subr.bf16.mxu0 0
        %8052 = vmatpush1.bf16.msra.mxu0 0
        %8053 = vmatprep.subr.bf16.mxu0 0
        %8054 = vmatpush1.bf16.msra.mxu0 0
        %8055 = vmatprep.subr.bf16.mxu0 0
        %8056 = vmatpush1.bf16.msra.mxu0 0
        %8057 = vmatprep.subr.bf16.mxu0 0
        %8058 = vmatpush1.bf16.msra.mxu0 0
        %8059 = vmatprep.subr.bf16.mxu0 0
        %8060 = vmatpush1.bf16.msra.mxu0 0
        %8061 = vmatprep.subr.bf16.mxu0 0
        %8062 = vmatpush1.bf16.msra.mxu0 0
        %8063 = vmatprep.subr.bf16.mxu0 0
        %8064 = vmatpush1.bf16.msra.mxu0 0
        %8065 = vmatprep.subr.bf16.mxu0 0
        %8066 = vmatpush1.bf16.msra.mxu0 0
        %8067 = vmatprep.subr.bf16.mxu0 0
        %8068 = vmatpush1.bf16.msra.mxu0 0
        %8069 = vmatprep.subr.bf16.mxu0 0
        %8070 = vmatpush1.bf16.msra.mxu0 0
        %8071 = vmatprep.subr.bf16.mxu0 0
        %8072 = vmatpush1.bf16.msra.mxu0 0
        %8073 = vmatprep.subr.bf16.mxu0 0
        %8074 = vmatpush1.bf16.msra.mxu0 0
        %8075 = vmatprep.subr.bf16.mxu0 0
        %8076 = vmatpush1.bf16.msra.mxu0 0
        %8077 = vmatprep.subr.bf16.mxu0 0
        %8078 = vmatpush1.bf16.msra.mxu0 0
        %8079 = vmatprep.mubr.bf16.mxu0 0
        %8080 = vmatmul.mubr.bf16.gmra.mrb[0].mxu0 %v8045
        %v8081 = vpop.f32.mrb[0].mxu0
        %v8082 = vadd.f32 0.0, %v8081
        %v8083 = vpop.f32.mrb[0].mxu0
        %v8084 = vadd.f32 0.0, %v8083
        %v8085 = vpop.f32.mrb[0].mxu0
        %v8086 = vadd.f32 0.0, %v8085
        %v8087 = vpop.f32.mrb[0].mxu0
        %v8088 = vadd.f32 0.0, %v8087
        %8089 = vdwg.mxu0
        %v8090 = vadd.f32 %v7894, %v8082
        %v8091 = vadd.f32 %v7895, %v8084
        %v8092 = vadd.f32 %v7896, %v8086
        %v8093 = vadd.f32 %v7897, %v8088
        %8094 = vrot.lane.b32.xlu0 %v7507, 32
        %v8095 = vpop.permute.xlu0 %8094
        %8096 = vrot.lane.b32.xlu0 %v7508, 32
        %v8097 = vpop.permute.xlu0 %8096
        %v8099 = vsel %vm2756, %v8095, 0
        %v8102 = vsel %vm2756, %v8097, 0
        %8104 = vmatprep.subr.bf16.mxu0 0
        %8105 = vmatpush1.bf16.xpose.msra.mxu0 %v8102
        %8106 = vmatprep.subr.bf16.mxu0 0
        %8107 = vmatpush1.bf16.xpose.msra.mxu0 0
        %8108 = vmatprep.subr.bf16.mxu0 0
        %8109 = vmatpush1.bf16.xpose.msra.mxu0 0
        %8110 = vmatprep.subr.bf16.mxu0 0
        %8111 = vmatpush1.bf16.xpose.msra.mxu0 0
        %8112 = vmatprep.subr.bf16.mxu0 0
        %8113 = vmatpush1.bf16.xpose.msra.mxu0 0
        %8114 = vmatprep.subr.bf16.mxu0 0
        %8115 = vmatpush1.bf16.xpose.msra.mxu0 0
        %8116 = vmatprep.subr.bf16.mxu0 0
        %8117 = vmatpush1.bf16.xpose.msra.mxu0 0
        %8118 = vmatprep.subr.bf16.mxu0 0
        %8119 = vmatpush1.bf16.xpose.msra.mxu0 0
        %8120 = vmatprep.subr.bf16.mxu0 0
        %8121 = vmatpush1.bf16.xpose.msra.mxu0 0
        %8122 = vmatprep.subr.bf16.mxu0 0
        %8123 = vmatpush1.bf16.xpose.msra.mxu0 0
        %8124 = vmatprep.subr.bf16.mxu0 0
        %8125 = vmatpush1.bf16.xpose.msra.mxu0 0
        %8126 = vmatprep.subr.bf16.mxu0 0
        %8127 = vmatpush1.bf16.xpose.msra.mxu0 0
        %8128 = vmatprep.subr.bf16.mxu0 0
        %8129 = vmatpush1.bf16.xpose.msra.mxu0 0
        %8130 = vmatprep.subr.bf16.mxu0 0
        %8131 = vmatpush1.bf16.xpose.msra.mxu0 0
        %8132 = vmatprep.subr.bf16.mxu0 0
        %8133 = vmatpush1.bf16.xpose.msra.mxu0 0
        %8134 = vmatprep.subr.bf16.mxu0 0
        %8135 = vmatpush1.bf16.xpose.msra.mxu0 0
        %8136 = vmatprep.mubr.bf16.mxu0 0
        %8137 = vmatmul.mubr.bf16.gmra.mrb[0].mxu0 %v8099
        %v8138 = vpop.f32.mrb[0].mxu0
        %v8139 = vadd.f32 0.0, %v8138
        %v8140 = vpop.f32.mrb[0].mxu0
        %v8141 = vpop.f32.mrb[0].mxu0
        %v8142 = vadd.f32 0.0, %v8141
        %v8143 = vpop.f32.mrb[0].mxu0
        %8144 = vdwg.mxu0
        %v8145 = vmul.f32 %v8139, 0.17677669
        %v8146 = vmul.f32 %v8142, 0.17677669
        %v8147 = vadd.f32 %v8145, %v2810
        %v8148 = vadd.f32 %v8146, %v2810
        %v8149 = vsel %vm2814, %v8147, -inf
        %8150 = vmax.xlane.f32.xlu0 %v8149
        %v8151 = vpop.xlane.xlu0 %8150
        %v8152 = vsel %vm2814, %v8148, -inf
        %8153 = vmax.xlane.f32.xlu0 %v8152
        %v8154 = vpop.xlane.xlu0 %8153
        %v8155 = vsub.f32 %v8147, %v8151
        %v8156 = vsub.f32 %v8148, %v8154
        %v8157 = vmul.f32 %v8155, 1.442695
        %v8158 = vpow.pop %v8157
        %v8159 = vmul.f32 %v8156, 1.442695
        %v8160 = vpow.pop %v8159
        %v8161 = vsel %vm2814, %v8158, 0.0
        %8162 = vadd.xlane.f32.xlu0 %v8161
        %v8163 = vpop.xlane.xlu0 %8162
        %v8164 = vsel %vm2814, %v8160, 0.0
        %8165 = vadd.xlane.f32.xlu0 %v8164
        %v8166 = vpop.xlane.xlu0 %8165
        %v8167 = vrcp.pop %v8163
        %v8168 = vmul.f32 %v8158, %v8167
        %v8169 = vrcp.pop %v8166
        %v8170 = vmul.f32 %v8160, %v8169
        %v8171 = vpack.c.bf16 %v8170, %v8168
        %8172 = vrot.lane.b32.xlu0 %v7509, 32
        %v8173 = vpop.permute.xlu0 %8172
        %v8176 = vsel %vm2814, %v8171, 0
        %8178 = vmatprep.subr.bf16.mxu0 0
        %8179 = vmatpush1.bf16.msra.mxu0 %v8173
        %8180 = vmatprep.subr.bf16.mxu0 0
        %8181 = vmatpush1.bf16.msra.mxu0 0
        %8182 = vmatprep.subr.bf16.mxu0 0
        %8183 = vmatpush1.bf16.msra.mxu0 0
        %8184 = vmatprep.subr.bf16.mxu0 0
        %8185 = vmatpush1.bf16.msra.mxu0 0
        %8186 = vmatprep.subr.bf16.mxu0 0
        %8187 = vmatpush1.bf16.msra.mxu0 0
        %8188 = vmatprep.subr.bf16.mxu0 0
        %8189 = vmatpush1.bf16.msra.mxu0 0
        %8190 = vmatprep.subr.bf16.mxu0 0
        %8191 = vmatpush1.bf16.msra.mxu0 0
        %8192 = vmatprep.subr.bf16.mxu0 0
        %8193 = vmatpush1.bf16.msra.mxu0 0
        %8194 = vmatprep.subr.bf16.mxu0 0
        %8195 = vmatpush1.bf16.msra.mxu0 0
        %8196 = vmatprep.subr.bf16.mxu0 0
        %8197 = vmatpush1.bf16.msra.mxu0 0
        %8198 = vmatprep.subr.bf16.mxu0 0
        %8199 = vmatpush1.bf16.msra.mxu0 0
        %8200 = vmatprep.subr.bf16.mxu0 0
        %8201 = vmatpush1.bf16.msra.mxu0 0
        %8202 = vmatprep.subr.bf16.mxu0 0
        %8203 = vmatpush1.bf16.msra.mxu0 0
        %8204 = vmatprep.subr.bf16.mxu0 0
        %8205 = vmatpush1.bf16.msra.mxu0 0
        %8206 = vmatprep.subr.bf16.mxu0 0
        %8207 = vmatpush1.bf16.msra.mxu0 0
        %8208 = vmatprep.subr.bf16.mxu0 0
        %8209 = vmatpush1.bf16.msra.mxu0 0
        %8210 = vmatprep.mubr.bf16.mxu0 0
        %8211 = vmatmul.mubr.bf16.gmra.mrb[0].mxu0 %v8176
        %v8212 = vpop.f32.mrb[0].mxu0
        %v8213 = vadd.f32 0.0, %v8212
        %v8214 = vpop.f32.mrb[0].mxu0
        %v8215 = vpop.f32.mrb[0].mxu0
        %v8216 = vadd.f32 0.0, %v8215
        %v8217 = vpop.f32.mrb[0].mxu0
        %8218 = vdwg.mxu0
        %v8219 = vpack.c.bf16 %v8216, %v8213
        %v8224 = vunpack.c.l.b16 %v6728
        %v8225 = vunpack.c.h.b16 %v6728
        %v8226 = vunpack.c.l.b16 %v6729
        %v8227 = vunpack.c.h.b16 %v6729
        %v8228 = vunpack.c.l.b16 %v6730
        %v8229 = vunpack.c.h.b16 %v6730
        %v8230 = vunpack.c.l.b16 %v6731
        %v8231 = vunpack.c.h.b16 %v6731
        %v8232 = vpack.c.b16 %v8226, %v8224
        %v8233 = vpack.c.b16 %v8227, %v8225
        %v8234 = vpack.c.b16 %v8230, %v8228
        %v8235 = vpack.c.b16 %v8231, %v8229
        %v8241 = vsel %vm2756, %v8219, 0
        %8243 = vmatprep.subr.bf16.mxu0 %v8233
        %8244 = vmatpush1.bf16.msra.mxu0 %v8232
        %8245 = vmatprep.subr.bf16.mxu0 %v8235
        %8246 = vmatpush1.bf16.msra.mxu0 %v8234
        %8247 = vmatprep.subr.bf16.mxu0 0
        %8248 = vmatpush1.bf16.msra.mxu0 0
        %8249 = vmatprep.subr.bf16.mxu0 0
        %8250 = vmatpush1.bf16.msra.mxu0 0
        %8251 = vmatprep.subr.bf16.mxu0 0
        %8252 = vmatpush1.bf16.msra.mxu0 0
        %8253 = vmatprep.subr.bf16.mxu0 0
        %8254 = vmatpush1.bf16.msra.mxu0 0
        %8255 = vmatprep.subr.bf16.mxu0 0
        %8256 = vmatpush1.bf16.msra.mxu0 0
        %8257 = vmatprep.subr.bf16.mxu0 0
        %8258 = vmatpush1.bf16.msra.mxu0 0
        %8259 = vmatprep.subr.bf16.mxu0 0
        %8260 = vmatpush1.bf16.msra.mxu0 0
        %8261 = vmatprep.subr.bf16.mxu0 0
        %8262 = vmatpush1.bf16.msra.mxu0 0
        %8263 = vmatprep.subr.bf16.mxu0 0
        %8264 = vmatpush1.bf16.msra.mxu0 0
        %8265 = vmatprep.subr.bf16.mxu0 0
        %8266 = vmatpush1.bf16.msra.mxu0 0
        %8267 = vmatprep.subr.bf16.mxu0 0
        %8268 = vmatpush1.bf16.msra.mxu0 0
        %8269 = vmatprep.subr.bf16.mxu0 0
        %8270 = vmatpush1.bf16.msra.mxu0 0
        %8271 = vmatprep.subr.bf16.mxu0 0
        %8272 = vmatpush1.bf16.msra.mxu0 0
        %8273 = vmatprep.subr.bf16.mxu0 0
        %8274 = vmatpush1.bf16.msra.mxu0 0
        %8275 = vmatprep.mubr.bf16.mxu0 0
        %8276 = vmatmul.mubr.bf16.gmra.mrb[0].mxu0 %v8241
        %v8277 = vpop.f32.mrb[0].mxu0
        %v8278 = vadd.f32 0.0, %v8277
        %v8279 = vpop.f32.mrb[0].mxu0
        %v8280 = vadd.f32 0.0, %v8279
        %v8281 = vpop.f32.mrb[0].mxu0
        %v8282 = vadd.f32 0.0, %v8281
        %v8283 = vpop.f32.mrb[0].mxu0
        %v8284 = vadd.f32 0.0, %v8283
        %8285 = vdwg.mxu0
        %v8286 = vadd.f32 %v8090, %v8278
        %v8287 = vadd.f32 %v8091, %v8280
        %v8288 = vadd.f32 %v8092, %v8282
        %v8289 = vadd.f32 %v8093, %v8284
        %s8290 = scalar_lea.vmem [#allocation13], 2
        %v8291 = vld [vmem:[%s8290] sm:$0x3]
        %v8293 = vlaneseq
        %v8294 = vshrl.u32 %v8293, 7
        %v8295 = vsub.s32 0, %v8294
        %v8296 = vrot.slane %v8291, %v8295
        %v8297 = vlaneseq
        %v8298 = vshrl.u32 %v8297, 7
        %v8299 = vsub.s32 1, %v8298
        %v8300 = vrot.slane %v8291, %v8299
        %v8303 = vadd.f32 %v8286, %v8296
        %v8304 = vadd.f32 %v8287, %v8300
        %v8305 = vadd.f32 %v8288, %v8296
        %v8306 = vadd.f32 %v8289, %v8300
        %v8307 = vadd.f32 %v5456, %v8303
        %v8308 = vadd.f32 %v5457, %v8304
        %v8309 = vadd.f32 %v5458, %v8305
        %v8310 = vadd.f32 %v5459, %v8306
        %s8311 = scalar_lea.vmem [#allocation14], 2
        %v8312 = vld [vmem:[%s8311] sm:$0x3]
        %s8313 = scalar_lea.vmem [#allocation16], 2
        %v8314 = vld [vmem:[%s8313] sm:$0x3]
        %v8315 = vadd.f32 %v8307, %v8308
        %8316 = vadd.xlane.f32.xlu0 %v8315
        %v8317 = vpop.xlane.xlu0 %8316
        %v8318 = vadd.f32 %v8309, %v8310
        %8319 = vadd.xlane.f32.xlu0 %v8318
        %v8320 = vpop.xlane.xlu0 %8319
        %v8321 = vmul.f32 %v8317, %v4347
        %v8322 = vmul.f32 %v8320, %v4347
        %v8323 = vsub.f32 %v8307, %v8321
        %v8324 = vsub.f32 %v8308, %v8321
        %v8325 = vsub.f32 %v8309, %v8322
        %v8326 = vsub.f32 %v8310, %v8322
        %v8327 = vmul.f32 %v8323, %v8323
        %v8328 = vmul.f32 %v8324, %v8324
        %v8329 = vmul.f32 %v8325, %v8325
        %v8330 = vmul.f32 %v8326, %v8326
        %v8331 = vadd.f32 %v8327, %v8328
        %8332 = vadd.xlane.f32.xlu0 %v8331
        %v8333 = vpop.xlane.xlu0 %8332
        %v8334 = vadd.f32 %v8329, %v8330
        %8335 = vadd.xlane.f32.xlu0 %v8334
        %v8336 = vpop.xlane.xlu0 %8335
        %v8337 = vmul.f32 %v8333, %v4347
        %v8338 = vmul.f32 %v8336, %v4347
        %v8339 = vadd.f32 %v8337, 1e-05
        %v8340 = vadd.f32 %v8338, 1e-05
        %v8341 = vrsqrt.pop %v8339
        %v8342 = vrsqrt.pop %v8340
        %v8343 = vmul.f32 %v8323, %v8341
        %v8344 = vmul.f32 %v8324, %v8341
        %v8345 = vmul.f32 %v8325, %v8342
        %v8346 = vmul.f32 %v8326, %v8342
        %v8348 = vlaneseq
        %v8349 = vshrl.u32 %v8348, 7
        %v8350 = vsub.s32 0, %v8349
        %v8351 = vrot.slane %v8312, %v8350
        %v8352 = vlaneseq
        %v8353 = vshrl.u32 %v8352, 7
        %v8354 = vsub.s32 1, %v8353
        %v8355 = vrot.slane %v8312, %v8354
        %v8358 = vmul.f32 %v8343, %v8351
        %v8359 = vmul.f32 %v8344, %v8355
        %v8360 = vmul.f32 %v8345, %v8351
        %v8361 = vmul.f32 %v8346, %v8355
        %v8363 = vlaneseq
        %v8364 = vshrl.u32 %v8363, 7
        %v8365 = vsub.s32 0, %v8364
        %v8366 = vrot.slane %v8314, %v8365
        %v8367 = vlaneseq
        %v8368 = vshrl.u32 %v8367, 7
        %v8369 = vsub.s32 1, %v8368
        %v8370 = vrot.slane %v8314, %v8369
        %v8373 = vadd.f32 %v8358, %v8366
        %v8374 = vadd.f32 %v8359, %v8370
        %v8375 = vadd.f32 %v8360, %v8366
        %v8376 = vadd.f32 %v8361, %v8370
        %v8377 = vpack.c.bf16 %v8375, %v8373
        %v8378 = vpack.c.bf16 %v8376, %v8374
        %s8379 = scalar_lea.vmem %s19, 512
        %v8380 = vld [vmem:[%s8379] sm:$0xff]
        %v8381 = vld [vmem:[%s8379 + $0x8] sm:$0xff]
        %v8382 = vld [vmem:[%s8379 + $0x10] sm:$0xff]
        %v8383 = vld [vmem:[%s8379 + $0x18] sm:$0xff]
        %v8384 = vld [vmem:[%s8379 + $0x20] sm:$0xff]
        %v8385 = vld [vmem:[%s8379 + $0x28] sm:$0xff]
        %v8386 = vld [vmem:[%s8379 + $0x30] sm:$0xff]
        %v8387 = vld [vmem:[%s8379 + $0x38] sm:$0xff]
        %v8388 = vld [vmem:[%s8379 + $0x40] sm:$0xff]
        %v8389 = vld [vmem:[%s8379 + $0x48] sm:$0xff]
        %v8390 = vld [vmem:[%s8379 + $0x50] sm:$0xff]
        %v8391 = vld [vmem:[%s8379 + $0x58] sm:$0xff]
        %v8392 = vld [vmem:[%s8379 + $0x60] sm:$0xff]
        %v8393 = vld [vmem:[%s8379 + $0x68] sm:$0xff]
        %v8394 = vld [vmem:[%s8379 + $0x70] sm:$0xff]
        %v8395 = vld [vmem:[%s8379 + $0x78] sm:$0xff]
        %v8396 = vld [vmem:[%s8379 + $0x80] sm:$0xff]
        %v8397 = vld [vmem:[%s8379 + $0x88] sm:$0xff]
        %v8398 = vld [vmem:[%s8379 + $0x90] sm:$0xff]
        %v8399 = vld [vmem:[%s8379 + $0x98] sm:$0xff]
        %v8400 = vld [vmem:[%s8379 + $0xa0] sm:$0xff]
        %v8401 = vld [vmem:[%s8379 + $0xa8] sm:$0xff]
        %v8402 = vld [vmem:[%s8379 + $0xb0] sm:$0xff]
        %v8403 = vld [vmem:[%s8379 + $0xb8] sm:$0xff]
        %v8404 = vld [vmem:[%s8379 + $0xc0] sm:$0xff]
        %v8405 = vld [vmem:[%s8379 + $0xc8] sm:$0xff]
        %v8406 = vld [vmem:[%s8379 + $0xd0] sm:$0xff]
        %v8407 = vld [vmem:[%s8379 + $0xd8] sm:$0xff]
        %v8408 = vld [vmem:[%s8379 + $0xe0] sm:$0xff]
        %v8409 = vld [vmem:[%s8379 + $0xe8] sm:$0xff]
        %v8410 = vld [vmem:[%s8379 + $0xf0] sm:$0xff]
        %v8411 = vld [vmem:[%s8379 + $0xf8] sm:$0xff]
        %v8412 = vld [vmem:[%s8379 + $0x100] sm:$0xff]
        %v8413 = vld [vmem:[%s8379 + $0x108] sm:$0xff]
        %v8414 = vld [vmem:[%s8379 + $0x110] sm:$0xff]
        %v8415 = vld [vmem:[%s8379 + $0x118] sm:$0xff]
        %v8416 = vld [vmem:[%s8379 + $0x120] sm:$0xff]
        %v8417 = vld [vmem:[%s8379 + $0x128] sm:$0xff]
        %v8418 = vld [vmem:[%s8379 + $0x130] sm:$0xff]
        %v8419 = vld [vmem:[%s8379 + $0x138] sm:$0xff]
        %v8420 = vld [vmem:[%s8379 + $0x140] sm:$0xff]
        %v8421 = vld [vmem:[%s8379 + $0x148] sm:$0xff]
        %v8422 = vld [vmem:[%s8379 + $0x150] sm:$0xff]
        %v8423 = vld [vmem:[%s8379 + $0x158] sm:$0xff]
        %v8424 = vld [vmem:[%s8379 + $0x160] sm:$0xff]
        %v8425 = vld [vmem:[%s8379 + $0x168] sm:$0xff]
        %v8426 = vld [vmem:[%s8379 + $0x170] sm:$0xff]
        %v8427 = vld [vmem:[%s8379 + $0x178] sm:$0xff]
        %v8428 = vld [vmem:[%s8379 + $0x180] sm:$0xff]
        %v8429 = vld [vmem:[%s8379 + $0x188] sm:$0xff]
        %v8430 = vld [vmem:[%s8379 + $0x190] sm:$0xff]
        %v8431 = vld [vmem:[%s8379 + $0x198] sm:$0xff]
        %v8432 = vld [vmem:[%s8379 + $0x1a0] sm:$0xff]
        %v8433 = vld [vmem:[%s8379 + $0x1a8] sm:$0xff]
        %v8434 = vld [vmem:[%s8379 + $0x1b0] sm:$0xff]
        %v8435 = vld [vmem:[%s8379 + $0x1b8] sm:$0xff]
        %v8436 = vld [vmem:[%s8379 + $0x1c0] sm:$0xff]
        %v8437 = vld [vmem:[%s8379 + $0x1c8] sm:$0xff]
        %v8438 = vld [vmem:[%s8379 + $0x1d0] sm:$0xff]
        %v8439 = vld [vmem:[%s8379 + $0x1d8] sm:$0xff]
        %v8440 = vld [vmem:[%s8379 + $0x1e0] sm:$0xff]
        %v8441 = vld [vmem:[%s8379 + $0x1e8] sm:$0xff]
        %v8442 = vld [vmem:[%s8379 + $0x1f0] sm:$0xff]
        %v8443 = vld [vmem:[%s8379 + $0x1f8] sm:$0xff]
        %s8444 = scalar_lea.vmem [#allocation17], 4
        %v8445 = vld [vmem:[%s8444] sm:$0xf]
        %v8447 = vlaneseq
        %v8448 = vshrl.u32 %v8447, 7
        %v8449 = vsub.s32 0, %v8448
        %v8450 = vrot.slane %v8445, %v8449
        %v8451 = vlaneseq
        %v8452 = vshrl.u32 %v8451, 7
        %v8453 = vsub.s32 1, %v8452
        %v8454 = vrot.slane %v8445, %v8453
        %v8455 = vlaneseq
        %v8456 = vshrl.u32 %v8455, 7
        %v8457 = vsub.s32 2, %v8456
        %v8458 = vrot.slane %v8445, %v8457
        %v8459 = vlaneseq
        %v8460 = vshrl.u32 %v8459, 7
        %v8461 = vsub.s32 3, %v8460
        %v8462 = vrot.slane %v8445, %v8461
        %v8531 = vunpack.c.l.b16 %v8380
        %v8532 = vunpack.c.h.b16 %v8380
        %v8533 = vunpack.c.l.b16 %v8381
        %v8534 = vunpack.c.h.b16 %v8381
        %v8535 = vunpack.c.l.b16 %v8382
        %v8536 = vunpack.c.h.b16 %v8382
        %v8537 = vunpack.c.l.b16 %v8383
        %v8538 = vunpack.c.h.b16 %v8383
        %v8539 = vunpack.c.l.b16 %v8384
        %v8540 = vunpack.c.h.b16 %v8384
        %v8541 = vunpack.c.l.b16 %v8385
        %v8542 = vunpack.c.h.b16 %v8385
        %v8543 = vunpack.c.l.b16 %v8386
        %v8544 = vunpack.c.h.b16 %v8386
        %v8545 = vunpack.c.l.b16 %v8387
        %v8546 = vunpack.c.h.b16 %v8387
        %v8547 = vunpack.c.l.b16 %v8388
        %v8548 = vunpack.c.h.b16 %v8388
        %v8549 = vunpack.c.l.b16 %v8389
        %v8550 = vunpack.c.h.b16 %v8389
        %v8551 = vunpack.c.l.b16 %v8390
        %v8552 = vunpack.c.h.b16 %v8390
        %v8553 = vunpack.c.l.b16 %v8391
        %v8554 = vunpack.c.h.b16 %v8391
        %v8555 = vunpack.c.l.b16 %v8392
        %v8556 = vunpack.c.h.b16 %v8392
        %v8557 = vunpack.c.l.b16 %v8393
        %v8558 = vunpack.c.h.b16 %v8393
        %v8559 = vunpack.c.l.b16 %v8394
        %v8560 = vunpack.c.h.b16 %v8394
        %v8561 = vunpack.c.l.b16 %v8395
        %v8562 = vunpack.c.h.b16 %v8395
        %v8563 = vunpack.c.l.b16 %v8396
        %v8564 = vunpack.c.h.b16 %v8396
        %v8565 = vunpack.c.l.b16 %v8397
        %v8566 = vunpack.c.h.b16 %v8397
        %v8567 = vunpack.c.l.b16 %v8398
        %v8568 = vunpack.c.h.b16 %v8398
        %v8569 = vunpack.c.l.b16 %v8399
        %v8570 = vunpack.c.h.b16 %v8399
        %v8571 = vunpack.c.l.b16 %v8400
        %v8572 = vunpack.c.h.b16 %v8400
        %v8573 = vunpack.c.l.b16 %v8401
        %v8574 = vunpack.c.h.b16 %v8401
        %v8575 = vunpack.c.l.b16 %v8402
        %v8576 = vunpack.c.h.b16 %v8402
        %v8577 = vunpack.c.l.b16 %v8403
        %v8578 = vunpack.c.h.b16 %v8403
        %v8579 = vunpack.c.l.b16 %v8404
        %v8580 = vunpack.c.h.b16 %v8404
        %v8581 = vunpack.c.l.b16 %v8405
        %v8582 = vunpack.c.h.b16 %v8405
        %v8583 = vunpack.c.l.b16 %v8406
        %v8584 = vunpack.c.h.b16 %v8406
        %v8585 = vunpack.c.l.b16 %v8407
        %v8586 = vunpack.c.h.b16 %v8407
        %v8587 = vunpack.c.l.b16 %v8408
        %v8588 = vunpack.c.h.b16 %v8408
        %v8589 = vunpack.c.l.b16 %v8409
        %v8590 = vunpack.c.h.b16 %v8409
        %v8591 = vunpack.c.l.b16 %v8410
        %v8592 = vunpack.c.h.b16 %v8410
        %v8593 = vunpack.c.l.b16 %v8411
        %v8594 = vunpack.c.h.b16 %v8411
        %v8595 = vunpack.c.l.b16 %v8412
        %v8596 = vunpack.c.h.b16 %v8412
        %v8597 = vunpack.c.l.b16 %v8413
        %v8598 = vunpack.c.h.b16 %v8413
        %v8599 = vunpack.c.l.b16 %v8414
        %v8600 = vunpack.c.h.b16 %v8414
        %v8601 = vunpack.c.l.b16 %v8415
        %v8602 = vunpack.c.h.b16 %v8415
        %v8603 = vunpack.c.l.b16 %v8416
        %v8604 = vunpack.c.h.b16 %v8416
        %v8605 = vunpack.c.l.b16 %v8417
        %v8606 = vunpack.c.h.b16 %v8417
        %v8607 = vunpack.c.l.b16 %v8418
        %v8608 = vunpack.c.h.b16 %v8418
        %v8609 = vunpack.c.l.b16 %v8419
        %v8610 = vunpack.c.h.b16 %v8419
        %v8611 = vunpack.c.l.b16 %v8420
        %v8612 = vunpack.c.h.b16 %v8420
        %v8613 = vunpack.c.l.b16 %v8421
        %v8614 = vunpack.c.h.b16 %v8421
        %v8615 = vunpack.c.l.b16 %v8422
        %v8616 = vunpack.c.h.b16 %v8422
        %v8617 = vunpack.c.l.b16 %v8423
        %v8618 = vunpack.c.h.b16 %v8423
        %v8619 = vunpack.c.l.b16 %v8424
        %v8620 = vunpack.c.h.b16 %v8424
        %v8621 = vunpack.c.l.b16 %v8425
        %v8622 = vunpack.c.h.b16 %v8425
        %v8623 = vunpack.c.l.b16 %v8426
        %v8624 = vunpack.c.h.b16 %v8426
        %v8625 = vunpack.c.l.b16 %v8427
        %v8626 = vunpack.c.h.b16 %v8427
        %v8627 = vunpack.c.l.b16 %v8428
        %v8628 = vunpack.c.h.b16 %v8428
        %v8629 = vunpack.c.l.b16 %v8429
        %v8630 = vunpack.c.h.b16 %v8429
        %v8631 = vunpack.c.l.b16 %v8430
        %v8632 = vunpack.c.h.b16 %v8430
        %v8633 = vunpack.c.l.b16 %v8431
        %v8634 = vunpack.c.h.b16 %v8431
        %v8635 = vunpack.c.l.b16 %v8432
        %v8636 = vunpack.c.h.b16 %v8432
        %v8637 = vunpack.c.l.b16 %v8433
        %v8638 = vunpack.c.h.b16 %v8433
        %v8639 = vunpack.c.l.b16 %v8434
        %v8640 = vunpack.c.h.b16 %v8434
        %v8641 = vunpack.c.l.b16 %v8435
        %v8642 = vunpack.c.h.b16 %v8435
        %v8643 = vunpack.c.l.b16 %v8436
        %v8644 = vunpack.c.h.b16 %v8436
        %v8645 = vunpack.c.l.b16 %v8437
        %v8646 = vunpack.c.h.b16 %v8437
        %v8647 = vunpack.c.l.b16 %v8438
        %v8648 = vunpack.c.h.b16 %v8438
        %v8649 = vunpack.c.l.b16 %v8439
        %v8650 = vunpack.c.h.b16 %v8439
        %v8651 = vunpack.c.l.b16 %v8440
        %v8652 = vunpack.c.h.b16 %v8440
        %v8653 = vunpack.c.l.b16 %v8441
        %v8654 = vunpack.c.h.b16 %v8441
        %v8655 = vunpack.c.l.b16 %v8442
        %v8656 = vunpack.c.h.b16 %v8442
        %v8657 = vunpack.c.l.b16 %v8443
        %v8658 = vunpack.c.h.b16 %v8443
        %v8659 = vpack.c.b16 %v8535, %v8531
        %v8660 = vpack.c.b16 %v8536, %v8532
        %v8661 = vpack.c.b16 %v8537, %v8533
        %v8662 = vpack.c.b16 %v8538, %v8534
        %v8663 = vpack.c.b16 %v8543, %v8539
        %v8664 = vpack.c.b16 %v8544, %v8540
        %v8665 = vpack.c.b16 %v8545, %v8541
        %v8666 = vpack.c.b16 %v8546, %v8542
        %v8667 = vpack.c.b16 %v8551, %v8547
        %v8668 = vpack.c.b16 %v8552, %v8548
        %v8669 = vpack.c.b16 %v8553, %v8549
        %v8670 = vpack.c.b16 %v8554, %v8550
        %v8671 = vpack.c.b16 %v8559, %v8555
        %v8672 = vpack.c.b16 %v8560, %v8556
        %v8673 = vpack.c.b16 %v8561, %v8557
        %v8674 = vpack.c.b16 %v8562, %v8558
        %v8675 = vpack.c.b16 %v8567, %v8563
        %v8676 = vpack.c.b16 %v8568, %v8564
        %v8677 = vpack.c.b16 %v8569, %v8565
        %v8678 = vpack.c.b16 %v8570, %v8566
        %v8679 = vpack.c.b16 %v8575, %v8571
        %v8680 = vpack.c.b16 %v8576, %v8572
        %v8681 = vpack.c.b16 %v8577, %v8573
        %v8682 = vpack.c.b16 %v8578, %v8574
        %v8683 = vpack.c.b16 %v8583, %v8579
        %v8684 = vpack.c.b16 %v8584, %v8580
        %v8685 = vpack.c.b16 %v8585, %v8581
        %v8686 = vpack.c.b16 %v8586, %v8582
        %v8687 = vpack.c.b16 %v8591, %v8587
        %v8688 = vpack.c.b16 %v8592, %v8588
        %v8689 = vpack.c.b16 %v8593, %v8589
        %v8690 = vpack.c.b16 %v8594, %v8590
        %v8691 = vpack.c.b16 %v8599, %v8595
        %v8692 = vpack.c.b16 %v8600, %v8596
        %v8693 = vpack.c.b16 %v8601, %v8597
        %v8694 = vpack.c.b16 %v8602, %v8598
        %v8695 = vpack.c.b16 %v8607, %v8603
        %v8696 = vpack.c.b16 %v8608, %v8604
        %v8697 = vpack.c.b16 %v8609, %v8605
        %v8698 = vpack.c.b16 %v8610, %v8606
        %v8699 = vpack.c.b16 %v8615, %v8611
        %v8700 = vpack.c.b16 %v8616, %v8612
        %v8701 = vpack.c.b16 %v8617, %v8613
        %v8702 = vpack.c.b16 %v8618, %v8614
        %v8703 = vpack.c.b16 %v8623, %v8619
        %v8704 = vpack.c.b16 %v8624, %v8620
        %v8705 = vpack.c.b16 %v8625, %v8621
        %v8706 = vpack.c.b16 %v8626, %v8622
        %v8707 = vpack.c.b16 %v8631, %v8627
        %v8708 = vpack.c.b16 %v8632, %v8628
        %v8709 = vpack.c.b16 %v8633, %v8629
        %v8710 = vpack.c.b16 %v8634, %v8630
        %v8711 = vpack.c.b16 %v8639, %v8635
        %v8712 = vpack.c.b16 %v8640, %v8636
        %v8713 = vpack.c.b16 %v8641, %v8637
        %v8714 = vpack.c.b16 %v8642, %v8638
        %v8715 = vpack.c.b16 %v8647, %v8643
        %v8716 = vpack.c.b16 %v8648, %v8644
        %v8717 = vpack.c.b16 %v8649, %v8645
        %v8718 = vpack.c.b16 %v8650, %v8646
        %v8719 = vpack.c.b16 %v8655, %v8651
        %v8720 = vpack.c.b16 %v8656, %v8652
        %v8721 = vpack.c.b16 %v8657, %v8653
        %v8722 = vpack.c.b16 %v8658, %v8654
        %8787 = vmatprep.subr.bf16.mxu0 %v8660
        %8788 = vmatpush1.bf16.msra.mxu0 %v8659
        %8789 = vmatprep.subr.bf16.mxu0 %v8664
        %8790 = vmatpush1.bf16.msra.mxu0 %v8663
        %8791 = vmatprep.subr.bf16.mxu0 %v8668
        %8792 = vmatpush1.bf16.msra.mxu0 %v8667
        %8793 = vmatprep.subr.bf16.mxu0 %v8672
        %8794 = vmatpush1.bf16.msra.mxu0 %v8671
        %8795 = vmatprep.subr.bf16.mxu0 %v8676
        %8796 = vmatpush1.bf16.msra.mxu0 %v8675
        %8797 = vmatprep.subr.bf16.mxu0 %v8680
        %8798 = vmatpush1.bf16.msra.mxu0 %v8679
        %8799 = vmatprep.subr.bf16.mxu0 %v8684
        %8800 = vmatpush1.bf16.msra.mxu0 %v8683
        %8801 = vmatprep.subr.bf16.mxu0 %v8688
        %8802 = vmatpush1.bf16.msra.mxu0 %v8687
        %8803 = vmatprep.subr.bf16.mxu0 %v8692
        %8804 = vmatpush1.bf16.msra.mxu0 %v8691
        %8805 = vmatprep.subr.bf16.mxu0 %v8696
        %8806 = vmatpush1.bf16.msra.mxu0 %v8695
        %8807 = vmatprep.subr.bf16.mxu0 %v8700
        %8808 = vmatpush1.bf16.msra.mxu0 %v8699
        %8809 = vmatprep.subr.bf16.mxu0 %v8704
        %8810 = vmatpush1.bf16.msra.mxu0 %v8703
        %8811 = vmatprep.subr.bf16.mxu0 %v8708
        %8812 = vmatpush1.bf16.msra.mxu0 %v8707
        %8813 = vmatprep.subr.bf16.mxu0 %v8712
        %8814 = vmatpush1.bf16.msra.mxu0 %v8711
        %8815 = vmatprep.subr.bf16.mxu0 %v8716
        %8816 = vmatpush1.bf16.msra.mxu0 %v8715
        %8817 = vmatprep.subr.bf16.mxu0 %v8720
        %8818 = vmatpush1.bf16.msra.mxu0 %v8719
        %8819 = vmatprep.mubr.bf16.mxu0 %v8378
        %8820 = vmatmul.mubr.bf16.gmra.mrb[0].mxu0 %v8377
        %v8821 = vpop.f32.mrb[0].mxu0
        %v8822 = vadd.f32 %v8450, %v8821
        %v8823 = vpop.f32.mrb[0].mxu0
        %v8824 = vadd.f32 %v8454, %v8823
        %v8825 = vpop.f32.mrb[0].mxu0
        %v8826 = vadd.f32 %v8450, %v8825
        %v8827 = vpop.f32.mrb[0].mxu0
        %v8828 = vadd.f32 %v8454, %v8827
        %8829 = vdwg.mxu0
        %8830 = vmatprep.subr.bf16.mxu0 %v8662
        %8831 = vmatpush1.bf16.msra.mxu0 %v8661
        %8832 = vmatprep.subr.bf16.mxu0 %v8666
        %8833 = vmatpush1.bf16.msra.mxu0 %v8665
        %8834 = vmatprep.subr.bf16.mxu0 %v8670
        %8835 = vmatpush1.bf16.msra.mxu0 %v8669
        %8836 = vmatprep.subr.bf16.mxu0 %v8674
        %8837 = vmatpush1.bf16.msra.mxu0 %v8673
        %8838 = vmatprep.subr.bf16.mxu0 %v8678
        %8839 = vmatpush1.bf16.msra.mxu0 %v8677
        %8840 = vmatprep.subr.bf16.mxu0 %v8682
        %8841 = vmatpush1.bf16.msra.mxu0 %v8681
        %8842 = vmatprep.subr.bf16.mxu0 %v8686
        %8843 = vmatpush1.bf16.msra.mxu0 %v8685
        %8844 = vmatprep.subr.bf16.mxu0 %v8690
        %8845 = vmatpush1.bf16.msra.mxu0 %v8689
        %8846 = vmatprep.subr.bf16.mxu0 %v8694
        %8847 = vmatpush1.bf16.msra.mxu0 %v8693
        %8848 = vmatprep.subr.bf16.mxu0 %v8698
        %8849 = vmatpush1.bf16.msra.mxu0 %v8697
        %8850 = vmatprep.subr.bf16.mxu0 %v8702
        %8851 = vmatpush1.bf16.msra.mxu0 %v8701
        %8852 = vmatprep.subr.bf16.mxu0 %v8706
        %8853 = vmatpush1.bf16.msra.mxu0 %v8705
        %8854 = vmatprep.subr.bf16.mxu0 %v8710
        %8855 = vmatpush1.bf16.msra.mxu0 %v8709
        %8856 = vmatprep.subr.bf16.mxu0 %v8714
        %8857 = vmatpush1.bf16.msra.mxu0 %v8713
        %8858 = vmatprep.subr.bf16.mxu0 %v8718
        %8859 = vmatpush1.bf16.msra.mxu0 %v8717
        %8860 = vmatprep.subr.bf16.mxu0 %v8722
        %8861 = vmatpush1.bf16.msra.mxu0 %v8721
        %8862 = vmatprep.mubr.bf16.mxu0 %v8378
        %8863 = vmatmul.mubr.bf16.gmra.mrb[0].mxu0 %v8377
        %v8864 = vpop.f32.mrb[0].mxu0
        %v8865 = vadd.f32 %v8458, %v8864
        %v8866 = vpop.f32.mrb[0].mxu0
        %v8867 = vadd.f32 %v8462, %v8866
        %v8868 = vpop.f32.mrb[0].mxu0
        %v8869 = vadd.f32 %v8458, %v8868
        %v8870 = vpop.f32.mrb[0].mxu0
        %v8871 = vadd.f32 %v8462, %v8870
        %8872 = vdwg.mxu0
        %v8873 = vmax.f32 %v8822, 0.0
        %v8874 = vmax.f32 %v8824, 0.0
        %v8875 = vmax.f32 %v8865, 0.0
        %v8876 = vmax.f32 %v8867, 0.0
        %v8877 = vmax.f32 %v8826, 0.0
        %v8878 = vmax.f32 %v8828, 0.0
        %v8879 = vmax.f32 %v8869, 0.0
        %v8880 = vmax.f32 %v8871, 0.0
        %v8881 = vpack.c.bf16 %v8877, %v8873
        %v8882 = vpack.c.bf16 %v8878, %v8874
        %v8883 = vpack.c.bf16 %v8879, %v8875
        %v8884 = vpack.c.bf16 %v8880, %v8876
        %s8885 = scalar_lea.vmem %s21, 512
        %v8886 = vld [vmem:[%s8885] sm:$0xff]
        %v8887 = vld [vmem:[%s8885 + $0x8] sm:$0xff]
        %v8888 = vld [vmem:[%s8885 + $0x10] sm:$0xff]
        %v8889 = vld [vmem:[%s8885 + $0x18] sm:$0xff]
        %v8890 = vld [vmem:[%s8885 + $0x20] sm:$0xff]
        %v8891 = vld [vmem:[%s8885 + $0x28] sm:$0xff]
        %v8892 = vld [vmem:[%s8885 + $0x30] sm:$0xff]
        %v8893 = vld [vmem:[%s8885 + $0x38] sm:$0xff]
        %v8894 = vld [vmem:[%s8885 + $0x40] sm:$0xff]
        %v8895 = vld [vmem:[%s8885 + $0x48] sm:$0xff]
        %v8896 = vld [vmem:[%s8885 + $0x50] sm:$0xff]
        %v8897 = vld [vmem:[%s8885 + $0x58] sm:$0xff]
        %v8898 = vld [vmem:[%s8885 + $0x60] sm:$0xff]
        %v8899 = vld [vmem:[%s8885 + $0x68] sm:$0xff]
        %v8900 = vld [vmem:[%s8885 + $0x70] sm:$0xff]
        %v8901 = vld [vmem:[%s8885 + $0x78] sm:$0xff]
        %v8902 = vld [vmem:[%s8885 + $0x80] sm:$0xff]
        %v8903 = vld [vmem:[%s8885 + $0x88] sm:$0xff]
        %v8904 = vld [vmem:[%s8885 + $0x90] sm:$0xff]
        %v8905 = vld [vmem:[%s8885 + $0x98] sm:$0xff]
        %v8906 = vld [vmem:[%s8885 + $0xa0] sm:$0xff]
        %v8907 = vld [vmem:[%s8885 + $0xa8] sm:$0xff]
        %v8908 = vld [vmem:[%s8885 + $0xb0] sm:$0xff]
        %v8909 = vld [vmem:[%s8885 + $0xb8] sm:$0xff]
        %v8910 = vld [vmem:[%s8885 + $0xc0] sm:$0xff]
        %v8911 = vld [vmem:[%s8885 + $0xc8] sm:$0xff]
        %v8912 = vld [vmem:[%s8885 + $0xd0] sm:$0xff]
        %v8913 = vld [vmem:[%s8885 + $0xd8] sm:$0xff]
        %v8914 = vld [vmem:[%s8885 + $0xe0] sm:$0xff]
        %v8915 = vld [vmem:[%s8885 + $0xe8] sm:$0xff]
        %v8916 = vld [vmem:[%s8885 + $0xf0] sm:$0xff]
        %v8917 = vld [vmem:[%s8885 + $0xf8] sm:$0xff]
        %v8918 = vld [vmem:[%s8885 + $0x100] sm:$0xff]
        %v8919 = vld [vmem:[%s8885 + $0x108] sm:$0xff]
        %v8920 = vld [vmem:[%s8885 + $0x110] sm:$0xff]
        %v8921 = vld [vmem:[%s8885 + $0x118] sm:$0xff]
        %v8922 = vld [vmem:[%s8885 + $0x120] sm:$0xff]
        %v8923 = vld [vmem:[%s8885 + $0x128] sm:$0xff]
        %v8924 = vld [vmem:[%s8885 + $0x130] sm:$0xff]
        %v8925 = vld [vmem:[%s8885 + $0x138] sm:$0xff]
        %v8926 = vld [vmem:[%s8885 + $0x140] sm:$0xff]
        %v8927 = vld [vmem:[%s8885 + $0x148] sm:$0xff]
        %v8928 = vld [vmem:[%s8885 + $0x150] sm:$0xff]
        %v8929 = vld [vmem:[%s8885 + $0x158] sm:$0xff]
        %v8930 = vld [vmem:[%s8885 + $0x160] sm:$0xff]
        %v8931 = vld [vmem:[%s8885 + $0x168] sm:$0xff]
        %v8932 = vld [vmem:[%s8885 + $0x170] sm:$0xff]
        %v8933 = vld [vmem:[%s8885 + $0x178] sm:$0xff]
        %v8934 = vld [vmem:[%s8885 + $0x180] sm:$0xff]
        %v8935 = vld [vmem:[%s8885 + $0x188] sm:$0xff]
        %v8936 = vld [vmem:[%s8885 + $0x190] sm:$0xff]
        %v8937 = vld [vmem:[%s8885 + $0x198] sm:$0xff]
        %v8938 = vld [vmem:[%s8885 + $0x1a0] sm:$0xff]
        %v8939 = vld [vmem:[%s8885 + $0x1a8] sm:$0xff]
        %v8940 = vld [vmem:[%s8885 + $0x1b0] sm:$0xff]
        %v8941 = vld [vmem:[%s8885 + $0x1b8] sm:$0xff]
        %v8942 = vld [vmem:[%s8885 + $0x1c0] sm:$0xff]
        %v8943 = vld [vmem:[%s8885 + $0x1c8] sm:$0xff]
        %v8944 = vld [vmem:[%s8885 + $0x1d0] sm:$0xff]
        %v8945 = vld [vmem:[%s8885 + $0x1d8] sm:$0xff]
        %v8946 = vld [vmem:[%s8885 + $0x1e0] sm:$0xff]
        %v8947 = vld [vmem:[%s8885 + $0x1e8] sm:$0xff]
        %v8948 = vld [vmem:[%s8885 + $0x1f0] sm:$0xff]
        %v8949 = vld [vmem:[%s8885 + $0x1f8] sm:$0xff]
        %s8950 = scalar_lea.vmem [#allocation19], 2
        %v8951 = vld [vmem:[%s8950] sm:$0x3]
        %v8953 = vlaneseq
        %v8954 = vshrl.u32 %v8953, 7
        %v8955 = vsub.s32 0, %v8954
        %v8956 = vrot.slane %v8951, %v8955
        %v8957 = vlaneseq
        %v8958 = vshrl.u32 %v8957, 7
        %v8959 = vsub.s32 1, %v8958
        %v8960 = vrot.slane %v8951, %v8959
        %v9027 = vunpack.c.l.b16 %v8886
        %v9028 = vunpack.c.h.b16 %v8886
        %v9029 = vunpack.c.l.b16 %v8887
        %v9030 = vunpack.c.h.b16 %v8887
        %v9031 = vunpack.c.l.b16 %v8888
        %v9032 = vunpack.c.h.b16 %v8888
        %v9033 = vunpack.c.l.b16 %v8889
        %v9034 = vunpack.c.h.b16 %v8889
        %v9035 = vunpack.c.l.b16 %v8890
        %v9036 = vunpack.c.h.b16 %v8890
        %v9037 = vunpack.c.l.b16 %v8891
        %v9038 = vunpack.c.h.b16 %v8891
        %v9039 = vunpack.c.l.b16 %v8892
        %v9040 = vunpack.c.h.b16 %v8892
        %v9041 = vunpack.c.l.b16 %v8893
        %v9042 = vunpack.c.h.b16 %v8893
        %v9043 = vunpack.c.l.b16 %v8894
        %v9044 = vunpack.c.h.b16 %v8894
        %v9045 = vunpack.c.l.b16 %v8895
        %v9046 = vunpack.c.h.b16 %v8895
        %v9047 = vunpack.c.l.b16 %v8896
        %v9048 = vunpack.c.h.b16 %v8896
        %v9049 = vunpack.c.l.b16 %v8897
        %v9050 = vunpack.c.h.b16 %v8897
        %v9051 = vunpack.c.l.b16 %v8898
        %v9052 = vunpack.c.h.b16 %v8898
        %v9053 = vunpack.c.l.b16 %v8899
        %v9054 = vunpack.c.h.b16 %v8899
        %v9055 = vunpack.c.l.b16 %v8900
        %v9056 = vunpack.c.h.b16 %v8900
        %v9057 = vunpack.c.l.b16 %v8901
        %v9058 = vunpack.c.h.b16 %v8901
        %v9059 = vunpack.c.l.b16 %v8902
        %v9060 = vunpack.c.h.b16 %v8902
        %v9061 = vunpack.c.l.b16 %v8903
        %v9062 = vunpack.c.h.b16 %v8903
        %v9063 = vunpack.c.l.b16 %v8904
        %v9064 = vunpack.c.h.b16 %v8904
        %v9065 = vunpack.c.l.b16 %v8905
        %v9066 = vunpack.c.h.b16 %v8905
        %v9067 = vunpack.c.l.b16 %v8906
        %v9068 = vunpack.c.h.b16 %v8906
        %v9069 = vunpack.c.l.b16 %v8907
        %v9070 = vunpack.c.h.b16 %v8907
        %v9071 = vunpack.c.l.b16 %v8908
        %v9072 = vunpack.c.h.b16 %v8908
        %v9073 = vunpack.c.l.b16 %v8909
        %v9074 = vunpack.c.h.b16 %v8909
        %v9075 = vunpack.c.l.b16 %v8910
        %v9076 = vunpack.c.h.b16 %v8910
        %v9077 = vunpack.c.l.b16 %v8911
        %v9078 = vunpack.c.h.b16 %v8911
        %v9079 = vunpack.c.l.b16 %v8912
        %v9080 = vunpack.c.h.b16 %v8912
        %v9081 = vunpack.c.l.b16 %v8913
        %v9082 = vunpack.c.h.b16 %v8913
        %v9083 = vunpack.c.l.b16 %v8914
        %v9084 = vunpack.c.h.b16 %v8914
        %v9085 = vunpack.c.l.b16 %v8915
        %v9086 = vunpack.c.h.b16 %v8915
        %v9087 = vunpack.c.l.b16 %v8916
        %v9088 = vunpack.c.h.b16 %v8916
        %v9089 = vunpack.c.l.b16 %v8917
        %v9090 = vunpack.c.h.b16 %v8917
        %v9091 = vunpack.c.l.b16 %v8918
        %v9092 = vunpack.c.h.b16 %v8918
        %v9093 = vunpack.c.l.b16 %v8919
        %v9094 = vunpack.c.h.b16 %v8919
        %v9095 = vunpack.c.l.b16 %v8920
        %v9096 = vunpack.c.h.b16 %v8920
        %v9097 = vunpack.c.l.b16 %v8921
        %v9098 = vunpack.c.h.b16 %v8921
        %v9099 = vunpack.c.l.b16 %v8922
        %v9100 = vunpack.c.h.b16 %v8922
        %v9101 = vunpack.c.l.b16 %v8923
        %v9102 = vunpack.c.h.b16 %v8923
        %v9103 = vunpack.c.l.b16 %v8924
        %v9104 = vunpack.c.h.b16 %v8924
        %v9105 = vunpack.c.l.b16 %v8925
        %v9106 = vunpack.c.h.b16 %v8925
        %v9107 = vunpack.c.l.b16 %v8926
        %v9108 = vunpack.c.h.b16 %v8926
        %v9109 = vunpack.c.l.b16 %v8927
        %v9110 = vunpack.c.h.b16 %v8927
        %v9111 = vunpack.c.l.b16 %v8928
        %v9112 = vunpack.c.h.b16 %v8928
        %v9113 = vunpack.c.l.b16 %v8929
        %v9114 = vunpack.c.h.b16 %v8929
        %v9115 = vunpack.c.l.b16 %v8930
        %v9116 = vunpack.c.h.b16 %v8930
        %v9117 = vunpack.c.l.b16 %v8931
        %v9118 = vunpack.c.h.b16 %v8931
        %v9119 = vunpack.c.l.b16 %v8932
        %v9120 = vunpack.c.h.b16 %v8932
        %v9121 = vunpack.c.l.b16 %v8933
        %v9122 = vunpack.c.h.b16 %v8933
        %v9123 = vunpack.c.l.b16 %v8934
        %v9124 = vunpack.c.h.b16 %v8934
        %v9125 = vunpack.c.l.b16 %v8935
        %v9126 = vunpack.c.h.b16 %v8935
        %v9127 = vunpack.c.l.b16 %v8936
        %v9128 = vunpack.c.h.b16 %v8936
        %v9129 = vunpack.c.l.b16 %v8937
        %v9130 = vunpack.c.h.b16 %v8937
        %v9131 = vunpack.c.l.b16 %v8938
        %v9132 = vunpack.c.h.b16 %v8938
        %v9133 = vunpack.c.l.b16 %v8939
        %v9134 = vunpack.c.h.b16 %v8939
        %v9135 = vunpack.c.l.b16 %v8940
        %v9136 = vunpack.c.h.b16 %v8940
        %v9137 = vunpack.c.l.b16 %v8941
        %v9138 = vunpack.c.h.b16 %v8941
        %v9139 = vunpack.c.l.b16 %v8942
        %v9140 = vunpack.c.h.b16 %v8942
        %v9141 = vunpack.c.l.b16 %v8943
        %v9142 = vunpack.c.h.b16 %v8943
        %v9143 = vunpack.c.l.b16 %v8944
        %v9144 = vunpack.c.h.b16 %v8944
        %v9145 = vunpack.c.l.b16 %v8945
        %v9146 = vunpack.c.h.b16 %v8945
        %v9147 = vunpack.c.l.b16 %v8946
        %v9148 = vunpack.c.h.b16 %v8946
        %v9149 = vunpack.c.l.b16 %v8947
        %v9150 = vunpack.c.h.b16 %v8947
        %v9151 = vunpack.c.l.b16 %v8948
        %v9152 = vunpack.c.h.b16 %v8948
        %v9153 = vunpack.c.l.b16 %v8949
        %v9154 = vunpack.c.h.b16 %v8949
        %v9155 = vpack.c.b16 %v9029, %v9027
        %v9156 = vpack.c.b16 %v9030, %v9028
        %v9157 = vpack.c.b16 %v9033, %v9031
        %v9158 = vpack.c.b16 %v9034, %v9032
        %v9159 = vpack.c.b16 %v9037, %v9035
        %v9160 = vpack.c.b16 %v9038, %v9036
        %v9161 = vpack.c.b16 %v9041, %v9039
        %v9162 = vpack.c.b16 %v9042, %v9040
        %v9163 = vpack.c.b16 %v9045, %v9043
        %v9164 = vpack.c.b16 %v9046, %v9044
        %v9165 = vpack.c.b16 %v9049, %v9047
        %v9166 = vpack.c.b16 %v9050, %v9048
        %v9167 = vpack.c.b16 %v9053, %v9051
        %v9168 = vpack.c.b16 %v9054, %v9052
        %v9169 = vpack.c.b16 %v9057, %v9055
        %v9170 = vpack.c.b16 %v9058, %v9056
        %v9171 = vpack.c.b16 %v9061, %v9059
        %v9172 = vpack.c.b16 %v9062, %v9060
        %v9173 = vpack.c.b16 %v9065, %v9063
        %v9174 = vpack.c.b16 %v9066, %v9064
        %v9175 = vpack.c.b16 %v9069, %v9067
        %v9176 = vpack.c.b16 %v9070, %v9068
        %v9177 = vpack.c.b16 %v9073, %v9071
        %v9178 = vpack.c.b16 %v9074, %v9072
        %v9179 = vpack.c.b16 %v9077, %v9075
        %v9180 = vpack.c.b16 %v9078, %v9076
        %v9181 = vpack.c.b16 %v9081, %v9079
        %v9182 = vpack.c.b16 %v9082, %v9080
        %v9183 = vpack.c.b16 %v9085, %v9083
        %v9184 = vpack.c.b16 %v9086, %v9084
        %v9185 = vpack.c.b16 %v9089, %v9087
        %v9186 = vpack.c.b16 %v9090, %v9088
        %v9187 = vpack.c.b16 %v9093, %v9091
        %v9188 = vpack.c.b16 %v9094, %v9092
        %v9189 = vpack.c.b16 %v9097, %v9095
        %v9190 = vpack.c.b16 %v9098, %v9096
        %v9191 = vpack.c.b16 %v9101, %v9099
        %v9192 = vpack.c.b16 %v9102, %v9100
        %v9193 = vpack.c.b16 %v9105, %v9103
        %v9194 = vpack.c.b16 %v9106, %v9104
        %v9195 = vpack.c.b16 %v9109, %v9107
        %v9196 = vpack.c.b16 %v9110, %v9108
        %v9197 = vpack.c.b16 %v9113, %v9111
        %v9198 = vpack.c.b16 %v9114, %v9112
        %v9199 = vpack.c.b16 %v9117, %v9115
        %v9200 = vpack.c.b16 %v9118, %v9116
        %v9201 = vpack.c.b16 %v9121, %v9119
        %v9202 = vpack.c.b16 %v9122, %v9120
        %v9203 = vpack.c.b16 %v9125, %v9123
        %v9204 = vpack.c.b16 %v9126, %v9124
        %v9205 = vpack.c.b16 %v9129, %v9127
        %v9206 = vpack.c.b16 %v9130, %v9128
        %v9207 = vpack.c.b16 %v9133, %v9131
        %v9208 = vpack.c.b16 %v9134, %v9132
        %v9209 = vpack.c.b16 %v9137, %v9135
        %v9210 = vpack.c.b16 %v9138, %v9136
        %v9211 = vpack.c.b16 %v9141, %v9139
        %v9212 = vpack.c.b16 %v9142, %v9140
        %v9213 = vpack.c.b16 %v9145, %v9143
        %v9214 = vpack.c.b16 %v9146, %v9144
        %v9215 = vpack.c.b16 %v9149, %v9147
        %v9216 = vpack.c.b16 %v9150, %v9148
        %v9217 = vpack.c.b16 %v9153, %v9151
        %v9218 = vpack.c.b16 %v9154, %v9152
        %9283 = vmatprep.subr.bf16.mxu0 %v9156
        %9284 = vmatpush1.bf16.msra.mxu0 %v9155
        %9285 = vmatprep.subr.bf16.mxu0 %v9158
        %9286 = vmatpush1.bf16.msra.mxu0 %v9157
        %9287 = vmatprep.subr.bf16.mxu0 %v9160
        %9288 = vmatpush1.bf16.msra.mxu0 %v9159
        %9289 = vmatprep.subr.bf16.mxu0 %v9162
        %9290 = vmatpush1.bf16.msra.mxu0 %v9161
        %9291 = vmatprep.subr.bf16.mxu0 %v9164
        %9292 = vmatpush1.bf16.msra.mxu0 %v9163
        %9293 = vmatprep.subr.bf16.mxu0 %v9166
        %9294 = vmatpush1.bf16.msra.mxu0 %v9165
        %9295 = vmatprep.subr.bf16.mxu0 %v9168
        %9296 = vmatpush1.bf16.msra.mxu0 %v9167
        %9297 = vmatprep.subr.bf16.mxu0 %v9170
        %9298 = vmatpush1.bf16.msra.mxu0 %v9169
        %9299 = vmatprep.subr.bf16.mxu0 %v9172
        %9300 = vmatpush1.bf16.msra.mxu0 %v9171
        %9301 = vmatprep.subr.bf16.mxu0 %v9174
        %9302 = vmatpush1.bf16.msra.mxu0 %v9173
        %9303 = vmatprep.subr.bf16.mxu0 %v9176
        %9304 = vmatpush1.bf16.msra.mxu0 %v9175
        %9305 = vmatprep.subr.bf16.mxu0 %v9178
        %9306 = vmatpush1.bf16.msra.mxu0 %v9177
        %9307 = vmatprep.subr.bf16.mxu0 %v9180
        %9308 = vmatpush1.bf16.msra.mxu0 %v9179
        %9309 = vmatprep.subr.bf16.mxu0 %v9182
        %9310 = vmatpush1.bf16.msra.mxu0 %v9181
        %9311 = vmatprep.subr.bf16.mxu0 %v9184
        %9312 = vmatpush1.bf16.msra.mxu0 %v9183
        %9313 = vmatprep.subr.bf16.mxu0 %v9186
        %9314 = vmatpush1.bf16.msra.mxu0 %v9185
        %9315 = vmatprep.mubr.bf16.mxu0 %v8882
        %9316 = vmatmul.mubr.bf16.gmra.mrb[0].mxu0 %v8881
        %v9317 = vpop.f32.mrb[0].mxu0
        %v9318 = vadd.f32 %v8956, %v9317
        %v9319 = vpop.f32.mrb[0].mxu0
        %v9320 = vadd.f32 %v8960, %v9319
        %v9321 = vpop.f32.mrb[0].mxu0
        %v9322 = vadd.f32 %v8956, %v9321
        %v9323 = vpop.f32.mrb[0].mxu0
        %v9324 = vadd.f32 %v8960, %v9323
        %9325 = vdwg.mxu0
        %9326 = vmatprep.subr.bf16.mxu0 %v9188
        %9327 = vmatpush1.bf16.msra.mxu0 %v9187
        %9328 = vmatprep.subr.bf16.mxu0 %v9190
        %9329 = vmatpush1.bf16.msra.mxu0 %v9189
        %9330 = vmatprep.subr.bf16.mxu0 %v9192
        %9331 = vmatpush1.bf16.msra.mxu0 %v9191
        %9332 = vmatprep.subr.bf16.mxu0 %v9194
        %9333 = vmatpush1.bf16.msra.mxu0 %v9193
        %9334 = vmatprep.subr.bf16.mxu0 %v9196
        %9335 = vmatpush1.bf16.msra.mxu0 %v9195
        %9336 = vmatprep.subr.bf16.mxu0 %v9198
        %9337 = vmatpush1.bf16.msra.mxu0 %v9197
        %9338 = vmatprep.subr.bf16.mxu0 %v9200
        %9339 = vmatpush1.bf16.msra.mxu0 %v9199
        %9340 = vmatprep.subr.bf16.mxu0 %v9202
        %9341 = vmatpush1.bf16.msra.mxu0 %v9201
        %9342 = vmatprep.subr.bf16.mxu0 %v9204
        %9343 = vmatpush1.bf16.msra.mxu0 %v9203
        %9344 = vmatprep.subr.bf16.mxu0 %v9206
        %9345 = vmatpush1.bf16.msra.mxu0 %v9205
        %9346 = vmatprep.subr.bf16.mxu0 %v9208
        %9347 = vmatpush1.bf16.msra.mxu0 %v9207
        %9348 = vmatprep.subr.bf16.mxu0 %v9210
        %9349 = vmatpush1.bf16.msra.mxu0 %v9209
        %9350 = vmatprep.subr.bf16.mxu0 %v9212
        %9351 = vmatpush1.bf16.msra.mxu0 %v9211
        %9352 = vmatprep.subr.bf16.mxu0 %v9214
        %9353 = vmatpush1.bf16.msra.mxu0 %v9213
        %9354 = vmatprep.subr.bf16.mxu0 %v9216
        %9355 = vmatpush1.bf16.msra.mxu0 %v9215
        %9356 = vmatprep.subr.bf16.mxu0 %v9218
        %9357 = vmatpush1.bf16.msra.mxu0 %v9217
        %9358 = vmatprep.mubr.bf16.mxu0 %v8884
        %9359 = vmatmul.mubr.bf16.gmra.mrb[0].mxu0 %v8883
        %v9360 = vpop.f32.mrb[0].mxu0
        %v9361 = vadd.f32 %v9318, %v9360
        %v9362 = vpop.f32.mrb[0].mxu0
        %v9363 = vadd.f32 %v9320, %v9362
        %v9364 = vpop.f32.mrb[0].mxu0
        %v9365 = vadd.f32 %v9322, %v9364
        %v9366 = vpop.f32.mrb[0].mxu0
        %v9367 = vadd.f32 %v9324, %v9366
        %9368 = vdwg.mxu0
        %v9369 = vadd.f32 %v8373, %v9361
        %v9370 = vadd.f32 %v8374, %v9363
        %v9371 = vadd.f32 %v8375, %v9365
        %v9372 = vadd.f32 %v8376, %v9367
        %s9373 = scalar_lea.vmem %s23, 2
        %v9374 = vld [vmem:[%s9373] sm:$0x3]
        %s9375 = scalar_lea.vmem [#allocation20], 2
        %v9376 = vld [vmem:[%s9375] sm:$0x3]
        %v9377 = vadd.f32 %v9369, %v9370
        %9378 = vadd.xlane.f32.xlu0 %v9377
        %v9379 = vpop.xlane.xlu0 %9378
        %v9380 = vadd.f32 %v9371, %v9372
        %9381 = vadd.xlane.f32.xlu0 %v9380
        %v9382 = vpop.xlane.xlu0 %9381
        %v9383 = vmul.f32 %v9379, %v4347
        %v9384 = vmul.f32 %v9382, %v4347
        %v9385 = vsub.f32 %v9369, %v9383
        %v9386 = vsub.f32 %v9370, %v9383
        %v9387 = vsub.f32 %v9371, %v9384
        %v9388 = vsub.f32 %v9372, %v9384
        %v9389 = vmul.f32 %v9385, %v9385
        %v9390 = vmul.f32 %v9386, %v9386
        %v9391 = vmul.f32 %v9387, %v9387
        %v9392 = vmul.f32 %v9388, %v9388
        %v9393 = vadd.f32 %v9389, %v9390
        %9394 = vadd.xlane.f32.xlu0 %v9393
        %v9395 = vpop.xlane.xlu0 %9394
        %v9396 = vadd.f32 %v9391, %v9392
        %9397 = vadd.xlane.f32.xlu0 %v9396
        %v9398 = vpop.xlane.xlu0 %9397
        %v9399 = vmul.f32 %v9395, %v4347
        %v9400 = vmul.f32 %v9398, %v4347
        %v9401 = vadd.f32 %v9399, 1e-05
        %v9402 = vadd.f32 %v9400, 1e-05
        %v9403 = vrsqrt.pop %v9401
        %v9404 = vrsqrt.pop %v9402
        %v9405 = vmul.f32 %v9385, %v9403
        %v9406 = vmul.f32 %v9386, %v9403
        %v9407 = vmul.f32 %v9387, %v9404
        %v9408 = vmul.f32 %v9388, %v9404
        %v9410 = vlaneseq
        %v9411 = vshrl.u32 %v9410, 7
        %v9412 = vsub.s32 0, %v9411
        %v9413 = vrot.slane %v9374, %v9412
        %v9414 = vlaneseq
        %v9415 = vshrl.u32 %v9414, 7
        %v9416 = vsub.s32 1, %v9415
        %v9417 = vrot.slane %v9374, %v9416
        %v9420 = vmul.f32 %v9405, %v9413
        %v9421 = vmul.f32 %v9406, %v9417
        %v9422 = vmul.f32 %v9407, %v9413
        %v9423 = vmul.f32 %v9408, %v9417
        %v9425 = vlaneseq
        %v9426 = vshrl.u32 %v9425, 7
        %v9427 = vsub.s32 0, %v9426
        %v9428 = vrot.slane %v9376, %v9427
        %v9429 = vlaneseq
        %v9430 = vshrl.u32 %v9429, 7
        %v9431 = vsub.s32 1, %v9430
        %v9432 = vrot.slane %v9376, %v9431
        %v9435 = vadd.f32 %v9420, %v9428
        %v9436 = vadd.f32 %v9421, %v9432
        %v9437 = vadd.f32 %v9422, %v9428
        %v9438 = vadd.f32 %v9423, %v9432
        %9439 = vst [vmem:[%s996] sm:$0xff] %v9435
        %9440 = vst [vmem:[%s996 + $0x8] sm:$0xff] %v9436
        %9441 = vst [vmem:[%s996 + $0x10] sm:$0xff] %v9437
        %9442 = vst [vmem:[%s996 + $0x18] sm:$0xff] %v9438
        %s9443 = sand.u32 %s598, 1
        %s9444 = scalar_lea.sflag [#allocation4], %s9443
        %s9445 = sand.u32 %s598, 1
        %s9446 = smul.addr %s9445, 32
        %s9447 = scalar_lea.vmem [#allocation22], %s9446
        %p9448 = scmp.lt.s32.totalorder %s50, 1
        %s9449 = scalar_select %p9448, %s50, 1
        %s9450 = smul.addr %s9449, 2
        %s9451 = smul.addr %s9450, 8
        %s9452 = scalar_lea.vmem %s26, %s9451
        // Predicated region
        $region169: #{_token_stage_impl.1} parent=119 // pred_check
          %p9453 = pneg %p608
        $region170: #{_token_stage_impl.1} parent=119 // pred_check_branch
          %9455 = sbr.rel (%p9453) target = $region172
        $region171: #{_token_stage_impl.1} parent=119 // pred_region
          %s9457 = ssub.s32 512, 512
          %9458 = vsyncadd %s9444, %s9457
          %s9459 = smul.addr %s50, 4
          %s9460 = smul.addr %s9459, 128
          %s9461 = scalar_lea.hbm %s25, %s9460
          %s9462 = sshll.u32 %s9447, 4
          %s9463 = int_to_ptr.vmem [resolvable:$true] %s9462
          %9468 = dma.vmem_to_hbm [thread:$0]  %s9463, 512, %s9461, %s9444, 256, 256, 16
        $region172: #{_token_stage_impl.1} parent=119 // pred_fallthru
          _
        // Predicated region
        $region173: #{_token_stage_impl.1} parent=119 // pred_check
          %p9469 = pneg %p634
        $region174: #{_token_stage_impl.1} parent=119 // pred_check_branch
          %9471 = sbr.rel (%p9469) target = $region176
        $region175: #{_token_stage_impl.1} parent=119 // pred_region
          _
        $region176: #{_token_stage_impl.1} parent=119 // pred_fallthru
          _
      $region120: #{_token_stage_impl.1} parent=5 // pred_fallthru
        _
      %p9472 = scmp.le.s32.totalorder 2, %s45
      // Predicated region
      $region177: #{_token_stage_impl.1} parent=5 // pred_check
        %p9473 = pneg %p9472
      $region178: #{_token_stage_impl.1} parent=5 // pred_check_branch
        %9475 = sbr.rel (%p9473) target = $region180
      $region179: #{_token_stage_impl.1} parent=5 // pred_region
        %s9476 = ssub.s32 %s45, 2
        // Predicated region
        $region181: #{_token_stage_impl.1} parent=179 // pred_check
          %p9477 = pneg %p614
        $region182: #{_token_stage_impl.1} parent=179 // pred_check_branch
          %9479 = sbr.rel (%p9477) target = $region184
        $region183: #{_token_stage_impl.1} parent=179 // pred_region
          %s9480 = sand.u32 %s599, 1
          %s9481 = scalar_lea.sflag [#allocation4], %s9480
          %s9482 = sand.u32 %s599, 1
          %s9483 = smul.addr %s9482, 32
          %s9484 = scalar_lea.vmem [#allocation22], %s9483
          %9485 = dma.done %s9481, 512
        $region184: #{_token_stage_impl.1} parent=179 // pred_fallthru
          _
        // Predicated region
        $region185: #{_token_stage_impl.1} parent=179 // pred_check
          %p9486 = pneg %p640
        $region186: #{_token_stage_impl.1} parent=179 // pred_check_branch
          %9488 = sbr.rel (%p9486) target = $region188
        $region187: #{_token_stage_impl.1} parent=179 // pred_region
          %p9489 = scmp.lt.s32.totalorder %s51, 1
          %s9490 = scalar_select %p9489, %s51, 1
          %s9491 = smul.addr %s9490, 2
          %s9492 = smul.addr %s9491, 8
          %s9493 = scalar_lea.vmem %s26, %s9492
        $region188: #{_token_stage_impl.1} parent=179 // pred_fallthru
          _
      $region180: #{_token_stage_impl.1} parent=5 // pred_fallthru
        _
    $region6: #{_token_stage_impl.1} parent=1 // loop_footer
      %s49 = sadd.s32 1, %s45
    $region7: #{_token_stage_impl.1} parent=1 // loop_footer_branch
      %44 = sbr.rel target = $region3
    $region8: #{_token_stage_impl.1} parent=1 // loop_exit
      _
    %9494 = vsyncpa [#allocation3], 1
    %s9495 = scalar_lea.sflag [#allocation3], 1
    %9496 = vsyncpa %s9495, 1
    %9497 = vsyncpa [#allocation6], 1
    %9498 = vsyncpa [#allocation9], 1
    %9499 = vsyncpa [#allocation12], 1
    %9500 = vsyncpa [#allocation15], 1
    %9501 = vsyncpa [#allocation18], 1
    %9502 = vsyncpa [#allocation21], 1
    %9503 = vsyncpa [#allocation4], 1
    %s9504 = scalar_lea.sflag [#allocation4], 1
    %9505 = vsyncpa %s9504, 1

</llo_original>
